<compile_context>
chip_gen: v5e
topology: v5e:2x2
jax: 0.10.0
libtpu: 0.0.40
codegen_flags: <defaults>
</compile_context>

<pallas_src>
import math
import numpy as np
import jax
import jax.numpy as jnp
from jax.experimental import pallas as pl
from jax.experimental.pallas import tpu as pltpu

# ---------------------------------------------------------------------------
# Static network geometry
# ---------------------------------------------------------------------------
K = 5                  # conv kernel
IMG = 24               # input image size
H1 = IMG - K + 1       # 20  conv1 output spatial
P1 = H1 // 2           # 10  after pool1
H2 = P1 - K + 1        # 6   conv2 output spatial
P2 = H2 // 2           # 3   after pool2
C1 = 6                 # conv1 channels
C2 = 16                # conv2 channels
F1, F2, FO = 120, 84, 1
IN_FLAT = IMG * IMG    # 576   input lanes  = (row r, col w)
L1 = H1 * H1 * C1      # 2400  conv1 lanes  = (i, j, o)
L2 = H2 * H2 * C2      # 576   conv2 lanes  = (i2, j2, o2)
NFLAT = C2 * P2 * P2   # 144   PyTorch (C,H,W) flatten size


# ---------------------------------------------------------------------------
# Host-side constant structure tensors (numpy, weight-independent, tiny)
# ---------------------------------------------------------------------------
def _conv_select(out_size, in_size, k):
    # S[i, r, d] = 1 iff r == i + d  (valid conv row/col selection)
    s = np.zeros((out_size, in_size, k), np.float32)
    for i in range(out_size):
        for d in range(k):
            s[i, i + d, d] = 1.0
    return s


def _pool_conv_select(in_size, out_size, k):
    # P[i, i2, d] = 1 iff i in {2*(i2+d), 2*(i2+d)+1}
    # (AvgPool2d(2,2) folded into a following 5x5 valid conv; 0.25 applied later)
    p = np.zeros((in_size, out_size, k), np.float32)
    for i2 in range(out_size):
        for d in range(k):
            for a in range(2):
                i = 2 * (i2 + d) + a
                if i < in_size:
                    p[i, i2, d] = 1.0
    return p


def _fc1_pool_fold():
    # T[(i2*6+j2)*16+o2, m] = 0.25 iff m == o2*9 + (i2//2)*3 + (j2//2)
    # (AvgPool2d(2,2) #2 + PyTorch C,H,W flatten, folded into FC1)
    t = np.zeros((L2, NFLAT), np.float32)
    for i2 in range(H2):
        for j2 in range(H2):
            for o2 in range(C2):
                lane = (i2 * H2 + j2) * C2 + o2
                m = o2 * P2 * P2 + (i2 // 2) * P2 + (j2 // 2)
                t[lane, m] = 0.25
    return t


_S1 = _conv_select(H1, IMG, K)          # (20, 24, 5)   conv1 row/col select
_PS = _pool_conv_select(H1, H2, K)      # (20, 6, 5)    pool1+conv2 row/col select
_T3 = _fc1_pool_fold()                  # (576, 144)    pool2+flatten fold


# ---------------------------------------------------------------------------
# The fused forward kernel: a pure 5-layer MLP over one batch block
# ---------------------------------------------------------------------------
def _blink_kernel(x_ref, w1_ref, b1_ref, w2_ref, b2_ref, w3_ref, b3_ref,
                  w4_ref, b4_ref, w5_ref, b5_ref, o_ref):
    bf = jnp.bfloat16
    x = x_ref[...]                                               # (nb, 576) bf16

    # conv1 + ReLU   (dense-folded; lanes = (i, j, o) = 2400)
    y1 = jnp.dot(x, w1_ref[...], preferred_element_type=jnp.float32)
    y1 = jnp.maximum(y1 + b1_ref[...], 0.0).astype(bf)           # (nb, 2400)

    # AvgPool2d #1 + conv2 + ReLU   (pool folded into w2; lanes = (i2,j2,o2) = 576)
    y2 = jnp.dot(y1, w2_ref[...], preferred_element_type=jnp.float32)
    y2 = jnp.maximum(y2 + b2_ref[...], 0.0).astype(bf)           # (nb, 576)

    # AvgPool2d #2 + flatten + FC1 + ReLU   (pool/flatten folded into w3)
    h1 = jnp.dot(y2, w3_ref[...], preferred_element_type=jnp.float32)
    h1 = jnp.maximum(h1 + b3_ref[...], 0.0).astype(bf)           # (nb, 120)

    # FC2 + ReLU
    h2 = jnp.dot(h1, w4_ref[...], preferred_element_type=jnp.float32)
    h2 = jnp.maximum(h2 + b4_ref[...], 0.0).astype(bf)           # (nb, 84)

    # FC3 + sigmoid (stable tanh form, runs on EUP)
    z = jnp.dot(h2, w5_ref[...], preferred_element_type=jnp.float32) + b5_ref[...]
    # (nb, 1) store: nb/8 masked vst, negligible vs. the ~2k MXU pushes above.
    o_ref[...] = 0.5 * (jnp.tanh(0.5 * z) + 1.0)


# ---------------------------------------------------------------------------
# Host-side weight folding (tiny trace-time einsums on the param arrays)
# ---------------------------------------------------------------------------
def _fold_params(params):
    bf = jnp.bfloat16
    f32 = jnp.float32

    # conv1 -> dense (576, 2400): W1[r*24+w, (i*20+j)*6+o] = c1w[o, r-i, w-j]
    c1w = params['c1w'][:, 0]                                     # (6,5,5)
    w1 = jnp.einsum('ird,jwe,ode->rwijo', _S1, _S1, c1w).reshape(IN_FLAT, L1)
    b1 = jnp.tile(params['c1b'].astype(f32), H1 * H1).reshape(1, L1)

    # pool1 + conv2 -> dense (2400, 576)
    w2 = 0.25 * jnp.einsum('iad,jbe,ocde->ijcabo', _PS, _PS,
                           params['c2w']).reshape(L1, L2)
    b2 = jnp.tile(params['c2b'].astype(f32), H2 * H2).reshape(1, L2)

    # pool2 + flatten + FC1 -> dense (576, 120)
    w3 = jnp.dot(jnp.asarray(_T3), params['f1w'].T)
    b3 = params['f1b'].astype(f32).reshape(1, F1)

    w4 = params['f2w'].T                                          # (120, 84)
    b4 = params['f2b'].astype(f32).reshape(1, F2)
    w5 = params['f3w'].T                                          # (84, 1)
    b5 = params['f3b'].astype(f32).reshape(1, FO)

    return (w1.astype(bf), b1, w2.astype(bf), b2, w3.astype(bf), b3,
            w4.astype(bf), b4, w5.astype(bf), b5)


# ---------------------------------------------------------------------------
# Wrapper: batch-gridded pallas_call
# ---------------------------------------------------------------------------
def blink_forward(x, params):
    """x: (N, 1, 24, 24) float32 NCHW.  params: PyTorch-shaped weights."""
    N = x.shape[0]
    xf = x.reshape(N, IN_FLAT).astype(jnp.bfloat16)               # lane-dense input
    w1, b1, w2, b2, w3, b3, w4, b4, w5, b5 = _fold_params(params)

    # Batch block: big enough to amortize grid overhead / MXU weight loads,
    # capped at 256 so per-block footprint (~20 MiB incl. bf16 weights x2)
    # stays well inside v7x's VMEM and large N keeps >= 2 blocks for its 2 TCs.
    if N >= 512:
        nb = 256
    elif N >= 128:
        nb = 128
    else:
        nb = max(8, ((N + 7) // 8) * 8)
    npad = ((N + nb - 1) // nb) * nb
    xp = jnp.pad(xf, ((0, npad - N), (0, 0)))

    rep = lambda b: (0, 0)   # replicated (weight) blocks: fetched once

    out = pl.pallas_call(
        _blink_kernel,
        out_shape=jax.ShapeDtypeStruct((npad, FO), jnp.float32),
        grid_spec=pltpu.PrefetchScalarGridSpec(
            num_scalar_prefetch=0,
            grid=(npad // nb,),
            in_specs=[
                pl.BlockSpec((nb, IN_FLAT), lambda b: (b, 0)),    # x block
                pl.BlockSpec((IN_FLAT, L1), rep),                 # conv1 dense w
                pl.BlockSpec((1, L1), rep),                       # conv1 bias
                pl.BlockSpec((L1, L2), rep),                      # pool1+conv2 w
                pl.BlockSpec((1, L2), rep),                       # conv2 bias
                pl.BlockSpec((L2, F1), rep),                      # pool2+FC1 w
                pl.BlockSpec((1, F1), rep),                       # FC1 bias
                pl.BlockSpec((F1, F2), rep),                      # FC2 w
                pl.BlockSpec((1, F2), rep),                       # FC2 bias
                pl.BlockSpec((F2, FO), rep),                      # FC3 w
                pl.BlockSpec((1, FO), rep),                       # FC3 bias
            ],
            out_specs=pl.BlockSpec((nb, FO), lambda b: (b, 0)),
        ),
        compiler_params=pltpu.CompilerParams(
            dimension_semantics=("parallel",),
            vmem_limit_bytes=48 * 1024 * 1024),
    )(xp, w1, b1, w2, b2, w3, b3, w4, b4, w5, b5)

    return out[:N]


# ---------------------------------------------------------------------------
# Deterministic parameter init (PyTorch-default-like uniform fan-in bounds)
# ---------------------------------------------------------------------------
def init_params(key):
    def uni(k, shape, fan_in):
        bound = 1.0 / math.sqrt(fan_in)
        return jax.random.uniform(k, shape, jnp.float32, -bound, bound)

    ks = jax.random.split(key, 10)
    return {
        'c1w': uni(ks[0], (6, 1, 5, 5), 1 * 25),
        'c1b': uni(ks[1], (6,), 1 * 25),
        'c2w': uni(ks[2], (16, 6, 5, 5), 6 * 25),
        'c2b': uni(ks[3], (16,), 6 * 25),
        'f1w': uni(ks[4], (120, 144), 144),
        'f1b': uni(ks[5], (120,), 144),
        'f2w': uni(ks[6], (84, 120), 120),
        'f2b': uni(ks[7], (84,), 120),
        'f3w': uni(ks[8], (1, 84), 84),
        'f3b': uni(ks[9], (1,), 84),
    }


# ---------------------------------------------------------------------------
# Pure-JAX f32 reference for correctness check
# ---------------------------------------------------------------------------
def reference_forward(x, p):
    def conv(x, w, b):
        y = jax.lax.conv_general_dilated(
            x, w, (1, 1), 'VALID', dimension_numbers=('NCHW', 'OIHW', 'NCHW'))
        return y + b.reshape(1, -1, 1, 1)

    def pool(x):
        return jax.lax.reduce_window(x, 0.0, jax.lax.add, (1, 1, 2, 2),
                                     (1, 1, 2, 2), 'VALID') / 4.0

    out = pool(jax.nn.relu(conv(x, p['c1w'], p['c1b'])))
    out = pool(jax.nn.relu(conv(out, p['c2w'], p['c2b'])))
    out = out.reshape(out.shape[0], -1)
    out = jax.nn.relu(out @ p['f1w'].T + p['f1b'])
    out = jax.nn.relu(out @ p['f2w'].T + p['f2b'])
    return jax.nn.sigmoid(out @ p['f3w'].T + p['f3b'])


if __name__ == "__main__":
    key = jax.random.PRNGKey(0)
    k_x, k_p = jax.random.split(key)
    x = jax.random.normal(k_x, (2, 1, 24, 24), jnp.float32)   # NCHW, image_size=24
    params = init_params(k_p)

    out = jax.block_until_ready(jax.jit(blink_forward)(x, params))
    ref = jax.block_until_ready(reference_forward(x, params))

    assert out.shape == (2, 1), out.shape
    # bf16 MXU operands (f32 accumulation) -> loosened tolerance vs f32 ref.
    assert jnp.allclose(out, ref, rtol=2e-2, atol=2e-2), (out, ref)
    print("KERNEL_OK")
</pallas_src>

<mosaic_0001>
module attributes {stable_mosaic.version = 11 : i64} {
  func.func @_blink_kernel(%arg0: i32, %arg1: memref<8x576xbf16, #tpu.memory_space<vmem>>, %arg2: memref<576x2400xbf16, #tpu.memory_space<vmem>>, %arg3: memref<1x2400xf32, #tpu.memory_space<vmem>>, %arg4: memref<2400x576xbf16, #tpu.memory_space<vmem>>, %arg5: memref<1x576xf32, #tpu.memory_space<vmem>>, %arg6: memref<576x120xbf16, #tpu.memory_space<vmem>>, %arg7: memref<1x120xf32, #tpu.memory_space<vmem>>, %arg8: memref<120x84xbf16, #tpu.memory_space<vmem>>, %arg9: memref<1x84xf32, #tpu.memory_space<vmem>>, %arg10: memref<84x1xbf16, #tpu.memory_space<vmem>>, %arg11: memref<1x1xf32, #tpu.memory_space<vmem>>, %arg12: memref<8x1xf32, #tpu.memory_space<vmem>>) attributes {dimension_semantics = [#tpu.dimension_semantics<parallel>], iteration_bounds = array<i64: 1>, scalar_prefetch = 0 : i64, scratch_operands = 0 : i64, tpu.core_type = #tpu.core_type<tc>, window_params = [{transform_indices = @transform_0, window_bounds = array<i64: 8, 576>}, {pipeline_mode = #tpu.pipeline_mode<synchronous>, transform_indices = @transform_1, window_bounds = array<i64: 576, 2400>}, {pipeline_mode = #tpu.pipeline_mode<synchronous>, transform_indices = @transform_2, window_bounds = array<i64: 1, 2400>}, {pipeline_mode = #tpu.pipeline_mode<synchronous>, transform_indices = @transform_3, window_bounds = array<i64: 2400, 576>}, {pipeline_mode = #tpu.pipeline_mode<synchronous>, transform_indices = @transform_4, window_bounds = array<i64: 1, 576>}, {pipeline_mode = #tpu.pipeline_mode<synchronous>, transform_indices = @transform_5, window_bounds = array<i64: 576, 120>}, {pipeline_mode = #tpu.pipeline_mode<synchronous>, transform_indices = @transform_6, window_bounds = array<i64: 1, 120>}, {pipeline_mode = #tpu.pipeline_mode<synchronous>, transform_indices = @transform_7, window_bounds = array<i64: 120, 84>}, {pipeline_mode = #tpu.pipeline_mode<synchronous>, transform_indices = @transform_8, window_bounds = array<i64: 1, 84>}, {pipeline_mode = #tpu.pipeline_mode<synchronous>, transform_indices = @transform_9, window_bounds = array<i64: 84, 1>}, {pipeline_mode = #tpu.pipeline_mode<synchronous>, transform_indices = @transform_10, window_bounds = array<i64: 1, 1>}, {transform_indices = @transform_11, window_bounds = array<i64: 8, 1>}]} {
    %c0 = arith.constant 0 : index
    %c0_0 = arith.constant 0 : index
    %0 = vector.load %arg1[%c0, %c0_0] : memref<8x576xbf16, #tpu.memory_space<vmem>>, vector<8x576xbf16>
    %c0_1 = arith.constant 0 : index
    %c0_2 = arith.constant 0 : index
    %1 = vector.load %arg2[%c0_1, %c0_2] : memref<576x2400xbf16, #tpu.memory_space<vmem>>, vector<576x2400xbf16>
    %cst = arith.constant dense<0.000000e+00> : vector<8x2400xf32>
    %2 = tpu.matmul %0, %1, %cst {dimension_numbers = #tpu.dot_dimension_numbers<[1], [0], [0], [1], [0, 0, 1, 1], [], []>} : vector<8x576xbf16>, vector<576x2400xbf16>, vector<8x2400xf32> -> vector<8x2400xf32>
    %c0_3 = arith.constant 0 : index
    %c0_4 = arith.constant 0 : index
    %3 = vector.load %arg3[%c0_3, %c0_4] : memref<1x2400xf32, #tpu.memory_space<vmem>>, vector<1x2400xf32>
    %4 = vector.broadcast %3 : vector<1x2400xf32> to vector<8x2400xf32>
    %5 = arith.addf %2, %4 : vector<8x2400xf32>
    %cst_5 = arith.constant 0.000000e+00 : f32
    %6 = vector.broadcast %cst_5 : f32 to vector<8x2400xf32>
    %7 = arith.maximumf %5, %6 : vector<8x2400xf32>
    %8 = arith.truncf %7 : vector<8x2400xf32> to vector<8x2400xbf16>
    %c0_6 = arith.constant 0 : index
    %c0_7 = arith.constant 0 : index
    %9 = vector.load %arg4[%c0_6, %c0_7] : memref<2400x576xbf16, #tpu.memory_space<vmem>>, vector<2400x576xbf16>
    %cst_8 = arith.constant dense<0.000000e+00> : vector<8x576xf32>
    %10 = tpu.matmul %8, %9, %cst_8 {dimension_numbers = #tpu.dot_dimension_numbers<[1], [0], [0], [1], [0, 0, 1, 1], [], []>} : vector<8x2400xbf16>, vector<2400x576xbf16>, vector<8x576xf32> -> vector<8x576xf32>
    %c0_9 = arith.constant 0 : index
    %c0_10 = arith.constant 0 : index
    %11 = vector.load %arg5[%c0_9, %c0_10] : memref<1x576xf32, #tpu.memory_space<vmem>>, vector<1x576xf32>
    %12 = vector.broadcast %11 : vector<1x576xf32> to vector<8x576xf32>
    %13 = arith.addf %10, %12 : vector<8x576xf32>
    %cst_11 = arith.constant 0.000000e+00 : f32
    %14 = vector.broadcast %cst_11 : f32 to vector<8x576xf32>
    %15 = arith.maximumf %13, %14 : vector<8x576xf32>
    %16 = arith.truncf %15 : vector<8x576xf32> to vector<8x576xbf16>
    %c0_12 = arith.constant 0 : index
    %c0_13 = arith.constant 0 : index
    %17 = vector.load %arg6[%c0_12, %c0_13] : memref<576x120xbf16, #tpu.memory_space<vmem>>, vector<576x120xbf16>
    %cst_14 = arith.constant dense<0.000000e+00> : vector<8x120xf32>
    %18 = tpu.matmul %16, %17, %cst_14 {dimension_numbers = #tpu.dot_dimension_numbers<[1], [0], [0], [1], [0, 0, 1, 1], [], []>} : vector<8x576xbf16>, vector<576x120xbf16>, vector<8x120xf32> -> vector<8x120xf32>
    %c0_15 = arith.constant 0 : index
    %c0_16 = arith.constant 0 : index
    %19 = vector.load %arg7[%c0_15, %c0_16] : memref<1x120xf32, #tpu.memory_space<vmem>>, vector<1x120xf32>
    %20 = vector.broadcast %19 : vector<1x120xf32> to vector<8x120xf32>
    %21 = arith.addf %18, %20 : vector<8x120xf32>
    %cst_17 = arith.constant 0.000000e+00 : f32
    %22 = vector.broadcast %cst_17 : f32 to vector<8x120xf32>
    %23 = arith.maximumf %21, %22 : vector<8x120xf32>
    %24 = arith.truncf %23 : vector<8x120xf32> to vector<8x120xbf16>
    %c0_18 = arith.constant 0 : index
    %c0_19 = arith.constant 0 : index
    %25 = vector.load %arg8[%c0_18, %c0_19] : memref<120x84xbf16, #tpu.memory_space<vmem>>, vector<120x84xbf16>
    %cst_20 = arith.constant dense<0.000000e+00> : vector<8x84xf32>
    %26 = tpu.matmul %24, %25, %cst_20 {dimension_numbers = #tpu.dot_dimension_numbers<[1], [0], [0], [1], [0, 0, 1, 1], [], []>} : vector<8x120xbf16>, vector<120x84xbf16>, vector<8x84xf32> -> vector<8x84xf32>
    %c0_21 = arith.constant 0 : index
    %c0_22 = arith.constant 0 : index
    %27 = vector.load %arg9[%c0_21, %c0_22] : memref<1x84xf32, #tpu.memory_space<vmem>>, vector<1x84xf32>
    %28 = vector.broadcast %27 : vector<1x84xf32> to vector<8x84xf32>
    %29 = arith.addf %26, %28 : vector<8x84xf32>
    %cst_23 = arith.constant 0.000000e+00 : f32
    %30 = vector.broadcast %cst_23 : f32 to vector<8x84xf32>
    %31 = arith.maximumf %29, %30 : vector<8x84xf32>
    %32 = arith.truncf %31 : vector<8x84xf32> to vector<8x84xbf16>
    %c0_24 = arith.constant 0 : index
    %c0_25 = arith.constant 0 : index
    %33 = vector.load %arg10[%c0_24, %c0_25] : memref<84x1xbf16, #tpu.memory_space<vmem>>, vector<84x1xbf16>
    %cst_26 = arith.constant dense<0.000000e+00> : vector<8x1xf32>
    %34 = tpu.matmul %32, %33, %cst_26 {dimension_numbers = #tpu.dot_dimension_numbers<[1], [0], [0], [1], [0, 0, 1, 1], [], []>} : vector<8x84xbf16>, vector<84x1xbf16>, vector<8x1xf32> -> vector<8x1xf32>
    %c0_27 = arith.constant 0 : index
    %c0_28 = arith.constant 0 : index
    %35 = vector.load %arg11[%c0_27, %c0_28] : memref<1x1xf32, #tpu.memory_space<vmem>>, vector<1x1xf32>
    %36 = vector.broadcast %35 : vector<1x1xf32> to vector<8x1xf32>
    %37 = arith.addf %34, %36 : vector<8x1xf32>
    %cst_29 = arith.constant 5.000000e-01 : f32
    %38 = vector.broadcast %cst_29 : f32 to vector<8x1xf32>
    %39 = arith.mulf %38, %37 : vector<8x1xf32>
    %40 = math.tanh %39 : vector<8x1xf32>
    %cst_30 = arith.constant 1.000000e+00 : f32
    %41 = vector.broadcast %cst_30 : f32 to vector<8x1xf32>
    %42 = arith.addf %40, %41 : vector<8x1xf32>
    %cst_31 = arith.constant 5.000000e-01 : f32
    %43 = vector.broadcast %cst_31 : f32 to vector<8x1xf32>
    %44 = arith.mulf %43, %42 : vector<8x1xf32>
    %c0_32 = arith.constant 0 : index
    %c0_33 = arith.constant 0 : index
    %45 = vector.load %arg12[%c0_32, %c0_33] : memref<8x1xf32, #tpu.memory_space<vmem>>, vector<8x1xf32>
    tpu.vector_store %arg12[%c0_32, %c0_33], %44 {strides = array<i32>} : memref<8x1xf32, #tpu.memory_space<vmem>>, vector<8x1xf32>,
    return
  }
  func.func @transform_0(%arg0: i32) -> (i32, i32) {
    %c0_i32 = arith.constant 0 : i32
    %c0_i32_0 = arith.constant 0 : i32
    return %arg0, %c0_i32 : i32, i32
  }
  func.func @transform_1(%arg0: i32) -> (i32, i32) {
    %c0_i32 = arith.constant 0 : i32
    %c0_i32_0 = arith.constant 0 : i32
    %c0_i32_1 = arith.constant 0 : i32
    return %c0_i32, %c0_i32_0 : i32, i32
  }
  func.func @transform_2(%arg0: i32) -> (i32, i32) {
    %c0_i32 = arith.constant 0 : i32
    %c0_i32_0 = arith.constant 0 : i32
    %c0_i32_1 = arith.constant 0 : i32
    return %c0_i32, %c0_i32_0 : i32, i32
  }
  func.func @transform_3(%arg0: i32) -> (i32, i32) {
    %c0_i32 = arith.constant 0 : i32
    %c0_i32_0 = arith.constant 0 : i32
    %c0_i32_1 = arith.constant 0 : i32
    return %c0_i32, %c0_i32_0 : i32, i32
  }
  func.func @transform_4(%arg0: i32) -> (i32, i32) {
    %c0_i32 = arith.constant 0 : i32
    %c0_i32_0 = arith.constant 0 : i32
    %c0_i32_1 = arith.constant 0 : i32
    return %c0_i32, %c0_i32_0 : i32, i32
  }
  func.func @transform_5(%arg0: i32) -> (i32, i32) {
    %c0_i32 = arith.constant 0 : i32
    %c0_i32_0 = arith.constant 0 : i32
    %c0_i32_1 = arith.constant 0 : i32
    return %c0_i32, %c0_i32_0 : i32, i32
  }
  func.func @transform_6(%arg0: i32) -> (i32, i32) {
    %c0_i32 = arith.constant 0 : i32
    %c0_i32_0 = arith.constant 0 : i32
    %c0_i32_1 = arith.constant 0 : i32
    return %c0_i32, %c0_i32_0 : i32, i32
  }
  func.func @transform_7(%arg0: i32) -> (i32, i32) {
    %c0_i32 = arith.constant 0 : i32
    %c0_i32_0 = arith.constant 0 : i32
    %c0_i32_1 = arith.constant 0 : i32
    return %c0_i32, %c0_i32_0 : i32, i32
  }
  func.func @transform_8(%arg0: i32) -> (i32, i32) {
    %c0_i32 = arith.constant 0 : i32
    %c0_i32_0 = arith.constant 0 : i32
    %c0_i32_1 = arith.constant 0 : i32
    return %c0_i32, %c0_i32_0 : i32, i32
  }
  func.func @transform_9(%arg0: i32) -> (i32, i32) {
    %c0_i32 = arith.constant 0 : i32
    %c0_i32_0 = arith.constant 0 : i32
    %c0_i32_1 = arith.constant 0 : i32
    return %c0_i32, %c0_i32_0 : i32, i32
  }
  func.func @transform_10(%arg0: i32) -> (i32, i32) {
    %c0_i32 = arith.constant 0 : i32
    %c0_i32_0 = arith.constant 0 : i32
    %c0_i32_1 = arith.constant 0 : i32
    return %c0_i32, %c0_i32_0 : i32, i32
  }
  func.func @transform_11(%arg0: i32) -> (i32, i32) {
    %c0_i32 = arith.constant 0 : i32
    %c0_i32_0 = arith.constant 0 : i32
    return %arg0, %c0_i32 : i32, i32
  }
}

</mosaic_0001>

<llo_original>
// kernel: tile.13
$region0: #{tile.13}
  #allocation0 [shape = 's32[1]{0}', space=sflag, size = 0x4, scoped, tag = 'scoped memory for tile.13']
  %s0 = inlined_call_operand.vmem [shape: f32[6], index: 0, kind: input, shape index: {}]
  %s1 = inlined_call_operand.vmem [shape: f32[400,6], index: 1, kind: output, shape index: {}]
  // Predicated region
  $region2: #{tile.13} parent=0 // pred_check
    _
  $region3: #{tile.13} parent=0 // pred_check_branch
    %3 = sbr.rel (0) target = $region5
  $region4: #{tile.13} parent=0 // pred_region
    _
  $region5: #{tile.13} parent=0 // pred_fallthru
    _
  %v4 = vld [vmem:[%s0] ss:$0 sm:$0xff]
  %5 = vst [vmem:[%s1] sm:$0xff] %v4
  %s6 = scalar_lea.vmem %s1, 8
  %7 = vst [vmem:[%s6] sm:$0xff] %v4
  %s8 = scalar_lea.vmem %s1, 16
  %9 = vst [vmem:[%s8] sm:$0xff] %v4
  %s10 = scalar_lea.vmem %s1, 24
  %11 = vst [vmem:[%s10] sm:$0xff] %v4
  %s12 = scalar_lea.vmem %s1, 32
  %13 = vst [vmem:[%s12] sm:$0xff] %v4
  %s14 = scalar_lea.vmem %s1, 40
  %15 = vst [vmem:[%s14] sm:$0xff] %v4
  %s16 = scalar_lea.vmem %s1, 48
  %17 = vst [vmem:[%s16] sm:$0xff] %v4
  %s18 = scalar_lea.vmem %s1, 56
  %19 = vst [vmem:[%s18] sm:$0xff] %v4
  %s20 = scalar_lea.vmem %s1, 64
  %21 = vst [vmem:[%s20] sm:$0xff] %v4
  %s22 = scalar_lea.vmem %s1, 72
  %23 = vst [vmem:[%s22] sm:$0xff] %v4
  %s24 = scalar_lea.vmem %s1, 80
  %25 = vst [vmem:[%s24] sm:$0xff] %v4
  %s26 = scalar_lea.vmem %s1, 88
  %27 = vst [vmem:[%s26] sm:$0xff] %v4
  %s28 = scalar_lea.vmem %s1, 96
  %29 = vst [vmem:[%s28] sm:$0xff] %v4
  %s30 = scalar_lea.vmem %s1, 104
  %31 = vst [vmem:[%s30] sm:$0xff] %v4
  %s32 = scalar_lea.vmem %s1, 112
  %33 = vst [vmem:[%s32] sm:$0xff] %v4
  %s34 = scalar_lea.vmem %s1, 120
  %35 = vst [vmem:[%s34] sm:$0xff] %v4
  %s36 = scalar_lea.vmem %s1, 128
  %37 = vst [vmem:[%s36] sm:$0xff] %v4
  %s38 = scalar_lea.vmem %s1, 136
  %39 = vst [vmem:[%s38] sm:$0xff] %v4
  %s40 = scalar_lea.vmem %s1, 144
  %41 = vst [vmem:[%s40] sm:$0xff] %v4
  %s42 = scalar_lea.vmem %s1, 152
  %43 = vst [vmem:[%s42] sm:$0xff] %v4
  %s44 = scalar_lea.vmem %s1, 160
  %45 = vst [vmem:[%s44] sm:$0xff] %v4
  %s46 = scalar_lea.vmem %s1, 168
  %47 = vst [vmem:[%s46] sm:$0xff] %v4
  %s48 = scalar_lea.vmem %s1, 176
  %49 = vst [vmem:[%s48] sm:$0xff] %v4
  %s50 = scalar_lea.vmem %s1, 184
  %51 = vst [vmem:[%s50] sm:$0xff] %v4
  %s52 = scalar_lea.vmem %s1, 192
  %53 = vst [vmem:[%s52] sm:$0xff] %v4
  %s54 = scalar_lea.vmem %s1, 200
  %55 = vst [vmem:[%s54] sm:$0xff] %v4
  %s56 = scalar_lea.vmem %s1, 208
  %57 = vst [vmem:[%s56] sm:$0xff] %v4
  %s58 = scalar_lea.vmem %s1, 216
  %59 = vst [vmem:[%s58] sm:$0xff] %v4
  %s60 = scalar_lea.vmem %s1, 224
  %61 = vst [vmem:[%s60] sm:$0xff] %v4
  %s62 = scalar_lea.vmem %s1, 232
  %63 = vst [vmem:[%s62] sm:$0xff] %v4
  %s64 = scalar_lea.vmem %s1, 240
  %65 = vst [vmem:[%s64] sm:$0xff] %v4
  %s66 = scalar_lea.vmem %s1, 248
  %67 = vst [vmem:[%s66] sm:$0xff] %v4
  %s68 = scalar_lea.vmem %s1, 256
  %69 = vst [vmem:[%s68] sm:$0xff] %v4
  %s70 = scalar_lea.vmem %s1, 264
  %71 = vst [vmem:[%s70] sm:$0xff] %v4
  %s72 = scalar_lea.vmem %s1, 272
  %73 = vst [vmem:[%s72] sm:$0xff] %v4
  %s74 = scalar_lea.vmem %s1, 280
  %75 = vst [vmem:[%s74] sm:$0xff] %v4
  %s76 = scalar_lea.vmem %s1, 288
  %77 = vst [vmem:[%s76] sm:$0xff] %v4
  %s78 = scalar_lea.vmem %s1, 296
  %79 = vst [vmem:[%s78] sm:$0xff] %v4
  %s80 = scalar_lea.vmem %s1, 304
  %81 = vst [vmem:[%s80] sm:$0xff] %v4
  %s82 = scalar_lea.vmem %s1, 312
  %83 = vst [vmem:[%s82] sm:$0xff] %v4
  %s84 = scalar_lea.vmem %s1, 320
  %85 = vst [vmem:[%s84] sm:$0xff] %v4
  %s86 = scalar_lea.vmem %s1, 328
  %87 = vst [vmem:[%s86] sm:$0xff] %v4
  %s88 = scalar_lea.vmem %s1, 336
  %89 = vst [vmem:[%s88] sm:$0xff] %v4
  %s90 = scalar_lea.vmem %s1, 344
  %91 = vst [vmem:[%s90] sm:$0xff] %v4
  %s92 = scalar_lea.vmem %s1, 352
  %93 = vst [vmem:[%s92] sm:$0xff] %v4
  %s94 = scalar_lea.vmem %s1, 360
  %95 = vst [vmem:[%s94] sm:$0xff] %v4
  %s96 = scalar_lea.vmem %s1, 368
  %97 = vst [vmem:[%s96] sm:$0xff] %v4
  %s98 = scalar_lea.vmem %s1, 376
  %99 = vst [vmem:[%s98] sm:$0xff] %v4
  %s100 = scalar_lea.vmem %s1, 384
  %101 = vst [vmem:[%s100] sm:$0xff] %v4
  %s102 = scalar_lea.vmem %s1, 392
  %103 = vst [vmem:[%s102] sm:$0xff] %v4

// kernel: tile.14
$region0: #{tile.14}
  %s0 = inlined_call_operand.vmem [shape: f32[400,6], index: 0, kind: input, shape index: {}]
  %s1 = inlined_call_operand.vmem [shape: f32[1,2400], index: 1, kind: output, shape index: {}]
  $region1: #{tile.14} parent=0
    #allocation0 [shape = 'u8[77824]{0}', space=vmem, size = 0x13000, scoped, tag = 'scoped mem for output reshape']
    %v2 = vld [vmem:[%s0] sm:$0x1]
    %s3 = scalar_lea.vmem %s0, 63
    %v4 = vld [vmem:[%s3] sm:$0x2]
    %vm5 = vcmask 1041409
    %v6 = vsel %vm5, %v4, %v2
    %s7 = scalar_lea.vmem %s0, 126
    %v8 = vld [vmem:[%s7] sm:$0x4]
    %vm9 = vcmask 1042434
    %v10 = vsel %vm9, %v8, %v6
    %s11 = scalar_lea.vmem %s0, 189
    %v12 = vld [vmem:[%s11] sm:$0x8]
    %vm13 = vcmask 1043459
    %v14 = vsel %vm13, %v12, %v10
    %s15 = scalar_lea.vmem %s0, 252
    %v16 = vld [vmem:[%s15] sm:$0x10]
    %vm17 = vcmask 1044484
    %v18 = vsel %vm17, %v16, %v14
    %s19 = scalar_lea.vmem %s0, 315
    %v20 = vld [vmem:[%s19] sm:$0x20]
    %vm21 = vcmask 1045509
    %v22 = vsel %vm21, %v20, %v18
    %s23 = scalar_lea.vmem %s0, 378
    %v24 = vld [vmem:[%s23] sm:$0x40]
    %vm25 = vcmask 1046534
    %v26 = vsel %vm25, %v24, %v22
    %vm27 = vcmask 48128
    %28 = vst.msk [vmem:[#allocation0] ss:$24 sm:$0xf] %vm27, %v26
    %29 = vst.msk [vmem:[#allocation0] ss:$24 sm:$0x70] %vm27, %v26
    %s30 = scalar_lea.vmem %s0, 85
    %v31 = vld [vmem:[%s30] sm:$0x1]
    %s32 = scalar_lea.vmem %s0, 20
    %v33 = vld [vmem:[%s32] sm:$0x2]
    %vm34 = vcmask 1041409
    %v35 = vsel %vm34, %v33, %v31
    %s36 = scalar_lea.vmem %s0, 211
    %v37 = vld [vmem:[%s36] sm:$0x4]
    %vm38 = vcmask 1042434
    %v39 = vsel %vm38, %v37, %v35
    %s40 = scalar_lea.vmem %s0, 146
    %v41 = vld [vmem:[%s40] sm:$0x8]
    %vm42 = vcmask 1043459
    %v43 = vsel %vm42, %v41, %v39
    %s44 = scalar_lea.vmem %s0, 337
    %v45 = vld [vmem:[%s44] sm:$0x10]
    %vm46 = vcmask 1044484
    %v47 = vsel %vm46, %v45, %v43
    %s48 = scalar_lea.vmem %s0, 272
    %v49 = vld [vmem:[%s48] sm:$0x20]
    %vm50 = vcmask 1045509
    %v51 = vsel %vm50, %v49, %v47
    %52 = vrot.lane.b32.xlu0 %v51, 126
    %v53 = vpop.permute.xlu0 %52
    %vm54 = vcmask 31744
    %s55 = scalar_lea.vmem [#allocation0], 32
    %56 = vst.msk [vmem:[%s55] ss:$-24 sm:$0x3] %vm54, %v53
    %s57 = scalar_lea.vmem [#allocation0], 128
    %58 = vst.msk [vmem:[%s57] ss:$-24 sm:$0xc] %vm54, %v53
    %s59 = scalar_lea.vmem [#allocation0], 224
    %60 = vst.msk [vmem:[%s59] ss:$-24 sm:$0x30] %vm54, %v53
    %s61 = scalar_lea.vmem %s0, 21
    %v62 = vld [vmem:[%s61] sm:$0x1]
    %s63 = scalar_lea.vmem %s0, 212
    %v64 = vld [vmem:[%s63] sm:$0x2]
    %vm65 = vcmask 1041409
    %v66 = vsel %vm65, %v64, %v62
    %s67 = scalar_lea.vmem %s0, 147
    %v68 = vld [vmem:[%s67] sm:$0x4]
    %vm69 = vcmask 1042434
    %v70 = vsel %vm69, %v68, %v66
    %s71 = scalar_lea.vmem %s0, 82
    %v72 = vld [vmem:[%s71] sm:$0x8]
    %vm73 = vcmask 1043459
    %v74 = vsel %vm73, %v72, %v70
    %s75 = scalar_lea.vmem %s0, 273
    %v76 = vld [vmem:[%s75] sm:$0x10]
    %vm77 = vcmask 1044484
    %v78 = vsel %vm77, %v76, %v74
    %s79 = scalar_lea.vmem %s0, 336
    %v80 = vld [vmem:[%s79] sm:$0x20]
    %vm81 = vcmask 1045509
    %v82 = vsel %vm81, %v80, %v78
    %83 = vrot.lane.b32.xlu0 %v82, 126
    %v84 = vpop.permute.xlu0 %83
    %vm85 = vcmask 1048560
    %86 = vst.msk [vmem:[#allocation0] ss:$72 sm:$0x3] %vm85, %v84
    %s87 = scalar_lea.vmem [#allocation0], 96
    %88 = vst.msk [vmem:[%s87] ss:$-24 sm:$0xc] %vm85, %v84
    %89 = vst.msk [vmem:[#allocation0] ss:$24 sm:$0x30] %vm85, %v84
    %s90 = scalar_lea.vmem %s0, 170
    %v91 = vld [vmem:[%s90] sm:$0x1]
    %s92 = scalar_lea.vmem %s0, 105
    %v93 = vld [vmem:[%s92] sm:$0x2]
    %vm94 = vcmask 1041409
    %v95 = vsel %vm94, %v93, %v91
    %s96 = scalar_lea.vmem %s0, 40
    %v97 = vld [vmem:[%s96] sm:$0x4]
    %vm98 = vcmask 1042434
    %v99 = vsel %vm98, %v97, %v95
    %s100 = scalar_lea.vmem %s0, 231
    %v101 = vld [vmem:[%s100] sm:$0x8]
    %vm102 = vcmask 1043459
    %v103 = vsel %vm102, %v101, %v99
    %s104 = scalar_lea.vmem %s0, 358
    %v105 = vld [vmem:[%s104] sm:$0x10]
    %vm106 = vcmask 1044484
    %v107 = vsel %vm106, %v105, %v103
    %s108 = scalar_lea.vmem %s0, 293
    %v109 = vld [vmem:[%s108] sm:$0x20]
    %vm110 = vcmask 1045509
    %v111 = vsel %vm110, %v109, %v107
    %112 = vrot.lane.b32.xlu0 %v111, 124
    %v113 = vpop.permute.xlu0 %112
    %vm114 = vcmask 15360
    %s115 = scalar_lea.vmem [#allocation0], 64
    %116 = vst.msk [vmem:[%s115] ss:$-24 sm:$0x7] %vm114, %v113
    %s117 = scalar_lea.vmem [#allocation0], 4294967240
    %118 = vst.msk [vmem:[%s117] ss:$48 sm:$0x18] %vm114, %v113
    %s119 = scalar_lea.vmem [#allocation0], 107
    %120 = vst.msk [vmem:[%s119] sm:$0x20] %vm114, %v113
    %s121 = scalar_lea.vmem %s0, 106
    %v122 = vld [vmem:[%s121] sm:$0x1]
    %s123 = scalar_lea.vmem %s0, 41
    %v124 = vld [vmem:[%s123] sm:$0x2]
    %vm125 = vcmask 1041409
    %v126 = vsel %vm125, %v124, %v122
    %s127 = scalar_lea.vmem %s0, 232
    %v128 = vld [vmem:[%s127] sm:$0x4]
    %vm129 = vcmask 1042434
    %v130 = vsel %vm129, %v128, %v126
    %s131 = scalar_lea.vmem %s0, 167
    %v132 = vld [vmem:[%s131] sm:$0x8]
    %vm133 = vcmask 1043459
    %v134 = vsel %vm133, %v132, %v130
    %s135 = scalar_lea.vmem %s0, 358
    %v136 = vld [vmem:[%s135] sm:$0x10]
    %vm137 = vcmask 1044484
    %v138 = vsel %vm137, %v136, %v134
    %s139 = scalar_lea.vmem %s0, 293
    %v140 = vld [vmem:[%s139] sm:$0x20]
    %vm141 = vcmask 1045509
    %v142 = vsel %vm141, %v140, %v138
    %143 = vrot.lane.b32.xlu0 %v142, 124
    %v144 = vpop.permute.xlu0 %143
    %vm145 = vcmask 1048544
    %s146 = scalar_lea.vmem [#allocation0], 32
    %147 = vst.msk [vmem:[%s146] ss:$-24 sm:$0x3] %vm145, %v144
    %s148 = scalar_lea.vmem [#allocation0], 128
    %149 = vst.msk [vmem:[%s148] ss:$-24 sm:$0xc] %vm145, %v144
    %s150 = scalar_lea.vmem [#allocation0], 224
    %151 = vst.msk [vmem:[%s150] ss:$-24 sm:$0x30] %vm145, %v144
    %s152 = scalar_lea.vmem %s0, 191
    %v153 = vld [vmem:[%s152] sm:$0x1]
    %s154 = scalar_lea.vmem %s0, 126
    %v155 = vld [vmem:[%s154] sm:$0x2]
    %vm156 = vcmask 1041409
    %v157 = vsel %vm156, %v155, %v153
    %s158 = scalar_lea.vmem %s0, 61
    %v159 = vld [vmem:[%s158] sm:$0x4]
    %vm160 = vcmask 1042434
    %v161 = vsel %vm160, %v159, %v157
    %s162 = scalar_lea.vmem %s0, 252
    %v163 = vld [vmem:[%s162] sm:$0x8]
    %vm164 = vcmask 1043459
    %v165 = vsel %vm164, %v163, %v161
    %s166 = scalar_lea.vmem %s0, 379
    %v167 = vld [vmem:[%s166] sm:$0x10]
    %vm168 = vcmask 1044484
    %v169 = vsel %vm168, %v167, %v165
    %s170 = scalar_lea.vmem %s0, 314
    %v171 = vld [vmem:[%s170] sm:$0x20]
    %vm172 = vcmask 1045509
    %v173 = vsel %vm172, %v171, %v169
    %174 = vrot.lane.b32.xlu0 %v173, 122
    %v175 = vpop.permute.xlu0 %174
    %vm176 = vcmask 1048528
    %s177 = scalar_lea.vmem [#allocation0], 64
    %178 = vst.msk [vmem:[%s177] ss:$-24 sm:$0x7] %vm176, %v175
    %s179 = scalar_lea.vmem [#allocation0], 4294967240
    %180 = vst.msk [vmem:[%s179] ss:$48 sm:$0x18] %vm176, %v175
    %s181 = scalar_lea.vmem [#allocation0], 107
    %182 = vst.msk [vmem:[%s181] sm:$0x20] %vm176, %v175
    %s183 = scalar_lea.vmem %s0, 20
    %v184 = vld [vmem:[%s183] sm:$0x1]
    %s185 = scalar_lea.vmem %s0, 211
    %v186 = vld [vmem:[%s185] sm:$0x2]
    %vm187 = vcmask 1041409
    %v188 = vsel %vm187, %v186, %v184
    %s189 = scalar_lea.vmem %s0, 146
    %v190 = vld [vmem:[%s189] sm:$0x4]
    %vm191 = vcmask 1042434
    %v192 = vsel %vm191, %v190, %v188
    %s193 = scalar_lea.vmem %s0, 81
    %v194 = vld [vmem:[%s193] sm:$0x8]
    %vm195 = vcmask 1043459
    %v196 = vsel %vm195, %v194, %v192
    %s197 = scalar_lea.vmem %s0, 272
    %v198 = vld [vmem:[%s197] sm:$0x10]
    %vm199 = vcmask 1044484
    %v200 = vsel %vm199, %v198, %v196
    %s201 = scalar_lea.vmem %s0, 335
    %v202 = vld [vmem:[%s201] sm:$0x20]
    %vm203 = vcmask 1045509
    %v204 = vsel %vm203, %v202, %v200
    %205 = vrot.lane.b32.xlu0 %v204, 120
    %v206 = vpop.permute.xlu0 %205
    %vm207 = vcmask 1032128
    %208 = vst.msk [vmem:[#allocation0] ss:$72 sm:$0x3] %vm207, %v206
    %s209 = scalar_lea.vmem [#allocation0], 96
    %210 = vst.msk [vmem:[%s209] ss:$-24 sm:$0xc] %vm207, %v206
    %211 = vst.msk [vmem:[#allocation0] ss:$24 sm:$0x30] %vm207, %v206
    %s212 = scalar_lea.vmem %s0, 105
    %v213 = vld [vmem:[%s212] sm:$0x1]
    %s214 = scalar_lea.vmem %s0, 40
    %v215 = vld [vmem:[%s214] sm:$0x2]
    %vm216 = vcmask 1041409
    %v217 = vsel %vm216, %v215, %v213
    %s218 = scalar_lea.vmem %s0, 231
    %v219 = vld [vmem:[%s218] sm:$0x4]
    %vm220 = vcmask 1042434
    %v221 = vsel %vm220, %v219, %v217
    %s222 = scalar_lea.vmem %s0, 166
    %v223 = vld [vmem:[%s222] sm:$0x8]
    %vm224 = vcmask 1043459
    %v225 = vsel %vm224, %v223, %v221
    %s226 = scalar_lea.vmem %s0, 357
    %v227 = vld [vmem:[%s226] sm:$0x10]
    %vm228 = vcmask 1044484
    %v229 = vsel %vm228, %v227, %v225
    %s230 = scalar_lea.vmem %s0, 292
    %v231 = vld [vmem:[%s230] sm:$0x20]
    %vm232 = vcmask 1045509
    %v233 = vsel %vm232, %v231, %v229
    %234 = vrot.lane.b32.xlu0 %v233, 118
    %v235 = vpop.permute.xlu0 %234
    %vm236 = vcmask 1015728
    %s237 = scalar_lea.vmem [#allocation0], 32
    %238 = vst.msk [vmem:[%s237] ss:$-24 sm:$0x3] %vm236, %v235
    %s239 = scalar_lea.vmem [#allocation0], 128
    %240 = vst.msk [vmem:[%s239] ss:$-24 sm:$0xc] %vm236, %v235
    %s241 = scalar_lea.vmem [#allocation0], 224
    %242 = vst.msk [vmem:[%s241] ss:$-24 sm:$0x30] %vm236, %v235
    %s243 = scalar_lea.vmem %s0, 190
    %v244 = vld [vmem:[%s243] sm:$0x1]
    %s245 = scalar_lea.vmem %s0, 125
    %v246 = vld [vmem:[%s245] sm:$0x2]
    %vm247 = vcmask 1041409
    %v248 = vsel %vm247, %v246, %v244
    %s249 = scalar_lea.vmem %s0, 60
    %v250 = vld [vmem:[%s249] sm:$0x4]
    %vm251 = vcmask 1042434
    %v252 = vsel %vm251, %v250, %v248
    %s253 = scalar_lea.vmem %s0, 251
    %v254 = vld [vmem:[%s253] sm:$0x8]
    %vm255 = vcmask 1043459
    %v256 = vsel %vm255, %v254, %v252
    %s257 = scalar_lea.vmem %s0, 378
    %v258 = vld [vmem:[%s257] sm:$0x10]
    %vm259 = vcmask 1044484
    %v260 = vsel %vm259, %v258, %v256
    %s261 = scalar_lea.vmem %s0, 313
    %v262 = vld [vmem:[%s261] sm:$0x20]
    %vm263 = vcmask 1045509
    %v264 = vsel %vm263, %v262, %v260
    %265 = vrot.lane.b32.xlu0 %v264, 116
    %v266 = vpop.permute.xlu0 %265
    %vm267 = vcmask 999328
    %s268 = scalar_lea.vmem [#allocation0], 64
    %269 = vst.msk [vmem:[%s268] ss:$-24 sm:$0x7] %vm267, %v266
    %s270 = scalar_lea.vmem [#allocation0], 4294967240
    %271 = vst.msk [vmem:[%s270] ss:$48 sm:$0x18] %vm267, %v266
    %s272 = scalar_lea.vmem [#allocation0], 107
    %273 = vst.msk [vmem:[%s272] sm:$0x20] %vm267, %v266
    %s274 = scalar_lea.vmem %s0, 19
    %v275 = vld [vmem:[%s274] sm:$0x1]
    %s276 = scalar_lea.vmem %s0, 210
    %v277 = vld [vmem:[%s276] sm:$0x2]
    %vm278 = vcmask 1041409
    %v279 = vsel %vm278, %v277, %v275
    %s280 = scalar_lea.vmem %s0, 145
    %v281 = vld [vmem:[%s280] sm:$0x4]
    %vm282 = vcmask 1042434
    %v283 = vsel %vm282, %v281, %v279
    %s284 = scalar_lea.vmem %s0, 80
    %v285 = vld [vmem:[%s284] sm:$0x8]
    %vm286 = vcmask 1043459
    %v287 = vsel %vm286, %v285, %v283
    %s288 = scalar_lea.vmem %s0, 271
    %v289 = vld [vmem:[%s288] sm:$0x10]
    %vm290 = vcmask 1044484
    %v291 = vsel %vm290, %v289, %v287
    %s292 = scalar_lea.vmem %s0, 334
    %v293 = vld [vmem:[%s292] sm:$0x20]
    %vm294 = vcmask 1045509
    %v295 = vsel %vm294, %v293, %v291
    %296 = vrot.lane.b32.xlu0 %v295, 114
    %v297 = vpop.permute.xlu0 %296
    %vm298 = vcmask 982928
    %299 = vst.msk [vmem:[#allocation0] ss:$72 sm:$0x3] %vm298, %v297
    %s300 = scalar_lea.vmem [#allocation0], 96
    %301 = vst.msk [vmem:[%s300] ss:$-24 sm:$0xc] %vm298, %v297
    %302 = vst.msk [vmem:[#allocation0] ss:$24 sm:$0x30] %vm298, %v297
    %s303 = scalar_lea.vmem %s0, 104
    %v304 = vld [vmem:[%s303] sm:$0x1]
    %s305 = scalar_lea.vmem %s0, 39
    %v306 = vld [vmem:[%s305] sm:$0x2]
    %vm307 = vcmask 1041409
    %v308 = vsel %vm307, %v306, %v304
    %s309 = scalar_lea.vmem %s0, 230
    %v310 = vld [vmem:[%s309] sm:$0x4]
    %vm311 = vcmask 1042434
    %v312 = vsel %vm311, %v310, %v308
    %s313 = scalar_lea.vmem %s0, 165
    %v314 = vld [vmem:[%s313] sm:$0x8]
    %vm315 = vcmask 1043459
    %v316 = vsel %vm315, %v314, %v312
    %s317 = scalar_lea.vmem %s0, 356
    %v318 = vld [vmem:[%s317] sm:$0x10]
    %vm319 = vcmask 1044484
    %v320 = vsel %vm319, %v318, %v316
    %s321 = scalar_lea.vmem %s0, 291
    %v322 = vld [vmem:[%s321] sm:$0x20]
    %vm323 = vcmask 1045509
    %v324 = vsel %vm323, %v322, %v320
    %325 = vrot.lane.b32.xlu0 %v324, 112
    %v326 = vpop.permute.xlu0 %325
    %vm327 = vcmask 966528
    %s328 = scalar_lea.vmem [#allocation0], 32
    %329 = vst.msk [vmem:[%s328] ss:$-24 sm:$0x3] %vm327, %v326
    %s330 = scalar_lea.vmem [#allocation0], 128
    %331 = vst.msk [vmem:[%s330] ss:$-24 sm:$0xc] %vm327, %v326
    %s332 = scalar_lea.vmem [#allocation0], 224
    %333 = vst.msk [vmem:[%s332] ss:$-24 sm:$0x30] %vm327, %v326
    %s334 = scalar_lea.vmem %s0, 189
    %v335 = vld [vmem:[%s334] sm:$0x1]
    %s336 = scalar_lea.vmem %s0, 124
    %v337 = vld [vmem:[%s336] sm:$0x2]
    %vm338 = vcmask 1041409
    %v339 = vsel %vm338, %v337, %v335
    %s340 = scalar_lea.vmem %s0, 59
    %v341 = vld [vmem:[%s340] sm:$0x4]
    %vm342 = vcmask 1042434
    %v343 = vsel %vm342, %v341, %v339
    %s344 = scalar_lea.vmem %s0, 250
    %v345 = vld [vmem:[%s344] sm:$0x8]
    %vm346 = vcmask 1043459
    %v347 = vsel %vm346, %v345, %v343
    %s348 = scalar_lea.vmem %s0, 377
    %v349 = vld [vmem:[%s348] sm:$0x10]
    %vm350 = vcmask 1044484
    %v351 = vsel %vm350, %v349, %v347
    %s352 = scalar_lea.vmem %s0, 312
    %v353 = vld [vmem:[%s352] sm:$0x20]
    %vm354 = vcmask 1045509
    %v355 = vsel %vm354, %v353, %v351
    %356 = vrot.lane.b32.xlu0 %v355, 110
    %v357 = vpop.permute.xlu0 %356
    %vm358 = vcmask 950128
    %s359 = scalar_lea.vmem [#allocation0], 64
    %360 = vst.msk [vmem:[%s359] ss:$-24 sm:$0x7] %vm358, %v357
    %s361 = scalar_lea.vmem [#allocation0], 4294967240
    %362 = vst.msk [vmem:[%s361] ss:$48 sm:$0x18] %vm358, %v357
    %s363 = scalar_lea.vmem [#allocation0], 107
    %364 = vst.msk [vmem:[%s363] sm:$0x20] %vm358, %v357
    %s365 = scalar_lea.vmem %s0, 18
    %v366 = vld [vmem:[%s365] sm:$0x1]
    %s367 = scalar_lea.vmem %s0, 209
    %v368 = vld [vmem:[%s367] sm:$0x2]
    %vm369 = vcmask 1041409
    %v370 = vsel %vm369, %v368, %v366
    %s371 = scalar_lea.vmem %s0, 144
    %v372 = vld [vmem:[%s371] sm:$0x4]
    %vm373 = vcmask 1042434
    %v374 = vsel %vm373, %v372, %v370
    %s375 = scalar_lea.vmem %s0, 79
    %v376 = vld [vmem:[%s375] sm:$0x8]
    %vm377 = vcmask 1043459
    %v378 = vsel %vm377, %v376, %v374
    %s379 = scalar_lea.vmem %s0, 270
    %v380 = vld [vmem:[%s379] sm:$0x10]
    %vm381 = vcmask 1044484
    %v382 = vsel %vm381, %v380, %v378
    %s383 = scalar_lea.vmem %s0, 333
    %v384 = vld [vmem:[%s383] sm:$0x20]
    %vm385 = vcmask 1045509
    %v386 = vsel %vm385, %v384, %v382
    %387 = vrot.lane.b32.xlu0 %v386, 108
    %v388 = vpop.permute.xlu0 %387
    %vm389 = vcmask 933728
    %390 = vst.msk [vmem:[#allocation0] ss:$72 sm:$0x3] %vm389, %v388
    %s391 = scalar_lea.vmem [#allocation0], 96
    %392 = vst.msk [vmem:[%s391] ss:$-24 sm:$0xc] %vm389, %v388
    %393 = vst.msk [vmem:[#allocation0] ss:$24 sm:$0x30] %vm389, %v388
    %s394 = scalar_lea.vmem %s0, 103
    %v395 = vld [vmem:[%s394] sm:$0x1]
    %s396 = scalar_lea.vmem %s0, 38
    %v397 = vld [vmem:[%s396] sm:$0x2]
    %vm398 = vcmask 1041409
    %v399 = vsel %vm398, %v397, %v395
    %s400 = scalar_lea.vmem %s0, 229
    %v401 = vld [vmem:[%s400] sm:$0x4]
    %vm402 = vcmask 1042434
    %v403 = vsel %vm402, %v401, %v399
    %s404 = scalar_lea.vmem %s0, 164
    %v405 = vld [vmem:[%s404] sm:$0x8]
    %vm406 = vcmask 1043459
    %v407 = vsel %vm406, %v405, %v403
    %s408 = scalar_lea.vmem %s0, 355
    %v409 = vld [vmem:[%s408] sm:$0x10]
    %vm410 = vcmask 1044484
    %v411 = vsel %vm410, %v409, %v407
    %s412 = scalar_lea.vmem %s0, 290
    %v413 = vld [vmem:[%s412] sm:$0x20]
    %vm414 = vcmask 1045509
    %v415 = vsel %vm414, %v413, %v411
    %416 = vrot.lane.b32.xlu0 %v415, 106
    %v417 = vpop.permute.xlu0 %416
    %vm418 = vcmask 917328
    %s419 = scalar_lea.vmem [#allocation0], 32
    %420 = vst.msk [vmem:[%s419] ss:$-24 sm:$0x3] %vm418, %v417
    %s421 = scalar_lea.vmem [#allocation0], 128
    %422 = vst.msk [vmem:[%s421] ss:$-24 sm:$0xc] %vm418, %v417
    %s423 = scalar_lea.vmem [#allocation0], 224
    %424 = vst.msk [vmem:[%s423] ss:$-24 sm:$0x30] %vm418, %v417
    %s425 = scalar_lea.vmem %s0, 188
    %v426 = vld [vmem:[%s425] sm:$0x1]
    %s427 = scalar_lea.vmem %s0, 123
    %v428 = vld [vmem:[%s427] sm:$0x2]
    %vm429 = vcmask 1041409
    %v430 = vsel %vm429, %v428, %v426
    %s431 = scalar_lea.vmem %s0, 58
    %v432 = vld [vmem:[%s431] sm:$0x4]
    %vm433 = vcmask 1042434
    %v434 = vsel %vm433, %v432, %v430
    %s435 = scalar_lea.vmem %s0, 249
    %v436 = vld [vmem:[%s435] sm:$0x8]
    %vm437 = vcmask 1043459
    %v438 = vsel %vm437, %v436, %v434
    %s439 = scalar_lea.vmem %s0, 376
    %v440 = vld [vmem:[%s439] sm:$0x10]
    %vm441 = vcmask 1044484
    %v442 = vsel %vm441, %v440, %v438
    %s443 = scalar_lea.vmem %s0, 311
    %v444 = vld [vmem:[%s443] sm:$0x20]
    %vm445 = vcmask 1045509
    %v446 = vsel %vm445, %v444, %v442
    %447 = vrot.lane.b32.xlu0 %v446, 104
    %v448 = vpop.permute.xlu0 %447
    %vm449 = vcmask 900928
    %s450 = scalar_lea.vmem [#allocation0], 64
    %451 = vst.msk [vmem:[%s450] ss:$-24 sm:$0x7] %vm449, %v448
    %s452 = scalar_lea.vmem [#allocation0], 4294967240
    %453 = vst.msk [vmem:[%s452] ss:$48 sm:$0x18] %vm449, %v448
    %s454 = scalar_lea.vmem [#allocation0], 107
    %455 = vst.msk [vmem:[%s454] sm:$0x20] %vm449, %v448
    %s456 = scalar_lea.vmem %s0, 17
    %v457 = vld [vmem:[%s456] sm:$0x1]
    %s458 = scalar_lea.vmem %s0, 208
    %v459 = vld [vmem:[%s458] sm:$0x2]
    %vm460 = vcmask 1041409
    %v461 = vsel %vm460, %v459, %v457
    %s462 = scalar_lea.vmem %s0, 143
    %v463 = vld [vmem:[%s462] sm:$0x4]
    %vm464 = vcmask 1042434
    %v465 = vsel %vm464, %v463, %v461
    %s466 = scalar_lea.vmem %s0, 78
    %v467 = vld [vmem:[%s466] sm:$0x8]
    %vm468 = vcmask 1043459
    %v469 = vsel %vm468, %v467, %v465
    %s470 = scalar_lea.vmem %s0, 269
    %v471 = vld [vmem:[%s470] sm:$0x10]
    %vm472 = vcmask 1044484
    %v473 = vsel %vm472, %v471, %v469
    %s474 = scalar_lea.vmem %s0, 332
    %v475 = vld [vmem:[%s474] sm:$0x20]
    %vm476 = vcmask 1045509
    %v477 = vsel %vm476, %v475, %v473
    %478 = vrot.lane.b32.xlu0 %v477, 102
    %v479 = vpop.permute.xlu0 %478
    %vm480 = vcmask 884528
    %481 = vst.msk [vmem:[#allocation0] ss:$72 sm:$0x3] %vm480, %v479
    %s482 = scalar_lea.vmem [#allocation0], 96
    %483 = vst.msk [vmem:[%s482] ss:$-24 sm:$0xc] %vm480, %v479
    %484 = vst.msk [vmem:[#allocation0] ss:$24 sm:$0x30] %vm480, %v479
    %s485 = scalar_lea.vmem %s0, 102
    %v486 = vld [vmem:[%s485] sm:$0x1]
    %s487 = scalar_lea.vmem %s0, 37
    %v488 = vld [vmem:[%s487] sm:$0x2]
    %vm489 = vcmask 1041409
    %v490 = vsel %vm489, %v488, %v486
    %s491 = scalar_lea.vmem %s0, 228
    %v492 = vld [vmem:[%s491] sm:$0x4]
    %vm493 = vcmask 1042434
    %v494 = vsel %vm493, %v492, %v490
    %s495 = scalar_lea.vmem %s0, 163
    %v496 = vld [vmem:[%s495] sm:$0x8]
    %vm497 = vcmask 1043459
    %v498 = vsel %vm497, %v496, %v494
    %s499 = scalar_lea.vmem %s0, 354
    %v500 = vld [vmem:[%s499] sm:$0x10]
    %vm501 = vcmask 1044484
    %v502 = vsel %vm501, %v500, %v498
    %s503 = scalar_lea.vmem %s0, 289
    %v504 = vld [vmem:[%s503] sm:$0x20]
    %vm505 = vcmask 1045509
    %v506 = vsel %vm505, %v504, %v502
    %507 = vrot.lane.b32.xlu0 %v506, 100
    %v508 = vpop.permute.xlu0 %507
    %vm509 = vcmask 868128
    %s510 = scalar_lea.vmem [#allocation0], 32
    %511 = vst.msk [vmem:[%s510] ss:$-24 sm:$0x3] %vm509, %v508
    %s512 = scalar_lea.vmem [#allocation0], 128
    %513 = vst.msk [vmem:[%s512] ss:$-24 sm:$0xc] %vm509, %v508
    %s514 = scalar_lea.vmem [#allocation0], 224
    %515 = vst.msk [vmem:[%s514] ss:$-24 sm:$0x30] %vm509, %v508
    %s516 = scalar_lea.vmem %s0, 187
    %v517 = vld [vmem:[%s516] sm:$0x1]
    %s518 = scalar_lea.vmem %s0, 122
    %v519 = vld [vmem:[%s518] sm:$0x2]
    %vm520 = vcmask 1041409
    %v521 = vsel %vm520, %v519, %v517
    %s522 = scalar_lea.vmem %s0, 57
    %v523 = vld [vmem:[%s522] sm:$0x4]
    %vm524 = vcmask 1042434
    %v525 = vsel %vm524, %v523, %v521
    %s526 = scalar_lea.vmem %s0, 248
    %v527 = vld [vmem:[%s526] sm:$0x8]
    %vm528 = vcmask 1043459
    %v529 = vsel %vm528, %v527, %v525
    %s530 = scalar_lea.vmem %s0, 375
    %v531 = vld [vmem:[%s530] sm:$0x10]
    %vm532 = vcmask 1044484
    %v533 = vsel %vm532, %v531, %v529
    %s534 = scalar_lea.vmem %s0, 310
    %v535 = vld [vmem:[%s534] sm:$0x20]
    %vm536 = vcmask 1045509
    %v537 = vsel %vm536, %v535, %v533
    %538 = vrot.lane.b32.xlu0 %v537, 98
    %v539 = vpop.permute.xlu0 %538
    %vm540 = vcmask 851728
    %s541 = scalar_lea.vmem [#allocation0], 64
    %542 = vst.msk [vmem:[%s541] ss:$-24 sm:$0x7] %vm540, %v539
    %s543 = scalar_lea.vmem [#allocation0], 4294967240
    %544 = vst.msk [vmem:[%s543] ss:$48 sm:$0x18] %vm540, %v539
    %s545 = scalar_lea.vmem [#allocation0], 107
    %546 = vst.msk [vmem:[%s545] sm:$0x20] %vm540, %v539
    %s547 = scalar_lea.vmem %s0, 16
    %v548 = vld [vmem:[%s547] sm:$0x1]
    %s549 = scalar_lea.vmem %s0, 207
    %v550 = vld [vmem:[%s549] sm:$0x2]
    %vm551 = vcmask 1041409
    %v552 = vsel %vm551, %v550, %v548
    %s553 = scalar_lea.vmem %s0, 142
    %v554 = vld [vmem:[%s553] sm:$0x4]
    %vm555 = vcmask 1042434
    %v556 = vsel %vm555, %v554, %v552
    %s557 = scalar_lea.vmem %s0, 77
    %v558 = vld [vmem:[%s557] sm:$0x8]
    %vm559 = vcmask 1043459
    %v560 = vsel %vm559, %v558, %v556
    %s561 = scalar_lea.vmem %s0, 268
    %v562 = vld [vmem:[%s561] sm:$0x10]
    %vm563 = vcmask 1044484
    %v564 = vsel %vm563, %v562, %v560
    %s565 = scalar_lea.vmem %s0, 331
    %v566 = vld [vmem:[%s565] sm:$0x20]
    %vm567 = vcmask 1045509
    %v568 = vsel %vm567, %v566, %v564
    %569 = vrot.lane.b32.xlu0 %v568, 96
    %v570 = vpop.permute.xlu0 %569
    %vm571 = vcmask 835328
    %572 = vst.msk [vmem:[#allocation0] ss:$72 sm:$0x3] %vm571, %v570
    %s573 = scalar_lea.vmem [#allocation0], 96
    %574 = vst.msk [vmem:[%s573] ss:$-24 sm:$0xc] %vm571, %v570
    %575 = vst.msk [vmem:[#allocation0] ss:$24 sm:$0x30] %vm571, %v570
    %s576 = scalar_lea.vmem %s0, 101
    %v577 = vld [vmem:[%s576] sm:$0x1]
    %s578 = scalar_lea.vmem %s0, 36
    %v579 = vld [vmem:[%s578] sm:$0x2]
    %vm580 = vcmask 1041409
    %v581 = vsel %vm580, %v579, %v577
    %s582 = scalar_lea.vmem %s0, 227
    %v583 = vld [vmem:[%s582] sm:$0x4]
    %vm584 = vcmask 1042434
    %v585 = vsel %vm584, %v583, %v581
    %s586 = scalar_lea.vmem %s0, 162
    %v587 = vld [vmem:[%s586] sm:$0x8]
    %vm588 = vcmask 1043459
    %v589 = vsel %vm588, %v587, %v585
    %s590 = scalar_lea.vmem %s0, 353
    %v591 = vld [vmem:[%s590] sm:$0x10]
    %vm592 = vcmask 1044484
    %v593 = vsel %vm592, %v591, %v589
    %s594 = scalar_lea.vmem %s0, 288
    %v595 = vld [vmem:[%s594] sm:$0x20]
    %vm596 = vcmask 1045509
    %v597 = vsel %vm596, %v595, %v593
    %598 = vrot.lane.b32.xlu0 %v597, 94
    %v599 = vpop.permute.xlu0 %598
    %vm600 = vcmask 818928
    %s601 = scalar_lea.vmem [#allocation0], 32
    %602 = vst.msk [vmem:[%s601] ss:$-24 sm:$0x3] %vm600, %v599
    %s603 = scalar_lea.vmem [#allocation0], 128
    %604 = vst.msk [vmem:[%s603] ss:$-24 sm:$0xc] %vm600, %v599
    %s605 = scalar_lea.vmem [#allocation0], 224
    %606 = vst.msk [vmem:[%s605] ss:$-24 sm:$0x30] %vm600, %v599
    %s607 = scalar_lea.vmem %s0, 186
    %v608 = vld [vmem:[%s607] sm:$0x1]
    %s609 = scalar_lea.vmem %s0, 121
    %v610 = vld [vmem:[%s609] sm:$0x2]
    %vm611 = vcmask 1041409
    %v612 = vsel %vm611, %v610, %v608
    %s613 = scalar_lea.vmem %s0, 56
    %v614 = vld [vmem:[%s613] sm:$0x4]
    %vm615 = vcmask 1042434
    %v616 = vsel %vm615, %v614, %v612
    %s617 = scalar_lea.vmem %s0, 247
    %v618 = vld [vmem:[%s617] sm:$0x8]
    %vm619 = vcmask 1043459
    %v620 = vsel %vm619, %v618, %v616
    %s621 = scalar_lea.vmem %s0, 374
    %v622 = vld [vmem:[%s621] sm:$0x10]
    %vm623 = vcmask 1044484
    %v624 = vsel %vm623, %v622, %v620
    %s625 = scalar_lea.vmem %s0, 309
    %v626 = vld [vmem:[%s625] sm:$0x20]
    %vm627 = vcmask 1045509
    %v628 = vsel %vm627, %v626, %v624
    %629 = vrot.lane.b32.xlu0 %v628, 92
    %v630 = vpop.permute.xlu0 %629
    %vm631 = vcmask 802528
    %s632 = scalar_lea.vmem [#allocation0], 64
    %633 = vst.msk [vmem:[%s632] ss:$-24 sm:$0x7] %vm631, %v630
    %s634 = scalar_lea.vmem [#allocation0], 4294967240
    %635 = vst.msk [vmem:[%s634] ss:$48 sm:$0x18] %vm631, %v630
    %s636 = scalar_lea.vmem [#allocation0], 107
    %637 = vst.msk [vmem:[%s636] sm:$0x20] %vm631, %v630
    %s638 = scalar_lea.vmem %s0, 15
    %v639 = vld [vmem:[%s638] sm:$0x1]
    %s640 = scalar_lea.vmem %s0, 206
    %v641 = vld [vmem:[%s640] sm:$0x2]
    %vm642 = vcmask 1041409
    %v643 = vsel %vm642, %v641, %v639
    %s644 = scalar_lea.vmem %s0, 141
    %v645 = vld [vmem:[%s644] sm:$0x4]
    %vm646 = vcmask 1042434
    %v647 = vsel %vm646, %v645, %v643
    %s648 = scalar_lea.vmem %s0, 76
    %v649 = vld [vmem:[%s648] sm:$0x8]
    %vm650 = vcmask 1043459
    %v651 = vsel %vm650, %v649, %v647
    %s652 = scalar_lea.vmem %s0, 267
    %v653 = vld [vmem:[%s652] sm:$0x10]
    %vm654 = vcmask 1044484
    %v655 = vsel %vm654, %v653, %v651
    %s656 = scalar_lea.vmem %s0, 394
    %v657 = vld [vmem:[%s656] sm:$0x20]
    %vm658 = vcmask 1045509
    %v659 = vsel %vm658, %v657, %v655
    %s660 = scalar_lea.vmem %s0, 329
    %v661 = vld [vmem:[%s660] sm:$0x40]
    %vm662 = vcmask 1046534
    %v663 = vsel %vm662, %v661, %v659
    %664 = vrot.lane.b32.xlu0 %v663, 90
    %v665 = vpop.permute.xlu0 %664
    %vm666 = vcmask 786128
    %667 = vst.msk [vmem:[#allocation0] ss:$72 sm:$0x3] %vm666, %v665
    %s668 = scalar_lea.vmem [#allocation0], 96
    %669 = vst.msk [vmem:[%s668] ss:$-24 sm:$0xc] %vm666, %v665
    %s670 = scalar_lea.vmem [#allocation0], 4294967200
    %671 = vst.msk [vmem:[%s670] ss:$48 sm:$0x30] %vm666, %v665
    %s672 = scalar_lea.vmem [#allocation0], 114
    %673 = vst.msk [vmem:[%s672] sm:$0x40] %vm666, %v665
    %s674 = scalar_lea.vmem %s0, 100
    %v675 = vld [vmem:[%s674] sm:$0x1]
    %s676 = scalar_lea.vmem %s0, 35
    %v677 = vld [vmem:[%s676] sm:$0x2]
    %vm678 = vcmask 1041409
    %v679 = vsel %vm678, %v677, %v675
    %s680 = scalar_lea.vmem %s0, 226
    %v681 = vld [vmem:[%s680] sm:$0x4]
    %vm682 = vcmask 1042434
    %v683 = vsel %vm682, %v681, %v679
    %s684 = scalar_lea.vmem %s0, 161
    %v685 = vld [vmem:[%s684] sm:$0x8]
    %vm686 = vcmask 1043459
    %v687 = vsel %vm686, %v685, %v683
    %s688 = scalar_lea.vmem %s0, 352
    %v689 = vld [vmem:[%s688] sm:$0x10]
    %vm690 = vcmask 1044484
    %v691 = vsel %vm690, %v689, %v687
    %s692 = scalar_lea.vmem %s0, 287
    %v693 = vld [vmem:[%s692] sm:$0x20]
    %vm694 = vcmask 1045509
    %v695 = vsel %vm694, %v693, %v691
    %696 = vrot.lane.b32.xlu0 %v695, 88
    %v697 = vpop.permute.xlu0 %696
    %vm698 = vcmask 769728
    %s699 = scalar_lea.vmem [#allocation0], 32
    %700 = vst.msk [vmem:[%s699] ss:$-24 sm:$0x3] %vm698, %v697
    %s701 = scalar_lea.vmem [#allocation0], 128
    %702 = vst.msk [vmem:[%s701] ss:$-24 sm:$0xc] %vm698, %v697
    %s703 = scalar_lea.vmem [#allocation0], 224
    %704 = vst.msk [vmem:[%s703] ss:$-24 sm:$0x30] %vm698, %v697
    %s705 = scalar_lea.vmem %s0, 185
    %v706 = vld [vmem:[%s705] sm:$0x1]
    %s707 = scalar_lea.vmem %s0, 120
    %v708 = vld [vmem:[%s707] sm:$0x2]
    %vm709 = vcmask 1041409
    %v710 = vsel %vm709, %v708, %v706
    %s711 = scalar_lea.vmem %s0, 55
    %v712 = vld [vmem:[%s711] sm:$0x4]
    %vm713 = vcmask 1042434
    %v714 = vsel %vm713, %v712, %v710
    %s715 = scalar_lea.vmem %s0, 246
    %v716 = vld [vmem:[%s715] sm:$0x8]
    %vm717 = vcmask 1043459
    %v718 = vsel %vm717, %v716, %v714
    %s719 = scalar_lea.vmem %s0, 373
    %v720 = vld [vmem:[%s719] sm:$0x10]
    %vm721 = vcmask 1044484
    %v722 = vsel %vm721, %v720, %v718
    %s723 = scalar_lea.vmem %s0, 308
    %v724 = vld [vmem:[%s723] sm:$0x20]
    %vm725 = vcmask 1045509
    %v726 = vsel %vm725, %v724, %v722
    %727 = vrot.lane.b32.xlu0 %v726, 86
    %v728 = vpop.permute.xlu0 %727
    %vm729 = vcmask 753328
    %s730 = scalar_lea.vmem [#allocation0], 64
    %731 = vst.msk [vmem:[%s730] ss:$-24 sm:$0x7] %vm729, %v728
    %s732 = scalar_lea.vmem [#allocation0], 4294967240
    %733 = vst.msk [vmem:[%s732] ss:$48 sm:$0x18] %vm729, %v728
    %s734 = scalar_lea.vmem [#allocation0], 107
    %735 = vst.msk [vmem:[%s734] sm:$0x20] %vm729, %v728
    %s736 = scalar_lea.vmem %s0, 14
    %v737 = vld [vmem:[%s736] sm:$0x1]
    %s738 = scalar_lea.vmem %s0, 205
    %v739 = vld [vmem:[%s738] sm:$0x2]
    %vm740 = vcmask 1041409
    %v741 = vsel %vm740, %v739, %v737
    %s742 = scalar_lea.vmem %s0, 140
    %v743 = vld [vmem:[%s742] sm:$0x4]
    %vm744 = vcmask 1042434
    %v745 = vsel %vm744, %v743, %v741
    %s746 = scalar_lea.vmem %s0, 75
    %v747 = vld [vmem:[%s746] sm:$0x8]
    %vm748 = vcmask 1043459
    %v749 = vsel %vm748, %v747, %v745
    %s750 = scalar_lea.vmem %s0, 266
    %v751 = vld [vmem:[%s750] sm:$0x10]
    %vm752 = vcmask 1044484
    %v753 = vsel %vm752, %v751, %v749
    %s754 = scalar_lea.vmem %s0, 393
    %v755 = vld [vmem:[%s754] sm:$0x20]
    %vm756 = vcmask 1045509
    %v757 = vsel %vm756, %v755, %v753
    %s758 = scalar_lea.vmem %s0, 328
    %v759 = vld [vmem:[%s758] sm:$0x40]
    %vm760 = vcmask 1046534
    %v761 = vsel %vm760, %v759, %v757
    %762 = vrot.lane.b32.xlu0 %v761, 84
    %v763 = vpop.permute.xlu0 %762
    %vm764 = vcmask 736928
    %765 = vst.msk [vmem:[#allocation0] ss:$72 sm:$0x3] %vm764, %v763
    %s766 = scalar_lea.vmem [#allocation0], 96
    %767 = vst.msk [vmem:[%s766] ss:$-24 sm:$0xc] %vm764, %v763
    %s768 = scalar_lea.vmem [#allocation0], 4294967200
    %769 = vst.msk [vmem:[%s768] ss:$48 sm:$0x30] %vm764, %v763
    %s770 = scalar_lea.vmem [#allocation0], 114
    %771 = vst.msk [vmem:[%s770] sm:$0x40] %vm764, %v763
    %s772 = scalar_lea.vmem %s0, 99
    %v773 = vld [vmem:[%s772] sm:$0x1]
    %s774 = scalar_lea.vmem %s0, 34
    %v775 = vld [vmem:[%s774] sm:$0x2]
    %vm776 = vcmask 1041409
    %v777 = vsel %vm776, %v775, %v773
    %s778 = scalar_lea.vmem %s0, 225
    %v779 = vld [vmem:[%s778] sm:$0x4]
    %vm780 = vcmask 1042434
    %v781 = vsel %vm780, %v779, %v777
    %s782 = scalar_lea.vmem %s0, 160
    %v783 = vld [vmem:[%s782] sm:$0x8]
    %vm784 = vcmask 1043459
    %v785 = vsel %vm784, %v783, %v781
    %s786 = scalar_lea.vmem %s0, 351
    %v787 = vld [vmem:[%s786] sm:$0x10]
    %vm788 = vcmask 1044484
    %v789 = vsel %vm788, %v787, %v785
    %s790 = scalar_lea.vmem %s0, 286
    %v791 = vld [vmem:[%s790] sm:$0x20]
    %vm792 = vcmask 1045509
    %v793 = vsel %vm792, %v791, %v789
    %794 = vrot.lane.b32.xlu0 %v793, 82
    %v795 = vpop.permute.xlu0 %794
    %vm796 = vcmask 720528
    %s797 = scalar_lea.vmem [#allocation0], 32
    %798 = vst.msk [vmem:[%s797] ss:$-24 sm:$0x3] %vm796, %v795
    %s799 = scalar_lea.vmem [#allocation0], 128
    %800 = vst.msk [vmem:[%s799] ss:$-24 sm:$0xc] %vm796, %v795
    %s801 = scalar_lea.vmem [#allocation0], 224
    %802 = vst.msk [vmem:[%s801] ss:$-24 sm:$0x30] %vm796, %v795
    %s803 = scalar_lea.vmem %s0, 184
    %v804 = vld [vmem:[%s803] sm:$0x1]
    %s805 = scalar_lea.vmem %s0, 119
    %v806 = vld [vmem:[%s805] sm:$0x2]
    %vm807 = vcmask 1041409
    %v808 = vsel %vm807, %v806, %v804
    %s809 = scalar_lea.vmem %s0, 54
    %v810 = vld [vmem:[%s809] sm:$0x4]
    %vm811 = vcmask 1042434
    %v812 = vsel %vm811, %v810, %v808
    %s813 = scalar_lea.vmem %s0, 245
    %v814 = vld [vmem:[%s813] sm:$0x8]
    %vm815 = vcmask 1043459
    %v816 = vsel %vm815, %v814, %v812
    %s817 = scalar_lea.vmem %s0, 372
    %v818 = vld [vmem:[%s817] sm:$0x10]
    %vm819 = vcmask 1044484
    %v820 = vsel %vm819, %v818, %v816
    %s821 = scalar_lea.vmem %s0, 307
    %v822 = vld [vmem:[%s821] sm:$0x20]
    %vm823 = vcmask 1045509
    %v824 = vsel %vm823, %v822, %v820
    %825 = vrot.lane.b32.xlu0 %v824, 80
    %v826 = vpop.permute.xlu0 %825
    %vm827 = vcmask 704128
    %s828 = scalar_lea.vmem [#allocation0], 64
    %829 = vst.msk [vmem:[%s828] ss:$-24 sm:$0x7] %vm827, %v826
    %s830 = scalar_lea.vmem [#allocation0], 4294967240
    %831 = vst.msk [vmem:[%s830] ss:$48 sm:$0x18] %vm827, %v826
    %s832 = scalar_lea.vmem [#allocation0], 107
    %833 = vst.msk [vmem:[%s832] sm:$0x20] %vm827, %v826
    %s834 = scalar_lea.vmem %s0, 13
    %v835 = vld [vmem:[%s834] sm:$0x1]
    %s836 = scalar_lea.vmem %s0, 204
    %v837 = vld [vmem:[%s836] sm:$0x2]
    %vm838 = vcmask 1041409
    %v839 = vsel %vm838, %v837, %v835
    %s840 = scalar_lea.vmem %s0, 139
    %v841 = vld [vmem:[%s840] sm:$0x4]
    %vm842 = vcmask 1042434
    %v843 = vsel %vm842, %v841, %v839
    %s844 = scalar_lea.vmem %s0, 74
    %v845 = vld [vmem:[%s844] sm:$0x8]
    %vm846 = vcmask 1043459
    %v847 = vsel %vm846, %v845, %v843
    %s848 = scalar_lea.vmem %s0, 265
    %v849 = vld [vmem:[%s848] sm:$0x10]
    %vm850 = vcmask 1044484
    %v851 = vsel %vm850, %v849, %v847
    %s852 = scalar_lea.vmem %s0, 392
    %v853 = vld [vmem:[%s852] sm:$0x20]
    %vm854 = vcmask 1045509
    %v855 = vsel %vm854, %v853, %v851
    %s856 = scalar_lea.vmem %s0, 327
    %v857 = vld [vmem:[%s856] sm:$0x40]
    %vm858 = vcmask 1046534
    %v859 = vsel %vm858, %v857, %v855
    %860 = vrot.lane.b32.xlu0 %v859, 78
    %v861 = vpop.permute.xlu0 %860
    %vm862 = vcmask 687728
    %863 = vst.msk [vmem:[#allocation0] ss:$72 sm:$0x3] %vm862, %v861
    %s864 = scalar_lea.vmem [#allocation0], 96
    %865 = vst.msk [vmem:[%s864] ss:$-24 sm:$0xc] %vm862, %v861
    %s866 = scalar_lea.vmem [#allocation0], 4294967200
    %867 = vst.msk [vmem:[%s866] ss:$48 sm:$0x30] %vm862, %v861
    %s868 = scalar_lea.vmem [#allocation0], 114
    %869 = vst.msk [vmem:[%s868] sm:$0x40] %vm862, %v861
    %s870 = scalar_lea.vmem %s0, 98
    %v871 = vld [vmem:[%s870] sm:$0x1]
    %s872 = scalar_lea.vmem %s0, 33
    %v873 = vld [vmem:[%s872] sm:$0x2]
    %vm874 = vcmask 1041409
    %v875 = vsel %vm874, %v873, %v871
    %s876 = scalar_lea.vmem %s0, 224
    %v877 = vld [vmem:[%s876] sm:$0x4]
    %vm878 = vcmask 1042434
    %v879 = vsel %vm878, %v877, %v875
    %s880 = scalar_lea.vmem %s0, 159
    %v881 = vld [vmem:[%s880] sm:$0x8]
    %vm882 = vcmask 1043459
    %v883 = vsel %vm882, %v881, %v879
    %s884 = scalar_lea.vmem %s0, 350
    %v885 = vld [vmem:[%s884] sm:$0x10]
    %vm886 = vcmask 1044484
    %v887 = vsel %vm886, %v885, %v883
    %s888 = scalar_lea.vmem %s0, 285
    %v889 = vld [vmem:[%s888] sm:$0x20]
    %vm890 = vcmask 1045509
    %v891 = vsel %vm890, %v889, %v887
    %892 = vrot.lane.b32.xlu0 %v891, 76
    %v893 = vpop.permute.xlu0 %892
    %vm894 = vcmask 671328
    %s895 = scalar_lea.vmem [#allocation0], 32
    %896 = vst.msk [vmem:[%s895] ss:$-24 sm:$0x3] %vm894, %v893
    %s897 = scalar_lea.vmem [#allocation0], 128
    %898 = vst.msk [vmem:[%s897] ss:$-24 sm:$0xc] %vm894, %v893
    %s899 = scalar_lea.vmem [#allocation0], 224
    %900 = vst.msk [vmem:[%s899] ss:$-24 sm:$0x30] %vm894, %v893
    %s901 = scalar_lea.vmem %s0, 183
    %v902 = vld [vmem:[%s901] sm:$0x1]
    %s903 = scalar_lea.vmem %s0, 118
    %v904 = vld [vmem:[%s903] sm:$0x2]
    %vm905 = vcmask 1041409
    %v906 = vsel %vm905, %v904, %v902
    %s907 = scalar_lea.vmem %s0, 53
    %v908 = vld [vmem:[%s907] sm:$0x4]
    %vm909 = vcmask 1042434
    %v910 = vsel %vm909, %v908, %v906
    %s911 = scalar_lea.vmem %s0, 244
    %v912 = vld [vmem:[%s911] sm:$0x8]
    %vm913 = vcmask 1043459
    %v914 = vsel %vm913, %v912, %v910
    %s915 = scalar_lea.vmem %s0, 371
    %v916 = vld [vmem:[%s915] sm:$0x10]
    %vm917 = vcmask 1044484
    %v918 = vsel %vm917, %v916, %v914
    %s919 = scalar_lea.vmem %s0, 306
    %v920 = vld [vmem:[%s919] sm:$0x20]
    %vm921 = vcmask 1045509
    %v922 = vsel %vm921, %v920, %v918
    %923 = vrot.lane.b32.xlu0 %v922, 74
    %v924 = vpop.permute.xlu0 %923
    %vm925 = vcmask 654928
    %s926 = scalar_lea.vmem [#allocation0], 64
    %927 = vst.msk [vmem:[%s926] ss:$-24 sm:$0x7] %vm925, %v924
    %s928 = scalar_lea.vmem [#allocation0], 4294967240
    %929 = vst.msk [vmem:[%s928] ss:$48 sm:$0x18] %vm925, %v924
    %s930 = scalar_lea.vmem [#allocation0], 107
    %931 = vst.msk [vmem:[%s930] sm:$0x20] %vm925, %v924
    %s932 = scalar_lea.vmem %s0, 12
    %v933 = vld [vmem:[%s932] sm:$0x1]
    %s934 = scalar_lea.vmem %s0, 203
    %v935 = vld [vmem:[%s934] sm:$0x2]
    %vm936 = vcmask 1041409
    %v937 = vsel %vm936, %v935, %v933
    %s938 = scalar_lea.vmem %s0, 138
    %v939 = vld [vmem:[%s938] sm:$0x4]
    %vm940 = vcmask 1042434
    %v941 = vsel %vm940, %v939, %v937
    %s942 = scalar_lea.vmem %s0, 73
    %v943 = vld [vmem:[%s942] sm:$0x8]
    %vm944 = vcmask 1043459
    %v945 = vsel %vm944, %v943, %v941
    %s946 = scalar_lea.vmem %s0, 264
    %v947 = vld [vmem:[%s946] sm:$0x10]
    %vm948 = vcmask 1044484
    %v949 = vsel %vm948, %v947, %v945
    %s950 = scalar_lea.vmem %s0, 391
    %v951 = vld [vmem:[%s950] sm:$0x20]
    %vm952 = vcmask 1045509
    %v953 = vsel %vm952, %v951, %v949
    %s954 = scalar_lea.vmem %s0, 326
    %v955 = vld [vmem:[%s954] sm:$0x40]
    %vm956 = vcmask 1046534
    %v957 = vsel %vm956, %v955, %v953
    %958 = vrot.lane.b32.xlu0 %v957, 72
    %v959 = vpop.permute.xlu0 %958
    %vm960 = vcmask 638528
    %961 = vst.msk [vmem:[#allocation0] ss:$72 sm:$0x3] %vm960, %v959
    %s962 = scalar_lea.vmem [#allocation0], 96
    %963 = vst.msk [vmem:[%s962] ss:$-24 sm:$0xc] %vm960, %v959
    %s964 = scalar_lea.vmem [#allocation0], 4294967200
    %965 = vst.msk [vmem:[%s964] ss:$48 sm:$0x30] %vm960, %v959
    %s966 = scalar_lea.vmem [#allocation0], 114
    %967 = vst.msk [vmem:[%s966] sm:$0x40] %vm960, %v959
    %s968 = scalar_lea.vmem %s0, 97
    %v969 = vld [vmem:[%s968] sm:$0x1]
    %s970 = scalar_lea.vmem %s0, 32
    %v971 = vld [vmem:[%s970] sm:$0x2]
    %vm972 = vcmask 1041409
    %v973 = vsel %vm972, %v971, %v969
    %s974 = scalar_lea.vmem %s0, 223
    %v975 = vld [vmem:[%s974] sm:$0x4]
    %vm976 = vcmask 1042434
    %v977 = vsel %vm976, %v975, %v973
    %s978 = scalar_lea.vmem %s0, 158
    %v979 = vld [vmem:[%s978] sm:$0x8]
    %vm980 = vcmask 1043459
    %v981 = vsel %vm980, %v979, %v977
    %s982 = scalar_lea.vmem %s0, 349
    %v983 = vld [vmem:[%s982] sm:$0x10]
    %vm984 = vcmask 1044484
    %v985 = vsel %vm984, %v983, %v981
    %s986 = scalar_lea.vmem %s0, 284
    %v987 = vld [vmem:[%s986] sm:$0x20]
    %vm988 = vcmask 1045509
    %v989 = vsel %vm988, %v987, %v985
    %990 = vrot.lane.b32.xlu0 %v989, 70
    %v991 = vpop.permute.xlu0 %990
    %vm992 = vcmask 622128
    %s993 = scalar_lea.vmem [#allocation0], 32
    %994 = vst.msk [vmem:[%s993] ss:$-24 sm:$0x3] %vm992, %v991
    %s995 = scalar_lea.vmem [#allocation0], 128
    %996 = vst.msk [vmem:[%s995] ss:$-24 sm:$0xc] %vm992, %v991
    %s997 = scalar_lea.vmem [#allocation0], 224
    %998 = vst.msk [vmem:[%s997] ss:$-24 sm:$0x30] %vm992, %v991
    %s999 = scalar_lea.vmem %s0, 182
    %v1000 = vld [vmem:[%s999] sm:$0x1]
    %s1001 = scalar_lea.vmem %s0, 117
    %v1002 = vld [vmem:[%s1001] sm:$0x2]
    %vm1003 = vcmask 1041409
    %v1004 = vsel %vm1003, %v1002, %v1000
    %s1005 = scalar_lea.vmem %s0, 52
    %v1006 = vld [vmem:[%s1005] sm:$0x4]
    %vm1007 = vcmask 1042434
    %v1008 = vsel %vm1007, %v1006, %v1004
    %s1009 = scalar_lea.vmem %s0, 243
    %v1010 = vld [vmem:[%s1009] sm:$0x8]
    %vm1011 = vcmask 1043459
    %v1012 = vsel %vm1011, %v1010, %v1008
    %s1013 = scalar_lea.vmem %s0, 370
    %v1014 = vld [vmem:[%s1013] sm:$0x10]
    %vm1015 = vcmask 1044484
    %v1016 = vsel %vm1015, %v1014, %v1012
    %s1017 = scalar_lea.vmem %s0, 305
    %v1018 = vld [vmem:[%s1017] sm:$0x20]
    %vm1019 = vcmask 1045509
    %v1020 = vsel %vm1019, %v1018, %v1016
    %1021 = vrot.lane.b32.xlu0 %v1020, 68
    %v1022 = vpop.permute.xlu0 %1021
    %vm1023 = vcmask 605728
    %s1024 = scalar_lea.vmem [#allocation0], 64
    %1025 = vst.msk [vmem:[%s1024] ss:$-24 sm:$0x7] %vm1023, %v1022
    %s1026 = scalar_lea.vmem [#allocation0], 4294967240
    %1027 = vst.msk [vmem:[%s1026] ss:$48 sm:$0x18] %vm1023, %v1022
    %s1028 = scalar_lea.vmem [#allocation0], 107
    %1029 = vst.msk [vmem:[%s1028] sm:$0x20] %vm1023, %v1022
    %s1030 = scalar_lea.vmem %s0, 11
    %v1031 = vld [vmem:[%s1030] sm:$0x1]
    %s1032 = scalar_lea.vmem %s0, 202
    %v1033 = vld [vmem:[%s1032] sm:$0x2]
    %vm1034 = vcmask 1041409
    %v1035 = vsel %vm1034, %v1033, %v1031
    %s1036 = scalar_lea.vmem %s0, 137
    %v1037 = vld [vmem:[%s1036] sm:$0x4]
    %vm1038 = vcmask 1042434
    %v1039 = vsel %vm1038, %v1037, %v1035
    %s1040 = scalar_lea.vmem %s0, 72
    %v1041 = vld [vmem:[%s1040] sm:$0x8]
    %vm1042 = vcmask 1043459
    %v1043 = vsel %vm1042, %v1041, %v1039
    %s1044 = scalar_lea.vmem %s0, 263
    %v1045 = vld [vmem:[%s1044] sm:$0x10]
    %vm1046 = vcmask 1044484
    %v1047 = vsel %vm1046, %v1045, %v1043
    %s1048 = scalar_lea.vmem %s0, 390
    %v1049 = vld [vmem:[%s1048] sm:$0x20]
    %vm1050 = vcmask 1045509
    %v1051 = vsel %vm1050, %v1049, %v1047
    %s1052 = scalar_lea.vmem %s0, 325
    %v1053 = vld [vmem:[%s1052] sm:$0x40]
    %vm1054 = vcmask 1046534
    %v1055 = vsel %vm1054, %v1053, %v1051
    %1056 = vrot.lane.b32.xlu0 %v1055, 66
    %v1057 = vpop.permute.xlu0 %1056
    %vm1058 = vcmask 589328
    %1059 = vst.msk [vmem:[#allocation0] ss:$72 sm:$0x3] %vm1058, %v1057
    %s1060 = scalar_lea.vmem [#allocation0], 96
    %1061 = vst.msk [vmem:[%s1060] ss:$-24 sm:$0xc] %vm1058, %v1057
    %s1062 = scalar_lea.vmem [#allocation0], 4294967200
    %1063 = vst.msk [vmem:[%s1062] ss:$48 sm:$0x30] %vm1058, %v1057
    %s1064 = scalar_lea.vmem [#allocation0], 114
    %1065 = vst.msk [vmem:[%s1064] sm:$0x40] %vm1058, %v1057
    %s1066 = scalar_lea.vmem %s0, 96
    %v1067 = vld [vmem:[%s1066] sm:$0x1]
    %s1068 = scalar_lea.vmem %s0, 31
    %v1069 = vld [vmem:[%s1068] sm:$0x2]
    %vm1070 = vcmask 1041409
    %v1071 = vsel %vm1070, %v1069, %v1067
    %s1072 = scalar_lea.vmem %s0, 222
    %v1073 = vld [vmem:[%s1072] sm:$0x4]
    %vm1074 = vcmask 1042434
    %v1075 = vsel %vm1074, %v1073, %v1071
    %s1076 = scalar_lea.vmem %s0, 157
    %v1077 = vld [vmem:[%s1076] sm:$0x8]
    %vm1078 = vcmask 1043459
    %v1079 = vsel %vm1078, %v1077, %v1075
    %s1080 = scalar_lea.vmem %s0, 348
    %v1081 = vld [vmem:[%s1080] sm:$0x10]
    %vm1082 = vcmask 1044484
    %v1083 = vsel %vm1082, %v1081, %v1079
    %s1084 = scalar_lea.vmem %s0, 283
    %v1085 = vld [vmem:[%s1084] sm:$0x20]
    %vm1086 = vcmask 1045509
    %v1087 = vsel %vm1086, %v1085, %v1083
    %1088 = vrot.lane.b32.xlu0 %v1087, 64
    %v1089 = vpop.permute.xlu0 %1088
    %vm1090 = vcmask 572928
    %s1091 = scalar_lea.vmem [#allocation0], 32
    %1092 = vst.msk [vmem:[%s1091] ss:$-24 sm:$0x3] %vm1090, %v1089
    %s1093 = scalar_lea.vmem [#allocation0], 128
    %1094 = vst.msk [vmem:[%s1093] ss:$-24 sm:$0xc] %vm1090, %v1089
    %s1095 = scalar_lea.vmem [#allocation0], 224
    %1096 = vst.msk [vmem:[%s1095] ss:$-24 sm:$0x30] %vm1090, %v1089
    %s1097 = scalar_lea.vmem %s0, 181
    %v1098 = vld [vmem:[%s1097] sm:$0x1]
    %s1099 = scalar_lea.vmem %s0, 116
    %v1100 = vld [vmem:[%s1099] sm:$0x2]
    %vm1101 = vcmask 1041409
    %v1102 = vsel %vm1101, %v1100, %v1098
    %s1103 = scalar_lea.vmem %s0, 51
    %v1104 = vld [vmem:[%s1103] sm:$0x4]
    %vm1105 = vcmask 1042434
    %v1106 = vsel %vm1105, %v1104, %v1102
    %s1107 = scalar_lea.vmem %s0, 242
    %v1108 = vld [vmem:[%s1107] sm:$0x8]
    %vm1109 = vcmask 1043459
    %v1110 = vsel %vm1109, %v1108, %v1106
    %s1111 = scalar_lea.vmem %s0, 369
    %v1112 = vld [vmem:[%s1111] sm:$0x10]
    %vm1113 = vcmask 1044484
    %v1114 = vsel %vm1113, %v1112, %v1110
    %s1115 = scalar_lea.vmem %s0, 304
    %v1116 = vld [vmem:[%s1115] sm:$0x20]
    %vm1117 = vcmask 1045509
    %v1118 = vsel %vm1117, %v1116, %v1114
    %1119 = vrot.lane.b32.xlu0 %v1118, 62
    %v1120 = vpop.permute.xlu0 %1119
    %vm1121 = vcmask 556528
    %s1122 = scalar_lea.vmem [#allocation0], 64
    %1123 = vst.msk [vmem:[%s1122] ss:$-24 sm:$0x7] %vm1121, %v1120
    %s1124 = scalar_lea.vmem [#allocation0], 4294967240
    %1125 = vst.msk [vmem:[%s1124] ss:$48 sm:$0x18] %vm1121, %v1120
    %s1126 = scalar_lea.vmem [#allocation0], 107
    %1127 = vst.msk [vmem:[%s1126] sm:$0x20] %vm1121, %v1120
    %s1128 = scalar_lea.vmem %s0, 10
    %v1129 = vld [vmem:[%s1128] sm:$0x1]
    %s1130 = scalar_lea.vmem %s0, 201
    %v1131 = vld [vmem:[%s1130] sm:$0x2]
    %vm1132 = vcmask 1041409
    %v1133 = vsel %vm1132, %v1131, %v1129
    %s1134 = scalar_lea.vmem %s0, 136
    %v1135 = vld [vmem:[%s1134] sm:$0x4]
    %vm1136 = vcmask 1042434
    %v1137 = vsel %vm1136, %v1135, %v1133
    %s1138 = scalar_lea.vmem %s0, 71
    %v1139 = vld [vmem:[%s1138] sm:$0x8]
    %vm1140 = vcmask 1043459
    %v1141 = vsel %vm1140, %v1139, %v1137
    %s1142 = scalar_lea.vmem %s0, 262
    %v1143 = vld [vmem:[%s1142] sm:$0x10]
    %vm1144 = vcmask 1044484
    %v1145 = vsel %vm1144, %v1143, %v1141
    %s1146 = scalar_lea.vmem %s0, 389
    %v1147 = vld [vmem:[%s1146] sm:$0x20]
    %vm1148 = vcmask 1045509
    %v1149 = vsel %vm1148, %v1147, %v1145
    %s1150 = scalar_lea.vmem %s0, 324
    %v1151 = vld [vmem:[%s1150] sm:$0x40]
    %vm1152 = vcmask 1046534
    %v1153 = vsel %vm1152, %v1151, %v1149
    %1154 = vrot.lane.b32.xlu0 %v1153, 60
    %v1155 = vpop.permute.xlu0 %1154
    %vm1156 = vcmask 540128
    %1157 = vst.msk [vmem:[#allocation0] ss:$72 sm:$0x3] %vm1156, %v1155
    %s1158 = scalar_lea.vmem [#allocation0], 96
    %1159 = vst.msk [vmem:[%s1158] ss:$-24 sm:$0xc] %vm1156, %v1155
    %s1160 = scalar_lea.vmem [#allocation0], 4294967200
    %1161 = vst.msk [vmem:[%s1160] ss:$48 sm:$0x30] %vm1156, %v1155
    %s1162 = scalar_lea.vmem [#allocation0], 114
    %1163 = vst.msk [vmem:[%s1162] sm:$0x40] %vm1156, %v1155
    %s1164 = scalar_lea.vmem %s0, 95
    %v1165 = vld [vmem:[%s1164] sm:$0x1]
    %s1166 = scalar_lea.vmem %s0, 30
    %v1167 = vld [vmem:[%s1166] sm:$0x2]
    %vm1168 = vcmask 1041409
    %v1169 = vsel %vm1168, %v1167, %v1165
    %s1170 = scalar_lea.vmem %s0, 221
    %v1171 = vld [vmem:[%s1170] sm:$0x4]
    %vm1172 = vcmask 1042434
    %v1173 = vsel %vm1172, %v1171, %v1169
    %s1174 = scalar_lea.vmem %s0, 156
    %v1175 = vld [vmem:[%s1174] sm:$0x8]
    %vm1176 = vcmask 1043459
    %v1177 = vsel %vm1176, %v1175, %v1173
    %s1178 = scalar_lea.vmem %s0, 347
    %v1179 = vld [vmem:[%s1178] sm:$0x10]
    %vm1180 = vcmask 1044484
    %v1181 = vsel %vm1180, %v1179, %v1177
    %s1182 = scalar_lea.vmem %s0, 282
    %v1183 = vld [vmem:[%s1182] sm:$0x20]
    %vm1184 = vcmask 1045509
    %v1185 = vsel %vm1184, %v1183, %v1181
    %1186 = vrot.lane.b32.xlu0 %v1185, 58
    %v1187 = vpop.permute.xlu0 %1186
    %vm1188 = vcmask 523728
    %s1189 = scalar_lea.vmem [#allocation0], 32
    %1190 = vst.msk [vmem:[%s1189] ss:$-24 sm:$0x3] %vm1188, %v1187
    %s1191 = scalar_lea.vmem [#allocation0], 128
    %1192 = vst.msk [vmem:[%s1191] ss:$-24 sm:$0xc] %vm1188, %v1187
    %s1193 = scalar_lea.vmem [#allocation0], 224
    %1194 = vst.msk [vmem:[%s1193] ss:$-24 sm:$0x30] %vm1188, %v1187
    %s1195 = scalar_lea.vmem %s0, 180
    %v1196 = vld [vmem:[%s1195] sm:$0x1]
    %s1197 = scalar_lea.vmem %s0, 115
    %v1198 = vld [vmem:[%s1197] sm:$0x2]
    %vm1199 = vcmask 1041409
    %v1200 = vsel %vm1199, %v1198, %v1196
    %s1201 = scalar_lea.vmem %s0, 50
    %v1202 = vld [vmem:[%s1201] sm:$0x4]
    %vm1203 = vcmask 1042434
    %v1204 = vsel %vm1203, %v1202, %v1200
    %s1205 = scalar_lea.vmem %s0, 241
    %v1206 = vld [vmem:[%s1205] sm:$0x8]
    %vm1207 = vcmask 1043459
    %v1208 = vsel %vm1207, %v1206, %v1204
    %s1209 = scalar_lea.vmem %s0, 368
    %v1210 = vld [vmem:[%s1209] sm:$0x10]
    %vm1211 = vcmask 1044484
    %v1212 = vsel %vm1211, %v1210, %v1208
    %s1213 = scalar_lea.vmem %s0, 303
    %v1214 = vld [vmem:[%s1213] sm:$0x20]
    %vm1215 = vcmask 1045509
    %v1216 = vsel %vm1215, %v1214, %v1212
    %1217 = vrot.lane.b32.xlu0 %v1216, 56
    %v1218 = vpop.permute.xlu0 %1217
    %vm1219 = vcmask 507328
    %s1220 = scalar_lea.vmem [#allocation0], 64
    %1221 = vst.msk [vmem:[%s1220] ss:$-24 sm:$0x7] %vm1219, %v1218
    %s1222 = scalar_lea.vmem [#allocation0], 4294967240
    %1223 = vst.msk [vmem:[%s1222] ss:$48 sm:$0x18] %vm1219, %v1218
    %s1224 = scalar_lea.vmem [#allocation0], 107
    %1225 = vst.msk [vmem:[%s1224] sm:$0x20] %vm1219, %v1218
    %s1226 = scalar_lea.vmem %s0, 9
    %v1227 = vld [vmem:[%s1226] sm:$0x1]
    %s1228 = scalar_lea.vmem %s0, 200
    %v1229 = vld [vmem:[%s1228] sm:$0x2]
    %vm1230 = vcmask 1041409
    %v1231 = vsel %vm1230, %v1229, %v1227
    %s1232 = scalar_lea.vmem %s0, 135
    %v1233 = vld [vmem:[%s1232] sm:$0x4]
    %vm1234 = vcmask 1042434
    %v1235 = vsel %vm1234, %v1233, %v1231
    %s1236 = scalar_lea.vmem %s0, 70
    %v1237 = vld [vmem:[%s1236] sm:$0x8]
    %vm1238 = vcmask 1043459
    %v1239 = vsel %vm1238, %v1237, %v1235
    %s1240 = scalar_lea.vmem %s0, 261
    %v1241 = vld [vmem:[%s1240] sm:$0x10]
    %vm1242 = vcmask 1044484
    %v1243 = vsel %vm1242, %v1241, %v1239
    %s1244 = scalar_lea.vmem %s0, 388
    %v1245 = vld [vmem:[%s1244] sm:$0x20]
    %vm1246 = vcmask 1045509
    %v1247 = vsel %vm1246, %v1245, %v1243
    %s1248 = scalar_lea.vmem %s0, 323
    %v1249 = vld [vmem:[%s1248] sm:$0x40]
    %vm1250 = vcmask 1046534
    %v1251 = vsel %vm1250, %v1249, %v1247
    %1252 = vrot.lane.b32.xlu0 %v1251, 54
    %v1253 = vpop.permute.xlu0 %1252
    %vm1254 = vcmask 490928
    %1255 = vst.msk [vmem:[#allocation0] ss:$72 sm:$0x3] %vm1254, %v1253
    %s1256 = scalar_lea.vmem [#allocation0], 96
    %1257 = vst.msk [vmem:[%s1256] ss:$-24 sm:$0xc] %vm1254, %v1253
    %s1258 = scalar_lea.vmem [#allocation0], 4294967200
    %1259 = vst.msk [vmem:[%s1258] ss:$48 sm:$0x30] %vm1254, %v1253
    %s1260 = scalar_lea.vmem [#allocation0], 114
    %1261 = vst.msk [vmem:[%s1260] sm:$0x40] %vm1254, %v1253
    %s1262 = scalar_lea.vmem %s0, 94
    %v1263 = vld [vmem:[%s1262] sm:$0x1]
    %s1264 = scalar_lea.vmem %s0, 29
    %v1265 = vld [vmem:[%s1264] sm:$0x2]
    %vm1266 = vcmask 1041409
    %v1267 = vsel %vm1266, %v1265, %v1263
    %s1268 = scalar_lea.vmem %s0, 220
    %v1269 = vld [vmem:[%s1268] sm:$0x4]
    %vm1270 = vcmask 1042434
    %v1271 = vsel %vm1270, %v1269, %v1267
    %s1272 = scalar_lea.vmem %s0, 155
    %v1273 = vld [vmem:[%s1272] sm:$0x8]
    %vm1274 = vcmask 1043459
    %v1275 = vsel %vm1274, %v1273, %v1271
    %s1276 = scalar_lea.vmem %s0, 346
    %v1277 = vld [vmem:[%s1276] sm:$0x10]
    %vm1278 = vcmask 1044484
    %v1279 = vsel %vm1278, %v1277, %v1275
    %s1280 = scalar_lea.vmem %s0, 281
    %v1281 = vld [vmem:[%s1280] sm:$0x20]
    %vm1282 = vcmask 1045509
    %v1283 = vsel %vm1282, %v1281, %v1279
    %1284 = vrot.lane.b32.xlu0 %v1283, 52
    %v1285 = vpop.permute.xlu0 %1284
    %vm1286 = vcmask 474528
    %s1287 = scalar_lea.vmem [#allocation0], 32
    %1288 = vst.msk [vmem:[%s1287] ss:$-24 sm:$0x3] %vm1286, %v1285
    %s1289 = scalar_lea.vmem [#allocation0], 128
    %1290 = vst.msk [vmem:[%s1289] ss:$-24 sm:$0xc] %vm1286, %v1285
    %s1291 = scalar_lea.vmem [#allocation0], 224
    %1292 = vst.msk [vmem:[%s1291] ss:$-24 sm:$0x30] %vm1286, %v1285
    %s1293 = scalar_lea.vmem %s0, 179
    %v1294 = vld [vmem:[%s1293] sm:$0x1]
    %s1295 = scalar_lea.vmem %s0, 114
    %v1296 = vld [vmem:[%s1295] sm:$0x2]
    %vm1297 = vcmask 1041409
    %v1298 = vsel %vm1297, %v1296, %v1294
    %s1299 = scalar_lea.vmem %s0, 49
    %v1300 = vld [vmem:[%s1299] sm:$0x4]
    %vm1301 = vcmask 1042434
    %v1302 = vsel %vm1301, %v1300, %v1298
    %s1303 = scalar_lea.vmem %s0, 240
    %v1304 = vld [vmem:[%s1303] sm:$0x8]
    %vm1305 = vcmask 1043459
    %v1306 = vsel %vm1305, %v1304, %v1302
    %s1307 = scalar_lea.vmem %s0, 367
    %v1308 = vld [vmem:[%s1307] sm:$0x10]
    %vm1309 = vcmask 1044484
    %v1310 = vsel %vm1309, %v1308, %v1306
    %s1311 = scalar_lea.vmem %s0, 302
    %v1312 = vld [vmem:[%s1311] sm:$0x20]
    %vm1313 = vcmask 1045509
    %v1314 = vsel %vm1313, %v1312, %v1310
    %1315 = vrot.lane.b32.xlu0 %v1314, 50
    %v1316 = vpop.permute.xlu0 %1315
    %vm1317 = vcmask 458128
    %s1318 = scalar_lea.vmem [#allocation0], 64
    %1319 = vst.msk [vmem:[%s1318] ss:$-24 sm:$0x7] %vm1317, %v1316
    %s1320 = scalar_lea.vmem [#allocation0], 4294967240
    %1321 = vst.msk [vmem:[%s1320] ss:$48 sm:$0x18] %vm1317, %v1316
    %s1322 = scalar_lea.vmem [#allocation0], 107
    %1323 = vst.msk [vmem:[%s1322] sm:$0x20] %vm1317, %v1316
    %s1324 = scalar_lea.vmem %s0, 8
    %v1325 = vld [vmem:[%s1324] sm:$0x1]
    %s1326 = scalar_lea.vmem %s0, 199
    %v1327 = vld [vmem:[%s1326] sm:$0x2]
    %vm1328 = vcmask 1041409
    %v1329 = vsel %vm1328, %v1327, %v1325
    %s1330 = scalar_lea.vmem %s0, 134
    %v1331 = vld [vmem:[%s1330] sm:$0x4]
    %vm1332 = vcmask 1042434
    %v1333 = vsel %vm1332, %v1331, %v1329
    %s1334 = scalar_lea.vmem %s0, 69
    %v1335 = vld [vmem:[%s1334] sm:$0x8]
    %vm1336 = vcmask 1043459
    %v1337 = vsel %vm1336, %v1335, %v1333
    %s1338 = scalar_lea.vmem %s0, 260
    %v1339 = vld [vmem:[%s1338] sm:$0x10]
    %vm1340 = vcmask 1044484
    %v1341 = vsel %vm1340, %v1339, %v1337
    %s1342 = scalar_lea.vmem %s0, 387
    %v1343 = vld [vmem:[%s1342] sm:$0x20]
    %vm1344 = vcmask 1045509
    %v1345 = vsel %vm1344, %v1343, %v1341
    %s1346 = scalar_lea.vmem %s0, 322
    %v1347 = vld [vmem:[%s1346] sm:$0x40]
    %vm1348 = vcmask 1046534
    %v1349 = vsel %vm1348, %v1347, %v1345
    %1350 = vrot.lane.b32.xlu0 %v1349, 48
    %v1351 = vpop.permute.xlu0 %1350
    %vm1352 = vcmask 441728
    %1353 = vst.msk [vmem:[#allocation0] ss:$72 sm:$0x3] %vm1352, %v1351
    %s1354 = scalar_lea.vmem [#allocation0], 96
    %1355 = vst.msk [vmem:[%s1354] ss:$-24 sm:$0xc] %vm1352, %v1351
    %s1356 = scalar_lea.vmem [#allocation0], 4294967200
    %1357 = vst.msk [vmem:[%s1356] ss:$48 sm:$0x30] %vm1352, %v1351
    %s1358 = scalar_lea.vmem [#allocation0], 114
    %1359 = vst.msk [vmem:[%s1358] sm:$0x40] %vm1352, %v1351
    %s1360 = scalar_lea.vmem %s0, 93
    %v1361 = vld [vmem:[%s1360] sm:$0x1]
    %s1362 = scalar_lea.vmem %s0, 28
    %v1363 = vld [vmem:[%s1362] sm:$0x2]
    %vm1364 = vcmask 1041409
    %v1365 = vsel %vm1364, %v1363, %v1361
    %s1366 = scalar_lea.vmem %s0, 219
    %v1367 = vld [vmem:[%s1366] sm:$0x4]
    %vm1368 = vcmask 1042434
    %v1369 = vsel %vm1368, %v1367, %v1365
    %s1370 = scalar_lea.vmem %s0, 154
    %v1371 = vld [vmem:[%s1370] sm:$0x8]
    %vm1372 = vcmask 1043459
    %v1373 = vsel %vm1372, %v1371, %v1369
    %s1374 = scalar_lea.vmem %s0, 345
    %v1375 = vld [vmem:[%s1374] sm:$0x10]
    %vm1376 = vcmask 1044484
    %v1377 = vsel %vm1376, %v1375, %v1373
    %s1378 = scalar_lea.vmem %s0, 280
    %v1379 = vld [vmem:[%s1378] sm:$0x20]
    %vm1380 = vcmask 1045509
    %v1381 = vsel %vm1380, %v1379, %v1377
    %1382 = vrot.lane.b32.xlu0 %v1381, 46
    %v1383 = vpop.permute.xlu0 %1382
    %vm1384 = vcmask 425328
    %s1385 = scalar_lea.vmem [#allocation0], 32
    %1386 = vst.msk [vmem:[%s1385] ss:$-24 sm:$0x3] %vm1384, %v1383
    %s1387 = scalar_lea.vmem [#allocation0], 128
    %1388 = vst.msk [vmem:[%s1387] ss:$-24 sm:$0xc] %vm1384, %v1383
    %s1389 = scalar_lea.vmem [#allocation0], 224
    %1390 = vst.msk [vmem:[%s1389] ss:$-24 sm:$0x30] %vm1384, %v1383
    %s1391 = scalar_lea.vmem %s0, 178
    %v1392 = vld [vmem:[%s1391] sm:$0x1]
    %s1393 = scalar_lea.vmem %s0, 113
    %v1394 = vld [vmem:[%s1393] sm:$0x2]
    %vm1395 = vcmask 1041409
    %v1396 = vsel %vm1395, %v1394, %v1392
    %s1397 = scalar_lea.vmem %s0, 48
    %v1398 = vld [vmem:[%s1397] sm:$0x4]
    %vm1399 = vcmask 1042434
    %v1400 = vsel %vm1399, %v1398, %v1396
    %s1401 = scalar_lea.vmem %s0, 239
    %v1402 = vld [vmem:[%s1401] sm:$0x8]
    %vm1403 = vcmask 1043459
    %v1404 = vsel %vm1403, %v1402, %v1400
    %s1405 = scalar_lea.vmem %s0, 366
    %v1406 = vld [vmem:[%s1405] sm:$0x10]
    %vm1407 = vcmask 1044484
    %v1408 = vsel %vm1407, %v1406, %v1404
    %s1409 = scalar_lea.vmem %s0, 301
    %v1410 = vld [vmem:[%s1409] sm:$0x20]
    %vm1411 = vcmask 1045509
    %v1412 = vsel %vm1411, %v1410, %v1408
    %1413 = vrot.lane.b32.xlu0 %v1412, 44
    %v1414 = vpop.permute.xlu0 %1413
    %vm1415 = vcmask 408928
    %s1416 = scalar_lea.vmem [#allocation0], 64
    %1417 = vst.msk [vmem:[%s1416] ss:$-24 sm:$0x7] %vm1415, %v1414
    %s1418 = scalar_lea.vmem [#allocation0], 4294967240
    %1419 = vst.msk [vmem:[%s1418] ss:$48 sm:$0x18] %vm1415, %v1414
    %s1420 = scalar_lea.vmem [#allocation0], 107
    %1421 = vst.msk [vmem:[%s1420] sm:$0x20] %vm1415, %v1414
    %s1422 = scalar_lea.vmem %s0, 7
    %v1423 = vld [vmem:[%s1422] sm:$0x1]
    %s1424 = scalar_lea.vmem %s0, 198
    %v1425 = vld [vmem:[%s1424] sm:$0x2]
    %vm1426 = vcmask 1041409
    %v1427 = vsel %vm1426, %v1425, %v1423
    %s1428 = scalar_lea.vmem %s0, 133
    %v1429 = vld [vmem:[%s1428] sm:$0x4]
    %vm1430 = vcmask 1042434
    %v1431 = vsel %vm1430, %v1429, %v1427
    %s1432 = scalar_lea.vmem %s0, 68
    %v1433 = vld [vmem:[%s1432] sm:$0x8]
    %vm1434 = vcmask 1043459
    %v1435 = vsel %vm1434, %v1433, %v1431
    %s1436 = scalar_lea.vmem %s0, 259
    %v1437 = vld [vmem:[%s1436] sm:$0x10]
    %vm1438 = vcmask 1044484
    %v1439 = vsel %vm1438, %v1437, %v1435
    %s1440 = scalar_lea.vmem %s0, 386
    %v1441 = vld [vmem:[%s1440] sm:$0x20]
    %vm1442 = vcmask 1045509
    %v1443 = vsel %vm1442, %v1441, %v1439
    %s1444 = scalar_lea.vmem %s0, 321
    %v1445 = vld [vmem:[%s1444] sm:$0x40]
    %vm1446 = vcmask 1046534
    %v1447 = vsel %vm1446, %v1445, %v1443
    %1448 = vrot.lane.b32.xlu0 %v1447, 42
    %v1449 = vpop.permute.xlu0 %1448
    %vm1450 = vcmask 392528
    %1451 = vst.msk [vmem:[#allocation0] ss:$72 sm:$0x3] %vm1450, %v1449
    %s1452 = scalar_lea.vmem [#allocation0], 96
    %1453 = vst.msk [vmem:[%s1452] ss:$-24 sm:$0xc] %vm1450, %v1449
    %s1454 = scalar_lea.vmem [#allocation0], 4294967200
    %1455 = vst.msk [vmem:[%s1454] ss:$48 sm:$0x30] %vm1450, %v1449
    %s1456 = scalar_lea.vmem [#allocation0], 114
    %1457 = vst.msk [vmem:[%s1456] sm:$0x40] %vm1450, %v1449
    %s1458 = scalar_lea.vmem %s0, 92
    %v1459 = vld [vmem:[%s1458] sm:$0x1]
    %s1460 = scalar_lea.vmem %s0, 27
    %v1461 = vld [vmem:[%s1460] sm:$0x2]
    %vm1462 = vcmask 1041409
    %v1463 = vsel %vm1462, %v1461, %v1459
    %s1464 = scalar_lea.vmem %s0, 218
    %v1465 = vld [vmem:[%s1464] sm:$0x4]
    %vm1466 = vcmask 1042434
    %v1467 = vsel %vm1466, %v1465, %v1463
    %s1468 = scalar_lea.vmem %s0, 153
    %v1469 = vld [vmem:[%s1468] sm:$0x8]
    %vm1470 = vcmask 1043459
    %v1471 = vsel %vm1470, %v1469, %v1467
    %s1472 = scalar_lea.vmem %s0, 344
    %v1473 = vld [vmem:[%s1472] sm:$0x10]
    %vm1474 = vcmask 1044484
    %v1475 = vsel %vm1474, %v1473, %v1471
    %s1476 = scalar_lea.vmem %s0, 279
    %v1477 = vld [vmem:[%s1476] sm:$0x20]
    %vm1478 = vcmask 1045509
    %v1479 = vsel %vm1478, %v1477, %v1475
    %1480 = vrot.lane.b32.xlu0 %v1479, 40
    %v1481 = vpop.permute.xlu0 %1480
    %vm1482 = vcmask 376128
    %s1483 = scalar_lea.vmem [#allocation0], 32
    %1484 = vst.msk [vmem:[%s1483] ss:$-24 sm:$0x3] %vm1482, %v1481
    %s1485 = scalar_lea.vmem [#allocation0], 128
    %1486 = vst.msk [vmem:[%s1485] ss:$-24 sm:$0xc] %vm1482, %v1481
    %s1487 = scalar_lea.vmem [#allocation0], 224
    %1488 = vst.msk [vmem:[%s1487] ss:$-24 sm:$0x30] %vm1482, %v1481
    %s1489 = scalar_lea.vmem %s0, 177
    %v1490 = vld [vmem:[%s1489] sm:$0x1]
    %s1491 = scalar_lea.vmem %s0, 112
    %v1492 = vld [vmem:[%s1491] sm:$0x2]
    %vm1493 = vcmask 1041409
    %v1494 = vsel %vm1493, %v1492, %v1490
    %s1495 = scalar_lea.vmem %s0, 47
    %v1496 = vld [vmem:[%s1495] sm:$0x4]
    %vm1497 = vcmask 1042434
    %v1498 = vsel %vm1497, %v1496, %v1494
    %s1499 = scalar_lea.vmem %s0, 238
    %v1500 = vld [vmem:[%s1499] sm:$0x8]
    %vm1501 = vcmask 1043459
    %v1502 = vsel %vm1501, %v1500, %v1498
    %s1503 = scalar_lea.vmem %s0, 365
    %v1504 = vld [vmem:[%s1503] sm:$0x10]
    %vm1505 = vcmask 1044484
    %v1506 = vsel %vm1505, %v1504, %v1502
    %s1507 = scalar_lea.vmem %s0, 300
    %v1508 = vld [vmem:[%s1507] sm:$0x20]
    %vm1509 = vcmask 1045509
    %v1510 = vsel %vm1509, %v1508, %v1506
    %1511 = vrot.lane.b32.xlu0 %v1510, 38
    %v1512 = vpop.permute.xlu0 %1511
    %vm1513 = vcmask 359728
    %s1514 = scalar_lea.vmem [#allocation0], 64
    %1515 = vst.msk [vmem:[%s1514] ss:$-24 sm:$0x7] %vm1513, %v1512
    %s1516 = scalar_lea.vmem [#allocation0], 4294967240
    %1517 = vst.msk [vmem:[%s1516] ss:$48 sm:$0x18] %vm1513, %v1512
    %s1518 = scalar_lea.vmem [#allocation0], 107
    %1519 = vst.msk [vmem:[%s1518] sm:$0x20] %vm1513, %v1512
    %s1520 = scalar_lea.vmem %s0, 6
    %v1521 = vld [vmem:[%s1520] sm:$0x1]
    %s1522 = scalar_lea.vmem %s0, 197
    %v1523 = vld [vmem:[%s1522] sm:$0x2]
    %vm1524 = vcmask 1041409
    %v1525 = vsel %vm1524, %v1523, %v1521
    %s1526 = scalar_lea.vmem %s0, 132
    %v1527 = vld [vmem:[%s1526] sm:$0x4]
    %vm1528 = vcmask 1042434
    %v1529 = vsel %vm1528, %v1527, %v1525
    %s1530 = scalar_lea.vmem %s0, 67
    %v1531 = vld [vmem:[%s1530] sm:$0x8]
    %vm1532 = vcmask 1043459
    %v1533 = vsel %vm1532, %v1531, %v1529
    %s1534 = scalar_lea.vmem %s0, 258
    %v1535 = vld [vmem:[%s1534] sm:$0x10]
    %vm1536 = vcmask 1044484
    %v1537 = vsel %vm1536, %v1535, %v1533
    %s1538 = scalar_lea.vmem %s0, 385
    %v1539 = vld [vmem:[%s1538] sm:$0x20]
    %vm1540 = vcmask 1045509
    %v1541 = vsel %vm1540, %v1539, %v1537
    %s1542 = scalar_lea.vmem %s0, 320
    %v1543 = vld [vmem:[%s1542] sm:$0x40]
    %vm1544 = vcmask 1046534
    %v1545 = vsel %vm1544, %v1543, %v1541
    %1546 = vrot.lane.b32.xlu0 %v1545, 36
    %v1547 = vpop.permute.xlu0 %1546
    %vm1548 = vcmask 343328
    %1549 = vst.msk [vmem:[#allocation0] ss:$72 sm:$0x3] %vm1548, %v1547
    %s1550 = scalar_lea.vmem [#allocation0], 96
    %1551 = vst.msk [vmem:[%s1550] ss:$-24 sm:$0xc] %vm1548, %v1547
    %s1552 = scalar_lea.vmem [#allocation0], 4294967200
    %1553 = vst.msk [vmem:[%s1552] ss:$48 sm:$0x30] %vm1548, %v1547
    %s1554 = scalar_lea.vmem [#allocation0], 114
    %1555 = vst.msk [vmem:[%s1554] sm:$0x40] %vm1548, %v1547
    %s1556 = scalar_lea.vmem %s0, 91
    %v1557 = vld [vmem:[%s1556] sm:$0x1]
    %s1558 = scalar_lea.vmem %s0, 26
    %v1559 = vld [vmem:[%s1558] sm:$0x2]
    %vm1560 = vcmask 1041409
    %v1561 = vsel %vm1560, %v1559, %v1557
    %s1562 = scalar_lea.vmem %s0, 217
    %v1563 = vld [vmem:[%s1562] sm:$0x4]
    %vm1564 = vcmask 1042434
    %v1565 = vsel %vm1564, %v1563, %v1561
    %s1566 = scalar_lea.vmem %s0, 152
    %v1567 = vld [vmem:[%s1566] sm:$0x8]
    %vm1568 = vcmask 1043459
    %v1569 = vsel %vm1568, %v1567, %v1565
    %s1570 = scalar_lea.vmem %s0, 343
    %v1571 = vld [vmem:[%s1570] sm:$0x10]
    %vm1572 = vcmask 1044484
    %v1573 = vsel %vm1572, %v1571, %v1569
    %s1574 = scalar_lea.vmem %s0, 278
    %v1575 = vld [vmem:[%s1574] sm:$0x20]
    %vm1576 = vcmask 1045509
    %v1577 = vsel %vm1576, %v1575, %v1573
    %1578 = vrot.lane.b32.xlu0 %v1577, 34
    %v1579 = vpop.permute.xlu0 %1578
    %vm1580 = vcmask 326928
    %s1581 = scalar_lea.vmem [#allocation0], 32
    %1582 = vst.msk [vmem:[%s1581] ss:$-24 sm:$0x3] %vm1580, %v1579
    %s1583 = scalar_lea.vmem [#allocation0], 128
    %1584 = vst.msk [vmem:[%s1583] ss:$-24 sm:$0xc] %vm1580, %v1579
    %s1585 = scalar_lea.vmem [#allocation0], 224
    %1586 = vst.msk [vmem:[%s1585] ss:$-24 sm:$0x30] %vm1580, %v1579
    %s1587 = scalar_lea.vmem %s0, 176
    %v1588 = vld [vmem:[%s1587] sm:$0x1]
    %s1589 = scalar_lea.vmem %s0, 111
    %v1590 = vld [vmem:[%s1589] sm:$0x2]
    %vm1591 = vcmask 1041409
    %v1592 = vsel %vm1591, %v1590, %v1588
    %s1593 = scalar_lea.vmem %s0, 46
    %v1594 = vld [vmem:[%s1593] sm:$0x4]
    %vm1595 = vcmask 1042434
    %v1596 = vsel %vm1595, %v1594, %v1592
    %s1597 = scalar_lea.vmem %s0, 237
    %v1598 = vld [vmem:[%s1597] sm:$0x8]
    %vm1599 = vcmask 1043459
    %v1600 = vsel %vm1599, %v1598, %v1596
    %s1601 = scalar_lea.vmem %s0, 364
    %v1602 = vld [vmem:[%s1601] sm:$0x10]
    %vm1603 = vcmask 1044484
    %v1604 = vsel %vm1603, %v1602, %v1600
    %s1605 = scalar_lea.vmem %s0, 299
    %v1606 = vld [vmem:[%s1605] sm:$0x20]
    %vm1607 = vcmask 1045509
    %v1608 = vsel %vm1607, %v1606, %v1604
    %1609 = vrot.lane.b32.xlu0 %v1608, 32
    %v1610 = vpop.permute.xlu0 %1609
    %vm1611 = vcmask 310528
    %s1612 = scalar_lea.vmem [#allocation0], 64
    %1613 = vst.msk [vmem:[%s1612] ss:$-24 sm:$0x7] %vm1611, %v1610
    %s1614 = scalar_lea.vmem [#allocation0], 4294967240
    %1615 = vst.msk [vmem:[%s1614] ss:$48 sm:$0x18] %vm1611, %v1610
    %s1616 = scalar_lea.vmem [#allocation0], 107
    %1617 = vst.msk [vmem:[%s1616] sm:$0x20] %vm1611, %v1610
    %s1618 = scalar_lea.vmem %s0, 5
    %v1619 = vld [vmem:[%s1618] sm:$0x1]
    %s1620 = scalar_lea.vmem %s0, 196
    %v1621 = vld [vmem:[%s1620] sm:$0x2]
    %vm1622 = vcmask 1041409
    %v1623 = vsel %vm1622, %v1621, %v1619
    %s1624 = scalar_lea.vmem %s0, 131
    %v1625 = vld [vmem:[%s1624] sm:$0x4]
    %vm1626 = vcmask 1042434
    %v1627 = vsel %vm1626, %v1625, %v1623
    %s1628 = scalar_lea.vmem %s0, 66
    %v1629 = vld [vmem:[%s1628] sm:$0x8]
    %vm1630 = vcmask 1043459
    %v1631 = vsel %vm1630, %v1629, %v1627
    %s1632 = scalar_lea.vmem %s0, 257
    %v1633 = vld [vmem:[%s1632] sm:$0x10]
    %vm1634 = vcmask 1044484
    %v1635 = vsel %vm1634, %v1633, %v1631
    %s1636 = scalar_lea.vmem %s0, 384
    %v1637 = vld [vmem:[%s1636] sm:$0x20]
    %vm1638 = vcmask 1045509
    %v1639 = vsel %vm1638, %v1637, %v1635
    %s1640 = scalar_lea.vmem %s0, 319
    %v1641 = vld [vmem:[%s1640] sm:$0x40]
    %vm1642 = vcmask 1046534
    %v1643 = vsel %vm1642, %v1641, %v1639
    %1644 = vrot.lane.b32.xlu0 %v1643, 30
    %v1645 = vpop.permute.xlu0 %1644
    %vm1646 = vcmask 294128
    %1647 = vst.msk [vmem:[#allocation0] ss:$72 sm:$0x3] %vm1646, %v1645
    %s1648 = scalar_lea.vmem [#allocation0], 96
    %1649 = vst.msk [vmem:[%s1648] ss:$-24 sm:$0xc] %vm1646, %v1645
    %s1650 = scalar_lea.vmem [#allocation0], 4294967200
    %1651 = vst.msk [vmem:[%s1650] ss:$48 sm:$0x30] %vm1646, %v1645
    %s1652 = scalar_lea.vmem [#allocation0], 114
    %1653 = vst.msk [vmem:[%s1652] sm:$0x40] %vm1646, %v1645
    %s1654 = scalar_lea.vmem %s0, 90
    %v1655 = vld [vmem:[%s1654] sm:$0x1]
    %s1656 = scalar_lea.vmem %s0, 25
    %v1657 = vld [vmem:[%s1656] sm:$0x2]
    %vm1658 = vcmask 1041409
    %v1659 = vsel %vm1658, %v1657, %v1655
    %s1660 = scalar_lea.vmem %s0, 216
    %v1661 = vld [vmem:[%s1660] sm:$0x4]
    %vm1662 = vcmask 1042434
    %v1663 = vsel %vm1662, %v1661, %v1659
    %s1664 = scalar_lea.vmem %s0, 151
    %v1665 = vld [vmem:[%s1664] sm:$0x8]
    %vm1666 = vcmask 1043459
    %v1667 = vsel %vm1666, %v1665, %v1663
    %s1668 = scalar_lea.vmem %s0, 342
    %v1669 = vld [vmem:[%s1668] sm:$0x10]
    %vm1670 = vcmask 1044484
    %v1671 = vsel %vm1670, %v1669, %v1667
    %s1672 = scalar_lea.vmem %s0, 277
    %v1673 = vld [vmem:[%s1672] sm:$0x20]
    %vm1674 = vcmask 1045509
    %v1675 = vsel %vm1674, %v1673, %v1671
    %1676 = vrot.lane.b32.xlu0 %v1675, 28
    %v1677 = vpop.permute.xlu0 %1676
    %vm1678 = vcmask 277728
    %s1679 = scalar_lea.vmem [#allocation0], 32
    %1680 = vst.msk [vmem:[%s1679] ss:$-24 sm:$0x3] %vm1678, %v1677
    %s1681 = scalar_lea.vmem [#allocation0], 128
    %1682 = vst.msk [vmem:[%s1681] ss:$-24 sm:$0xc] %vm1678, %v1677
    %s1683 = scalar_lea.vmem [#allocation0], 224
    %1684 = vst.msk [vmem:[%s1683] ss:$-24 sm:$0x30] %vm1678, %v1677
    %s1685 = scalar_lea.vmem %s0, 175
    %v1686 = vld [vmem:[%s1685] sm:$0x1]
    %s1687 = scalar_lea.vmem %s0, 110
    %v1688 = vld [vmem:[%s1687] sm:$0x2]
    %vm1689 = vcmask 1041409
    %v1690 = vsel %vm1689, %v1688, %v1686
    %s1691 = scalar_lea.vmem %s0, 45
    %v1692 = vld [vmem:[%s1691] sm:$0x4]
    %vm1693 = vcmask 1042434
    %v1694 = vsel %vm1693, %v1692, %v1690
    %s1695 = scalar_lea.vmem %s0, 236
    %v1696 = vld [vmem:[%s1695] sm:$0x8]
    %vm1697 = vcmask 1043459
    %v1698 = vsel %vm1697, %v1696, %v1694
    %s1699 = scalar_lea.vmem %s0, 363
    %v1700 = vld [vmem:[%s1699] sm:$0x10]
    %vm1701 = vcmask 1044484
    %v1702 = vsel %vm1701, %v1700, %v1698
    %s1703 = scalar_lea.vmem %s0, 298
    %v1704 = vld [vmem:[%s1703] sm:$0x20]
    %vm1705 = vcmask 1045509
    %v1706 = vsel %vm1705, %v1704, %v1702
    %1707 = vrot.lane.b32.xlu0 %v1706, 26
    %v1708 = vpop.permute.xlu0 %1707
    %vm1709 = vcmask 261328
    %s1710 = scalar_lea.vmem [#allocation0], 64
    %1711 = vst.msk [vmem:[%s1710] ss:$-24 sm:$0x7] %vm1709, %v1708
    %s1712 = scalar_lea.vmem [#allocation0], 4294967240
    %1713 = vst.msk [vmem:[%s1712] ss:$48 sm:$0x18] %vm1709, %v1708
    %s1714 = scalar_lea.vmem [#allocation0], 107
    %1715 = vst.msk [vmem:[%s1714] sm:$0x20] %vm1709, %v1708
    %s1716 = scalar_lea.vmem %s0, 4
    %v1717 = vld [vmem:[%s1716] sm:$0x1]
    %s1718 = scalar_lea.vmem %s0, 195
    %v1719 = vld [vmem:[%s1718] sm:$0x2]
    %vm1720 = vcmask 1041409
    %v1721 = vsel %vm1720, %v1719, %v1717
    %s1722 = scalar_lea.vmem %s0, 130
    %v1723 = vld [vmem:[%s1722] sm:$0x4]
    %vm1724 = vcmask 1042434
    %v1725 = vsel %vm1724, %v1723, %v1721
    %s1726 = scalar_lea.vmem %s0, 65
    %v1727 = vld [vmem:[%s1726] sm:$0x8]
    %vm1728 = vcmask 1043459
    %v1729 = vsel %vm1728, %v1727, %v1725
    %s1730 = scalar_lea.vmem %s0, 256
    %v1731 = vld [vmem:[%s1730] sm:$0x10]
    %vm1732 = vcmask 1044484
    %v1733 = vsel %vm1732, %v1731, %v1729
    %s1734 = scalar_lea.vmem %s0, 383
    %v1735 = vld [vmem:[%s1734] sm:$0x20]
    %vm1736 = vcmask 1045509
    %v1737 = vsel %vm1736, %v1735, %v1733
    %s1738 = scalar_lea.vmem %s0, 318
    %v1739 = vld [vmem:[%s1738] sm:$0x40]
    %vm1740 = vcmask 1046534
    %v1741 = vsel %vm1740, %v1739, %v1737
    %1742 = vrot.lane.b32.xlu0 %v1741, 24
    %v1743 = vpop.permute.xlu0 %1742
    %vm1744 = vcmask 244928
    %1745 = vst.msk [vmem:[#allocation0] ss:$72 sm:$0x3] %vm1744, %v1743
    %s1746 = scalar_lea.vmem [#allocation0], 96
    %1747 = vst.msk [vmem:[%s1746] ss:$-24 sm:$0xc] %vm1744, %v1743
    %s1748 = scalar_lea.vmem [#allocation0], 4294967200
    %1749 = vst.msk [vmem:[%s1748] ss:$48 sm:$0x30] %vm1744, %v1743
    %s1750 = scalar_lea.vmem [#allocation0], 114
    %1751 = vst.msk [vmem:[%s1750] sm:$0x40] %vm1744, %v1743
    %s1752 = scalar_lea.vmem %s0, 89
    %v1753 = vld [vmem:[%s1752] sm:$0x1]
    %s1754 = scalar_lea.vmem %s0, 24
    %v1755 = vld [vmem:[%s1754] sm:$0x2]
    %vm1756 = vcmask 1041409
    %v1757 = vsel %vm1756, %v1755, %v1753
    %s1758 = scalar_lea.vmem %s0, 215
    %v1759 = vld [vmem:[%s1758] sm:$0x4]
    %vm1760 = vcmask 1042434
    %v1761 = vsel %vm1760, %v1759, %v1757
    %s1762 = scalar_lea.vmem %s0, 150
    %v1763 = vld [vmem:[%s1762] sm:$0x8]
    %vm1764 = vcmask 1043459
    %v1765 = vsel %vm1764, %v1763, %v1761
    %s1766 = scalar_lea.vmem %s0, 341
    %v1767 = vld [vmem:[%s1766] sm:$0x10]
    %vm1768 = vcmask 1044484
    %v1769 = vsel %vm1768, %v1767, %v1765
    %s1770 = scalar_lea.vmem %s0, 276
    %v1771 = vld [vmem:[%s1770] sm:$0x20]
    %vm1772 = vcmask 1045509
    %v1773 = vsel %vm1772, %v1771, %v1769
    %1774 = vrot.lane.b32.xlu0 %v1773, 22
    %v1775 = vpop.permute.xlu0 %1774
    %vm1776 = vcmask 228528
    %s1777 = scalar_lea.vmem [#allocation0], 32
    %1778 = vst.msk [vmem:[%s1777] ss:$-24 sm:$0x3] %vm1776, %v1775
    %s1779 = scalar_lea.vmem [#allocation0], 128
    %1780 = vst.msk [vmem:[%s1779] ss:$-24 sm:$0xc] %vm1776, %v1775
    %s1781 = scalar_lea.vmem [#allocation0], 224
    %1782 = vst.msk [vmem:[%s1781] ss:$-24 sm:$0x30] %vm1776, %v1775
    %s1783 = scalar_lea.vmem %s0, 174
    %v1784 = vld [vmem:[%s1783] sm:$0x1]
    %s1785 = scalar_lea.vmem %s0, 109
    %v1786 = vld [vmem:[%s1785] sm:$0x2]
    %vm1787 = vcmask 1041409
    %v1788 = vsel %vm1787, %v1786, %v1784
    %s1789 = scalar_lea.vmem %s0, 44
    %v1790 = vld [vmem:[%s1789] sm:$0x4]
    %vm1791 = vcmask 1042434
    %v1792 = vsel %vm1791, %v1790, %v1788
    %s1793 = scalar_lea.vmem %s0, 235
    %v1794 = vld [vmem:[%s1793] sm:$0x8]
    %vm1795 = vcmask 1043459
    %v1796 = vsel %vm1795, %v1794, %v1792
    %s1797 = scalar_lea.vmem %s0, 362
    %v1798 = vld [vmem:[%s1797] sm:$0x10]
    %vm1799 = vcmask 1044484
    %v1800 = vsel %vm1799, %v1798, %v1796
    %s1801 = scalar_lea.vmem %s0, 297
    %v1802 = vld [vmem:[%s1801] sm:$0x20]
    %vm1803 = vcmask 1045509
    %v1804 = vsel %vm1803, %v1802, %v1800
    %1805 = vrot.lane.b32.xlu0 %v1804, 20
    %v1806 = vpop.permute.xlu0 %1805
    %vm1807 = vcmask 212128
    %s1808 = scalar_lea.vmem [#allocation0], 64
    %1809 = vst.msk [vmem:[%s1808] ss:$-24 sm:$0x7] %vm1807, %v1806
    %s1810 = scalar_lea.vmem [#allocation0], 4294967240
    %1811 = vst.msk [vmem:[%s1810] ss:$48 sm:$0x18] %vm1807, %v1806
    %s1812 = scalar_lea.vmem [#allocation0], 107
    %1813 = vst.msk [vmem:[%s1812] sm:$0x20] %vm1807, %v1806
    %s1814 = scalar_lea.vmem %s0, 3
    %v1815 = vld [vmem:[%s1814] sm:$0x1]
    %s1816 = scalar_lea.vmem %s0, 194
    %v1817 = vld [vmem:[%s1816] sm:$0x2]
    %vm1818 = vcmask 1041409
    %v1819 = vsel %vm1818, %v1817, %v1815
    %s1820 = scalar_lea.vmem %s0, 129
    %v1821 = vld [vmem:[%s1820] sm:$0x4]
    %vm1822 = vcmask 1042434
    %v1823 = vsel %vm1822, %v1821, %v1819
    %s1824 = scalar_lea.vmem %s0, 64
    %v1825 = vld [vmem:[%s1824] sm:$0x8]
    %vm1826 = vcmask 1043459
    %v1827 = vsel %vm1826, %v1825, %v1823
    %s1828 = scalar_lea.vmem %s0, 255
    %v1829 = vld [vmem:[%s1828] sm:$0x10]
    %vm1830 = vcmask 1044484
    %v1831 = vsel %vm1830, %v1829, %v1827
    %s1832 = scalar_lea.vmem %s0, 382
    %v1833 = vld [vmem:[%s1832] sm:$0x20]
    %vm1834 = vcmask 1045509
    %v1835 = vsel %vm1834, %v1833, %v1831
    %s1836 = scalar_lea.vmem %s0, 317
    %v1837 = vld [vmem:[%s1836] sm:$0x40]
    %vm1838 = vcmask 1046534
    %v1839 = vsel %vm1838, %v1837, %v1835
    %1840 = vrot.lane.b32.xlu0 %v1839, 18
    %v1841 = vpop.permute.xlu0 %1840
    %vm1842 = vcmask 195728
    %1843 = vst.msk [vmem:[#allocation0] ss:$72 sm:$0x3] %vm1842, %v1841
    %s1844 = scalar_lea.vmem [#allocation0], 96
    %1845 = vst.msk [vmem:[%s1844] ss:$-24 sm:$0xc] %vm1842, %v1841
    %s1846 = scalar_lea.vmem [#allocation0], 4294967200
    %1847 = vst.msk [vmem:[%s1846] ss:$48 sm:$0x30] %vm1842, %v1841
    %s1848 = scalar_lea.vmem [#allocation0], 114
    %1849 = vst.msk [vmem:[%s1848] sm:$0x40] %vm1842, %v1841
    %s1850 = scalar_lea.vmem %s0, 88
    %v1851 = vld [vmem:[%s1850] sm:$0x1]
    %s1852 = scalar_lea.vmem %s0, 23
    %v1853 = vld [vmem:[%s1852] sm:$0x2]
    %vm1854 = vcmask 1041409
    %v1855 = vsel %vm1854, %v1853, %v1851
    %s1856 = scalar_lea.vmem %s0, 214
    %v1857 = vld [vmem:[%s1856] sm:$0x4]
    %vm1858 = vcmask 1042434
    %v1859 = vsel %vm1858, %v1857, %v1855
    %s1860 = scalar_lea.vmem %s0, 149
    %v1861 = vld [vmem:[%s1860] sm:$0x8]
    %vm1862 = vcmask 1043459
    %v1863 = vsel %vm1862, %v1861, %v1859
    %s1864 = scalar_lea.vmem %s0, 340
    %v1865 = vld [vmem:[%s1864] sm:$0x10]
    %vm1866 = vcmask 1044484
    %v1867 = vsel %vm1866, %v1865, %v1863
    %s1868 = scalar_lea.vmem %s0, 275
    %v1869 = vld [vmem:[%s1868] sm:$0x20]
    %vm1870 = vcmask 1045509
    %v1871 = vsel %vm1870, %v1869, %v1867
    %1872 = vrot.lane.b32.xlu0 %v1871, 16
    %v1873 = vpop.permute.xlu0 %1872
    %vm1874 = vcmask 179328
    %s1875 = scalar_lea.vmem [#allocation0], 32
    %1876 = vst.msk [vmem:[%s1875] ss:$-24 sm:$0x3] %vm1874, %v1873
    %s1877 = scalar_lea.vmem [#allocation0], 128
    %1878 = vst.msk [vmem:[%s1877] ss:$-24 sm:$0xc] %vm1874, %v1873
    %s1879 = scalar_lea.vmem [#allocation0], 224
    %1880 = vst.msk [vmem:[%s1879] ss:$-24 sm:$0x30] %vm1874, %v1873
    %s1881 = scalar_lea.vmem %s0, 173
    %v1882 = vld [vmem:[%s1881] sm:$0x1]
    %s1883 = scalar_lea.vmem %s0, 108
    %v1884 = vld [vmem:[%s1883] sm:$0x2]
    %vm1885 = vcmask 1041409
    %v1886 = vsel %vm1885, %v1884, %v1882
    %s1887 = scalar_lea.vmem %s0, 43
    %v1888 = vld [vmem:[%s1887] sm:$0x4]
    %vm1889 = vcmask 1042434
    %v1890 = vsel %vm1889, %v1888, %v1886
    %s1891 = scalar_lea.vmem %s0, 234
    %v1892 = vld [vmem:[%s1891] sm:$0x8]
    %vm1893 = vcmask 1043459
    %v1894 = vsel %vm1893, %v1892, %v1890
    %s1895 = scalar_lea.vmem %s0, 361
    %v1896 = vld [vmem:[%s1895] sm:$0x10]
    %vm1897 = vcmask 1044484
    %v1898 = vsel %vm1897, %v1896, %v1894
    %s1899 = scalar_lea.vmem %s0, 296
    %v1900 = vld [vmem:[%s1899] sm:$0x20]
    %vm1901 = vcmask 1045509
    %v1902 = vsel %vm1901, %v1900, %v1898
    %1903 = vrot.lane.b32.xlu0 %v1902, 14
    %v1904 = vpop.permute.xlu0 %1903
    %vm1905 = vcmask 162928
    %s1906 = scalar_lea.vmem [#allocation0], 64
    %1907 = vst.msk [vmem:[%s1906] ss:$-24 sm:$0x7] %vm1905, %v1904
    %s1908 = scalar_lea.vmem [#allocation0], 4294967240
    %1909 = vst.msk [vmem:[%s1908] ss:$48 sm:$0x18] %vm1905, %v1904
    %s1910 = scalar_lea.vmem [#allocation0], 107
    %1911 = vst.msk [vmem:[%s1910] sm:$0x20] %vm1905, %v1904
    %s1912 = scalar_lea.vmem %s0, 2
    %v1913 = vld [vmem:[%s1912] sm:$0x1]
    %s1914 = scalar_lea.vmem %s0, 193
    %v1915 = vld [vmem:[%s1914] sm:$0x2]
    %vm1916 = vcmask 1041409
    %v1917 = vsel %vm1916, %v1915, %v1913
    %s1918 = scalar_lea.vmem %s0, 128
    %v1919 = vld [vmem:[%s1918] sm:$0x4]
    %vm1920 = vcmask 1042434
    %v1921 = vsel %vm1920, %v1919, %v1917
    %s1922 = scalar_lea.vmem %s0, 63
    %v1923 = vld [vmem:[%s1922] sm:$0x8]
    %vm1924 = vcmask 1043459
    %v1925 = vsel %vm1924, %v1923, %v1921
    %s1926 = scalar_lea.vmem %s0, 254
    %v1927 = vld [vmem:[%s1926] sm:$0x10]
    %vm1928 = vcmask 1044484
    %v1929 = vsel %vm1928, %v1927, %v1925
    %s1930 = scalar_lea.vmem %s0, 381
    %v1931 = vld [vmem:[%s1930] sm:$0x20]
    %vm1932 = vcmask 1045509
    %v1933 = vsel %vm1932, %v1931, %v1929
    %s1934 = scalar_lea.vmem %s0, 316
    %v1935 = vld [vmem:[%s1934] sm:$0x40]
    %vm1936 = vcmask 1046534
    %v1937 = vsel %vm1936, %v1935, %v1933
    %1938 = vrot.lane.b32.xlu0 %v1937, 12
    %v1939 = vpop.permute.xlu0 %1938
    %vm1940 = vcmask 146528
    %1941 = vst.msk [vmem:[#allocation0] ss:$72 sm:$0x3] %vm1940, %v1939
    %s1942 = scalar_lea.vmem [#allocation0], 96
    %1943 = vst.msk [vmem:[%s1942] ss:$-24 sm:$0xc] %vm1940, %v1939
    %s1944 = scalar_lea.vmem [#allocation0], 4294967200
    %1945 = vst.msk [vmem:[%s1944] ss:$48 sm:$0x30] %vm1940, %v1939
    %s1946 = scalar_lea.vmem [#allocation0], 114
    %1947 = vst.msk [vmem:[%s1946] sm:$0x40] %vm1940, %v1939
    %s1948 = scalar_lea.vmem %s0, 87
    %v1949 = vld [vmem:[%s1948] sm:$0x1]
    %s1950 = scalar_lea.vmem %s0, 22
    %v1951 = vld [vmem:[%s1950] sm:$0x2]
    %vm1952 = vcmask 1041409
    %v1953 = vsel %vm1952, %v1951, %v1949
    %s1954 = scalar_lea.vmem %s0, 213
    %v1955 = vld [vmem:[%s1954] sm:$0x4]
    %vm1956 = vcmask 1042434
    %v1957 = vsel %vm1956, %v1955, %v1953
    %s1958 = scalar_lea.vmem %s0, 148
    %v1959 = vld [vmem:[%s1958] sm:$0x8]
    %vm1960 = vcmask 1043459
    %v1961 = vsel %vm1960, %v1959, %v1957
    %s1962 = scalar_lea.vmem %s0, 339
    %v1963 = vld [vmem:[%s1962] sm:$0x10]
    %vm1964 = vcmask 1044484
    %v1965 = vsel %vm1964, %v1963, %v1961
    %s1966 = scalar_lea.vmem %s0, 274
    %v1967 = vld [vmem:[%s1966] sm:$0x20]
    %vm1968 = vcmask 1045509
    %v1969 = vsel %vm1968, %v1967, %v1965
    %1970 = vrot.lane.b32.xlu0 %v1969, 10
    %v1971 = vpop.permute.xlu0 %1970
    %vm1972 = vcmask 130128
    %s1973 = scalar_lea.vmem [#allocation0], 32
    %1974 = vst.msk [vmem:[%s1973] ss:$-24 sm:$0x3] %vm1972, %v1971
    %s1975 = scalar_lea.vmem [#allocation0], 128
    %1976 = vst.msk [vmem:[%s1975] ss:$-24 sm:$0xc] %vm1972, %v1971
    %s1977 = scalar_lea.vmem [#allocation0], 224
    %1978 = vst.msk [vmem:[%s1977] ss:$-24 sm:$0x30] %vm1972, %v1971
    %s1979 = scalar_lea.vmem %s0, 172
    %v1980 = vld [vmem:[%s1979] sm:$0x1]
    %s1981 = scalar_lea.vmem %s0, 107
    %v1982 = vld [vmem:[%s1981] sm:$0x2]
    %vm1983 = vcmask 1041409
    %v1984 = vsel %vm1983, %v1982, %v1980
    %s1985 = scalar_lea.vmem %s0, 42
    %v1986 = vld [vmem:[%s1985] sm:$0x4]
    %vm1987 = vcmask 1042434
    %v1988 = vsel %vm1987, %v1986, %v1984
    %s1989 = scalar_lea.vmem %s0, 233
    %v1990 = vld [vmem:[%s1989] sm:$0x8]
    %vm1991 = vcmask 1043459
    %v1992 = vsel %vm1991, %v1990, %v1988
    %s1993 = scalar_lea.vmem %s0, 360
    %v1994 = vld [vmem:[%s1993] sm:$0x10]
    %vm1995 = vcmask 1044484
    %v1996 = vsel %vm1995, %v1994, %v1992
    %s1997 = scalar_lea.vmem %s0, 295
    %v1998 = vld [vmem:[%s1997] sm:$0x20]
    %vm1999 = vcmask 1045509
    %v2000 = vsel %vm1999, %v1998, %v1996
    %2001 = vrot.lane.b32.xlu0 %v2000, 8
    %v2002 = vpop.permute.xlu0 %2001
    %vm2003 = vcmask 113728
    %s2004 = scalar_lea.vmem [#allocation0], 64
    %2005 = vst.msk [vmem:[%s2004] ss:$-24 sm:$0x7] %vm2003, %v2002
    %s2006 = scalar_lea.vmem [#allocation0], 4294967240
    %2007 = vst.msk [vmem:[%s2006] ss:$48 sm:$0x18] %vm2003, %v2002
    %s2008 = scalar_lea.vmem [#allocation0], 107
    %2009 = vst.msk [vmem:[%s2008] sm:$0x20] %vm2003, %v2002
    %s2010 = scalar_lea.vmem %s0, 1
    %v2011 = vld [vmem:[%s2010] sm:$0x1]
    %s2012 = scalar_lea.vmem %s0, 192
    %v2013 = vld [vmem:[%s2012] sm:$0x2]
    %vm2014 = vcmask 1041409
    %v2015 = vsel %vm2014, %v2013, %v2011
    %s2016 = scalar_lea.vmem %s0, 127
    %v2017 = vld [vmem:[%s2016] sm:$0x4]
    %vm2018 = vcmask 1042434
    %v2019 = vsel %vm2018, %v2017, %v2015
    %s2020 = scalar_lea.vmem %s0, 62
    %v2021 = vld [vmem:[%s2020] sm:$0x8]
    %vm2022 = vcmask 1043459
    %v2023 = vsel %vm2022, %v2021, %v2019
    %s2024 = scalar_lea.vmem %s0, 253
    %v2025 = vld [vmem:[%s2024] sm:$0x10]
    %vm2026 = vcmask 1044484
    %v2027 = vsel %vm2026, %v2025, %v2023
    %s2028 = scalar_lea.vmem %s0, 380
    %v2029 = vld [vmem:[%s2028] sm:$0x20]
    %vm2030 = vcmask 1045509
    %v2031 = vsel %vm2030, %v2029, %v2027
    %s2032 = scalar_lea.vmem %s0, 315
    %v2033 = vld [vmem:[%s2032] sm:$0x40]
    %vm2034 = vcmask 1046534
    %v2035 = vsel %vm2034, %v2033, %v2031
    %2036 = vrot.lane.b32.xlu0 %v2035, 6
    %v2037 = vpop.permute.xlu0 %2036
    %vm2038 = vcmask 97328
    %2039 = vst.msk [vmem:[#allocation0] ss:$72 sm:$0x3] %vm2038, %v2037
    %s2040 = scalar_lea.vmem [#allocation0], 96
    %2041 = vst.msk [vmem:[%s2040] ss:$-24 sm:$0xc] %vm2038, %v2037
    %s2042 = scalar_lea.vmem [#allocation0], 4294967200
    %2043 = vst.msk [vmem:[%s2042] ss:$48 sm:$0x30] %vm2038, %v2037
    %s2044 = scalar_lea.vmem [#allocation0], 114
    %2045 = vst.msk [vmem:[%s2044] sm:$0x40] %vm2038, %v2037
    %s2046 = scalar_lea.vmem %s0, 86
    %v2047 = vld [vmem:[%s2046] sm:$0x1]
    %s2048 = scalar_lea.vmem %s0, 21
    %v2049 = vld [vmem:[%s2048] sm:$0x2]
    %vm2050 = vcmask 1041409
    %v2051 = vsel %vm2050, %v2049, %v2047
    %s2052 = scalar_lea.vmem %s0, 212
    %v2053 = vld [vmem:[%s2052] sm:$0x4]
    %vm2054 = vcmask 1042434
    %v2055 = vsel %vm2054, %v2053, %v2051
    %s2056 = scalar_lea.vmem %s0, 147
    %v2057 = vld [vmem:[%s2056] sm:$0x8]
    %vm2058 = vcmask 1043459
    %v2059 = vsel %vm2058, %v2057, %v2055
    %s2060 = scalar_lea.vmem %s0, 338
    %v2061 = vld [vmem:[%s2060] sm:$0x10]
    %vm2062 = vcmask 1044484
    %v2063 = vsel %vm2062, %v2061, %v2059
    %s2064 = scalar_lea.vmem %s0, 273
    %v2065 = vld [vmem:[%s2064] sm:$0x20]
    %vm2066 = vcmask 1045509
    %v2067 = vsel %vm2066, %v2065, %v2063
    %2068 = vrot.lane.b32.xlu0 %v2067, 4
    %v2069 = vpop.permute.xlu0 %2068
    %vm2070 = vcmask 80928
    %s2071 = scalar_lea.vmem [#allocation0], 32
    %2072 = vst.msk [vmem:[%s2071] ss:$-24 sm:$0x3] %vm2070, %v2069
    %s2073 = scalar_lea.vmem [#allocation0], 128
    %2074 = vst.msk [vmem:[%s2073] ss:$-24 sm:$0xc] %vm2070, %v2069
    %s2075 = scalar_lea.vmem [#allocation0], 224
    %2076 = vst.msk [vmem:[%s2075] ss:$-24 sm:$0x30] %vm2070, %v2069
    %s2077 = scalar_lea.vmem %s0, 171
    %v2078 = vld [vmem:[%s2077] sm:$0x1]
    %s2079 = scalar_lea.vmem %s0, 106
    %v2080 = vld [vmem:[%s2079] sm:$0x2]
    %vm2081 = vcmask 1041409
    %v2082 = vsel %vm2081, %v2080, %v2078
    %s2083 = scalar_lea.vmem %s0, 41
    %v2084 = vld [vmem:[%s2083] sm:$0x4]
    %vm2085 = vcmask 1042434
    %v2086 = vsel %vm2085, %v2084, %v2082
    %s2087 = scalar_lea.vmem %s0, 232
    %v2088 = vld [vmem:[%s2087] sm:$0x8]
    %vm2089 = vcmask 1043459
    %v2090 = vsel %vm2089, %v2088, %v2086
    %s2091 = scalar_lea.vmem %s0, 359
    %v2092 = vld [vmem:[%s2091] sm:$0x10]
    %vm2093 = vcmask 1044484
    %v2094 = vsel %vm2093, %v2092, %v2090
    %s2095 = scalar_lea.vmem %s0, 294
    %v2096 = vld [vmem:[%s2095] sm:$0x20]
    %vm2097 = vcmask 1045509
    %v2098 = vsel %vm2097, %v2096, %v2094
    %2099 = vrot.lane.b32.xlu0 %v2098, 2
    %v2100 = vpop.permute.xlu0 %2099
    %vm2101 = vcmask 64528
    %s2102 = scalar_lea.vmem [#allocation0], 64
    %2103 = vst.msk [vmem:[%s2102] ss:$-24 sm:$0x7] %vm2101, %v2100
    %s2104 = scalar_lea.vmem [#allocation0], 4294967240
    %2105 = vst.msk [vmem:[%s2104] ss:$48 sm:$0x18] %vm2101, %v2100
    %s2106 = scalar_lea.vmem [#allocation0], 107
    %2107 = vst.msk [vmem:[%s2106] sm:$0x20] %vm2101, %v2100
    %s2109 = ssub.s32 2, 1
    %v2110 = vld [vmem:[#allocation0] sm:%s2109]
    %s2112 = ssub.s32 2, 1
    %2113 = vst [vmem:[%s1] sm:%s2112] %v2110
    %s2114 = scalar_lea.vmem [#allocation0], 8
    %v2115 = vld [vmem:[%s2114] sm:%s2109]
    %s2117 = ssub.s32 2, 1
    %s2118 = scalar_lea.vmem %s1, 1
    %2119 = vst [vmem:[%s2118] sm:%s2117] %v2115
    %s2120 = scalar_lea.vmem [#allocation0], 16
    %v2121 = vld [vmem:[%s2120] sm:%s2109]
    %s2123 = ssub.s32 2, 1
    %s2124 = scalar_lea.vmem %s1, 2
    %2125 = vst [vmem:[%s2124] sm:%s2123] %v2121
    %s2126 = scalar_lea.vmem [#allocation0], 24
    %v2127 = vld [vmem:[%s2126] sm:%s2109]
    %s2129 = ssub.s32 2, 1
    %s2130 = scalar_lea.vmem %s1, 3
    %2131 = vst [vmem:[%s2130] sm:%s2129] %v2127
    %s2132 = scalar_lea.vmem [#allocation0], 32
    %v2133 = vld [vmem:[%s2132] sm:%s2109]
    %s2135 = ssub.s32 2, 1
    %s2136 = scalar_lea.vmem %s1, 4
    %2137 = vst [vmem:[%s2136] sm:%s2135] %v2133
    %s2138 = scalar_lea.vmem [#allocation0], 40
    %v2139 = vld [vmem:[%s2138] sm:%s2109]
    %s2141 = ssub.s32 2, 1
    %s2142 = scalar_lea.vmem %s1, 5
    %2143 = vst [vmem:[%s2142] sm:%s2141] %v2139
    %s2144 = scalar_lea.vmem [#allocation0], 48
    %v2145 = vld [vmem:[%s2144] sm:%s2109]
    %s2147 = ssub.s32 2, 1
    %s2148 = scalar_lea.vmem %s1, 6
    %2149 = vst [vmem:[%s2148] sm:%s2147] %v2145
    %s2150 = scalar_lea.vmem [#allocation0], 56
    %v2151 = vld [vmem:[%s2150] sm:%s2109]
    %s2153 = ssub.s32 2, 1
    %s2154 = scalar_lea.vmem %s1, 7
    %2155 = vst [vmem:[%s2154] sm:%s2153] %v2151
    %s2156 = scalar_lea.vmem [#allocation0], 64
    %v2157 = vld [vmem:[%s2156] sm:%s2109]
    %s2159 = ssub.s32 2, 1
    %s2160 = scalar_lea.vmem %s1, 8
    %2161 = vst [vmem:[%s2160] sm:%s2159] %v2157
    %s2162 = scalar_lea.vmem [#allocation0], 72
    %v2163 = vld [vmem:[%s2162] sm:%s2109]
    %s2165 = ssub.s32 2, 1
    %s2166 = scalar_lea.vmem %s1, 9
    %2167 = vst [vmem:[%s2166] sm:%s2165] %v2163
    %s2168 = scalar_lea.vmem [#allocation0], 80
    %v2169 = vld [vmem:[%s2168] sm:%s2109]
    %s2171 = ssub.s32 2, 1
    %s2172 = scalar_lea.vmem %s1, 10
    %2173 = vst [vmem:[%s2172] sm:%s2171] %v2169
    %s2174 = scalar_lea.vmem [#allocation0], 88
    %v2175 = vld [vmem:[%s2174] sm:%s2109]
    %s2177 = ssub.s32 2, 1
    %s2178 = scalar_lea.vmem %s1, 11
    %2179 = vst [vmem:[%s2178] sm:%s2177] %v2175
    %s2180 = scalar_lea.vmem [#allocation0], 96
    %v2181 = vld [vmem:[%s2180] sm:%s2109]
    %s2183 = ssub.s32 2, 1
    %s2184 = scalar_lea.vmem %s1, 12
    %2185 = vst [vmem:[%s2184] sm:%s2183] %v2181
    %s2186 = scalar_lea.vmem [#allocation0], 104
    %v2187 = vld [vmem:[%s2186] sm:%s2109]
    %s2189 = ssub.s32 2, 1
    %s2190 = scalar_lea.vmem %s1, 13
    %2191 = vst [vmem:[%s2190] sm:%s2189] %v2187
    %s2192 = scalar_lea.vmem [#allocation0], 112
    %v2193 = vld [vmem:[%s2192] sm:%s2109]
    %s2195 = ssub.s32 2, 1
    %s2196 = scalar_lea.vmem %s1, 14
    %2197 = vst [vmem:[%s2196] sm:%s2195] %v2193
    %s2198 = scalar_lea.vmem [#allocation0], 120
    %v2199 = vld [vmem:[%s2198] sm:%s2109]
    %s2201 = ssub.s32 2, 1
    %s2202 = scalar_lea.vmem %s1, 15
    %2203 = vst [vmem:[%s2202] sm:%s2201] %v2199
    %s2204 = scalar_lea.vmem [#allocation0], 128
    %v2205 = vld [vmem:[%s2204] sm:%s2109]
    %s2207 = ssub.s32 2, 1
    %s2208 = scalar_lea.vmem %s1, 16
    %2209 = vst [vmem:[%s2208] sm:%s2207] %v2205
    %s2210 = scalar_lea.vmem [#allocation0], 136
    %v2211 = vld [vmem:[%s2210] sm:%s2109]
    %s2213 = ssub.s32 2, 1
    %s2214 = scalar_lea.vmem %s1, 17
    %2215 = vst [vmem:[%s2214] sm:%s2213] %v2211
    %s2216 = scalar_lea.vmem [#allocation0], 144
    %v2217 = vld [vmem:[%s2216] sm:%s2109]
    %s2219 = ssub.s32 2, 1
    %s2220 = scalar_lea.vmem %s1, 18
    %2221 = vst [vmem:[%s2220] sm:%s2219] %v2217

// kernel: tile.18
$region0: #{tile.18}
  #allocation0 [shape = 's32[1]{0}', space=sflag, size = 0x4, scoped, tag = 'scoped memory for tile.18']
  %s0 = inlined_call_operand.vmem [shape: f32[16], index: 0, kind: input, shape index: {}]
  %s1 = inlined_call_operand.vmem [shape: f32[36,16], index: 1, kind: output, shape index: {}]
  // Predicated region
  $region2: #{tile.18} parent=0 // pred_check
    _
  $region3: #{tile.18} parent=0 // pred_check_branch
    %3 = sbr.rel (0) target = $region5
  $region4: #{tile.18} parent=0 // pred_region
    _
  $region5: #{tile.18} parent=0 // pred_fallthru
    _
  %v4 = vld [vmem:[%s0] ss:$0 sm:$0xff]
  %5 = vst [vmem:[%s1] sm:$0xff] %v4
  %s6 = scalar_lea.vmem %s1, 8
  %7 = vst [vmem:[%s6] sm:$0xff] %v4
  %s8 = scalar_lea.vmem %s1, 16
  %9 = vst [vmem:[%s8] sm:$0xff] %v4
  %s10 = scalar_lea.vmem %s1, 24
  %11 = vst [vmem:[%s10] sm:$0xff] %v4
  %s12 = scalar_lea.vmem %s1, 32
  %13 = vst [vmem:[%s12] sm:$0xff] %v4

// kernel: tile.19
$region0: #{tile.19}
  %s0 = inlined_call_operand.vmem [shape: f32[36,16], index: 0, kind: input, shape index: {}]
  %s1 = inlined_call_operand.vmem [shape: f32[1,576], index: 1, kind: output, shape index: {}]
  $region1: #{tile.19} parent=0
    #allocation0 [shape = 'u8[20480]{0}', space=vmem, size = 0x5000, scoped, tag = 'scoped mem for output reshape']
    %v2 = vld [vmem:[%s0] ss:$8 sm:$0xf]
    %s3 = scalar_lea.vmem %s0, 28
    %v4 = vld [vmem:[%s3] sm:$0x10]
    %vm5 = vcmask 1044484
    %v6 = vsel %vm5, %v4, %v2
    %vm7 = vcmask 130048
    %8 = vst.msk [vmem:[#allocation0] ss:$8 sm:$0xf] %vm7, %v6
    %s9 = scalar_lea.vmem [#allocation0], 28
    %10 = vst.msk [vmem:[%s9] sm:$0x10] %vm7, %v6
    %s11 = scalar_lea.vmem %s0, 7
    %v12 = vld [vmem:[%s11] ss:$8 sm:$0xf]
    %13 = vrot.lane.b32.xlu0 %v12, 112
    %v14 = vpop.permute.xlu0 %13
    %vm15 = vcmask 1048448
    %16 = vst.msk [vmem:[#allocation0] ss:$8 sm:$0xf] %vm15, %v14
    %s17 = scalar_lea.vmem %s0, 6
    %v18 = vld [vmem:[%s17] ss:$8 sm:$0xf]
    %19 = vrot.lane.b32.xlu0 %v18, 96
    %v20 = vpop.permute.xlu0 %19
    %vm21 = vcmask 917248
    %22 = vst.msk [vmem:[#allocation0] ss:$8 sm:$0xf] %vm21, %v20
    %s23 = scalar_lea.vmem %s0, 5
    %v24 = vld [vmem:[%s23] ss:$8 sm:$0xf]
    %25 = vrot.lane.b32.xlu0 %v24, 80
    %v26 = vpop.permute.xlu0 %25
    %vm27 = vcmask 786048
    %28 = vst.msk [vmem:[#allocation0] ss:$8 sm:$0xf] %vm27, %v26
    %s29 = scalar_lea.vmem %s0, 4
    %v30 = vld [vmem:[%s29] ss:$8 sm:$0xf]
    %31 = vrot.lane.b32.xlu0 %v30, 64
    %v32 = vpop.permute.xlu0 %31
    %vm33 = vcmask 654848
    %34 = vst.msk [vmem:[#allocation0] ss:$8 sm:$0xf] %vm33, %v32
    %s35 = scalar_lea.vmem %s0, 3
    %v36 = vld [vmem:[%s35] ss:$8 sm:$0xf]
    %s37 = scalar_lea.vmem %s0, 31
    %v38 = vld [vmem:[%s37] sm:$0x10]
    %vm39 = vcmask 1044484
    %v40 = vsel %vm39, %v38, %v36
    %41 = vrot.lane.b32.xlu0 %v40, 48
    %v42 = vpop.permute.xlu0 %41
    %vm43 = vcmask 523648
    %44 = vst.msk [vmem:[#allocation0] ss:$8 sm:$0xf] %vm43, %v42
    %s45 = scalar_lea.vmem [#allocation0], 28
    %46 = vst.msk [vmem:[%s45] sm:$0x10] %vm43, %v42
    %s47 = scalar_lea.vmem %s0, 2
    %v48 = vld [vmem:[%s47] ss:$8 sm:$0xf]
    %s49 = scalar_lea.vmem %s0, 30
    %v50 = vld [vmem:[%s49] sm:$0x10]
    %vm51 = vcmask 1044484
    %v52 = vsel %vm51, %v50, %v48
    %53 = vrot.lane.b32.xlu0 %v52, 32
    %v54 = vpop.permute.xlu0 %53
    %vm55 = vcmask 392448
    %56 = vst.msk [vmem:[#allocation0] ss:$8 sm:$0xf] %vm55, %v54
    %s57 = scalar_lea.vmem [#allocation0], 28
    %58 = vst.msk [vmem:[%s57] sm:$0x10] %vm55, %v54
    %s59 = scalar_lea.vmem %s0, 1
    %v60 = vld [vmem:[%s59] ss:$8 sm:$0xf]
    %s61 = scalar_lea.vmem %s0, 29
    %v62 = vld [vmem:[%s61] sm:$0x10]
    %vm63 = vcmask 1044484
    %v64 = vsel %vm63, %v62, %v60
    %65 = vrot.lane.b32.xlu0 %v64, 16
    %v66 = vpop.permute.xlu0 %65
    %vm67 = vcmask 261248
    %68 = vst.msk [vmem:[#allocation0] ss:$8 sm:$0xf] %vm67, %v66
    %s69 = scalar_lea.vmem [#allocation0], 28
    %70 = vst.msk [vmem:[%s69] sm:$0x10] %vm67, %v66
    %s72 = ssub.s32 2, 1
    %v73 = vld [vmem:[#allocation0] sm:%s72]
    %s75 = ssub.s32 2, 1
    %76 = vst [vmem:[%s1] sm:%s75] %v73
    %s77 = scalar_lea.vmem [#allocation0], 8
    %v78 = vld [vmem:[%s77] sm:%s72]
    %s80 = ssub.s32 2, 1
    %s81 = scalar_lea.vmem %s1, 1
    %82 = vst [vmem:[%s81] sm:%s80] %v78
    %s83 = scalar_lea.vmem [#allocation0], 16
    %v84 = vld [vmem:[%s83] sm:%s72]
    %s86 = ssub.s32 2, 1
    %s87 = scalar_lea.vmem %s1, 2
    %88 = vst [vmem:[%s87] sm:%s86] %v84
    %s89 = scalar_lea.vmem [#allocation0], 24
    %v90 = vld [vmem:[%s89] sm:%s72]
    %s92 = ssub.s32 2, 1
    %s93 = scalar_lea.vmem %s1, 3
    %94 = vst [vmem:[%s93] sm:%s92] %v90
    %s95 = scalar_lea.vmem [#allocation0], 32
    %v96 = vld [vmem:[%s95] sm:%s72]
    %s98 = ssub.s32 2, 1
    %s99 = scalar_lea.vmem %s1, 4
    %100 = vst [vmem:[%s99] sm:%s98] %v96

// kernel: blink_forward.1
$region0: #{blink_forward.1}
  #allocation0 [shape = 'u32[]', space=smem, size = 0x4, offset = 0x4, fixed_abs, tag = 'smem constant byte address 0x4 - core index']
  #allocation1 [shape = 'u32[72,128]{1,0:T(1,128)}', space=vmem, size = 0x9000, scoped, tag = 'internal scratch']
  #allocation2 [shape = 'f32[1,1]{1,0:T(1,128)S(1)}', space=vmem, size = 0x200, scoped, tag = 'scoped memory for blink_forward.1']
  %s0 = inlined_call_operand.vmem [shape: bf16[8,576], index: 0, kind: input, shape index: {}]
  %s1 = inlined_call_operand.vmem [shape: bf16[576,2400], index: 1, kind: input, shape index: {}]
  %s2 = inlined_call_operand.vmem [shape: f32[1,2400], index: 2, kind: input, shape index: {}]
  %s3 = inlined_call_operand.vmem [shape: bf16[2400,576], index: 3, kind: input, shape index: {}]
  %s4 = inlined_call_operand.vmem [shape: f32[1,576], index: 4, kind: input, shape index: {}]
  %s5 = inlined_call_operand.vmem [shape: bf16[576,120], index: 5, kind: input, shape index: {}]
  %s6 = inlined_call_operand.vmem [shape: f32[1,120], index: 6, kind: input, shape index: {}]
  %s7 = inlined_call_operand.vmem [shape: bf16[120,84], index: 7, kind: input, shape index: {}]
  %s8 = inlined_call_operand.vmem [shape: f32[1,84], index: 8, kind: input, shape index: {}]
  %s9 = inlined_call_operand.vmem [shape: bf16[84,1], index: 9, kind: input, shape index: {}]
  %s10 = inlined_call_operand.<no memory space> [shape: f32[1,1], index: 10, kind: input, shape index: {}]
  %s11 = inlined_call_operand.vmem [shape: f32[8,1], index: 11, kind: output, shape index: {}]
  %s12 = sld [smem:[#allocation0]]
  $region54: #{blink_forward.1} parent=0
    _
  %s14 = ssub.s32 1, %s12
  %s15 = scalar_select 0, %s14, %s12
  %v16 = vstv %s10
  %17 = vst [vmem:[#allocation2] sm:$0x1] %v16
  // Predicated region
  $region2: #{blink_forward.1} parent=0 // pred_check
    _
  $region3: #{blink_forward.1} parent=0 // pred_check_branch
    %19 = sbr.rel (0) target = $region5
  $region4: #{blink_forward.1} parent=0 // pred_region
    _
  $region5: #{blink_forward.1} parent=0 // pred_fallthru
    _
  // Predicated region
  $region6: #{blink_forward.1} parent=0 // pred_check
    _
  $region7: #{blink_forward.1} parent=0 // pred_check_branch
    %21 = sbr.rel (0) target = $region9
  $region8: #{blink_forward.1} parent=0 // pred_region
    _
  $region9: #{blink_forward.1} parent=0 // pred_fallthru
    _
  // Predicated region
  $region10: #{blink_forward.1} parent=0 // pred_check
    _
  $region11: #{blink_forward.1} parent=0 // pred_check_branch
    %23 = sbr.rel (0) target = $region13
  $region12: #{blink_forward.1} parent=0 // pred_region
    _
  $region13: #{blink_forward.1} parent=0 // pred_fallthru
    _
  // Predicated region
  $region14: #{blink_forward.1} parent=0 // pred_check
    _
  $region15: #{blink_forward.1} parent=0 // pred_check_branch
    %25 = sbr.rel (0) target = $region17
  $region16: #{blink_forward.1} parent=0 // pred_region
    _
  $region17: #{blink_forward.1} parent=0 // pred_fallthru
    _
  // Predicated region
  $region18: #{blink_forward.1} parent=0 // pred_check
    _
  $region19: #{blink_forward.1} parent=0 // pred_check_branch
    %27 = sbr.rel (0) target = $region21
  $region20: #{blink_forward.1} parent=0 // pred_region
    _
  $region21: #{blink_forward.1} parent=0 // pred_fallthru
    _
  // Predicated region
  $region22: #{blink_forward.1} parent=0 // pred_check
    _
  $region23: #{blink_forward.1} parent=0 // pred_check_branch
    %29 = sbr.rel (0) target = $region25
  $region24: #{blink_forward.1} parent=0 // pred_region
    _
  $region25: #{blink_forward.1} parent=0 // pred_fallthru
    _
  // Predicated region
  $region26: #{blink_forward.1} parent=0 // pred_check
    _
  $region27: #{blink_forward.1} parent=0 // pred_check_branch
    %31 = sbr.rel (0) target = $region29
  $region28: #{blink_forward.1} parent=0 // pred_region
    _
  $region29: #{blink_forward.1} parent=0 // pred_fallthru
    _
  // Predicated region
  $region30: #{blink_forward.1} parent=0 // pred_check
    _
  $region31: #{blink_forward.1} parent=0 // pred_check_branch
    %33 = sbr.rel (0) target = $region33
  $region32: #{blink_forward.1} parent=0 // pred_region
    _
  $region33: #{blink_forward.1} parent=0 // pred_fallthru
    _
  // Predicated region
  $region34: #{blink_forward.1} parent=0 // pred_check
    _
  $region35: #{blink_forward.1} parent=0 // pred_check_branch
    %35 = sbr.rel (0) target = $region37
  $region36: #{blink_forward.1} parent=0 // pred_region
    _
  $region37: #{blink_forward.1} parent=0 // pred_fallthru
    _
  // Predicated region
  $region38: #{blink_forward.1} parent=0 // pred_check
    _
  $region39: #{blink_forward.1} parent=0 // pred_check_branch
    %37 = sbr.rel (0) target = $region41
  $region40: #{blink_forward.1} parent=0 // pred_region
    _
  $region41: #{blink_forward.1} parent=0 // pred_fallthru
    _
  // Predicated region
  $region42: #{blink_forward.1} parent=0 // pred_check
    _
  $region43: #{blink_forward.1} parent=0 // pred_check_branch
    %39 = sbr.rel (0) target = $region45
  $region44: #{blink_forward.1} parent=0 // pred_region
    _
  $region45: #{blink_forward.1} parent=0 // pred_fallthru
    _
  %v41 = vld [vmem:[%s0] sm:$0xff]
  %v42 = vld [vmem:[%s0 + $0x8] sm:$0xff]
  %v43 = vld [vmem:[%s0 + $0x10] sm:$0xf]
  %v44 = vld [vmem:[%s1] sm:$0xff]
  %v45 = vld [vmem:[%s1 + $0x8] sm:$0xff]
  %v46 = vld [vmem:[%s1 + $0x10] sm:$0xff]
  %v47 = vld [vmem:[%s1 + $0x18] sm:$0xff]
  %v48 = vld [vmem:[%s1 + $0x20] sm:$0xff]
  %v49 = vld [vmem:[%s1 + $0x28] sm:$0xff]
  %v50 = vld [vmem:[%s1 + $0x30] sm:$0xff]
  %v51 = vld [vmem:[%s1 + $0x38] sm:$0xff]
  %v52 = vld [vmem:[%s1 + $0x40] sm:$0xff]
  %v53 = vld [vmem:[%s1 + $0x48] sm:$0xf]
  %v54 = vld [vmem:[%s1 + $0x4c] sm:$0xff]
  %v55 = vld [vmem:[%s1 + $0x54] sm:$0xff]
  %v56 = vld [vmem:[%s1 + $0x5c] sm:$0xff]
  %v57 = vld [vmem:[%s1 + $0x64] sm:$0xff]
  %v58 = vld [vmem:[%s1 + $0x6c] sm:$0xff]
  %v59 = vld [vmem:[%s1 + $0x74] sm:$0xff]
  %v60 = vld [vmem:[%s1 + $0x7c] sm:$0xff]
  %v61 = vld [vmem:[%s1 + $0x84] sm:$0xff]
  %v62 = vld [vmem:[%s1 + $0x8c] sm:$0xff]
  %v63 = vld [vmem:[%s1 + $0x94] sm:$0xf]
  %v64 = vld [vmem:[%s1 + $0x98] sm:$0xff]
  %v65 = vld [vmem:[%s1 + $0xa0] sm:$0xff]
  %v66 = vld [vmem:[%s1 + $0xa8] sm:$0xff]
  %v67 = vld [vmem:[%s1 + $0xb0] sm:$0xff]
  %v68 = vld [vmem:[%s1 + $0xb8] sm:$0xff]
  %v69 = vld [vmem:[%s1 + $0xc0] sm:$0xff]
  %v70 = vld [vmem:[%s1 + $0xc8] sm:$0xff]
  %v71 = vld [vmem:[%s1 + $0xd0] sm:$0xff]
  %v72 = vld [vmem:[%s1 + $0xd8] sm:$0xff]
  %v73 = vld [vmem:[%s1 + $0xe0] sm:$0xf]
  %v74 = vld [vmem:[%s1 + $0xe4] sm:$0xff]
  %v75 = vld [vmem:[%s1 + $0xec] sm:$0xff]
  %v76 = vld [vmem:[%s1 + $0xf4] sm:$0xff]
  %v77 = vld [vmem:[%s1 + $0xfc] sm:$0xff]
  %v78 = vld [vmem:[%s1 + $0x104] sm:$0xff]
  %v79 = vld [vmem:[%s1 + $0x10c] sm:$0xff]
  %v80 = vld [vmem:[%s1 + $0x114] sm:$0xff]
  %v81 = vld [vmem:[%s1 + $0x11c] sm:$0xff]
  %v82 = vld [vmem:[%s1 + $0x124] sm:$0xff]
  %v83 = vld [vmem:[%s1 + $0x12c] sm:$0xf]
  %v84 = vld [vmem:[%s1 + $0x130] sm:$0xff]
  %v85 = vld [vmem:[%s1 + $0x138] sm:$0xff]
  %v86 = vld [vmem:[%s1 + $0x140] sm:$0xff]
  %v87 = vld [vmem:[%s1 + $0x148] sm:$0xff]
  %v88 = vld [vmem:[%s1 + $0x150] sm:$0xff]
  %v89 = vld [vmem:[%s1 + $0x158] sm:$0xff]
  %v90 = vld [vmem:[%s1 + $0x160] sm:$0xff]
  %v91 = vld [vmem:[%s1 + $0x168] sm:$0xff]
  %v92 = vld [vmem:[%s1 + $0x170] sm:$0xff]
  %v93 = vld [vmem:[%s1 + $0x178] sm:$0xf]
  %v94 = vld [vmem:[%s1 + $0x17c] sm:$0xff]
  %v95 = vld [vmem:[%s1 + $0x184] sm:$0xff]
  %v96 = vld [vmem:[%s1 + $0x18c] sm:$0xff]
  %v97 = vld [vmem:[%s1 + $0x194] sm:$0xff]
  %v98 = vld [vmem:[%s1 + $0x19c] sm:$0xff]
  %v99 = vld [vmem:[%s1 + $0x1a4] sm:$0xff]
  %v100 = vld [vmem:[%s1 + $0x1ac] sm:$0xff]
  %v101 = vld [vmem:[%s1 + $0x1b4] sm:$0xff]
  %v102 = vld [vmem:[%s1 + $0x1bc] sm:$0xff]
  %v103 = vld [vmem:[%s1 + $0x1c4] sm:$0xf]
  %v104 = vld [vmem:[%s1 + $0x1c8] sm:$0xff]
  %v105 = vld [vmem:[%s1 + $0x1d0] sm:$0xff]
  %v106 = vld [vmem:[%s1 + $0x1d8] sm:$0xff]
  %v107 = vld [vmem:[%s1 + $0x1e0] sm:$0xff]
  %v108 = vld [vmem:[%s1 + $0x1e8] sm:$0xff]
  %v109 = vld [vmem:[%s1 + $0x1f0] sm:$0xff]
  %v110 = vld [vmem:[%s1 + $0x1f8] sm:$0xff]
  %v111 = vld [vmem:[%s1 + $0x200] sm:$0xff]
  %v112 = vld [vmem:[%s1 + $0x208] sm:$0xff]
  %v113 = vld [vmem:[%s1 + $0x210] sm:$0xf]
  %v114 = vld [vmem:[%s1 + $0x214] sm:$0xff]
  %v115 = vld [vmem:[%s1 + $0x21c] sm:$0xff]
  %v116 = vld [vmem:[%s1 + $0x224] sm:$0xff]
  %v117 = vld [vmem:[%s1 + $0x22c] sm:$0xff]
  %v118 = vld [vmem:[%s1 + $0x234] sm:$0xff]
  %v119 = vld [vmem:[%s1 + $0x23c] sm:$0xff]
  %v120 = vld [vmem:[%s1 + $0x244] sm:$0xff]
  %v121 = vld [vmem:[%s1 + $0x24c] sm:$0xff]
  %v122 = vld [vmem:[%s1 + $0x254] sm:$0xff]
  %v123 = vld [vmem:[%s1 + $0x25c] sm:$0xf]
  %v124 = vld [vmem:[%s1 + $0x260] sm:$0xff]
  %v125 = vld [vmem:[%s1 + $0x268] sm:$0xff]
  %v126 = vld [vmem:[%s1 + $0x270] sm:$0xff]
  %v127 = vld [vmem:[%s1 + $0x278] sm:$0xff]
  %v128 = vld [vmem:[%s1 + $0x280] sm:$0xff]
  %v129 = vld [vmem:[%s1 + $0x288] sm:$0xff]
  %v130 = vld [vmem:[%s1 + $0x290] sm:$0xff]
  %v131 = vld [vmem:[%s1 + $0x298] sm:$0xff]
  %v132 = vld [vmem:[%s1 + $0x2a0] sm:$0xff]
  %v133 = vld [vmem:[%s1 + $0x2a8] sm:$0xf]
  %v134 = vld [vmem:[%s1 + $0x2ac] sm:$0xff]
  %v135 = vld [vmem:[%s1 + $0x2b4] sm:$0xff]
  %v136 = vld [vmem:[%s1 + $0x2bc] sm:$0xff]
  %v137 = vld [vmem:[%s1 + $0x2c4] sm:$0xff]
  %v138 = vld [vmem:[%s1 + $0x2cc] sm:$0xff]
  %v139 = vld [vmem:[%s1 + $0x2d4] sm:$0xff]
  %v140 = vld [vmem:[%s1 + $0x2dc] sm:$0xff]
  %v141 = vld [vmem:[%s1 + $0x2e4] sm:$0xff]
  %v142 = vld [vmem:[%s1 + $0x2ec] sm:$0xff]
  %v143 = vld [vmem:[%s1 + $0x2f4] sm:$0xf]
  %v144 = vld [vmem:[%s1 + $0x2f8] sm:$0xff]
  %v145 = vld [vmem:[%s1 + $0x300] sm:$0xff]
  %v146 = vld [vmem:[%s1 + $0x308] sm:$0xff]
  %v147 = vld [vmem:[%s1 + $0x310] sm:$0xff]
  %v148 = vld [vmem:[%s1 + $0x318] sm:$0xff]
  %v149 = vld [vmem:[%s1 + $0x320] sm:$0xff]
  %v150 = vld [vmem:[%s1 + $0x328] sm:$0xff]
  %v151 = vld [vmem:[%s1 + $0x330] sm:$0xff]
  %v152 = vld [vmem:[%s1 + $0x338] sm:$0xff]
  %v153 = vld [vmem:[%s1 + $0x340] sm:$0xf]
  %v154 = vld [vmem:[%s1 + $0x344] sm:$0xff]
  %v155 = vld [vmem:[%s1 + $0x34c] sm:$0xff]
  %v156 = vld [vmem:[%s1 + $0x354] sm:$0xff]
  %v157 = vld [vmem:[%s1 + $0x35c] sm:$0xff]
  %v158 = vld [vmem:[%s1 + $0x364] sm:$0xff]
  %v159 = vld [vmem:[%s1 + $0x36c] sm:$0xff]
  %v160 = vld [vmem:[%s1 + $0x374] sm:$0xff]
  %v161 = vld [vmem:[%s1 + $0x37c] sm:$0xff]
  %v162 = vld [vmem:[%s1 + $0x384] sm:$0xff]
  %v163 = vld [vmem:[%s1 + $0x38c] sm:$0xf]
  %v164 = vld [vmem:[%s1 + $0x390] sm:$0xff]
  %v165 = vld [vmem:[%s1 + $0x398] sm:$0xff]
  %v166 = vld [vmem:[%s1 + $0x3a0] sm:$0xff]
  %v167 = vld [vmem:[%s1 + $0x3a8] sm:$0xff]
  %v168 = vld [vmem:[%s1 + $0x3b0] sm:$0xff]
  %v169 = vld [vmem:[%s1 + $0x3b8] sm:$0xff]
  %v170 = vld [vmem:[%s1 + $0x3c0] sm:$0xff]
  %v171 = vld [vmem:[%s1 + $0x3c8] sm:$0xff]
  %v172 = vld [vmem:[%s1 + $0x3d0] sm:$0xff]
  %v173 = vld [vmem:[%s1 + $0x3d8] sm:$0xf]
  %v174 = vld [vmem:[%s1 + $0x3dc] sm:$0xff]
  %v175 = vld [vmem:[%s1 + $0x3e4] sm:$0xff]
  %v176 = vld [vmem:[%s1 + $0x3ec] sm:$0xff]
  %v177 = vld [vmem:[%s1 + $0x3f4] sm:$0xff]
  %v178 = vld [vmem:[%s1 + $0x3fc] sm:$0xff]
  %v179 = vld [vmem:[%s1 + $0x404] sm:$0xff]
  %v180 = vld [vmem:[%s1 + $0x40c] sm:$0xff]
  %v181 = vld [vmem:[%s1 + $0x414] sm:$0xff]
  %v182 = vld [vmem:[%s1 + $0x41c] sm:$0xff]
  %v183 = vld [vmem:[%s1 + $0x424] sm:$0xf]
  %v184 = vld [vmem:[%s1 + $0x428] sm:$0xff]
  %v185 = vld [vmem:[%s1 + $0x430] sm:$0xff]
  %v186 = vld [vmem:[%s1 + $0x438] sm:$0xff]
  %v187 = vld [vmem:[%s1 + $0x440] sm:$0xff]
  %v188 = vld [vmem:[%s1 + $0x448] sm:$0xff]
  %v189 = vld [vmem:[%s1 + $0x450] sm:$0xff]
  %v190 = vld [vmem:[%s1 + $0x458] sm:$0xff]
  %v191 = vld [vmem:[%s1 + $0x460] sm:$0xff]
  %v192 = vld [vmem:[%s1 + $0x468] sm:$0xff]
  %v193 = vld [vmem:[%s1 + $0x470] sm:$0xf]
  %v194 = vld [vmem:[%s1 + $0x474] sm:$0xff]
  %v195 = vld [vmem:[%s1 + $0x47c] sm:$0xff]
  %v196 = vld [vmem:[%s1 + $0x484] sm:$0xff]
  %v197 = vld [vmem:[%s1 + $0x48c] sm:$0xff]
  %v198 = vld [vmem:[%s1 + $0x494] sm:$0xff]
  %v199 = vld [vmem:[%s1 + $0x49c] sm:$0xff]
  %v200 = vld [vmem:[%s1 + $0x4a4] sm:$0xff]
  %v201 = vld [vmem:[%s1 + $0x4ac] sm:$0xff]
  %v202 = vld [vmem:[%s1 + $0x4b4] sm:$0xff]
  %v203 = vld [vmem:[%s1 + $0x4bc] sm:$0xf]
  %v204 = vld [vmem:[%s1 + $0x4c0] sm:$0xff]
  %v205 = vld [vmem:[%s1 + $0x4c8] sm:$0xff]
  %v206 = vld [vmem:[%s1 + $0x4d0] sm:$0xff]
  %v207 = vld [vmem:[%s1 + $0x4d8] sm:$0xff]
  %v208 = vld [vmem:[%s1 + $0x4e0] sm:$0xff]
  %v209 = vld [vmem:[%s1 + $0x4e8] sm:$0xff]
  %v210 = vld [vmem:[%s1 + $0x4f0] sm:$0xff]
  %v211 = vld [vmem:[%s1 + $0x4f8] sm:$0xff]
  %v212 = vld [vmem:[%s1 + $0x500] sm:$0xff]
  %v213 = vld [vmem:[%s1 + $0x508] sm:$0xf]
  %v214 = vld [vmem:[%s1 + $0x50c] sm:$0xff]
  %v215 = vld [vmem:[%s1 + $0x514] sm:$0xff]
  %v216 = vld [vmem:[%s1 + $0x51c] sm:$0xff]
  %v217 = vld [vmem:[%s1 + $0x524] sm:$0xff]
  %v218 = vld [vmem:[%s1 + $0x52c] sm:$0xff]
  %v219 = vld [vmem:[%s1 + $0x534] sm:$0xff]
  %v220 = vld [vmem:[%s1 + $0x53c] sm:$0xff]
  %v221 = vld [vmem:[%s1 + $0x544] sm:$0xff]
  %v222 = vld [vmem:[%s1 + $0x54c] sm:$0xff]
  %v223 = vld [vmem:[%s1 + $0x554] sm:$0xf]
  %v224 = vld [vmem:[%s1 + $0x558] sm:$0xff]
  %v225 = vld [vmem:[%s1 + $0x560] sm:$0xff]
  %v226 = vld [vmem:[%s1 + $0x568] sm:$0xff]
  %v227 = vld [vmem:[%s1 + $0x570] sm:$0xff]
  %v228 = vld [vmem:[%s1 + $0x578] sm:$0xff]
  %v229 = vld [vmem:[%s1 + $0x580] sm:$0xff]
  %v230 = vld [vmem:[%s1 + $0x588] sm:$0xff]
  %v231 = vld [vmem:[%s1 + $0x590] sm:$0xff]
  %v232 = vld [vmem:[%s1 + $0x598] sm:$0xff]
  %v233 = vld [vmem:[%s1 + $0x5a0] sm:$0xf]
  %v234 = vld [vmem:[%s1 + $0x5a4] sm:$0xff]
  %v235 = vld [vmem:[%s1 + $0x5ac] sm:$0xff]
  %v236 = vld [vmem:[%s1 + $0x5b4] sm:$0xff]
  %v237 = vld [vmem:[%s1 + $0x5bc] sm:$0xff]
  %v238 = vld [vmem:[%s1 + $0x5c4] sm:$0xff]
  %v239 = vld [vmem:[%s1 + $0x5cc] sm:$0xff]
  %v240 = vld [vmem:[%s1 + $0x5d4] sm:$0xff]
  %v241 = vld [vmem:[%s1 + $0x5dc] sm:$0xff]
  %v242 = vld [vmem:[%s1 + $0x5e4] sm:$0xff]
  %v243 = vld [vmem:[%s1 + $0x5ec] sm:$0xf]
  %v244 = vld [vmem:[%s1 + $0x5f0] sm:$0xff]
  %v245 = vld [vmem:[%s1 + $0x5f8] sm:$0xff]
  %v246 = vld [vmem:[%s1 + $0x600] sm:$0xff]
  %v247 = vld [vmem:[%s1 + $0x608] sm:$0xff]
  %v248 = vld [vmem:[%s1 + $0x610] sm:$0xff]
  %v249 = vld [vmem:[%s1 + $0x618] sm:$0xff]
  %v250 = vld [vmem:[%s1 + $0x620] sm:$0xff]
  %v251 = vld [vmem:[%s1 + $0x628] sm:$0xff]
  %v252 = vld [vmem:[%s1 + $0x630] sm:$0xff]
  %v253 = vld [vmem:[%s1 + $0x638] sm:$0xf]
  %v254 = vld [vmem:[%s1 + $0x63c] sm:$0xff]
  %v255 = vld [vmem:[%s1 + $0x644] sm:$0xff]
  %v256 = vld [vmem:[%s1 + $0x64c] sm:$0xff]
  %v257 = vld [vmem:[%s1 + $0x654] sm:$0xff]
  %v258 = vld [vmem:[%s1 + $0x65c] sm:$0xff]
  %v259 = vld [vmem:[%s1 + $0x664] sm:$0xff]
  %v260 = vld [vmem:[%s1 + $0x66c] sm:$0xff]
  %v261 = vld [vmem:[%s1 + $0x674] sm:$0xff]
  %v262 = vld [vmem:[%s1 + $0x67c] sm:$0xff]
  %v263 = vld [vmem:[%s1 + $0x684] sm:$0xf]
  %v264 = vld [vmem:[%s1 + $0x688] sm:$0xff]
  %v265 = vld [vmem:[%s1 + $0x690] sm:$0xff]
  %v266 = vld [vmem:[%s1 + $0x698] sm:$0xff]
  %v267 = vld [vmem:[%s1 + $0x6a0] sm:$0xff]
  %v268 = vld [vmem:[%s1 + $0x6a8] sm:$0xff]
  %v269 = vld [vmem:[%s1 + $0x6b0] sm:$0xff]
  %v270 = vld [vmem:[%s1 + $0x6b8] sm:$0xff]
  %v271 = vld [vmem:[%s1 + $0x6c0] sm:$0xff]
  %v272 = vld [vmem:[%s1 + $0x6c8] sm:$0xff]
  %v273 = vld [vmem:[%s1 + $0x6d0] sm:$0xf]
  %v274 = vld [vmem:[%s1 + $0x6d4] sm:$0xff]
  %v275 = vld [vmem:[%s1 + $0x6dc] sm:$0xff]
  %v276 = vld [vmem:[%s1 + $0x6e4] sm:$0xff]
  %v277 = vld [vmem:[%s1 + $0x6ec] sm:$0xff]
  %v278 = vld [vmem:[%s1 + $0x6f4] sm:$0xff]
  %v279 = vld [vmem:[%s1 + $0x6fc] sm:$0xff]
  %v280 = vld [vmem:[%s1 + $0x704] sm:$0xff]
  %v281 = vld [vmem:[%s1 + $0x70c] sm:$0xff]
  %v282 = vld [vmem:[%s1 + $0x714] sm:$0xff]
  %v283 = vld [vmem:[%s1 + $0x71c] sm:$0xf]
  %v284 = vld [vmem:[%s1 + $0x720] sm:$0xff]
  %v285 = vld [vmem:[%s1 + $0x728] sm:$0xff]
  %v286 = vld [vmem:[%s1 + $0x730] sm:$0xff]
  %v287 = vld [vmem:[%s1 + $0x738] sm:$0xff]
  %v288 = vld [vmem:[%s1 + $0x740] sm:$0xff]
  %v289 = vld [vmem:[%s1 + $0x748] sm:$0xff]
  %v290 = vld [vmem:[%s1 + $0x750] sm:$0xff]
  %v291 = vld [vmem:[%s1 + $0x758] sm:$0xff]
  %v292 = vld [vmem:[%s1 + $0x760] sm:$0xff]
  %v293 = vld [vmem:[%s1 + $0x768] sm:$0xf]
  %v294 = vld [vmem:[%s1 + $0x76c] sm:$0xff]
  %v295 = vld [vmem:[%s1 + $0x774] sm:$0xff]
  %v296 = vld [vmem:[%s1 + $0x77c] sm:$0xff]
  %v297 = vld [vmem:[%s1 + $0x784] sm:$0xff]
  %v298 = vld [vmem:[%s1 + $0x78c] sm:$0xff]
  %v299 = vld [vmem:[%s1 + $0x794] sm:$0xff]
  %v300 = vld [vmem:[%s1 + $0x79c] sm:$0xff]
  %v301 = vld [vmem:[%s1 + $0x7a4] sm:$0xff]
  %v302 = vld [vmem:[%s1 + $0x7ac] sm:$0xff]
  %v303 = vld [vmem:[%s1 + $0x7b4] sm:$0xf]
  %v304 = vld [vmem:[%s1 + $0x7b8] sm:$0xff]
  %v305 = vld [vmem:[%s1 + $0x7c0] sm:$0xff]
  %v306 = vld [vmem:[%s1 + $0x7c8] sm:$0xff]
  %v307 = vld [vmem:[%s1 + $0x7d0] sm:$0xff]
  %v308 = vld [vmem:[%s1 + $0x7d8] sm:$0xff]
  %v309 = vld [vmem:[%s1 + $0x7e0] sm:$0xff]
  %v310 = vld [vmem:[%s1 + $0x7e8] sm:$0xff]
  %v311 = vld [vmem:[%s1 + $0x7f0] sm:$0xff]
  %v312 = vld [vmem:[%s1 + $0x7f8] sm:$0xff]
  %v313 = vld [vmem:[%s1 + $0x800] sm:$0xf]
  %v314 = vld [vmem:[%s1 + $0x804] sm:$0xff]
  %v315 = vld [vmem:[%s1 + $0x80c] sm:$0xff]
  %v316 = vld [vmem:[%s1 + $0x814] sm:$0xff]
  %v317 = vld [vmem:[%s1 + $0x81c] sm:$0xff]
  %v318 = vld [vmem:[%s1 + $0x824] sm:$0xff]
  %v319 = vld [vmem:[%s1 + $0x82c] sm:$0xff]
  %v320 = vld [vmem:[%s1 + $0x834] sm:$0xff]
  %v321 = vld [vmem:[%s1 + $0x83c] sm:$0xff]
  %v322 = vld [vmem:[%s1 + $0x844] sm:$0xff]
  %v323 = vld [vmem:[%s1 + $0x84c] sm:$0xf]
  %v324 = vld [vmem:[%s1 + $0x850] sm:$0xff]
  %v325 = vld [vmem:[%s1 + $0x858] sm:$0xff]
  %v326 = vld [vmem:[%s1 + $0x860] sm:$0xff]
  %v327 = vld [vmem:[%s1 + $0x868] sm:$0xff]
  %v328 = vld [vmem:[%s1 + $0x870] sm:$0xff]
  %v329 = vld [vmem:[%s1 + $0x878] sm:$0xff]
  %v330 = vld [vmem:[%s1 + $0x880] sm:$0xff]
  %v331 = vld [vmem:[%s1 + $0x888] sm:$0xff]
  %v332 = vld [vmem:[%s1 + $0x890] sm:$0xff]
  %v333 = vld [vmem:[%s1 + $0x898] sm:$0xf]
  %v334 = vld [vmem:[%s1 + $0x89c] sm:$0xff]
  %v335 = vld [vmem:[%s1 + $0x8a4] sm:$0xff]
  %v336 = vld [vmem:[%s1 + $0x8ac] sm:$0xff]
  %v337 = vld [vmem:[%s1 + $0x8b4] sm:$0xff]
  %v338 = vld [vmem:[%s1 + $0x8bc] sm:$0xff]
  %v339 = vld [vmem:[%s1 + $0x8c4] sm:$0xff]
  %v340 = vld [vmem:[%s1 + $0x8cc] sm:$0xff]
  %v341 = vld [vmem:[%s1 + $0x8d4] sm:$0xff]
  %v342 = vld [vmem:[%s1 + $0x8dc] sm:$0xff]
  %v343 = vld [vmem:[%s1 + $0x8e4] sm:$0xf]
  %v344 = vld [vmem:[%s1 + $0x8e8] sm:$0xff]
  %v345 = vld [vmem:[%s1 + $0x8f0] sm:$0xff]
  %v346 = vld [vmem:[%s1 + $0x8f8] sm:$0xff]
  %v347 = vld [vmem:[%s1 + $0x900] sm:$0xff]
  %v348 = vld [vmem:[%s1 + $0x908] sm:$0xff]
  %v349 = vld [vmem:[%s1 + $0x910] sm:$0xff]
  %v350 = vld [vmem:[%s1 + $0x918] sm:$0xff]
  %v351 = vld [vmem:[%s1 + $0x920] sm:$0xff]
  %v352 = vld [vmem:[%s1 + $0x928] sm:$0xff]
  %v353 = vld [vmem:[%s1 + $0x930] sm:$0xf]
  %v354 = vld [vmem:[%s1 + $0x934] sm:$0xff]
  %v355 = vld [vmem:[%s1 + $0x93c] sm:$0xff]
  %v356 = vld [vmem:[%s1 + $0x944] sm:$0xff]
  %v357 = vld [vmem:[%s1 + $0x94c] sm:$0xff]
  %v358 = vld [vmem:[%s1 + $0x954] sm:$0xff]
  %v359 = vld [vmem:[%s1 + $0x95c] sm:$0xff]
  %v360 = vld [vmem:[%s1 + $0x964] sm:$0xff]
  %v361 = vld [vmem:[%s1 + $0x96c] sm:$0xff]
  %v362 = vld [vmem:[%s1 + $0x974] sm:$0xff]
  %v363 = vld [vmem:[%s1 + $0x97c] sm:$0xf]
  %v364 = vld [vmem:[%s1 + $0x980] sm:$0xff]
  %v365 = vld [vmem:[%s1 + $0x988] sm:$0xff]
  %v366 = vld [vmem:[%s1 + $0x990] sm:$0xff]
  %v367 = vld [vmem:[%s1 + $0x998] sm:$0xff]
  %v368 = vld [vmem:[%s1 + $0x9a0] sm:$0xff]
  %v369 = vld [vmem:[%s1 + $0x9a8] sm:$0xff]
  %v370 = vld [vmem:[%s1 + $0x9b0] sm:$0xff]
  %v371 = vld [vmem:[%s1 + $0x9b8] sm:$0xff]
  %v372 = vld [vmem:[%s1 + $0x9c0] sm:$0xff]
  %v373 = vld [vmem:[%s1 + $0x9c8] sm:$0xf]
  %v374 = vld [vmem:[%s1 + $0x9cc] sm:$0xff]
  %v375 = vld [vmem:[%s1 + $0x9d4] sm:$0xff]
  %v376 = vld [vmem:[%s1 + $0x9dc] sm:$0xff]
  %v377 = vld [vmem:[%s1 + $0x9e4] sm:$0xff]
  %v378 = vld [vmem:[%s1 + $0x9ec] sm:$0xff]
  %v379 = vld [vmem:[%s1 + $0x9f4] sm:$0xff]
  %v380 = vld [vmem:[%s1 + $0x9fc] sm:$0xff]
  %v381 = vld [vmem:[%s1 + $0xa04] sm:$0xff]
  %v382 = vld [vmem:[%s1 + $0xa0c] sm:$0xff]
  %v383 = vld [vmem:[%s1 + $0xa14] sm:$0xf]
  %v384 = vld [vmem:[%s1 + $0xa18] sm:$0xff]
  %v385 = vld [vmem:[%s1 + $0xa20] sm:$0xff]
  %v386 = vld [vmem:[%s1 + $0xa28] sm:$0xff]
  %v387 = vld [vmem:[%s1 + $0xa30] sm:$0xff]
  %v388 = vld [vmem:[%s1 + $0xa38] sm:$0xff]
  %v389 = vld [vmem:[%s1 + $0xa40] sm:$0xff]
  %v390 = vld [vmem:[%s1 + $0xa48] sm:$0xff]
  %v391 = vld [vmem:[%s1 + $0xa50] sm:$0xff]
  %v392 = vld [vmem:[%s1 + $0xa58] sm:$0xff]
  %v393 = vld [vmem:[%s1 + $0xa60] sm:$0xf]
  %v394 = vld [vmem:[%s1 + $0xa64] sm:$0xff]
  %v395 = vld [vmem:[%s1 + $0xa6c] sm:$0xff]
  %v396 = vld [vmem:[%s1 + $0xa74] sm:$0xff]
  %v397 = vld [vmem:[%s1 + $0xa7c] sm:$0xff]
  %v398 = vld [vmem:[%s1 + $0xa84] sm:$0xff]
  %v399 = vld [vmem:[%s1 + $0xa8c] sm:$0xff]
  %v400 = vld [vmem:[%s1 + $0xa94] sm:$0xff]
  %v401 = vld [vmem:[%s1 + $0xa9c] sm:$0xff]
  %v402 = vld [vmem:[%s1 + $0xaa4] sm:$0xff]
  %v403 = vld [vmem:[%s1 + $0xaac] sm:$0xf]
  %v404 = vld [vmem:[%s1 + $0xab0] sm:$0xff]
  %v405 = vld [vmem:[%s1 + $0xab8] sm:$0xff]
  %v406 = vld [vmem:[%s1 + $0xac0] sm:$0xff]
  %v407 = vld [vmem:[%s1 + $0xac8] sm:$0xff]
  %v408 = vld [vmem:[%s1 + $0xad0] sm:$0xff]
  %v409 = vld [vmem:[%s1 + $0xad8] sm:$0xff]
  %v410 = vld [vmem:[%s1 + $0xae0] sm:$0xff]
  %v411 = vld [vmem:[%s1 + $0xae8] sm:$0xff]
  %v412 = vld [vmem:[%s1 + $0xaf0] sm:$0xff]
  %v413 = vld [vmem:[%s1 + $0xaf8] sm:$0xf]
  %v414 = vld [vmem:[%s1 + $0xafc] sm:$0xff]
  %v415 = vld [vmem:[%s1 + $0xb04] sm:$0xff]
  %v416 = vld [vmem:[%s1 + $0xb0c] sm:$0xff]
  %v417 = vld [vmem:[%s1 + $0xb14] sm:$0xff]
  %v418 = vld [vmem:[%s1 + $0xb1c] sm:$0xff]
  %v419 = vld [vmem:[%s1 + $0xb24] sm:$0xff]
  %v420 = vld [vmem:[%s1 + $0xb2c] sm:$0xff]
  %v421 = vld [vmem:[%s1 + $0xb34] sm:$0xff]
  %v422 = vld [vmem:[%s1 + $0xb3c] sm:$0xff]
  %v423 = vld [vmem:[%s1 + $0xb44] sm:$0xf]
  %v424 = vld [vmem:[%s1 + $0xb48] sm:$0xff]
  %v425 = vld [vmem:[%s1 + $0xb50] sm:$0xff]
  %v426 = vld [vmem:[%s1 + $0xb58] sm:$0xff]
  %v427 = vld [vmem:[%s1 + $0xb60] sm:$0xff]
  %v428 = vld [vmem:[%s1 + $0xb68] sm:$0xff]
  %v429 = vld [vmem:[%s1 + $0xb70] sm:$0xff]
  %v430 = vld [vmem:[%s1 + $0xb78] sm:$0xff]
  %v431 = vld [vmem:[%s1 + $0xb80] sm:$0xff]
  %v432 = vld [vmem:[%s1 + $0xb88] sm:$0xff]
  %v433 = vld [vmem:[%s1 + $0xb90] sm:$0xf]
  %v434 = vld [vmem:[%s1 + $0xb94] sm:$0xff]
  %v435 = vld [vmem:[%s1 + $0xb9c] sm:$0xff]
  %v436 = vld [vmem:[%s1 + $0xba4] sm:$0xff]
  %v437 = vld [vmem:[%s1 + $0xbac] sm:$0xff]
  %v438 = vld [vmem:[%s1 + $0xbb4] sm:$0xff]
  %v439 = vld [vmem:[%s1 + $0xbbc] sm:$0xff]
  %v440 = vld [vmem:[%s1 + $0xbc4] sm:$0xff]
  %v441 = vld [vmem:[%s1 + $0xbcc] sm:$0xff]
  %v442 = vld [vmem:[%s1 + $0xbd4] sm:$0xff]
  %v443 = vld [vmem:[%s1 + $0xbdc] sm:$0xf]
  %v444 = vld [vmem:[%s1 + $0xbe0] sm:$0xff]
  %v445 = vld [vmem:[%s1 + $0xbe8] sm:$0xff]
  %v446 = vld [vmem:[%s1 + $0xbf0] sm:$0xff]
  %v447 = vld [vmem:[%s1 + $0xbf8] sm:$0xff]
  %v448 = vld [vmem:[%s1 + $0xc00] sm:$0xff]
  %v449 = vld [vmem:[%s1 + $0xc08] sm:$0xff]
  %v450 = vld [vmem:[%s1 + $0xc10] sm:$0xff]
  %v451 = vld [vmem:[%s1 + $0xc18] sm:$0xff]
  %v452 = vld [vmem:[%s1 + $0xc20] sm:$0xff]
  %v453 = vld [vmem:[%s1 + $0xc28] sm:$0xf]
  %v454 = vld [vmem:[%s1 + $0xc2c] sm:$0xff]
  %v455 = vld [vmem:[%s1 + $0xc34] sm:$0xff]
  %v456 = vld [vmem:[%s1 + $0xc3c] sm:$0xff]
  %v457 = vld [vmem:[%s1 + $0xc44] sm:$0xff]
  %v458 = vld [vmem:[%s1 + $0xc4c] sm:$0xff]
  %v459 = vld [vmem:[%s1 + $0xc54] sm:$0xff]
  %v460 = vld [vmem:[%s1 + $0xc5c] sm:$0xff]
  %v461 = vld [vmem:[%s1 + $0xc64] sm:$0xff]
  %v462 = vld [vmem:[%s1 + $0xc6c] sm:$0xff]
  %v463 = vld [vmem:[%s1 + $0xc74] sm:$0xf]
  %v464 = vld [vmem:[%s1 + $0xc78] sm:$0xff]
  %v465 = vld [vmem:[%s1 + $0xc80] sm:$0xff]
  %v466 = vld [vmem:[%s1 + $0xc88] sm:$0xff]
  %v467 = vld [vmem:[%s1 + $0xc90] sm:$0xff]
  %v468 = vld [vmem:[%s1 + $0xc98] sm:$0xff]
  %v469 = vld [vmem:[%s1 + $0xca0] sm:$0xff]
  %v470 = vld [vmem:[%s1 + $0xca8] sm:$0xff]
  %v471 = vld [vmem:[%s1 + $0xcb0] sm:$0xff]
  %v472 = vld [vmem:[%s1 + $0xcb8] sm:$0xff]
  %v473 = vld [vmem:[%s1 + $0xcc0] sm:$0xf]
  %v474 = vld [vmem:[%s1 + $0xcc4] sm:$0xff]
  %v475 = vld [vmem:[%s1 + $0xccc] sm:$0xff]
  %v476 = vld [vmem:[%s1 + $0xcd4] sm:$0xff]
  %v477 = vld [vmem:[%s1 + $0xcdc] sm:$0xff]
  %v478 = vld [vmem:[%s1 + $0xce4] sm:$0xff]
  %v479 = vld [vmem:[%s1 + $0xcec] sm:$0xff]
  %v480 = vld [vmem:[%s1 + $0xcf4] sm:$0xff]
  %v481 = vld [vmem:[%s1 + $0xcfc] sm:$0xff]
  %v482 = vld [vmem:[%s1 + $0xd04] sm:$0xff]
  %v483 = vld [vmem:[%s1 + $0xd0c] sm:$0xf]
  %v484 = vld [vmem:[%s1 + $0xd10] sm:$0xff]
  %v485 = vld [vmem:[%s1 + $0xd18] sm:$0xff]
  %v486 = vld [vmem:[%s1 + $0xd20] sm:$0xff]
  %v487 = vld [vmem:[%s1 + $0xd28] sm:$0xff]
  %v488 = vld [vmem:[%s1 + $0xd30] sm:$0xff]
  %v489 = vld [vmem:[%s1 + $0xd38] sm:$0xff]
  %v490 = vld [vmem:[%s1 + $0xd40] sm:$0xff]
  %v491 = vld [vmem:[%s1 + $0xd48] sm:$0xff]
  %v492 = vld [vmem:[%s1 + $0xd50] sm:$0xff]
  %v493 = vld [vmem:[%s1 + $0xd58] sm:$0xf]
  %v494 = vld [vmem:[%s1 + $0xd5c] sm:$0xff]
  %v495 = vld [vmem:[%s1 + $0xd64] sm:$0xff]
  %v496 = vld [vmem:[%s1 + $0xd6c] sm:$0xff]
  %v497 = vld [vmem:[%s1 + $0xd74] sm:$0xff]
  %v498 = vld [vmem:[%s1 + $0xd7c] sm:$0xff]
  %v499 = vld [vmem:[%s1 + $0xd84] sm:$0xff]
  %v500 = vld [vmem:[%s1 + $0xd8c] sm:$0xff]
  %v501 = vld [vmem:[%s1 + $0xd94] sm:$0xff]
  %v502 = vld [vmem:[%s1 + $0xd9c] sm:$0xff]
  %v503 = vld [vmem:[%s1 + $0xda4] sm:$0xf]
  %v504 = vld [vmem:[%s1 + $0xda8] sm:$0xff]
  %v505 = vld [vmem:[%s1 + $0xdb0] sm:$0xff]
  %v506 = vld [vmem:[%s1 + $0xdb8] sm:$0xff]
  %v507 = vld [vmem:[%s1 + $0xdc0] sm:$0xff]
  %v508 = vld [vmem:[%s1 + $0xdc8] sm:$0xff]
  %v509 = vld [vmem:[%s1 + $0xdd0] sm:$0xff]
  %v510 = vld [vmem:[%s1 + $0xdd8] sm:$0xff]
  %v511 = vld [vmem:[%s1 + $0xde0] sm:$0xff]
  %v512 = vld [vmem:[%s1 + $0xde8] sm:$0xff]
  %v513 = vld [vmem:[%s1 + $0xdf0] sm:$0xf]
  %v514 = vld [vmem:[%s1 + $0xdf4] sm:$0xff]
  %v515 = vld [vmem:[%s1 + $0xdfc] sm:$0xff]
  %v516 = vld [vmem:[%s1 + $0xe04] sm:$0xff]
  %v517 = vld [vmem:[%s1 + $0xe0c] sm:$0xff]
  %v518 = vld [vmem:[%s1 + $0xe14] sm:$0xff]
  %v519 = vld [vmem:[%s1 + $0xe1c] sm:$0xff]
  %v520 = vld [vmem:[%s1 + $0xe24] sm:$0xff]
  %v521 = vld [vmem:[%s1 + $0xe2c] sm:$0xff]
  %v522 = vld [vmem:[%s1 + $0xe34] sm:$0xff]
  %v523 = vld [vmem:[%s1 + $0xe3c] sm:$0xf]
  %v524 = vld [vmem:[%s1 + $0xe40] sm:$0xff]
  %v525 = vld [vmem:[%s1 + $0xe48] sm:$0xff]
  %v526 = vld [vmem:[%s1 + $0xe50] sm:$0xff]
  %v527 = vld [vmem:[%s1 + $0xe58] sm:$0xff]
  %v528 = vld [vmem:[%s1 + $0xe60] sm:$0xff]
  %v529 = vld [vmem:[%s1 + $0xe68] sm:$0xff]
  %v530 = vld [vmem:[%s1 + $0xe70] sm:$0xff]
  %v531 = vld [vmem:[%s1 + $0xe78] sm:$0xff]
  %v532 = vld [vmem:[%s1 + $0xe80] sm:$0xff]
  %v533 = vld [vmem:[%s1 + $0xe88] sm:$0xf]
  %v534 = vld [vmem:[%s1 + $0xe8c] sm:$0xff]
  %v535 = vld [vmem:[%s1 + $0xe94] sm:$0xff]
  %v536 = vld [vmem:[%s1 + $0xe9c] sm:$0xff]
  %v537 = vld [vmem:[%s1 + $0xea4] sm:$0xff]
  %v538 = vld [vmem:[%s1 + $0xeac] sm:$0xff]
  %v539 = vld [vmem:[%s1 + $0xeb4] sm:$0xff]
  %v540 = vld [vmem:[%s1 + $0xebc] sm:$0xff]
  %v541 = vld [vmem:[%s1 + $0xec4] sm:$0xff]
  %v542 = vld [vmem:[%s1 + $0xecc] sm:$0xff]
  %v543 = vld [vmem:[%s1 + $0xed4] sm:$0xf]
  %v544 = vld [vmem:[%s1 + $0xed8] sm:$0xff]
  %v545 = vld [vmem:[%s1 + $0xee0] sm:$0xff]
  %v546 = vld [vmem:[%s1 + $0xee8] sm:$0xff]
  %v547 = vld [vmem:[%s1 + $0xef0] sm:$0xff]
  %v548 = vld [vmem:[%s1 + $0xef8] sm:$0xff]
  %v549 = vld [vmem:[%s1 + $0xf00] sm:$0xff]
  %v550 = vld [vmem:[%s1 + $0xf08] sm:$0xff]
  %v551 = vld [vmem:[%s1 + $0xf10] sm:$0xff]
  %v552 = vld [vmem:[%s1 + $0xf18] sm:$0xff]
  %v553 = vld [vmem:[%s1 + $0xf20] sm:$0xf]
  %v554 = vld [vmem:[%s1 + $0xf24] sm:$0xff]
  %v555 = vld [vmem:[%s1 + $0xf2c] sm:$0xff]
  %v556 = vld [vmem:[%s1 + $0xf34] sm:$0xff]
  %v557 = vld [vmem:[%s1 + $0xf3c] sm:$0xff]
  %v558 = vld [vmem:[%s1 + $0xf44] sm:$0xff]
  %v559 = vld [vmem:[%s1 + $0xf4c] sm:$0xff]
  %v560 = vld [vmem:[%s1 + $0xf54] sm:$0xff]
  %v561 = vld [vmem:[%s1 + $0xf5c] sm:$0xff]
  %v562 = vld [vmem:[%s1 + $0xf64] sm:$0xff]
  %v563 = vld [vmem:[%s1 + $0xf6c] sm:$0xf]
  %v564 = vld [vmem:[%s1 + $0xf70] sm:$0xff]
  %v565 = vld [vmem:[%s1 + $0xf78] sm:$0xff]
  %v566 = vld [vmem:[%s1 + $0xf80] sm:$0xff]
  %v567 = vld [vmem:[%s1 + $0xf88] sm:$0xff]
  %v568 = vld [vmem:[%s1 + $0xf90] sm:$0xff]
  %v569 = vld [vmem:[%s1 + $0xf98] sm:$0xff]
  %v570 = vld [vmem:[%s1 + $0xfa0] sm:$0xff]
  %v571 = vld [vmem:[%s1 + $0xfa8] sm:$0xff]
  %v572 = vld [vmem:[%s1 + $0xfb0] sm:$0xff]
  %v573 = vld [vmem:[%s1 + $0xfb8] sm:$0xf]
  %v574 = vld [vmem:[%s1 + $0xfbc] sm:$0xff]
  %v575 = vld [vmem:[%s1 + $0xfc4] sm:$0xff]
  %v576 = vld [vmem:[%s1 + $0xfcc] sm:$0xff]
  %v577 = vld [vmem:[%s1 + $0xfd4] sm:$0xff]
  %v578 = vld [vmem:[%s1 + $0xfdc] sm:$0xff]
  %v579 = vld [vmem:[%s1 + $0xfe4] sm:$0xff]
  %v580 = vld [vmem:[%s1 + $0xfec] sm:$0xff]
  %v581 = vld [vmem:[%s1 + $0xff4] sm:$0xff]
  %v582 = vld [vmem:[%s1 + $0xffc] sm:$0xff]
  %v583 = vld [vmem:[%s1 + $0x1004] sm:$0xf]
  %v584 = vld [vmem:[%s1 + $0x1008] sm:$0xff]
  %v585 = vld [vmem:[%s1 + $0x1010] sm:$0xff]
  %v586 = vld [vmem:[%s1 + $0x1018] sm:$0xff]
  %v587 = vld [vmem:[%s1 + $0x1020] sm:$0xff]
  %v588 = vld [vmem:[%s1 + $0x1028] sm:$0xff]
  %v589 = vld [vmem:[%s1 + $0x1030] sm:$0xff]
  %v590 = vld [vmem:[%s1 + $0x1038] sm:$0xff]
  %v591 = vld [vmem:[%s1 + $0x1040] sm:$0xff]
  %v592 = vld [vmem:[%s1 + $0x1048] sm:$0xff]
  %v593 = vld [vmem:[%s1 + $0x1050] sm:$0xf]
  %v594 = vld [vmem:[%s1 + $0x1054] sm:$0xff]
  %v595 = vld [vmem:[%s1 + $0x105c] sm:$0xff]
  %v596 = vld [vmem:[%s1 + $0x1064] sm:$0xff]
  %v597 = vld [vmem:[%s1 + $0x106c] sm:$0xff]
  %v598 = vld [vmem:[%s1 + $0x1074] sm:$0xff]
  %v599 = vld [vmem:[%s1 + $0x107c] sm:$0xff]
  %v600 = vld [vmem:[%s1 + $0x1084] sm:$0xff]
  %v601 = vld [vmem:[%s1 + $0x108c] sm:$0xff]
  %v602 = vld [vmem:[%s1 + $0x1094] sm:$0xff]
  %v603 = vld [vmem:[%s1 + $0x109c] sm:$0xf]
  %v604 = vld [vmem:[%s1 + $0x10a0] sm:$0xff]
  %v605 = vld [vmem:[%s1 + $0x10a8] sm:$0xff]
  %v606 = vld [vmem:[%s1 + $0x10b0] sm:$0xff]
  %v607 = vld [vmem:[%s1 + $0x10b8] sm:$0xff]
  %v608 = vld [vmem:[%s1 + $0x10c0] sm:$0xff]
  %v609 = vld [vmem:[%s1 + $0x10c8] sm:$0xff]
  %v610 = vld [vmem:[%s1 + $0x10d0] sm:$0xff]
  %v611 = vld [vmem:[%s1 + $0x10d8] sm:$0xff]
  %v612 = vld [vmem:[%s1 + $0x10e0] sm:$0xff]
  %v613 = vld [vmem:[%s1 + $0x10e8] sm:$0xf]
  %v614 = vld [vmem:[%s1 + $0x10ec] sm:$0xff]
  %v615 = vld [vmem:[%s1 + $0x10f4] sm:$0xff]
  %v616 = vld [vmem:[%s1 + $0x10fc] sm:$0xff]
  %v617 = vld [vmem:[%s1 + $0x1104] sm:$0xff]
  %v618 = vld [vmem:[%s1 + $0x110c] sm:$0xff]
  %v619 = vld [vmem:[%s1 + $0x1114] sm:$0xff]
  %v620 = vld [vmem:[%s1 + $0x111c] sm:$0xff]
  %v621 = vld [vmem:[%s1 + $0x1124] sm:$0xff]
  %v622 = vld [vmem:[%s1 + $0x112c] sm:$0xff]
  %v623 = vld [vmem:[%s1 + $0x1134] sm:$0xf]
  %v624 = vld [vmem:[%s1 + $0x1138] sm:$0xff]
  %v625 = vld [vmem:[%s1 + $0x1140] sm:$0xff]
  %v626 = vld [vmem:[%s1 + $0x1148] sm:$0xff]
  %v627 = vld [vmem:[%s1 + $0x1150] sm:$0xff]
  %v628 = vld [vmem:[%s1 + $0x1158] sm:$0xff]
  %v629 = vld [vmem:[%s1 + $0x1160] sm:$0xff]
  %v630 = vld [vmem:[%s1 + $0x1168] sm:$0xff]
  %v631 = vld [vmem:[%s1 + $0x1170] sm:$0xff]
  %v632 = vld [vmem:[%s1 + $0x1178] sm:$0xff]
  %v633 = vld [vmem:[%s1 + $0x1180] sm:$0xf]
  %v634 = vld [vmem:[%s1 + $0x1184] sm:$0xff]
  %v635 = vld [vmem:[%s1 + $0x118c] sm:$0xff]
  %v636 = vld [vmem:[%s1 + $0x1194] sm:$0xff]
  %v637 = vld [vmem:[%s1 + $0x119c] sm:$0xff]
  %v638 = vld [vmem:[%s1 + $0x11a4] sm:$0xff]
  %v639 = vld [vmem:[%s1 + $0x11ac] sm:$0xff]
  %v640 = vld [vmem:[%s1 + $0x11b4] sm:$0xff]
  %v641 = vld [vmem:[%s1 + $0x11bc] sm:$0xff]
  %v642 = vld [vmem:[%s1 + $0x11c4] sm:$0xff]
  %v643 = vld [vmem:[%s1 + $0x11cc] sm:$0xf]
  %v644 = vld [vmem:[%s1 + $0x11d0] sm:$0xff]
  %v645 = vld [vmem:[%s1 + $0x11d8] sm:$0xff]
  %v646 = vld [vmem:[%s1 + $0x11e0] sm:$0xff]
  %v647 = vld [vmem:[%s1 + $0x11e8] sm:$0xff]
  %v648 = vld [vmem:[%s1 + $0x11f0] sm:$0xff]
  %v649 = vld [vmem:[%s1 + $0x11f8] sm:$0xff]
  %v650 = vld [vmem:[%s1 + $0x1200] sm:$0xff]
  %v651 = vld [vmem:[%s1 + $0x1208] sm:$0xff]
  %v652 = vld [vmem:[%s1 + $0x1210] sm:$0xff]
  %v653 = vld [vmem:[%s1 + $0x1218] sm:$0xf]
  %v654 = vld [vmem:[%s1 + $0x121c] sm:$0xff]
  %v655 = vld [vmem:[%s1 + $0x1224] sm:$0xff]
  %v656 = vld [vmem:[%s1 + $0x122c] sm:$0xff]
  %v657 = vld [vmem:[%s1 + $0x1234] sm:$0xff]
  %v658 = vld [vmem:[%s1 + $0x123c] sm:$0xff]
  %v659 = vld [vmem:[%s1 + $0x1244] sm:$0xff]
  %v660 = vld [vmem:[%s1 + $0x124c] sm:$0xff]
  %v661 = vld [vmem:[%s1 + $0x1254] sm:$0xff]
  %v662 = vld [vmem:[%s1 + $0x125c] sm:$0xff]
  %v663 = vld [vmem:[%s1 + $0x1264] sm:$0xf]
  %v664 = vld [vmem:[%s1 + $0x1268] sm:$0xff]
  %v665 = vld [vmem:[%s1 + $0x1270] sm:$0xff]
  %v666 = vld [vmem:[%s1 + $0x1278] sm:$0xff]
  %v667 = vld [vmem:[%s1 + $0x1280] sm:$0xff]
  %v668 = vld [vmem:[%s1 + $0x1288] sm:$0xff]
  %v669 = vld [vmem:[%s1 + $0x1290] sm:$0xff]
  %v670 = vld [vmem:[%s1 + $0x1298] sm:$0xff]
  %v671 = vld [vmem:[%s1 + $0x12a0] sm:$0xff]
  %v672 = vld [vmem:[%s1 + $0x12a8] sm:$0xff]
  %v673 = vld [vmem:[%s1 + $0x12b0] sm:$0xf]
  %v674 = vld [vmem:[%s1 + $0x12b4] sm:$0xff]
  %v675 = vld [vmem:[%s1 + $0x12bc] sm:$0xff]
  %v676 = vld [vmem:[%s1 + $0x12c4] sm:$0xff]
  %v677 = vld [vmem:[%s1 + $0x12cc] sm:$0xff]
  %v678 = vld [vmem:[%s1 + $0x12d4] sm:$0xff]
  %v679 = vld [vmem:[%s1 + $0x12dc] sm:$0xff]
  %v680 = vld [vmem:[%s1 + $0x12e4] sm:$0xff]
  %v681 = vld [vmem:[%s1 + $0x12ec] sm:$0xff]
  %v682 = vld [vmem:[%s1 + $0x12f4] sm:$0xff]
  %v683 = vld [vmem:[%s1 + $0x12fc] sm:$0xf]
  %v684 = vld [vmem:[%s1 + $0x1300] sm:$0xff]
  %v685 = vld [vmem:[%s1 + $0x1308] sm:$0xff]
  %v686 = vld [vmem:[%s1 + $0x1310] sm:$0xff]
  %v687 = vld [vmem:[%s1 + $0x1318] sm:$0xff]
  %v688 = vld [vmem:[%s1 + $0x1320] sm:$0xff]
  %v689 = vld [vmem:[%s1 + $0x1328] sm:$0xff]
  %v690 = vld [vmem:[%s1 + $0x1330] sm:$0xff]
  %v691 = vld [vmem:[%s1 + $0x1338] sm:$0xff]
  %v692 = vld [vmem:[%s1 + $0x1340] sm:$0xff]
  %v693 = vld [vmem:[%s1 + $0x1348] sm:$0xf]
  %v694 = vld [vmem:[%s1 + $0x134c] sm:$0xff]
  %v695 = vld [vmem:[%s1 + $0x1354] sm:$0xff]
  %v696 = vld [vmem:[%s1 + $0x135c] sm:$0xff]
  %v697 = vld [vmem:[%s1 + $0x1364] sm:$0xff]
  %v698 = vld [vmem:[%s1 + $0x136c] sm:$0xff]
  %v699 = vld [vmem:[%s1 + $0x1374] sm:$0xff]
  %v700 = vld [vmem:[%s1 + $0x137c] sm:$0xff]
  %v701 = vld [vmem:[%s1 + $0x1384] sm:$0xff]
  %v702 = vld [vmem:[%s1 + $0x138c] sm:$0xff]
  %v703 = vld [vmem:[%s1 + $0x1394] sm:$0xf]
  %v704 = vld [vmem:[%s1 + $0x1398] sm:$0xff]
  %v705 = vld [vmem:[%s1 + $0x13a0] sm:$0xff]
  %v706 = vld [vmem:[%s1 + $0x13a8] sm:$0xff]
  %v707 = vld [vmem:[%s1 + $0x13b0] sm:$0xff]
  %v708 = vld [vmem:[%s1 + $0x13b8] sm:$0xff]
  %v709 = vld [vmem:[%s1 + $0x13c0] sm:$0xff]
  %v710 = vld [vmem:[%s1 + $0x13c8] sm:$0xff]
  %v711 = vld [vmem:[%s1 + $0x13d0] sm:$0xff]
  %v712 = vld [vmem:[%s1 + $0x13d8] sm:$0xff]
  %v713 = vld [vmem:[%s1 + $0x13e0] sm:$0xf]
  %v714 = vld [vmem:[%s1 + $0x13e4] sm:$0xff]
  %v715 = vld [vmem:[%s1 + $0x13ec] sm:$0xff]
  %v716 = vld [vmem:[%s1 + $0x13f4] sm:$0xff]
  %v717 = vld [vmem:[%s1 + $0x13fc] sm:$0xff]
  %v718 = vld [vmem:[%s1 + $0x1404] sm:$0xff]
  %v719 = vld [vmem:[%s1 + $0x140c] sm:$0xff]
  %v720 = vld [vmem:[%s1 + $0x1414] sm:$0xff]
  %v721 = vld [vmem:[%s1 + $0x141c] sm:$0xff]
  %v722 = vld [vmem:[%s1 + $0x1424] sm:$0xff]
  %v723 = vld [vmem:[%s1 + $0x142c] sm:$0xf]
  %v724 = vld [vmem:[%s1 + $0x1430] sm:$0xff]
  %v725 = vld [vmem:[%s1 + $0x1438] sm:$0xff]
  %v726 = vld [vmem:[%s1 + $0x1440] sm:$0xff]
  %v727 = vld [vmem:[%s1 + $0x1448] sm:$0xff]
  %v728 = vld [vmem:[%s1 + $0x1450] sm:$0xff]
  %v729 = vld [vmem:[%s1 + $0x1458] sm:$0xff]
  %v730 = vld [vmem:[%s1 + $0x1460] sm:$0xff]
  %v731 = vld [vmem:[%s1 + $0x1468] sm:$0xff]
  %v732 = vld [vmem:[%s1 + $0x1470] sm:$0xff]
  %v733 = vld [vmem:[%s1 + $0x1478] sm:$0xf]
  %v734 = vld [vmem:[%s1 + $0x147c] sm:$0xff]
  %v735 = vld [vmem:[%s1 + $0x1484] sm:$0xff]
  %v736 = vld [vmem:[%s1 + $0x148c] sm:$0xff]
  %v737 = vld [vmem:[%s1 + $0x1494] sm:$0xff]
  %v738 = vld [vmem:[%s1 + $0x149c] sm:$0xff]
  %v739 = vld [vmem:[%s1 + $0x14a4] sm:$0xff]
  %v740 = vld [vmem:[%s1 + $0x14ac] sm:$0xff]
  %v741 = vld [vmem:[%s1 + $0x14b4] sm:$0xff]
  %v742 = vld [vmem:[%s1 + $0x14bc] sm:$0xff]
  %v743 = vld [vmem:[%s1 + $0x14c4] sm:$0xf]
  %v744 = vld [vmem:[%s1 + $0x14c8] sm:$0xff]
  %v745 = vld [vmem:[%s1 + $0x14d0] sm:$0xff]
  %v746 = vld [vmem:[%s1 + $0x14d8] sm:$0xff]
  %v747 = vld [vmem:[%s1 + $0x14e0] sm:$0xff]
  %v748 = vld [vmem:[%s1 + $0x14e8] sm:$0xff]
  %v749 = vld [vmem:[%s1 + $0x14f0] sm:$0xff]
  %v750 = vld [vmem:[%s1 + $0x14f8] sm:$0xff]
  %v751 = vld [vmem:[%s1 + $0x1500] sm:$0xff]
  %v752 = vld [vmem:[%s1 + $0x1508] sm:$0xff]
  %v753 = vld [vmem:[%s1 + $0x1510] sm:$0xf]
  %v754 = vld [vmem:[%s1 + $0x1514] sm:$0xff]
  %v755 = vld [vmem:[%s1 + $0x151c] sm:$0xff]
  %v756 = vld [vmem:[%s1 + $0x1524] sm:$0xff]
  %v757 = vld [vmem:[%s1 + $0x152c] sm:$0xff]
  %v758 = vld [vmem:[%s1 + $0x1534] sm:$0xff]
  %v759 = vld [vmem:[%s1 + $0x153c] sm:$0xff]
  %v760 = vld [vmem:[%s1 + $0x1544] sm:$0xff]
  %v761 = vld [vmem:[%s1 + $0x154c] sm:$0xff]
  %v762 = vld [vmem:[%s1 + $0x1554] sm:$0xff]
  %v763 = vld [vmem:[%s1 + $0x155c] sm:$0xf]
  %v764 = vld [vmem:[%s2] sm:$0xff]
  %v765 = vld [vmem:[%s2 + $0x8] sm:$0xff]
  %v766 = vld [vmem:[%s2 + $0x10] sm:$0x7]
  %v770 = vperm.slane %v764, 0
  %v771 = vperm.slane %v764, 1
  %v772 = vperm.slane %v764, 2
  %v773 = vperm.slane %v764, 3
  %v774 = vperm.slane %v764, 4
  %v775 = vperm.slane %v764, 5
  %v776 = vperm.slane %v764, 6
  %v777 = vperm.slane %v764, 7
  %v778 = vperm.slane %v765, 0
  %v779 = vperm.slane %v765, 1
  %v780 = vperm.slane %v765, 2
  %v781 = vperm.slane %v765, 3
  %v782 = vperm.slane %v765, 4
  %v783 = vperm.slane %v765, 5
  %v784 = vperm.slane %v765, 6
  %v785 = vperm.slane %v765, 7
  %v786 = vperm.slane %v766, 0
  %v787 = vperm.slane %v766, 1
  %v788 = vperm.slane %v766, 2
  %v811 = vunpack.c.l.b16 %v41
  %v812 = vunpack.c.h.b16 %v41
  %v813 = vunpack.c.l.b16 %v42
  %v814 = vunpack.c.h.b16 %v42
  %v815 = vunpack.c.l.b16 %v43
  %v816 = vpack.c.b16 %v811, %v811
  %v817 = vpack.c.b16 %v812, %v812
  %v818 = vpack.c.b16 %v813, %v813
  %v819 = vpack.c.b16 %v814, %v814
  %v820 = vpack.c.b16 %v815, %v815
  %v1545 = vunpack.c.l.b16 %v44
  %v1546 = vunpack.c.h.b16 %v44
  %v1547 = vunpack.c.l.b16 %v45
  %v1548 = vunpack.c.h.b16 %v45
  %v1549 = vunpack.c.l.b16 %v46
  %v1550 = vunpack.c.h.b16 %v46
  %v1551 = vunpack.c.l.b16 %v47
  %v1552 = vunpack.c.h.b16 %v47
  %v1553 = vunpack.c.l.b16 %v48
  %v1554 = vunpack.c.h.b16 %v48
  %v1555 = vunpack.c.l.b16 %v49
  %v1556 = vunpack.c.h.b16 %v49
  %v1557 = vunpack.c.l.b16 %v50
  %v1558 = vunpack.c.h.b16 %v50
  %v1559 = vunpack.c.l.b16 %v51
  %v1560 = vunpack.c.h.b16 %v51
  %v1561 = vunpack.c.l.b16 %v52
  %v1562 = vunpack.c.h.b16 %v52
  %v1563 = vunpack.c.l.b16 %v53
  %v1564 = vunpack.c.l.b16 %v54
  %v1565 = vunpack.c.h.b16 %v54
  %v1566 = vunpack.c.l.b16 %v55
  %v1567 = vunpack.c.h.b16 %v55
  %v1568 = vunpack.c.l.b16 %v56
  %v1569 = vunpack.c.h.b16 %v56
  %v1570 = vunpack.c.l.b16 %v57
  %v1571 = vunpack.c.h.b16 %v57
  %v1572 = vunpack.c.l.b16 %v58
  %v1573 = vunpack.c.h.b16 %v58
  %v1574 = vunpack.c.l.b16 %v59
  %v1575 = vunpack.c.h.b16 %v59
  %v1576 = vunpack.c.l.b16 %v60
  %v1577 = vunpack.c.h.b16 %v60
  %v1578 = vunpack.c.l.b16 %v61
  %v1579 = vunpack.c.h.b16 %v61
  %v1580 = vunpack.c.l.b16 %v62
  %v1581 = vunpack.c.h.b16 %v62
  %v1582 = vunpack.c.l.b16 %v63
  %v1583 = vunpack.c.l.b16 %v64
  %v1584 = vunpack.c.h.b16 %v64
  %v1585 = vunpack.c.l.b16 %v65
  %v1586 = vunpack.c.h.b16 %v65
  %v1587 = vunpack.c.l.b16 %v66
  %v1588 = vunpack.c.h.b16 %v66
  %v1589 = vunpack.c.l.b16 %v67
  %v1590 = vunpack.c.h.b16 %v67
  %v1591 = vunpack.c.l.b16 %v68
  %v1592 = vunpack.c.h.b16 %v68
  %v1593 = vunpack.c.l.b16 %v69
  %v1594 = vunpack.c.h.b16 %v69
  %v1595 = vunpack.c.l.b16 %v70
  %v1596 = vunpack.c.h.b16 %v70
  %v1597 = vunpack.c.l.b16 %v71
  %v1598 = vunpack.c.h.b16 %v71
  %v1599 = vunpack.c.l.b16 %v72
  %v1600 = vunpack.c.h.b16 %v72
  %v1601 = vunpack.c.l.b16 %v73
  %v1602 = vunpack.c.l.b16 %v74
  %v1603 = vunpack.c.h.b16 %v74
  %v1604 = vunpack.c.l.b16 %v75
  %v1605 = vunpack.c.h.b16 %v75
  %v1606 = vunpack.c.l.b16 %v76
  %v1607 = vunpack.c.h.b16 %v76
  %v1608 = vunpack.c.l.b16 %v77
  %v1609 = vunpack.c.h.b16 %v77
  %v1610 = vunpack.c.l.b16 %v78
  %v1611 = vunpack.c.h.b16 %v78
  %v1612 = vunpack.c.l.b16 %v79
  %v1613 = vunpack.c.h.b16 %v79
  %v1614 = vunpack.c.l.b16 %v80
  %v1615 = vunpack.c.h.b16 %v80
  %v1616 = vunpack.c.l.b16 %v81
  %v1617 = vunpack.c.h.b16 %v81
  %v1618 = vunpack.c.l.b16 %v82
  %v1619 = vunpack.c.h.b16 %v82
  %v1620 = vunpack.c.l.b16 %v83
  %v1621 = vunpack.c.l.b16 %v84
  %v1622 = vunpack.c.h.b16 %v84
  %v1623 = vunpack.c.l.b16 %v85
  %v1624 = vunpack.c.h.b16 %v85
  %v1625 = vunpack.c.l.b16 %v86
  %v1626 = vunpack.c.h.b16 %v86
  %v1627 = vunpack.c.l.b16 %v87
  %v1628 = vunpack.c.h.b16 %v87
  %v1629 = vunpack.c.l.b16 %v88
  %v1630 = vunpack.c.h.b16 %v88
  %v1631 = vunpack.c.l.b16 %v89
  %v1632 = vunpack.c.h.b16 %v89
  %v1633 = vunpack.c.l.b16 %v90
  %v1634 = vunpack.c.h.b16 %v90
  %v1635 = vunpack.c.l.b16 %v91
  %v1636 = vunpack.c.h.b16 %v91
  %v1637 = vunpack.c.l.b16 %v92
  %v1638 = vunpack.c.h.b16 %v92
  %v1639 = vunpack.c.l.b16 %v93
  %v1640 = vunpack.c.l.b16 %v94
  %v1641 = vunpack.c.h.b16 %v94
  %v1642 = vunpack.c.l.b16 %v95
  %v1643 = vunpack.c.h.b16 %v95
  %v1644 = vunpack.c.l.b16 %v96
  %v1645 = vunpack.c.h.b16 %v96
  %v1646 = vunpack.c.l.b16 %v97
  %v1647 = vunpack.c.h.b16 %v97
  %v1648 = vunpack.c.l.b16 %v98
  %v1649 = vunpack.c.h.b16 %v98
  %v1650 = vunpack.c.l.b16 %v99
  %v1651 = vunpack.c.h.b16 %v99
  %v1652 = vunpack.c.l.b16 %v100
  %v1653 = vunpack.c.h.b16 %v100
  %v1654 = vunpack.c.l.b16 %v101
  %v1655 = vunpack.c.h.b16 %v101
  %v1656 = vunpack.c.l.b16 %v102
  %v1657 = vunpack.c.h.b16 %v102
  %v1658 = vunpack.c.l.b16 %v103
  %v1659 = vunpack.c.l.b16 %v104
  %v1660 = vunpack.c.h.b16 %v104
  %v1661 = vunpack.c.l.b16 %v105
  %v1662 = vunpack.c.h.b16 %v105
  %v1663 = vunpack.c.l.b16 %v106
  %v1664 = vunpack.c.h.b16 %v106
  %v1665 = vunpack.c.l.b16 %v107
  %v1666 = vunpack.c.h.b16 %v107
  %v1667 = vunpack.c.l.b16 %v108
  %v1668 = vunpack.c.h.b16 %v108
  %v1669 = vunpack.c.l.b16 %v109
  %v1670 = vunpack.c.h.b16 %v109
  %v1671 = vunpack.c.l.b16 %v110
  %v1672 = vunpack.c.h.b16 %v110
  %v1673 = vunpack.c.l.b16 %v111
  %v1674 = vunpack.c.h.b16 %v111
  %v1675 = vunpack.c.l.b16 %v112
  %v1676 = vunpack.c.h.b16 %v112
  %v1677 = vunpack.c.l.b16 %v113
  %v1678 = vunpack.c.l.b16 %v114
  %v1679 = vunpack.c.h.b16 %v114
  %v1680 = vunpack.c.l.b16 %v115
  %v1681 = vunpack.c.h.b16 %v115
  %v1682 = vunpack.c.l.b16 %v116
  %v1683 = vunpack.c.h.b16 %v116
  %v1684 = vunpack.c.l.b16 %v117
  %v1685 = vunpack.c.h.b16 %v117
  %v1686 = vunpack.c.l.b16 %v118
  %v1687 = vunpack.c.h.b16 %v118
  %v1688 = vunpack.c.l.b16 %v119
  %v1689 = vunpack.c.h.b16 %v119
  %v1690 = vunpack.c.l.b16 %v120
  %v1691 = vunpack.c.h.b16 %v120
  %v1692 = vunpack.c.l.b16 %v121
  %v1693 = vunpack.c.h.b16 %v121
  %v1694 = vunpack.c.l.b16 %v122
  %v1695 = vunpack.c.h.b16 %v122
  %v1696 = vunpack.c.l.b16 %v123
  %v1697 = vunpack.c.l.b16 %v124
  %v1698 = vunpack.c.h.b16 %v124
  %v1699 = vunpack.c.l.b16 %v125
  %v1700 = vunpack.c.h.b16 %v125
  %v1701 = vunpack.c.l.b16 %v126
  %v1702 = vunpack.c.h.b16 %v126
  %v1703 = vunpack.c.l.b16 %v127
  %v1704 = vunpack.c.h.b16 %v127
  %v1705 = vunpack.c.l.b16 %v128
  %v1706 = vunpack.c.h.b16 %v128
  %v1707 = vunpack.c.l.b16 %v129
  %v1708 = vunpack.c.h.b16 %v129
  %v1709 = vunpack.c.l.b16 %v130
  %v1710 = vunpack.c.h.b16 %v130
  %v1711 = vunpack.c.l.b16 %v131
  %v1712 = vunpack.c.h.b16 %v131
  %v1713 = vunpack.c.l.b16 %v132
  %v1714 = vunpack.c.h.b16 %v132
  %v1715 = vunpack.c.l.b16 %v133
  %v1716 = vunpack.c.l.b16 %v134
  %v1717 = vunpack.c.h.b16 %v134
  %v1718 = vunpack.c.l.b16 %v135
  %v1719 = vunpack.c.h.b16 %v135
  %v1720 = vunpack.c.l.b16 %v136
  %v1721 = vunpack.c.h.b16 %v136
  %v1722 = vunpack.c.l.b16 %v137
  %v1723 = vunpack.c.h.b16 %v137
  %v1724 = vunpack.c.l.b16 %v138
  %v1725 = vunpack.c.h.b16 %v138
  %v1726 = vunpack.c.l.b16 %v139
  %v1727 = vunpack.c.h.b16 %v139
  %v1728 = vunpack.c.l.b16 %v140
  %v1729 = vunpack.c.h.b16 %v140
  %v1730 = vunpack.c.l.b16 %v141
  %v1731 = vunpack.c.h.b16 %v141
  %v1732 = vunpack.c.l.b16 %v142
  %v1733 = vunpack.c.h.b16 %v142
  %v1734 = vunpack.c.l.b16 %v143
  %v1735 = vunpack.c.l.b16 %v144
  %v1736 = vunpack.c.h.b16 %v144
  %v1737 = vunpack.c.l.b16 %v145
  %v1738 = vunpack.c.h.b16 %v145
  %v1739 = vunpack.c.l.b16 %v146
  %v1740 = vunpack.c.h.b16 %v146
  %v1741 = vunpack.c.l.b16 %v147
  %v1742 = vunpack.c.h.b16 %v147
  %v1743 = vunpack.c.l.b16 %v148
  %v1744 = vunpack.c.h.b16 %v148
  %v1745 = vunpack.c.l.b16 %v149
  %v1746 = vunpack.c.h.b16 %v149
  %v1747 = vunpack.c.l.b16 %v150
  %v1748 = vunpack.c.h.b16 %v150
  %v1749 = vunpack.c.l.b16 %v151
  %v1750 = vunpack.c.h.b16 %v151
  %v1751 = vunpack.c.l.b16 %v152
  %v1752 = vunpack.c.h.b16 %v152
  %v1753 = vunpack.c.l.b16 %v153
  %v1754 = vunpack.c.l.b16 %v154
  %v1755 = vunpack.c.h.b16 %v154
  %v1756 = vunpack.c.l.b16 %v155
  %v1757 = vunpack.c.h.b16 %v155
  %v1758 = vunpack.c.l.b16 %v156
  %v1759 = vunpack.c.h.b16 %v156
  %v1760 = vunpack.c.l.b16 %v157
  %v1761 = vunpack.c.h.b16 %v157
  %v1762 = vunpack.c.l.b16 %v158
  %v1763 = vunpack.c.h.b16 %v158
  %v1764 = vunpack.c.l.b16 %v159
  %v1765 = vunpack.c.h.b16 %v159
  %v1766 = vunpack.c.l.b16 %v160
  %v1767 = vunpack.c.h.b16 %v160
  %v1768 = vunpack.c.l.b16 %v161
  %v1769 = vunpack.c.h.b16 %v161
  %v1770 = vunpack.c.l.b16 %v162
  %v1771 = vunpack.c.h.b16 %v162
  %v1772 = vunpack.c.l.b16 %v163
  %v1773 = vunpack.c.l.b16 %v164
  %v1774 = vunpack.c.h.b16 %v164
  %v1775 = vunpack.c.l.b16 %v165
  %v1776 = vunpack.c.h.b16 %v165
  %v1777 = vunpack.c.l.b16 %v166
  %v1778 = vunpack.c.h.b16 %v166
  %v1779 = vunpack.c.l.b16 %v167
  %v1780 = vunpack.c.h.b16 %v167
  %v1781 = vunpack.c.l.b16 %v168
  %v1782 = vunpack.c.h.b16 %v168
  %v1783 = vunpack.c.l.b16 %v169
  %v1784 = vunpack.c.h.b16 %v169
  %v1785 = vunpack.c.l.b16 %v170
  %v1786 = vunpack.c.h.b16 %v170
  %v1787 = vunpack.c.l.b16 %v171
  %v1788 = vunpack.c.h.b16 %v171
  %v1789 = vunpack.c.l.b16 %v172
  %v1790 = vunpack.c.h.b16 %v172
  %v1791 = vunpack.c.l.b16 %v173
  %v1792 = vunpack.c.l.b16 %v174
  %v1793 = vunpack.c.h.b16 %v174
  %v1794 = vunpack.c.l.b16 %v175
  %v1795 = vunpack.c.h.b16 %v175
  %v1796 = vunpack.c.l.b16 %v176
  %v1797 = vunpack.c.h.b16 %v176
  %v1798 = vunpack.c.l.b16 %v177
  %v1799 = vunpack.c.h.b16 %v177
  %v1800 = vunpack.c.l.b16 %v178
  %v1801 = vunpack.c.h.b16 %v178
  %v1802 = vunpack.c.l.b16 %v179
  %v1803 = vunpack.c.h.b16 %v179
  %v1804 = vunpack.c.l.b16 %v180
  %v1805 = vunpack.c.h.b16 %v180
  %v1806 = vunpack.c.l.b16 %v181
  %v1807 = vunpack.c.h.b16 %v181
  %v1808 = vunpack.c.l.b16 %v182
  %v1809 = vunpack.c.h.b16 %v182
  %v1810 = vunpack.c.l.b16 %v183
  %v1811 = vunpack.c.l.b16 %v184
  %v1812 = vunpack.c.h.b16 %v184
  %v1813 = vunpack.c.l.b16 %v185
  %v1814 = vunpack.c.h.b16 %v185
  %v1815 = vunpack.c.l.b16 %v186
  %v1816 = vunpack.c.h.b16 %v186
  %v1817 = vunpack.c.l.b16 %v187
  %v1818 = vunpack.c.h.b16 %v187
  %v1819 = vunpack.c.l.b16 %v188
  %v1820 = vunpack.c.h.b16 %v188
  %v1821 = vunpack.c.l.b16 %v189
  %v1822 = vunpack.c.h.b16 %v189
  %v1823 = vunpack.c.l.b16 %v190
  %v1824 = vunpack.c.h.b16 %v190
  %v1825 = vunpack.c.l.b16 %v191
  %v1826 = vunpack.c.h.b16 %v191
  %v1827 = vunpack.c.l.b16 %v192
  %v1828 = vunpack.c.h.b16 %v192
  %v1829 = vunpack.c.l.b16 %v193
  %v1830 = vunpack.c.l.b16 %v194
  %v1831 = vunpack.c.h.b16 %v194
  %v1832 = vunpack.c.l.b16 %v195
  %v1833 = vunpack.c.h.b16 %v195
  %v1834 = vunpack.c.l.b16 %v196
  %v1835 = vunpack.c.h.b16 %v196
  %v1836 = vunpack.c.l.b16 %v197
  %v1837 = vunpack.c.h.b16 %v197
  %v1838 = vunpack.c.l.b16 %v198
  %v1839 = vunpack.c.h.b16 %v198
  %v1840 = vunpack.c.l.b16 %v199
  %v1841 = vunpack.c.h.b16 %v199
  %v1842 = vunpack.c.l.b16 %v200
  %v1843 = vunpack.c.h.b16 %v200
  %v1844 = vunpack.c.l.b16 %v201
  %v1845 = vunpack.c.h.b16 %v201
  %v1846 = vunpack.c.l.b16 %v202
  %v1847 = vunpack.c.h.b16 %v202
  %v1848 = vunpack.c.l.b16 %v203
  %v1849 = vunpack.c.l.b16 %v204
  %v1850 = vunpack.c.h.b16 %v204
  %v1851 = vunpack.c.l.b16 %v205
  %v1852 = vunpack.c.h.b16 %v205
  %v1853 = vunpack.c.l.b16 %v206
  %v1854 = vunpack.c.h.b16 %v206
  %v1855 = vunpack.c.l.b16 %v207
  %v1856 = vunpack.c.h.b16 %v207
  %v1857 = vunpack.c.l.b16 %v208
  %v1858 = vunpack.c.h.b16 %v208
  %v1859 = vunpack.c.l.b16 %v209
  %v1860 = vunpack.c.h.b16 %v209
  %v1861 = vunpack.c.l.b16 %v210
  %v1862 = vunpack.c.h.b16 %v210
  %v1863 = vunpack.c.l.b16 %v211
  %v1864 = vunpack.c.h.b16 %v211
  %v1865 = vunpack.c.l.b16 %v212
  %v1866 = vunpack.c.h.b16 %v212
  %v1867 = vunpack.c.l.b16 %v213
  %v1868 = vunpack.c.l.b16 %v214
  %v1869 = vunpack.c.h.b16 %v214
  %v1870 = vunpack.c.l.b16 %v215
  %v1871 = vunpack.c.h.b16 %v215
  %v1872 = vunpack.c.l.b16 %v216
  %v1873 = vunpack.c.h.b16 %v216
  %v1874 = vunpack.c.l.b16 %v217
  %v1875 = vunpack.c.h.b16 %v217
  %v1876 = vunpack.c.l.b16 %v218
  %v1877 = vunpack.c.h.b16 %v218
  %v1878 = vunpack.c.l.b16 %v219
  %v1879 = vunpack.c.h.b16 %v219
  %v1880 = vunpack.c.l.b16 %v220
  %v1881 = vunpack.c.h.b16 %v220
  %v1882 = vunpack.c.l.b16 %v221
  %v1883 = vunpack.c.h.b16 %v221
  %v1884 = vunpack.c.l.b16 %v222
  %v1885 = vunpack.c.h.b16 %v222
  %v1886 = vunpack.c.l.b16 %v223
  %v1887 = vunpack.c.l.b16 %v224
  %v1888 = vunpack.c.h.b16 %v224
  %v1889 = vunpack.c.l.b16 %v225
  %v1890 = vunpack.c.h.b16 %v225
  %v1891 = vunpack.c.l.b16 %v226
  %v1892 = vunpack.c.h.b16 %v226
  %v1893 = vunpack.c.l.b16 %v227
  %v1894 = vunpack.c.h.b16 %v227
  %v1895 = vunpack.c.l.b16 %v228
  %v1896 = vunpack.c.h.b16 %v228
  %v1897 = vunpack.c.l.b16 %v229
  %v1898 = vunpack.c.h.b16 %v229
  %v1899 = vunpack.c.l.b16 %v230
  %v1900 = vunpack.c.h.b16 %v230
  %v1901 = vunpack.c.l.b16 %v231
  %v1902 = vunpack.c.h.b16 %v231
  %v1903 = vunpack.c.l.b16 %v232
  %v1904 = vunpack.c.h.b16 %v232
  %v1905 = vunpack.c.l.b16 %v233
  %v1906 = vunpack.c.l.b16 %v234
  %v1907 = vunpack.c.h.b16 %v234
  %v1908 = vunpack.c.l.b16 %v235
  %v1909 = vunpack.c.h.b16 %v235
  %v1910 = vunpack.c.l.b16 %v236
  %v1911 = vunpack.c.h.b16 %v236
  %v1912 = vunpack.c.l.b16 %v237
  %v1913 = vunpack.c.h.b16 %v237
  %v1914 = vunpack.c.l.b16 %v238
  %v1915 = vunpack.c.h.b16 %v238
  %v1916 = vunpack.c.l.b16 %v239
  %v1917 = vunpack.c.h.b16 %v239
  %v1918 = vunpack.c.l.b16 %v240
  %v1919 = vunpack.c.h.b16 %v240
  %v1920 = vunpack.c.l.b16 %v241
  %v1921 = vunpack.c.h.b16 %v241
  %v1922 = vunpack.c.l.b16 %v242
  %v1923 = vunpack.c.h.b16 %v242
  %v1924 = vunpack.c.l.b16 %v243
  %v1925 = vunpack.c.l.b16 %v244
  %v1926 = vunpack.c.h.b16 %v244
  %v1927 = vunpack.c.l.b16 %v245
  %v1928 = vunpack.c.h.b16 %v245
  %v1929 = vunpack.c.l.b16 %v246
  %v1930 = vunpack.c.h.b16 %v246
  %v1931 = vunpack.c.l.b16 %v247
  %v1932 = vunpack.c.h.b16 %v247
  %v1933 = vunpack.c.l.b16 %v248
  %v1934 = vunpack.c.h.b16 %v248
  %v1935 = vunpack.c.l.b16 %v249
  %v1936 = vunpack.c.h.b16 %v249
  %v1937 = vunpack.c.l.b16 %v250
  %v1938 = vunpack.c.h.b16 %v250
  %v1939 = vunpack.c.l.b16 %v251
  %v1940 = vunpack.c.h.b16 %v251
  %v1941 = vunpack.c.l.b16 %v252
  %v1942 = vunpack.c.h.b16 %v252
  %v1943 = vunpack.c.l.b16 %v253
  %v1944 = vunpack.c.l.b16 %v254
  %v1945 = vunpack.c.h.b16 %v254
  %v1946 = vunpack.c.l.b16 %v255
  %v1947 = vunpack.c.h.b16 %v255
  %v1948 = vunpack.c.l.b16 %v256
  %v1949 = vunpack.c.h.b16 %v256
  %v1950 = vunpack.c.l.b16 %v257
  %v1951 = vunpack.c.h.b16 %v257
  %v1952 = vunpack.c.l.b16 %v258
  %v1953 = vunpack.c.h.b16 %v258
  %v1954 = vunpack.c.l.b16 %v259
  %v1955 = vunpack.c.h.b16 %v259
  %v1956 = vunpack.c.l.b16 %v260
  %v1957 = vunpack.c.h.b16 %v260
  %v1958 = vunpack.c.l.b16 %v261
  %v1959 = vunpack.c.h.b16 %v261
  %v1960 = vunpack.c.l.b16 %v262
  %v1961 = vunpack.c.h.b16 %v262
  %v1962 = vunpack.c.l.b16 %v263
  %v1963 = vunpack.c.l.b16 %v264
  %v1964 = vunpack.c.h.b16 %v264
  %v1965 = vunpack.c.l.b16 %v265
  %v1966 = vunpack.c.h.b16 %v265
  %v1967 = vunpack.c.l.b16 %v266
  %v1968 = vunpack.c.h.b16 %v266
  %v1969 = vunpack.c.l.b16 %v267
  %v1970 = vunpack.c.h.b16 %v267
  %v1971 = vunpack.c.l.b16 %v268
  %v1972 = vunpack.c.h.b16 %v268
  %v1973 = vunpack.c.l.b16 %v269
  %v1974 = vunpack.c.h.b16 %v269
  %v1975 = vunpack.c.l.b16 %v270
  %v1976 = vunpack.c.h.b16 %v270
  %v1977 = vunpack.c.l.b16 %v271
  %v1978 = vunpack.c.h.b16 %v271
  %v1979 = vunpack.c.l.b16 %v272
  %v1980 = vunpack.c.h.b16 %v272
  %v1981 = vunpack.c.l.b16 %v273
  %v1982 = vunpack.c.l.b16 %v274
  %v1983 = vunpack.c.h.b16 %v274
  %v1984 = vunpack.c.l.b16 %v275
  %v1985 = vunpack.c.h.b16 %v275
  %v1986 = vunpack.c.l.b16 %v276
  %v1987 = vunpack.c.h.b16 %v276
  %v1988 = vunpack.c.l.b16 %v277
  %v1989 = vunpack.c.h.b16 %v277
  %v1990 = vunpack.c.l.b16 %v278
  %v1991 = vunpack.c.h.b16 %v278
  %v1992 = vunpack.c.l.b16 %v279
  %v1993 = vunpack.c.h.b16 %v279
  %v1994 = vunpack.c.l.b16 %v280
  %v1995 = vunpack.c.h.b16 %v280
  %v1996 = vunpack.c.l.b16 %v281
  %v1997 = vunpack.c.h.b16 %v281
  %v1998 = vunpack.c.l.b16 %v282
  %v1999 = vunpack.c.h.b16 %v282
  %v2000 = vunpack.c.l.b16 %v283
  %v2001 = vunpack.c.l.b16 %v284
  %v2002 = vunpack.c.h.b16 %v284
  %v2003 = vunpack.c.l.b16 %v285
  %v2004 = vunpack.c.h.b16 %v285
  %v2005 = vunpack.c.l.b16 %v286
  %v2006 = vunpack.c.h.b16 %v286
  %v2007 = vunpack.c.l.b16 %v287
  %v2008 = vunpack.c.h.b16 %v287
  %v2009 = vunpack.c.l.b16 %v288
  %v2010 = vunpack.c.h.b16 %v288
  %v2011 = vunpack.c.l.b16 %v289
  %v2012 = vunpack.c.h.b16 %v289
  %v2013 = vunpack.c.l.b16 %v290
  %v2014 = vunpack.c.h.b16 %v290
  %v2015 = vunpack.c.l.b16 %v291
  %v2016 = vunpack.c.h.b16 %v291
  %v2017 = vunpack.c.l.b16 %v292
  %v2018 = vunpack.c.h.b16 %v292
  %v2019 = vunpack.c.l.b16 %v293
  %v2020 = vunpack.c.l.b16 %v294
  %v2021 = vunpack.c.h.b16 %v294
  %v2022 = vunpack.c.l.b16 %v295
  %v2023 = vunpack.c.h.b16 %v295
  %v2024 = vunpack.c.l.b16 %v296
  %v2025 = vunpack.c.h.b16 %v296
  %v2026 = vunpack.c.l.b16 %v297
  %v2027 = vunpack.c.h.b16 %v297
  %v2028 = vunpack.c.l.b16 %v298
  %v2029 = vunpack.c.h.b16 %v298
  %v2030 = vunpack.c.l.b16 %v299
  %v2031 = vunpack.c.h.b16 %v299
  %v2032 = vunpack.c.l.b16 %v300
  %v2033 = vunpack.c.h.b16 %v300
  %v2034 = vunpack.c.l.b16 %v301
  %v2035 = vunpack.c.h.b16 %v301
  %v2036 = vunpack.c.l.b16 %v302
  %v2037 = vunpack.c.h.b16 %v302
  %v2038 = vunpack.c.l.b16 %v303
  %v2039 = vunpack.c.l.b16 %v304
  %v2040 = vunpack.c.h.b16 %v304
  %v2041 = vunpack.c.l.b16 %v305
  %v2042 = vunpack.c.h.b16 %v305
  %v2043 = vunpack.c.l.b16 %v306
  %v2044 = vunpack.c.h.b16 %v306
  %v2045 = vunpack.c.l.b16 %v307
  %v2046 = vunpack.c.h.b16 %v307
  %v2047 = vunpack.c.l.b16 %v308
  %v2048 = vunpack.c.h.b16 %v308
  %v2049 = vunpack.c.l.b16 %v309
  %v2050 = vunpack.c.h.b16 %v309
  %v2051 = vunpack.c.l.b16 %v310
  %v2052 = vunpack.c.h.b16 %v310
  %v2053 = vunpack.c.l.b16 %v311
  %v2054 = vunpack.c.h.b16 %v311
  %v2055 = vunpack.c.l.b16 %v312
  %v2056 = vunpack.c.h.b16 %v312
  %v2057 = vunpack.c.l.b16 %v313
  %v2058 = vunpack.c.l.b16 %v314
  %v2059 = vunpack.c.h.b16 %v314
  %v2060 = vunpack.c.l.b16 %v315
  %v2061 = vunpack.c.h.b16 %v315
  %v2062 = vunpack.c.l.b16 %v316
  %v2063 = vunpack.c.h.b16 %v316
  %v2064 = vunpack.c.l.b16 %v317
  %v2065 = vunpack.c.h.b16 %v317
  %v2066 = vunpack.c.l.b16 %v318
  %v2067 = vunpack.c.h.b16 %v318
  %v2068 = vunpack.c.l.b16 %v319
  %v2069 = vunpack.c.h.b16 %v319
  %v2070 = vunpack.c.l.b16 %v320
  %v2071 = vunpack.c.h.b16 %v320
  %v2072 = vunpack.c.l.b16 %v321
  %v2073 = vunpack.c.h.b16 %v321
  %v2074 = vunpack.c.l.b16 %v322
  %v2075 = vunpack.c.h.b16 %v322
  %v2076 = vunpack.c.l.b16 %v323
  %v2077 = vunpack.c.l.b16 %v324
  %v2078 = vunpack.c.h.b16 %v324
  %v2079 = vunpack.c.l.b16 %v325
  %v2080 = vunpack.c.h.b16 %v325
  %v2081 = vunpack.c.l.b16 %v326
  %v2082 = vunpack.c.h.b16 %v326
  %v2083 = vunpack.c.l.b16 %v327
  %v2084 = vunpack.c.h.b16 %v327
  %v2085 = vunpack.c.l.b16 %v328
  %v2086 = vunpack.c.h.b16 %v328
  %v2087 = vunpack.c.l.b16 %v329
  %v2088 = vunpack.c.h.b16 %v329
  %v2089 = vunpack.c.l.b16 %v330
  %v2090 = vunpack.c.h.b16 %v330
  %v2091 = vunpack.c.l.b16 %v331
  %v2092 = vunpack.c.h.b16 %v331
  %v2093 = vunpack.c.l.b16 %v332
  %v2094 = vunpack.c.h.b16 %v332
  %v2095 = vunpack.c.l.b16 %v333
  %v2096 = vunpack.c.l.b16 %v334
  %v2097 = vunpack.c.h.b16 %v334
  %v2098 = vunpack.c.l.b16 %v335
  %v2099 = vunpack.c.h.b16 %v335
  %v2100 = vunpack.c.l.b16 %v336
  %v2101 = vunpack.c.h.b16 %v336
  %v2102 = vunpack.c.l.b16 %v337
  %v2103 = vunpack.c.h.b16 %v337
  %v2104 = vunpack.c.l.b16 %v338
  %v2105 = vunpack.c.h.b16 %v338
  %v2106 = vunpack.c.l.b16 %v339
  %v2107 = vunpack.c.h.b16 %v339
  %v2108 = vunpack.c.l.b16 %v340
  %v2109 = vunpack.c.h.b16 %v340
  %v2110 = vunpack.c.l.b16 %v341
  %v2111 = vunpack.c.h.b16 %v341
  %v2112 = vunpack.c.l.b16 %v342
  %v2113 = vunpack.c.h.b16 %v342
  %v2114 = vunpack.c.l.b16 %v343
  %v2115 = vunpack.c.l.b16 %v344
  %v2116 = vunpack.c.h.b16 %v344
  %v2117 = vunpack.c.l.b16 %v345
  %v2118 = vunpack.c.h.b16 %v345
  %v2119 = vunpack.c.l.b16 %v346
  %v2120 = vunpack.c.h.b16 %v346
  %v2121 = vunpack.c.l.b16 %v347
  %v2122 = vunpack.c.h.b16 %v347
  %v2123 = vunpack.c.l.b16 %v348
  %v2124 = vunpack.c.h.b16 %v348
  %v2125 = vunpack.c.l.b16 %v349
  %v2126 = vunpack.c.h.b16 %v349
  %v2127 = vunpack.c.l.b16 %v350
  %v2128 = vunpack.c.h.b16 %v350
  %v2129 = vunpack.c.l.b16 %v351
  %v2130 = vunpack.c.h.b16 %v351
  %v2131 = vunpack.c.l.b16 %v352
  %v2132 = vunpack.c.h.b16 %v352
  %v2133 = vunpack.c.l.b16 %v353
  %v2134 = vunpack.c.l.b16 %v354
  %v2135 = vunpack.c.h.b16 %v354
  %v2136 = vunpack.c.l.b16 %v355
  %v2137 = vunpack.c.h.b16 %v355
  %v2138 = vunpack.c.l.b16 %v356
  %v2139 = vunpack.c.h.b16 %v356
  %v2140 = vunpack.c.l.b16 %v357
  %v2141 = vunpack.c.h.b16 %v357
  %v2142 = vunpack.c.l.b16 %v358
  %v2143 = vunpack.c.h.b16 %v358
  %v2144 = vunpack.c.l.b16 %v359
  %v2145 = vunpack.c.h.b16 %v359
  %v2146 = vunpack.c.l.b16 %v360
  %v2147 = vunpack.c.h.b16 %v360
  %v2148 = vunpack.c.l.b16 %v361
  %v2149 = vunpack.c.h.b16 %v361
  %v2150 = vunpack.c.l.b16 %v362
  %v2151 = vunpack.c.h.b16 %v362
  %v2152 = vunpack.c.l.b16 %v363
  %v2153 = vunpack.c.l.b16 %v364
  %v2154 = vunpack.c.h.b16 %v364
  %v2155 = vunpack.c.l.b16 %v365
  %v2156 = vunpack.c.h.b16 %v365
  %v2157 = vunpack.c.l.b16 %v366
  %v2158 = vunpack.c.h.b16 %v366
  %v2159 = vunpack.c.l.b16 %v367
  %v2160 = vunpack.c.h.b16 %v367
  %v2161 = vunpack.c.l.b16 %v368
  %v2162 = vunpack.c.h.b16 %v368
  %v2163 = vunpack.c.l.b16 %v369
  %v2164 = vunpack.c.h.b16 %v369
  %v2165 = vunpack.c.l.b16 %v370
  %v2166 = vunpack.c.h.b16 %v370
  %v2167 = vunpack.c.l.b16 %v371
  %v2168 = vunpack.c.h.b16 %v371
  %v2169 = vunpack.c.l.b16 %v372
  %v2170 = vunpack.c.h.b16 %v372
  %v2171 = vunpack.c.l.b16 %v373
  %v2172 = vunpack.c.l.b16 %v374
  %v2173 = vunpack.c.h.b16 %v374
  %v2174 = vunpack.c.l.b16 %v375
  %v2175 = vunpack.c.h.b16 %v375
  %v2176 = vunpack.c.l.b16 %v376
  %v2177 = vunpack.c.h.b16 %v376
  %v2178 = vunpack.c.l.b16 %v377
  %v2179 = vunpack.c.h.b16 %v377
  %v2180 = vunpack.c.l.b16 %v378
  %v2181 = vunpack.c.h.b16 %v378
  %v2182 = vunpack.c.l.b16 %v379
  %v2183 = vunpack.c.h.b16 %v379
  %v2184 = vunpack.c.l.b16 %v380
  %v2185 = vunpack.c.h.b16 %v380
  %v2186 = vunpack.c.l.b16 %v381
  %v2187 = vunpack.c.h.b16 %v381
  %v2188 = vunpack.c.l.b16 %v382
  %v2189 = vunpack.c.h.b16 %v382
  %v2190 = vunpack.c.l.b16 %v383
  %v2191 = vunpack.c.l.b16 %v384
  %v2192 = vunpack.c.h.b16 %v384
  %v2193 = vunpack.c.l.b16 %v385
  %v2194 = vunpack.c.h.b16 %v385
  %v2195 = vunpack.c.l.b16 %v386
  %v2196 = vunpack.c.h.b16 %v386
  %v2197 = vunpack.c.l.b16 %v387
  %v2198 = vunpack.c.h.b16 %v387
  %v2199 = vunpack.c.l.b16 %v388
  %v2200 = vunpack.c.h.b16 %v388
  %v2201 = vunpack.c.l.b16 %v389
  %v2202 = vunpack.c.h.b16 %v389
  %v2203 = vunpack.c.l.b16 %v390
  %v2204 = vunpack.c.h.b16 %v390
  %v2205 = vunpack.c.l.b16 %v391
  %v2206 = vunpack.c.h.b16 %v391
  %v2207 = vunpack.c.l.b16 %v392
  %v2208 = vunpack.c.h.b16 %v392
  %v2209 = vunpack.c.l.b16 %v393
  %v2210 = vunpack.c.l.b16 %v394
  %v2211 = vunpack.c.h.b16 %v394
  %v2212 = vunpack.c.l.b16 %v395
  %v2213 = vunpack.c.h.b16 %v395
  %v2214 = vunpack.c.l.b16 %v396
  %v2215 = vunpack.c.h.b16 %v396
  %v2216 = vunpack.c.l.b16 %v397
  %v2217 = vunpack.c.h.b16 %v397
  %v2218 = vunpack.c.l.b16 %v398
  %v2219 = vunpack.c.h.b16 %v398
  %v2220 = vunpack.c.l.b16 %v399
  %v2221 = vunpack.c.h.b16 %v399
  %v2222 = vunpack.c.l.b16 %v400
  %v2223 = vunpack.c.h.b16 %v400
  %v2224 = vunpack.c.l.b16 %v401
  %v2225 = vunpack.c.h.b16 %v401
  %v2226 = vunpack.c.l.b16 %v402
  %v2227 = vunpack.c.h.b16 %v402
  %v2228 = vunpack.c.l.b16 %v403
  %v2229 = vunpack.c.l.b16 %v404
  %v2230 = vunpack.c.h.b16 %v404
  %v2231 = vunpack.c.l.b16 %v405
  %v2232 = vunpack.c.h.b16 %v405
  %v2233 = vunpack.c.l.b16 %v406
  %v2234 = vunpack.c.h.b16 %v406
  %v2235 = vunpack.c.l.b16 %v407
  %v2236 = vunpack.c.h.b16 %v407
  %v2237 = vunpack.c.l.b16 %v408
  %v2238 = vunpack.c.h.b16 %v408
  %v2239 = vunpack.c.l.b16 %v409
  %v2240 = vunpack.c.h.b16 %v409
  %v2241 = vunpack.c.l.b16 %v410
  %v2242 = vunpack.c.h.b16 %v410
  %v2243 = vunpack.c.l.b16 %v411
  %v2244 = vunpack.c.h.b16 %v411
  %v2245 = vunpack.c.l.b16 %v412
  %v2246 = vunpack.c.h.b16 %v412
  %v2247 = vunpack.c.l.b16 %v413
  %v2248 = vunpack.c.l.b16 %v414
  %v2249 = vunpack.c.h.b16 %v414
  %v2250 = vunpack.c.l.b16 %v415
  %v2251 = vunpack.c.h.b16 %v415
  %v2252 = vunpack.c.l.b16 %v416
  %v2253 = vunpack.c.h.b16 %v416
  %v2254 = vunpack.c.l.b16 %v417
  %v2255 = vunpack.c.h.b16 %v417
  %v2256 = vunpack.c.l.b16 %v418
  %v2257 = vunpack.c.h.b16 %v418
  %v2258 = vunpack.c.l.b16 %v419
  %v2259 = vunpack.c.h.b16 %v419
  %v2260 = vunpack.c.l.b16 %v420
  %v2261 = vunpack.c.h.b16 %v420
  %v2262 = vunpack.c.l.b16 %v421
  %v2263 = vunpack.c.h.b16 %v421
  %v2264 = vunpack.c.l.b16 %v422
  %v2265 = vunpack.c.h.b16 %v422
  %v2266 = vunpack.c.l.b16 %v423
  %v2267 = vunpack.c.l.b16 %v424
  %v2268 = vunpack.c.h.b16 %v424
  %v2269 = vunpack.c.l.b16 %v425
  %v2270 = vunpack.c.h.b16 %v425
  %v2271 = vunpack.c.l.b16 %v426
  %v2272 = vunpack.c.h.b16 %v426
  %v2273 = vunpack.c.l.b16 %v427
  %v2274 = vunpack.c.h.b16 %v427
  %v2275 = vunpack.c.l.b16 %v428
  %v2276 = vunpack.c.h.b16 %v428
  %v2277 = vunpack.c.l.b16 %v429
  %v2278 = vunpack.c.h.b16 %v429
  %v2279 = vunpack.c.l.b16 %v430
  %v2280 = vunpack.c.h.b16 %v430
  %v2281 = vunpack.c.l.b16 %v431
  %v2282 = vunpack.c.h.b16 %v431
  %v2283 = vunpack.c.l.b16 %v432
  %v2284 = vunpack.c.h.b16 %v432
  %v2285 = vunpack.c.l.b16 %v433
  %v2286 = vunpack.c.l.b16 %v434
  %v2287 = vunpack.c.h.b16 %v434
  %v2288 = vunpack.c.l.b16 %v435
  %v2289 = vunpack.c.h.b16 %v435
  %v2290 = vunpack.c.l.b16 %v436
  %v2291 = vunpack.c.h.b16 %v436
  %v2292 = vunpack.c.l.b16 %v437
  %v2293 = vunpack.c.h.b16 %v437
  %v2294 = vunpack.c.l.b16 %v438
  %v2295 = vunpack.c.h.b16 %v438
  %v2296 = vunpack.c.l.b16 %v439
  %v2297 = vunpack.c.h.b16 %v439
  %v2298 = vunpack.c.l.b16 %v440
  %v2299 = vunpack.c.h.b16 %v440
  %v2300 = vunpack.c.l.b16 %v441
  %v2301 = vunpack.c.h.b16 %v441
  %v2302 = vunpack.c.l.b16 %v442
  %v2303 = vunpack.c.h.b16 %v442
  %v2304 = vunpack.c.l.b16 %v443
  %v2305 = vunpack.c.l.b16 %v444
  %v2306 = vunpack.c.h.b16 %v444
  %v2307 = vunpack.c.l.b16 %v445
  %v2308 = vunpack.c.h.b16 %v445
  %v2309 = vunpack.c.l.b16 %v446
  %v2310 = vunpack.c.h.b16 %v446
  %v2311 = vunpack.c.l.b16 %v447
  %v2312 = vunpack.c.h.b16 %v447
  %v2313 = vunpack.c.l.b16 %v448
  %v2314 = vunpack.c.h.b16 %v448
  %v2315 = vunpack.c.l.b16 %v449
  %v2316 = vunpack.c.h.b16 %v449
  %v2317 = vunpack.c.l.b16 %v450
  %v2318 = vunpack.c.h.b16 %v450
  %v2319 = vunpack.c.l.b16 %v451
  %v2320 = vunpack.c.h.b16 %v451
  %v2321 = vunpack.c.l.b16 %v452
  %v2322 = vunpack.c.h.b16 %v452
  %v2323 = vunpack.c.l.b16 %v453
  %v2324 = vunpack.c.l.b16 %v454
  %v2325 = vunpack.c.h.b16 %v454
  %v2326 = vunpack.c.l.b16 %v455
  %v2327 = vunpack.c.h.b16 %v455
  %v2328 = vunpack.c.l.b16 %v456
  %v2329 = vunpack.c.h.b16 %v456
  %v2330 = vunpack.c.l.b16 %v457
  %v2331 = vunpack.c.h.b16 %v457
  %v2332 = vunpack.c.l.b16 %v458
  %v2333 = vunpack.c.h.b16 %v458
  %v2334 = vunpack.c.l.b16 %v459
  %v2335 = vunpack.c.h.b16 %v459
  %v2336 = vunpack.c.l.b16 %v460
  %v2337 = vunpack.c.h.b16 %v460
  %v2338 = vunpack.c.l.b16 %v461
  %v2339 = vunpack.c.h.b16 %v461
  %v2340 = vunpack.c.l.b16 %v462
  %v2341 = vunpack.c.h.b16 %v462
  %v2342 = vunpack.c.l.b16 %v463
  %v2343 = vunpack.c.l.b16 %v464
  %v2344 = vunpack.c.h.b16 %v464
  %v2345 = vunpack.c.l.b16 %v465
  %v2346 = vunpack.c.h.b16 %v465
  %v2347 = vunpack.c.l.b16 %v466
  %v2348 = vunpack.c.h.b16 %v466
  %v2349 = vunpack.c.l.b16 %v467
  %v2350 = vunpack.c.h.b16 %v467
  %v2351 = vunpack.c.l.b16 %v468
  %v2352 = vunpack.c.h.b16 %v468
  %v2353 = vunpack.c.l.b16 %v469
  %v2354 = vunpack.c.h.b16 %v469
  %v2355 = vunpack.c.l.b16 %v470
  %v2356 = vunpack.c.h.b16 %v470
  %v2357 = vunpack.c.l.b16 %v471
  %v2358 = vunpack.c.h.b16 %v471
  %v2359 = vunpack.c.l.b16 %v472
  %v2360 = vunpack.c.h.b16 %v472
  %v2361 = vunpack.c.l.b16 %v473
  %v2362 = vunpack.c.l.b16 %v474
  %v2363 = vunpack.c.h.b16 %v474
  %v2364 = vunpack.c.l.b16 %v475
  %v2365 = vunpack.c.h.b16 %v475
  %v2366 = vunpack.c.l.b16 %v476
  %v2367 = vunpack.c.h.b16 %v476
  %v2368 = vunpack.c.l.b16 %v477
  %v2369 = vunpack.c.h.b16 %v477
  %v2370 = vunpack.c.l.b16 %v478
  %v2371 = vunpack.c.h.b16 %v478
  %v2372 = vunpack.c.l.b16 %v479
  %v2373 = vunpack.c.h.b16 %v479
  %v2374 = vunpack.c.l.b16 %v480
  %v2375 = vunpack.c.h.b16 %v480
  %v2376 = vunpack.c.l.b16 %v481
  %v2377 = vunpack.c.h.b16 %v481
  %v2378 = vunpack.c.l.b16 %v482
  %v2379 = vunpack.c.h.b16 %v482
  %v2380 = vunpack.c.l.b16 %v483
  %v2381 = vunpack.c.l.b16 %v484
  %v2382 = vunpack.c.h.b16 %v484
  %v2383 = vunpack.c.l.b16 %v485
  %v2384 = vunpack.c.h.b16 %v485
  %v2385 = vunpack.c.l.b16 %v486
  %v2386 = vunpack.c.h.b16 %v486
  %v2387 = vunpack.c.l.b16 %v487
  %v2388 = vunpack.c.h.b16 %v487
  %v2389 = vunpack.c.l.b16 %v488
  %v2390 = vunpack.c.h.b16 %v488
  %v2391 = vunpack.c.l.b16 %v489
  %v2392 = vunpack.c.h.b16 %v489
  %v2393 = vunpack.c.l.b16 %v490
  %v2394 = vunpack.c.h.b16 %v490
  %v2395 = vunpack.c.l.b16 %v491
  %v2396 = vunpack.c.h.b16 %v491
  %v2397 = vunpack.c.l.b16 %v492
  %v2398 = vunpack.c.h.b16 %v492
  %v2399 = vunpack.c.l.b16 %v493
  %v2400 = vunpack.c.l.b16 %v494
  %v2401 = vunpack.c.h.b16 %v494
  %v2402 = vunpack.c.l.b16 %v495
  %v2403 = vunpack.c.h.b16 %v495
  %v2404 = vunpack.c.l.b16 %v496
  %v2405 = vunpack.c.h.b16 %v496
  %v2406 = vunpack.c.l.b16 %v497
  %v2407 = vunpack.c.h.b16 %v497
  %v2408 = vunpack.c.l.b16 %v498
  %v2409 = vunpack.c.h.b16 %v498
  %v2410 = vunpack.c.l.b16 %v499
  %v2411 = vunpack.c.h.b16 %v499
  %v2412 = vunpack.c.l.b16 %v500
  %v2413 = vunpack.c.h.b16 %v500
  %v2414 = vunpack.c.l.b16 %v501
  %v2415 = vunpack.c.h.b16 %v501
  %v2416 = vunpack.c.l.b16 %v502
  %v2417 = vunpack.c.h.b16 %v502
  %v2418 = vunpack.c.l.b16 %v503
  %v2419 = vunpack.c.l.b16 %v504
  %v2420 = vunpack.c.h.b16 %v504
  %v2421 = vunpack.c.l.b16 %v505
  %v2422 = vunpack.c.h.b16 %v505
  %v2423 = vunpack.c.l.b16 %v506
  %v2424 = vunpack.c.h.b16 %v506
  %v2425 = vunpack.c.l.b16 %v507
  %v2426 = vunpack.c.h.b16 %v507
  %v2427 = vunpack.c.l.b16 %v508
  %v2428 = vunpack.c.h.b16 %v508
  %v2429 = vunpack.c.l.b16 %v509
  %v2430 = vunpack.c.h.b16 %v509
  %v2431 = vunpack.c.l.b16 %v510
  %v2432 = vunpack.c.h.b16 %v510
  %v2433 = vunpack.c.l.b16 %v511
  %v2434 = vunpack.c.h.b16 %v511
  %v2435 = vunpack.c.l.b16 %v512
  %v2436 = vunpack.c.h.b16 %v512
  %v2437 = vunpack.c.l.b16 %v513
  %v2438 = vunpack.c.l.b16 %v514
  %v2439 = vunpack.c.h.b16 %v514
  %v2440 = vunpack.c.l.b16 %v515
  %v2441 = vunpack.c.h.b16 %v515
  %v2442 = vunpack.c.l.b16 %v516
  %v2443 = vunpack.c.h.b16 %v516
  %v2444 = vunpack.c.l.b16 %v517
  %v2445 = vunpack.c.h.b16 %v517
  %v2446 = vunpack.c.l.b16 %v518
  %v2447 = vunpack.c.h.b16 %v518
  %v2448 = vunpack.c.l.b16 %v519
  %v2449 = vunpack.c.h.b16 %v519
  %v2450 = vunpack.c.l.b16 %v520
  %v2451 = vunpack.c.h.b16 %v520
  %v2452 = vunpack.c.l.b16 %v521
  %v2453 = vunpack.c.h.b16 %v521
  %v2454 = vunpack.c.l.b16 %v522
  %v2455 = vunpack.c.h.b16 %v522
  %v2456 = vunpack.c.l.b16 %v523
  %v2457 = vunpack.c.l.b16 %v524
  %v2458 = vunpack.c.h.b16 %v524
  %v2459 = vunpack.c.l.b16 %v525
  %v2460 = vunpack.c.h.b16 %v525
  %v2461 = vunpack.c.l.b16 %v526
  %v2462 = vunpack.c.h.b16 %v526
  %v2463 = vunpack.c.l.b16 %v527
  %v2464 = vunpack.c.h.b16 %v527
  %v2465 = vunpack.c.l.b16 %v528
  %v2466 = vunpack.c.h.b16 %v528
  %v2467 = vunpack.c.l.b16 %v529
  %v2468 = vunpack.c.h.b16 %v529
  %v2469 = vunpack.c.l.b16 %v530
  %v2470 = vunpack.c.h.b16 %v530
  %v2471 = vunpack.c.l.b16 %v531
  %v2472 = vunpack.c.h.b16 %v531
  %v2473 = vunpack.c.l.b16 %v532
  %v2474 = vunpack.c.h.b16 %v532
  %v2475 = vunpack.c.l.b16 %v533
  %v2476 = vunpack.c.l.b16 %v534
  %v2477 = vunpack.c.h.b16 %v534
  %v2478 = vunpack.c.l.b16 %v535
  %v2479 = vunpack.c.h.b16 %v535
  %v2480 = vunpack.c.l.b16 %v536
  %v2481 = vunpack.c.h.b16 %v536
  %v2482 = vunpack.c.l.b16 %v537
  %v2483 = vunpack.c.h.b16 %v537
  %v2484 = vunpack.c.l.b16 %v538
  %v2485 = vunpack.c.h.b16 %v538
  %v2486 = vunpack.c.l.b16 %v539
  %v2487 = vunpack.c.h.b16 %v539
  %v2488 = vunpack.c.l.b16 %v540
  %v2489 = vunpack.c.h.b16 %v540
  %v2490 = vunpack.c.l.b16 %v541
  %v2491 = vunpack.c.h.b16 %v541
  %v2492 = vunpack.c.l.b16 %v542
  %v2493 = vunpack.c.h.b16 %v542
  %v2494 = vunpack.c.l.b16 %v543
  %v2495 = vunpack.c.l.b16 %v544
  %v2496 = vunpack.c.h.b16 %v544
  %v2497 = vunpack.c.l.b16 %v545
  %v2498 = vunpack.c.h.b16 %v545
  %v2499 = vunpack.c.l.b16 %v546
  %v2500 = vunpack.c.h.b16 %v546
  %v2501 = vunpack.c.l.b16 %v547
  %v2502 = vunpack.c.h.b16 %v547
  %v2503 = vunpack.c.l.b16 %v548
  %v2504 = vunpack.c.h.b16 %v548
  %v2505 = vunpack.c.l.b16 %v549
  %v2506 = vunpack.c.h.b16 %v549
  %v2507 = vunpack.c.l.b16 %v550
  %v2508 = vunpack.c.h.b16 %v550
  %v2509 = vunpack.c.l.b16 %v551
  %v2510 = vunpack.c.h.b16 %v551
  %v2511 = vunpack.c.l.b16 %v552
  %v2512 = vunpack.c.h.b16 %v552
  %v2513 = vunpack.c.l.b16 %v553
  %v2514 = vunpack.c.l.b16 %v554
  %v2515 = vunpack.c.h.b16 %v554
  %v2516 = vunpack.c.l.b16 %v555
  %v2517 = vunpack.c.h.b16 %v555
  %v2518 = vunpack.c.l.b16 %v556
  %v2519 = vunpack.c.h.b16 %v556
  %v2520 = vunpack.c.l.b16 %v557
  %v2521 = vunpack.c.h.b16 %v557
  %v2522 = vunpack.c.l.b16 %v558
  %v2523 = vunpack.c.h.b16 %v558
  %v2524 = vunpack.c.l.b16 %v559
  %v2525 = vunpack.c.h.b16 %v559
  %v2526 = vunpack.c.l.b16 %v560
  %v2527 = vunpack.c.h.b16 %v560
  %v2528 = vunpack.c.l.b16 %v561
  %v2529 = vunpack.c.h.b16 %v561
  %v2530 = vunpack.c.l.b16 %v562
  %v2531 = vunpack.c.h.b16 %v562
  %v2532 = vunpack.c.l.b16 %v563
  %v2533 = vunpack.c.l.b16 %v564
  %v2534 = vunpack.c.h.b16 %v564
  %v2535 = vunpack.c.l.b16 %v565
  %v2536 = vunpack.c.h.b16 %v565
  %v2537 = vunpack.c.l.b16 %v566
  %v2538 = vunpack.c.h.b16 %v566
  %v2539 = vunpack.c.l.b16 %v567
  %v2540 = vunpack.c.h.b16 %v567
  %v2541 = vunpack.c.l.b16 %v568
  %v2542 = vunpack.c.h.b16 %v568
  %v2543 = vunpack.c.l.b16 %v569
  %v2544 = vunpack.c.h.b16 %v569
  %v2545 = vunpack.c.l.b16 %v570
  %v2546 = vunpack.c.h.b16 %v570
  %v2547 = vunpack.c.l.b16 %v571
  %v2548 = vunpack.c.h.b16 %v571
  %v2549 = vunpack.c.l.b16 %v572
  %v2550 = vunpack.c.h.b16 %v572
  %v2551 = vunpack.c.l.b16 %v573
  %v2552 = vunpack.c.l.b16 %v574
  %v2553 = vunpack.c.h.b16 %v574
  %v2554 = vunpack.c.l.b16 %v575
  %v2555 = vunpack.c.h.b16 %v575
  %v2556 = vunpack.c.l.b16 %v576
  %v2557 = vunpack.c.h.b16 %v576
  %v2558 = vunpack.c.l.b16 %v577
  %v2559 = vunpack.c.h.b16 %v577
  %v2560 = vunpack.c.l.b16 %v578
  %v2561 = vunpack.c.h.b16 %v578
  %v2562 = vunpack.c.l.b16 %v579
  %v2563 = vunpack.c.h.b16 %v579
  %v2564 = vunpack.c.l.b16 %v580
  %v2565 = vunpack.c.h.b16 %v580
  %v2566 = vunpack.c.l.b16 %v581
  %v2567 = vunpack.c.h.b16 %v581
  %v2568 = vunpack.c.l.b16 %v582
  %v2569 = vunpack.c.h.b16 %v582
  %v2570 = vunpack.c.l.b16 %v583
  %v2571 = vunpack.c.l.b16 %v584
  %v2572 = vunpack.c.h.b16 %v584
  %v2573 = vunpack.c.l.b16 %v585
  %v2574 = vunpack.c.h.b16 %v585
  %v2575 = vunpack.c.l.b16 %v586
  %v2576 = vunpack.c.h.b16 %v586
  %v2577 = vunpack.c.l.b16 %v587
  %v2578 = vunpack.c.h.b16 %v587
  %v2579 = vunpack.c.l.b16 %v588
  %v2580 = vunpack.c.h.b16 %v588
  %v2581 = vunpack.c.l.b16 %v589
  %v2582 = vunpack.c.h.b16 %v589
  %v2583 = vunpack.c.l.b16 %v590
  %v2584 = vunpack.c.h.b16 %v590
  %v2585 = vunpack.c.l.b16 %v591
  %v2586 = vunpack.c.h.b16 %v591
  %v2587 = vunpack.c.l.b16 %v592
  %v2588 = vunpack.c.h.b16 %v592
  %v2589 = vunpack.c.l.b16 %v593
  %v2590 = vunpack.c.l.b16 %v594
  %v2591 = vunpack.c.h.b16 %v594
  %v2592 = vunpack.c.l.b16 %v595
  %v2593 = vunpack.c.h.b16 %v595
  %v2594 = vunpack.c.l.b16 %v596
  %v2595 = vunpack.c.h.b16 %v596
  %v2596 = vunpack.c.l.b16 %v597
  %v2597 = vunpack.c.h.b16 %v597
  %v2598 = vunpack.c.l.b16 %v598
  %v2599 = vunpack.c.h.b16 %v598
  %v2600 = vunpack.c.l.b16 %v599
  %v2601 = vunpack.c.h.b16 %v599
  %v2602 = vunpack.c.l.b16 %v600
  %v2603 = vunpack.c.h.b16 %v600
  %v2604 = vunpack.c.l.b16 %v601
  %v2605 = vunpack.c.h.b16 %v601
  %v2606 = vunpack.c.l.b16 %v602
  %v2607 = vunpack.c.h.b16 %v602
  %v2608 = vunpack.c.l.b16 %v603
  %v2609 = vunpack.c.l.b16 %v604
  %v2610 = vunpack.c.h.b16 %v604
  %v2611 = vunpack.c.l.b16 %v605
  %v2612 = vunpack.c.h.b16 %v605
  %v2613 = vunpack.c.l.b16 %v606
  %v2614 = vunpack.c.h.b16 %v606
  %v2615 = vunpack.c.l.b16 %v607
  %v2616 = vunpack.c.h.b16 %v607
  %v2617 = vunpack.c.l.b16 %v608
  %v2618 = vunpack.c.h.b16 %v608
  %v2619 = vunpack.c.l.b16 %v609
  %v2620 = vunpack.c.h.b16 %v609
  %v2621 = vunpack.c.l.b16 %v610
  %v2622 = vunpack.c.h.b16 %v610
  %v2623 = vunpack.c.l.b16 %v611
  %v2624 = vunpack.c.h.b16 %v611
  %v2625 = vunpack.c.l.b16 %v612
  %v2626 = vunpack.c.h.b16 %v612
  %v2627 = vunpack.c.l.b16 %v613
  %v2628 = vunpack.c.l.b16 %v614
  %v2629 = vunpack.c.h.b16 %v614
  %v2630 = vunpack.c.l.b16 %v615
  %v2631 = vunpack.c.h.b16 %v615
  %v2632 = vunpack.c.l.b16 %v616
  %v2633 = vunpack.c.h.b16 %v616
  %v2634 = vunpack.c.l.b16 %v617
  %v2635 = vunpack.c.h.b16 %v617
  %v2636 = vunpack.c.l.b16 %v618
  %v2637 = vunpack.c.h.b16 %v618
  %v2638 = vunpack.c.l.b16 %v619
  %v2639 = vunpack.c.h.b16 %v619
  %v2640 = vunpack.c.l.b16 %v620
  %v2641 = vunpack.c.h.b16 %v620
  %v2642 = vunpack.c.l.b16 %v621
  %v2643 = vunpack.c.h.b16 %v621
  %v2644 = vunpack.c.l.b16 %v622
  %v2645 = vunpack.c.h.b16 %v622
  %v2646 = vunpack.c.l.b16 %v623
  %v2647 = vunpack.c.l.b16 %v624
  %v2648 = vunpack.c.h.b16 %v624
  %v2649 = vunpack.c.l.b16 %v625
  %v2650 = vunpack.c.h.b16 %v625
  %v2651 = vunpack.c.l.b16 %v626
  %v2652 = vunpack.c.h.b16 %v626
  %v2653 = vunpack.c.l.b16 %v627
  %v2654 = vunpack.c.h.b16 %v627
  %v2655 = vunpack.c.l.b16 %v628
  %v2656 = vunpack.c.h.b16 %v628
  %v2657 = vunpack.c.l.b16 %v629
  %v2658 = vunpack.c.h.b16 %v629
  %v2659 = vunpack.c.l.b16 %v630
  %v2660 = vunpack.c.h.b16 %v630
  %v2661 = vunpack.c.l.b16 %v631
  %v2662 = vunpack.c.h.b16 %v631
  %v2663 = vunpack.c.l.b16 %v632
  %v2664 = vunpack.c.h.b16 %v632
  %v2665 = vunpack.c.l.b16 %v633
  %v2666 = vunpack.c.l.b16 %v634
  %v2667 = vunpack.c.h.b16 %v634
  %v2668 = vunpack.c.l.b16 %v635
  %v2669 = vunpack.c.h.b16 %v635
  %v2670 = vunpack.c.l.b16 %v636
  %v2671 = vunpack.c.h.b16 %v636
  %v2672 = vunpack.c.l.b16 %v637
  %v2673 = vunpack.c.h.b16 %v637
  %v2674 = vunpack.c.l.b16 %v638
  %v2675 = vunpack.c.h.b16 %v638
  %v2676 = vunpack.c.l.b16 %v639
  %v2677 = vunpack.c.h.b16 %v639
  %v2678 = vunpack.c.l.b16 %v640
  %v2679 = vunpack.c.h.b16 %v640
  %v2680 = vunpack.c.l.b16 %v641
  %v2681 = vunpack.c.h.b16 %v641
  %v2682 = vunpack.c.l.b16 %v642
  %v2683 = vunpack.c.h.b16 %v642
  %v2684 = vunpack.c.l.b16 %v643
  %v2685 = vunpack.c.l.b16 %v644
  %v2686 = vunpack.c.h.b16 %v644
  %v2687 = vunpack.c.l.b16 %v645
  %v2688 = vunpack.c.h.b16 %v645
  %v2689 = vunpack.c.l.b16 %v646
  %v2690 = vunpack.c.h.b16 %v646
  %v2691 = vunpack.c.l.b16 %v647
  %v2692 = vunpack.c.h.b16 %v647
  %v2693 = vunpack.c.l.b16 %v648
  %v2694 = vunpack.c.h.b16 %v648
  %v2695 = vunpack.c.l.b16 %v649
  %v2696 = vunpack.c.h.b16 %v649
  %v2697 = vunpack.c.l.b16 %v650
  %v2698 = vunpack.c.h.b16 %v650
  %v2699 = vunpack.c.l.b16 %v651
  %v2700 = vunpack.c.h.b16 %v651
  %v2701 = vunpack.c.l.b16 %v652
  %v2702 = vunpack.c.h.b16 %v652
  %v2703 = vunpack.c.l.b16 %v653
  %v2704 = vunpack.c.l.b16 %v654
  %v2705 = vunpack.c.h.b16 %v654
  %v2706 = vunpack.c.l.b16 %v655
  %v2707 = vunpack.c.h.b16 %v655
  %v2708 = vunpack.c.l.b16 %v656
  %v2709 = vunpack.c.h.b16 %v656
  %v2710 = vunpack.c.l.b16 %v657
  %v2711 = vunpack.c.h.b16 %v657
  %v2712 = vunpack.c.l.b16 %v658
  %v2713 = vunpack.c.h.b16 %v658
  %v2714 = vunpack.c.l.b16 %v659
  %v2715 = vunpack.c.h.b16 %v659
  %v2716 = vunpack.c.l.b16 %v660
  %v2717 = vunpack.c.h.b16 %v660
  %v2718 = vunpack.c.l.b16 %v661
  %v2719 = vunpack.c.h.b16 %v661
  %v2720 = vunpack.c.l.b16 %v662
  %v2721 = vunpack.c.h.b16 %v662
  %v2722 = vunpack.c.l.b16 %v663
  %v2723 = vunpack.c.l.b16 %v664
  %v2724 = vunpack.c.h.b16 %v664
  %v2725 = vunpack.c.l.b16 %v665
  %v2726 = vunpack.c.h.b16 %v665
  %v2727 = vunpack.c.l.b16 %v666
  %v2728 = vunpack.c.h.b16 %v666
  %v2729 = vunpack.c.l.b16 %v667
  %v2730 = vunpack.c.h.b16 %v667
  %v2731 = vunpack.c.l.b16 %v668
  %v2732 = vunpack.c.h.b16 %v668
  %v2733 = vunpack.c.l.b16 %v669
  %v2734 = vunpack.c.h.b16 %v669
  %v2735 = vunpack.c.l.b16 %v670
  %v2736 = vunpack.c.h.b16 %v670
  %v2737 = vunpack.c.l.b16 %v671
  %v2738 = vunpack.c.h.b16 %v671
  %v2739 = vunpack.c.l.b16 %v672
  %v2740 = vunpack.c.h.b16 %v672
  %v2741 = vunpack.c.l.b16 %v673
  %v2742 = vunpack.c.l.b16 %v674
  %v2743 = vunpack.c.h.b16 %v674
  %v2744 = vunpack.c.l.b16 %v675
  %v2745 = vunpack.c.h.b16 %v675
  %v2746 = vunpack.c.l.b16 %v676
  %v2747 = vunpack.c.h.b16 %v676
  %v2748 = vunpack.c.l.b16 %v677
  %v2749 = vunpack.c.h.b16 %v677
  %v2750 = vunpack.c.l.b16 %v678
  %v2751 = vunpack.c.h.b16 %v678
  %v2752 = vunpack.c.l.b16 %v679
  %v2753 = vunpack.c.h.b16 %v679
  %v2754 = vunpack.c.l.b16 %v680
  %v2755 = vunpack.c.h.b16 %v680
  %v2756 = vunpack.c.l.b16 %v681
  %v2757 = vunpack.c.h.b16 %v681
  %v2758 = vunpack.c.l.b16 %v682
  %v2759 = vunpack.c.h.b16 %v682
  %v2760 = vunpack.c.l.b16 %v683
  %v2761 = vunpack.c.l.b16 %v684
  %v2762 = vunpack.c.h.b16 %v684
  %v2763 = vunpack.c.l.b16 %v685
  %v2764 = vunpack.c.h.b16 %v685
  %v2765 = vunpack.c.l.b16 %v686
  %v2766 = vunpack.c.h.b16 %v686
  %v2767 = vunpack.c.l.b16 %v687
  %v2768 = vunpack.c.h.b16 %v687
  %v2769 = vunpack.c.l.b16 %v688
  %v2770 = vunpack.c.h.b16 %v688
  %v2771 = vunpack.c.l.b16 %v689
  %v2772 = vunpack.c.h.b16 %v689
  %v2773 = vunpack.c.l.b16 %v690
  %v2774 = vunpack.c.h.b16 %v690
  %v2775 = vunpack.c.l.b16 %v691
  %v2776 = vunpack.c.h.b16 %v691
  %v2777 = vunpack.c.l.b16 %v692
  %v2778 = vunpack.c.h.b16 %v692
  %v2779 = vunpack.c.l.b16 %v693
  %v2780 = vunpack.c.l.b16 %v694
  %v2781 = vunpack.c.h.b16 %v694
  %v2782 = vunpack.c.l.b16 %v695
  %v2783 = vunpack.c.h.b16 %v695
  %v2784 = vunpack.c.l.b16 %v696
  %v2785 = vunpack.c.h.b16 %v696
  %v2786 = vunpack.c.l.b16 %v697
  %v2787 = vunpack.c.h.b16 %v697
  %v2788 = vunpack.c.l.b16 %v698
  %v2789 = vunpack.c.h.b16 %v698
  %v2790 = vunpack.c.l.b16 %v699
  %v2791 = vunpack.c.h.b16 %v699
  %v2792 = vunpack.c.l.b16 %v700
  %v2793 = vunpack.c.h.b16 %v700
  %v2794 = vunpack.c.l.b16 %v701
  %v2795 = vunpack.c.h.b16 %v701
  %v2796 = vunpack.c.l.b16 %v702
  %v2797 = vunpack.c.h.b16 %v702
  %v2798 = vunpack.c.l.b16 %v703
  %v2799 = vunpack.c.l.b16 %v704
  %v2800 = vunpack.c.h.b16 %v704
  %v2801 = vunpack.c.l.b16 %v705
  %v2802 = vunpack.c.h.b16 %v705
  %v2803 = vunpack.c.l.b16 %v706
  %v2804 = vunpack.c.h.b16 %v706
  %v2805 = vunpack.c.l.b16 %v707
  %v2806 = vunpack.c.h.b16 %v707
  %v2807 = vunpack.c.l.b16 %v708
  %v2808 = vunpack.c.h.b16 %v708
  %v2809 = vunpack.c.l.b16 %v709
  %v2810 = vunpack.c.h.b16 %v709
  %v2811 = vunpack.c.l.b16 %v710
  %v2812 = vunpack.c.h.b16 %v710
  %v2813 = vunpack.c.l.b16 %v711
  %v2814 = vunpack.c.h.b16 %v711
  %v2815 = vunpack.c.l.b16 %v712
  %v2816 = vunpack.c.h.b16 %v712
  %v2817 = vunpack.c.l.b16 %v713
  %v2818 = vunpack.c.l.b16 %v714
  %v2819 = vunpack.c.h.b16 %v714
  %v2820 = vunpack.c.l.b16 %v715
  %v2821 = vunpack.c.h.b16 %v715
  %v2822 = vunpack.c.l.b16 %v716
  %v2823 = vunpack.c.h.b16 %v716
  %v2824 = vunpack.c.l.b16 %v717
  %v2825 = vunpack.c.h.b16 %v717
  %v2826 = vunpack.c.l.b16 %v718
  %v2827 = vunpack.c.h.b16 %v718
  %v2828 = vunpack.c.l.b16 %v719
  %v2829 = vunpack.c.h.b16 %v719
  %v2830 = vunpack.c.l.b16 %v720
  %v2831 = vunpack.c.h.b16 %v720
  %v2832 = vunpack.c.l.b16 %v721
  %v2833 = vunpack.c.h.b16 %v721
  %v2834 = vunpack.c.l.b16 %v722
  %v2835 = vunpack.c.h.b16 %v722
  %v2836 = vunpack.c.l.b16 %v723
  %v2837 = vunpack.c.l.b16 %v724
  %v2838 = vunpack.c.h.b16 %v724
  %v2839 = vunpack.c.l.b16 %v725
  %v2840 = vunpack.c.h.b16 %v725
  %v2841 = vunpack.c.l.b16 %v726
  %v2842 = vunpack.c.h.b16 %v726
  %v2843 = vunpack.c.l.b16 %v727
  %v2844 = vunpack.c.h.b16 %v727
  %v2845 = vunpack.c.l.b16 %v728
  %v2846 = vunpack.c.h.b16 %v728
  %v2847 = vunpack.c.l.b16 %v729
  %v2848 = vunpack.c.h.b16 %v729
  %v2849 = vunpack.c.l.b16 %v730
  %v2850 = vunpack.c.h.b16 %v730
  %v2851 = vunpack.c.l.b16 %v731
  %v2852 = vunpack.c.h.b16 %v731
  %v2853 = vunpack.c.l.b16 %v732
  %v2854 = vunpack.c.h.b16 %v732
  %v2855 = vunpack.c.l.b16 %v733
  %v2856 = vunpack.c.l.b16 %v734
  %v2857 = vunpack.c.h.b16 %v734
  %v2858 = vunpack.c.l.b16 %v735
  %v2859 = vunpack.c.h.b16 %v735
  %v2860 = vunpack.c.l.b16 %v736
  %v2861 = vunpack.c.h.b16 %v736
  %v2862 = vunpack.c.l.b16 %v737
  %v2863 = vunpack.c.h.b16 %v737
  %v2864 = vunpack.c.l.b16 %v738
  %v2865 = vunpack.c.h.b16 %v738
  %v2866 = vunpack.c.l.b16 %v739
  %v2867 = vunpack.c.h.b16 %v739
  %v2868 = vunpack.c.l.b16 %v740
  %v2869 = vunpack.c.h.b16 %v740
  %v2870 = vunpack.c.l.b16 %v741
  %v2871 = vunpack.c.h.b16 %v741
  %v2872 = vunpack.c.l.b16 %v742
  %v2873 = vunpack.c.h.b16 %v742
  %v2874 = vunpack.c.l.b16 %v743
  %v2875 = vunpack.c.l.b16 %v744
  %v2876 = vunpack.c.h.b16 %v744
  %v2877 = vunpack.c.l.b16 %v745
  %v2878 = vunpack.c.h.b16 %v745
  %v2879 = vunpack.c.l.b16 %v746
  %v2880 = vunpack.c.h.b16 %v746
  %v2881 = vunpack.c.l.b16 %v747
  %v2882 = vunpack.c.h.b16 %v747
  %v2883 = vunpack.c.l.b16 %v748
  %v2884 = vunpack.c.h.b16 %v748
  %v2885 = vunpack.c.l.b16 %v749
  %v2886 = vunpack.c.h.b16 %v749
  %v2887 = vunpack.c.l.b16 %v750
  %v2888 = vunpack.c.h.b16 %v750
  %v2889 = vunpack.c.l.b16 %v751
  %v2890 = vunpack.c.h.b16 %v751
  %v2891 = vunpack.c.l.b16 %v752
  %v2892 = vunpack.c.h.b16 %v752
  %v2893 = vunpack.c.l.b16 %v753
  %v2894 = vunpack.c.l.b16 %v754
  %v2895 = vunpack.c.h.b16 %v754
  %v2896 = vunpack.c.l.b16 %v755
  %v2897 = vunpack.c.h.b16 %v755
  %v2898 = vunpack.c.l.b16 %v756
  %v2899 = vunpack.c.h.b16 %v756
  %v2900 = vunpack.c.l.b16 %v757
  %v2901 = vunpack.c.h.b16 %v757
  %v2902 = vunpack.c.l.b16 %v758
  %v2903 = vunpack.c.h.b16 %v758
  %v2904 = vunpack.c.l.b16 %v759
  %v2905 = vunpack.c.h.b16 %v759
  %v2906 = vunpack.c.l.b16 %v760
  %v2907 = vunpack.c.h.b16 %v760
  %v2908 = vunpack.c.l.b16 %v761
  %v2909 = vunpack.c.h.b16 %v761
  %v2910 = vunpack.c.l.b16 %v762
  %v2911 = vunpack.c.h.b16 %v762
  %v2912 = vunpack.c.l.b16 %v763
  %v2913 = vpack.c.b16 %v1564, %v1545
  %v2914 = vpack.c.b16 %v1565, %v1546
  %v2915 = vpack.c.b16 %v1566, %v1547
  %v2916 = vpack.c.b16 %v1567, %v1548
  %v2917 = vpack.c.b16 %v1568, %v1549
  %v2918 = vpack.c.b16 %v1569, %v1550
  %v2919 = vpack.c.b16 %v1570, %v1551
  %v2920 = vpack.c.b16 %v1571, %v1552
  %v2921 = vpack.c.b16 %v1572, %v1553
  %v2922 = vpack.c.b16 %v1573, %v1554
  %v2923 = vpack.c.b16 %v1574, %v1555
  %v2924 = vpack.c.b16 %v1575, %v1556
  %v2925 = vpack.c.b16 %v1576, %v1557
  %v2926 = vpack.c.b16 %v1577, %v1558
  %v2927 = vpack.c.b16 %v1578, %v1559
  %v2928 = vpack.c.b16 %v1579, %v1560
  %v2929 = vpack.c.b16 %v1580, %v1561
  %v2930 = vpack.c.b16 %v1581, %v1562
  %v2931 = vpack.c.b16 %v1582, %v1563
  %v2932 = vpack.c.b16 %v1602, %v1583
  %v2933 = vpack.c.b16 %v1603, %v1584
  %v2934 = vpack.c.b16 %v1604, %v1585
  %v2935 = vpack.c.b16 %v1605, %v1586
  %v2936 = vpack.c.b16 %v1606, %v1587
  %v2937 = vpack.c.b16 %v1607, %v1588
  %v2938 = vpack.c.b16 %v1608, %v1589
  %v2939 = vpack.c.b16 %v1609, %v1590
  %v2940 = vpack.c.b16 %v1610, %v1591
  %v2941 = vpack.c.b16 %v1611, %v1592
  %v2942 = vpack.c.b16 %v1612, %v1593
  %v2943 = vpack.c.b16 %v1613, %v1594
  %v2944 = vpack.c.b16 %v1614, %v1595
  %v2945 = vpack.c.b16 %v1615, %v1596
  %v2946 = vpack.c.b16 %v1616, %v1597
  %v2947 = vpack.c.b16 %v1617, %v1598
  %v2948 = vpack.c.b16 %v1618, %v1599
  %v2949 = vpack.c.b16 %v1619, %v1600
  %v2950 = vpack.c.b16 %v1620, %v1601
  %v2951 = vpack.c.b16 %v1640, %v1621
  %v2952 = vpack.c.b16 %v1641, %v1622
  %v2953 = vpack.c.b16 %v1642, %v1623
  %v2954 = vpack.c.b16 %v1643, %v1624
  %v2955 = vpack.c.b16 %v1644, %v1625
  %v2956 = vpack.c.b16 %v1645, %v1626
  %v2957 = vpack.c.b16 %v1646, %v1627
  %v2958 = vpack.c.b16 %v1647, %v1628
  %v2959 = vpack.c.b16 %v1648, %v1629
  %v2960 = vpack.c.b16 %v1649, %v1630
  %v2961 = vpack.c.b16 %v1650, %v1631
  %v2962 = vpack.c.b16 %v1651, %v1632
  %v2963 = vpack.c.b16 %v1652, %v1633
  %v2964 = vpack.c.b16 %v1653, %v1634
  %v2965 = vpack.c.b16 %v1654, %v1635
  %v2966 = vpack.c.b16 %v1655, %v1636
  %v2967 = vpack.c.b16 %v1656, %v1637
  %v2968 = vpack.c.b16 %v1657, %v1638
  %v2969 = vpack.c.b16 %v1658, %v1639
  %v2970 = vpack.c.b16 %v1678, %v1659
  %v2971 = vpack.c.b16 %v1679, %v1660
  %v2972 = vpack.c.b16 %v1680, %v1661
  %v2973 = vpack.c.b16 %v1681, %v1662
  %v2974 = vpack.c.b16 %v1682, %v1663
  %v2975 = vpack.c.b16 %v1683, %v1664
  %v2976 = vpack.c.b16 %v1684, %v1665
  %v2977 = vpack.c.b16 %v1685, %v1666
  %v2978 = vpack.c.b16 %v1686, %v1667
  %v2979 = vpack.c.b16 %v1687, %v1668
  %v2980 = vpack.c.b16 %v1688, %v1669
  %v2981 = vpack.c.b16 %v1689, %v1670
  %v2982 = vpack.c.b16 %v1690, %v1671
  %v2983 = vpack.c.b16 %v1691, %v1672
  %v2984 = vpack.c.b16 %v1692, %v1673
  %v2985 = vpack.c.b16 %v1693, %v1674
  %v2986 = vpack.c.b16 %v1694, %v1675
  %v2987 = vpack.c.b16 %v1695, %v1676
  %v2988 = vpack.c.b16 %v1696, %v1677
  %v2989 = vpack.c.b16 %v1716, %v1697
  %v2990 = vpack.c.b16 %v1717, %v1698
  %v2991 = vpack.c.b16 %v1718, %v1699
  %v2992 = vpack.c.b16 %v1719, %v1700
  %v2993 = vpack.c.b16 %v1720, %v1701
  %v2994 = vpack.c.b16 %v1721, %v1702
  %v2995 = vpack.c.b16 %v1722, %v1703
  %v2996 = vpack.c.b16 %v1723, %v1704
  %v2997 = vpack.c.b16 %v1724, %v1705
  %v2998 = vpack.c.b16 %v1725, %v1706
  %v2999 = vpack.c.b16 %v1726, %v1707
  %v3000 = vpack.c.b16 %v1727, %v1708
  %v3001 = vpack.c.b16 %v1728, %v1709
  %v3002 = vpack.c.b16 %v1729, %v1710
  %v3003 = vpack.c.b16 %v1730, %v1711
  %v3004 = vpack.c.b16 %v1731, %v1712
  %v3005 = vpack.c.b16 %v1732, %v1713
  %v3006 = vpack.c.b16 %v1733, %v1714
  %v3007 = vpack.c.b16 %v1734, %v1715
  %v3008 = vpack.c.b16 %v1754, %v1735
  %v3009 = vpack.c.b16 %v1755, %v1736
  %v3010 = vpack.c.b16 %v1756, %v1737
  %v3011 = vpack.c.b16 %v1757, %v1738
  %v3012 = vpack.c.b16 %v1758, %v1739
  %v3013 = vpack.c.b16 %v1759, %v1740
  %v3014 = vpack.c.b16 %v1760, %v1741
  %v3015 = vpack.c.b16 %v1761, %v1742
  %v3016 = vpack.c.b16 %v1762, %v1743
  %v3017 = vpack.c.b16 %v1763, %v1744
  %v3018 = vpack.c.b16 %v1764, %v1745
  %v3019 = vpack.c.b16 %v1765, %v1746
  %v3020 = vpack.c.b16 %v1766, %v1747
  %v3021 = vpack.c.b16 %v1767, %v1748
  %v3022 = vpack.c.b16 %v1768, %v1749
  %v3023 = vpack.c.b16 %v1769, %v1750
  %v3024 = vpack.c.b16 %v1770, %v1751
  %v3025 = vpack.c.b16 %v1771, %v1752
  %v3026 = vpack.c.b16 %v1772, %v1753
  %v3027 = vpack.c.b16 %v1792, %v1773
  %v3028 = vpack.c.b16 %v1793, %v1774
  %v3029 = vpack.c.b16 %v1794, %v1775
  %v3030 = vpack.c.b16 %v1795, %v1776
  %v3031 = vpack.c.b16 %v1796, %v1777
  %v3032 = vpack.c.b16 %v1797, %v1778
  %v3033 = vpack.c.b16 %v1798, %v1779
  %v3034 = vpack.c.b16 %v1799, %v1780
  %v3035 = vpack.c.b16 %v1800, %v1781
  %v3036 = vpack.c.b16 %v1801, %v1782
  %v3037 = vpack.c.b16 %v1802, %v1783
  %v3038 = vpack.c.b16 %v1803, %v1784
  %v3039 = vpack.c.b16 %v1804, %v1785
  %v3040 = vpack.c.b16 %v1805, %v1786
  %v3041 = vpack.c.b16 %v1806, %v1787
  %v3042 = vpack.c.b16 %v1807, %v1788
  %v3043 = vpack.c.b16 %v1808, %v1789
  %v3044 = vpack.c.b16 %v1809, %v1790
  %v3045 = vpack.c.b16 %v1810, %v1791
  %v3046 = vpack.c.b16 %v1830, %v1811
  %v3047 = vpack.c.b16 %v1831, %v1812
  %v3048 = vpack.c.b16 %v1832, %v1813
  %v3049 = vpack.c.b16 %v1833, %v1814
  %v3050 = vpack.c.b16 %v1834, %v1815
  %v3051 = vpack.c.b16 %v1835, %v1816
  %v3052 = vpack.c.b16 %v1836, %v1817
  %v3053 = vpack.c.b16 %v1837, %v1818
  %v3054 = vpack.c.b16 %v1838, %v1819
  %v3055 = vpack.c.b16 %v1839, %v1820
  %v3056 = vpack.c.b16 %v1840, %v1821
  %v3057 = vpack.c.b16 %v1841, %v1822
  %v3058 = vpack.c.b16 %v1842, %v1823
  %v3059 = vpack.c.b16 %v1843, %v1824
  %v3060 = vpack.c.b16 %v1844, %v1825
  %v3061 = vpack.c.b16 %v1845, %v1826
  %v3062 = vpack.c.b16 %v1846, %v1827
  %v3063 = vpack.c.b16 %v1847, %v1828
  %v3064 = vpack.c.b16 %v1848, %v1829
  %v3065 = vpack.c.b16 %v1868, %v1849
  %v3066 = vpack.c.b16 %v1869, %v1850
  %v3067 = vpack.c.b16 %v1870, %v1851
  %v3068 = vpack.c.b16 %v1871, %v1852
  %v3069 = vpack.c.b16 %v1872, %v1853
  %v3070 = vpack.c.b16 %v1873, %v1854
  %v3071 = vpack.c.b16 %v1874, %v1855
  %v3072 = vpack.c.b16 %v1875, %v1856
  %v3073 = vpack.c.b16 %v1876, %v1857
  %v3074 = vpack.c.b16 %v1877, %v1858
  %v3075 = vpack.c.b16 %v1878, %v1859
  %v3076 = vpack.c.b16 %v1879, %v1860
  %v3077 = vpack.c.b16 %v1880, %v1861
  %v3078 = vpack.c.b16 %v1881, %v1862
  %v3079 = vpack.c.b16 %v1882, %v1863
  %v3080 = vpack.c.b16 %v1883, %v1864
  %v3081 = vpack.c.b16 %v1884, %v1865
  %v3082 = vpack.c.b16 %v1885, %v1866
  %v3083 = vpack.c.b16 %v1886, %v1867
  %v3084 = vpack.c.b16 %v1906, %v1887
  %v3085 = vpack.c.b16 %v1907, %v1888
  %v3086 = vpack.c.b16 %v1908, %v1889
  %v3087 = vpack.c.b16 %v1909, %v1890
  %v3088 = vpack.c.b16 %v1910, %v1891
  %v3089 = vpack.c.b16 %v1911, %v1892
  %v3090 = vpack.c.b16 %v1912, %v1893
  %v3091 = vpack.c.b16 %v1913, %v1894
  %v3092 = vpack.c.b16 %v1914, %v1895
  %v3093 = vpack.c.b16 %v1915, %v1896
  %v3094 = vpack.c.b16 %v1916, %v1897
  %v3095 = vpack.c.b16 %v1917, %v1898
  %v3096 = vpack.c.b16 %v1918, %v1899
  %v3097 = vpack.c.b16 %v1919, %v1900
  %v3098 = vpack.c.b16 %v1920, %v1901
  %v3099 = vpack.c.b16 %v1921, %v1902
  %v3100 = vpack.c.b16 %v1922, %v1903
  %v3101 = vpack.c.b16 %v1923, %v1904
  %v3102 = vpack.c.b16 %v1924, %v1905
  %v3103 = vpack.c.b16 %v1944, %v1925
  %v3104 = vpack.c.b16 %v1945, %v1926
  %v3105 = vpack.c.b16 %v1946, %v1927
  %v3106 = vpack.c.b16 %v1947, %v1928
  %v3107 = vpack.c.b16 %v1948, %v1929
  %v3108 = vpack.c.b16 %v1949, %v1930
  %v3109 = vpack.c.b16 %v1950, %v1931
  %v3110 = vpack.c.b16 %v1951, %v1932
  %v3111 = vpack.c.b16 %v1952, %v1933
  %v3112 = vpack.c.b16 %v1953, %v1934
  %v3113 = vpack.c.b16 %v1954, %v1935
  %v3114 = vpack.c.b16 %v1955, %v1936
  %v3115 = vpack.c.b16 %v1956, %v1937
  %v3116 = vpack.c.b16 %v1957, %v1938
  %v3117 = vpack.c.b16 %v1958, %v1939
  %v3118 = vpack.c.b16 %v1959, %v1940
  %v3119 = vpack.c.b16 %v1960, %v1941
  %v3120 = vpack.c.b16 %v1961, %v1942
  %v3121 = vpack.c.b16 %v1962, %v1943
  %v3122 = vpack.c.b16 %v1982, %v1963
  %v3123 = vpack.c.b16 %v1983, %v1964
  %v3124 = vpack.c.b16 %v1984, %v1965
  %v3125 = vpack.c.b16 %v1985, %v1966
  %v3126 = vpack.c.b16 %v1986, %v1967
  %v3127 = vpack.c.b16 %v1987, %v1968
  %v3128 = vpack.c.b16 %v1988, %v1969
  %v3129 = vpack.c.b16 %v1989, %v1970
  %v3130 = vpack.c.b16 %v1990, %v1971
  %v3131 = vpack.c.b16 %v1991, %v1972
  %v3132 = vpack.c.b16 %v1992, %v1973
  %v3133 = vpack.c.b16 %v1993, %v1974
  %v3134 = vpack.c.b16 %v1994, %v1975
  %v3135 = vpack.c.b16 %v1995, %v1976
  %v3136 = vpack.c.b16 %v1996, %v1977
  %v3137 = vpack.c.b16 %v1997, %v1978
  %v3138 = vpack.c.b16 %v1998, %v1979
  %v3139 = vpack.c.b16 %v1999, %v1980
  %v3140 = vpack.c.b16 %v2000, %v1981
  %v3141 = vpack.c.b16 %v2020, %v2001
  %v3142 = vpack.c.b16 %v2021, %v2002
  %v3143 = vpack.c.b16 %v2022, %v2003
  %v3144 = vpack.c.b16 %v2023, %v2004
  %v3145 = vpack.c.b16 %v2024, %v2005
  %v3146 = vpack.c.b16 %v2025, %v2006
  %v3147 = vpack.c.b16 %v2026, %v2007
  %v3148 = vpack.c.b16 %v2027, %v2008
  %v3149 = vpack.c.b16 %v2028, %v2009
  %v3150 = vpack.c.b16 %v2029, %v2010
  %v3151 = vpack.c.b16 %v2030, %v2011
  %v3152 = vpack.c.b16 %v2031, %v2012
  %v3153 = vpack.c.b16 %v2032, %v2013
  %v3154 = vpack.c.b16 %v2033, %v2014
  %v3155 = vpack.c.b16 %v2034, %v2015
  %v3156 = vpack.c.b16 %v2035, %v2016
  %v3157 = vpack.c.b16 %v2036, %v2017
  %v3158 = vpack.c.b16 %v2037, %v2018
  %v3159 = vpack.c.b16 %v2038, %v2019
  %v3160 = vpack.c.b16 %v2058, %v2039
  %v3161 = vpack.c.b16 %v2059, %v2040
  %v3162 = vpack.c.b16 %v2060, %v2041
  %v3163 = vpack.c.b16 %v2061, %v2042
  %v3164 = vpack.c.b16 %v2062, %v2043
  %v3165 = vpack.c.b16 %v2063, %v2044
  %v3166 = vpack.c.b16 %v2064, %v2045
  %v3167 = vpack.c.b16 %v2065, %v2046
  %v3168 = vpack.c.b16 %v2066, %v2047
  %v3169 = vpack.c.b16 %v2067, %v2048
  %v3170 = vpack.c.b16 %v2068, %v2049
  %v3171 = vpack.c.b16 %v2069, %v2050
  %v3172 = vpack.c.b16 %v2070, %v2051
  %v3173 = vpack.c.b16 %v2071, %v2052
  %v3174 = vpack.c.b16 %v2072, %v2053
  %v3175 = vpack.c.b16 %v2073, %v2054
  %v3176 = vpack.c.b16 %v2074, %v2055
  %v3177 = vpack.c.b16 %v2075, %v2056
  %v3178 = vpack.c.b16 %v2076, %v2057
  %v3179 = vpack.c.b16 %v2096, %v2077
  %v3180 = vpack.c.b16 %v2097, %v2078
  %v3181 = vpack.c.b16 %v2098, %v2079
  %v3182 = vpack.c.b16 %v2099, %v2080
  %v3183 = vpack.c.b16 %v2100, %v2081
  %v3184 = vpack.c.b16 %v2101, %v2082
  %v3185 = vpack.c.b16 %v2102, %v2083
  %v3186 = vpack.c.b16 %v2103, %v2084
  %v3187 = vpack.c.b16 %v2104, %v2085
  %v3188 = vpack.c.b16 %v2105, %v2086
  %v3189 = vpack.c.b16 %v2106, %v2087
  %v3190 = vpack.c.b16 %v2107, %v2088
  %v3191 = vpack.c.b16 %v2108, %v2089
  %v3192 = vpack.c.b16 %v2109, %v2090
  %v3193 = vpack.c.b16 %v2110, %v2091
  %v3194 = vpack.c.b16 %v2111, %v2092
  %v3195 = vpack.c.b16 %v2112, %v2093
  %v3196 = vpack.c.b16 %v2113, %v2094
  %v3197 = vpack.c.b16 %v2114, %v2095
  %v3198 = vpack.c.b16 %v2134, %v2115
  %v3199 = vpack.c.b16 %v2135, %v2116
  %v3200 = vpack.c.b16 %v2136, %v2117
  %v3201 = vpack.c.b16 %v2137, %v2118
  %v3202 = vpack.c.b16 %v2138, %v2119
  %v3203 = vpack.c.b16 %v2139, %v2120
  %v3204 = vpack.c.b16 %v2140, %v2121
  %v3205 = vpack.c.b16 %v2141, %v2122
  %v3206 = vpack.c.b16 %v2142, %v2123
  %v3207 = vpack.c.b16 %v2143, %v2124
  %v3208 = vpack.c.b16 %v2144, %v2125
  %v3209 = vpack.c.b16 %v2145, %v2126
  %v3210 = vpack.c.b16 %v2146, %v2127
  %v3211 = vpack.c.b16 %v2147, %v2128
  %v3212 = vpack.c.b16 %v2148, %v2129
  %v3213 = vpack.c.b16 %v2149, %v2130
  %v3214 = vpack.c.b16 %v2150, %v2131
  %v3215 = vpack.c.b16 %v2151, %v2132
  %v3216 = vpack.c.b16 %v2152, %v2133
  %v3217 = vpack.c.b16 %v2172, %v2153
  %v3218 = vpack.c.b16 %v2173, %v2154
  %v3219 = vpack.c.b16 %v2174, %v2155
  %v3220 = vpack.c.b16 %v2175, %v2156
  %v3221 = vpack.c.b16 %v2176, %v2157
  %v3222 = vpack.c.b16 %v2177, %v2158
  %v3223 = vpack.c.b16 %v2178, %v2159
  %v3224 = vpack.c.b16 %v2179, %v2160
  %v3225 = vpack.c.b16 %v2180, %v2161
  %v3226 = vpack.c.b16 %v2181, %v2162
  %v3227 = vpack.c.b16 %v2182, %v2163
  %v3228 = vpack.c.b16 %v2183, %v2164
  %v3229 = vpack.c.b16 %v2184, %v2165
  %v3230 = vpack.c.b16 %v2185, %v2166
  %v3231 = vpack.c.b16 %v2186, %v2167
  %v3232 = vpack.c.b16 %v2187, %v2168
  %v3233 = vpack.c.b16 %v2188, %v2169
  %v3234 = vpack.c.b16 %v2189, %v2170
  %v3235 = vpack.c.b16 %v2190, %v2171
  %v3236 = vpack.c.b16 %v2210, %v2191
  %v3237 = vpack.c.b16 %v2211, %v2192
  %v3238 = vpack.c.b16 %v2212, %v2193
  %v3239 = vpack.c.b16 %v2213, %v2194
  %v3240 = vpack.c.b16 %v2214, %v2195
  %v3241 = vpack.c.b16 %v2215, %v2196
  %v3242 = vpack.c.b16 %v2216, %v2197
  %v3243 = vpack.c.b16 %v2217, %v2198
  %v3244 = vpack.c.b16 %v2218, %v2199
  %v3245 = vpack.c.b16 %v2219, %v2200
  %v3246 = vpack.c.b16 %v2220, %v2201
  %v3247 = vpack.c.b16 %v2221, %v2202
  %v3248 = vpack.c.b16 %v2222, %v2203
  %v3249 = vpack.c.b16 %v2223, %v2204
  %v3250 = vpack.c.b16 %v2224, %v2205
  %v3251 = vpack.c.b16 %v2225, %v2206
  %v3252 = vpack.c.b16 %v2226, %v2207
  %v3253 = vpack.c.b16 %v2227, %v2208
  %v3254 = vpack.c.b16 %v2228, %v2209
  %v3255 = vpack.c.b16 %v2248, %v2229
  %v3256 = vpack.c.b16 %v2249, %v2230
  %v3257 = vpack.c.b16 %v2250, %v2231
  %v3258 = vpack.c.b16 %v2251, %v2232
  %v3259 = vpack.c.b16 %v2252, %v2233
  %v3260 = vpack.c.b16 %v2253, %v2234
  %v3261 = vpack.c.b16 %v2254, %v2235
  %v3262 = vpack.c.b16 %v2255, %v2236
  %v3263 = vpack.c.b16 %v2256, %v2237
  %v3264 = vpack.c.b16 %v2257, %v2238
  %v3265 = vpack.c.b16 %v2258, %v2239
  %v3266 = vpack.c.b16 %v2259, %v2240
  %v3267 = vpack.c.b16 %v2260, %v2241
  %v3268 = vpack.c.b16 %v2261, %v2242
  %v3269 = vpack.c.b16 %v2262, %v2243
  %v3270 = vpack.c.b16 %v2263, %v2244
  %v3271 = vpack.c.b16 %v2264, %v2245
  %v3272 = vpack.c.b16 %v2265, %v2246
  %v3273 = vpack.c.b16 %v2266, %v2247
  %v3274 = vpack.c.b16 %v2286, %v2267
  %v3275 = vpack.c.b16 %v2287, %v2268
  %v3276 = vpack.c.b16 %v2288, %v2269
  %v3277 = vpack.c.b16 %v2289, %v2270
  %v3278 = vpack.c.b16 %v2290, %v2271
  %v3279 = vpack.c.b16 %v2291, %v2272
  %v3280 = vpack.c.b16 %v2292, %v2273
  %v3281 = vpack.c.b16 %v2293, %v2274
  %v3282 = vpack.c.b16 %v2294, %v2275
  %v3283 = vpack.c.b16 %v2295, %v2276
  %v3284 = vpack.c.b16 %v2296, %v2277
  %v3285 = vpack.c.b16 %v2297, %v2278
  %v3286 = vpack.c.b16 %v2298, %v2279
  %v3287 = vpack.c.b16 %v2299, %v2280
  %v3288 = vpack.c.b16 %v2300, %v2281
  %v3289 = vpack.c.b16 %v2301, %v2282
  %v3290 = vpack.c.b16 %v2302, %v2283
  %v3291 = vpack.c.b16 %v2303, %v2284
  %v3292 = vpack.c.b16 %v2304, %v2285
  %v3293 = vpack.c.b16 %v2324, %v2305
  %v3294 = vpack.c.b16 %v2325, %v2306
  %v3295 = vpack.c.b16 %v2326, %v2307
  %v3296 = vpack.c.b16 %v2327, %v2308
  %v3297 = vpack.c.b16 %v2328, %v2309
  %v3298 = vpack.c.b16 %v2329, %v2310
  %v3299 = vpack.c.b16 %v2330, %v2311
  %v3300 = vpack.c.b16 %v2331, %v2312
  %v3301 = vpack.c.b16 %v2332, %v2313
  %v3302 = vpack.c.b16 %v2333, %v2314
  %v3303 = vpack.c.b16 %v2334, %v2315
  %v3304 = vpack.c.b16 %v2335, %v2316
  %v3305 = vpack.c.b16 %v2336, %v2317
  %v3306 = vpack.c.b16 %v2337, %v2318
  %v3307 = vpack.c.b16 %v2338, %v2319
  %v3308 = vpack.c.b16 %v2339, %v2320
  %v3309 = vpack.c.b16 %v2340, %v2321
  %v3310 = vpack.c.b16 %v2341, %v2322
  %v3311 = vpack.c.b16 %v2342, %v2323
  %v3312 = vpack.c.b16 %v2362, %v2343
  %v3313 = vpack.c.b16 %v2363, %v2344
  %v3314 = vpack.c.b16 %v2364, %v2345
  %v3315 = vpack.c.b16 %v2365, %v2346
  %v3316 = vpack.c.b16 %v2366, %v2347
  %v3317 = vpack.c.b16 %v2367, %v2348
  %v3318 = vpack.c.b16 %v2368, %v2349
  %v3319 = vpack.c.b16 %v2369, %v2350
  %v3320 = vpack.c.b16 %v2370, %v2351
  %v3321 = vpack.c.b16 %v2371, %v2352
  %v3322 = vpack.c.b16 %v2372, %v2353
  %v3323 = vpack.c.b16 %v2373, %v2354
  %v3324 = vpack.c.b16 %v2374, %v2355
  %v3325 = vpack.c.b16 %v2375, %v2356
  %v3326 = vpack.c.b16 %v2376, %v2357
  %v3327 = vpack.c.b16 %v2377, %v2358
  %v3328 = vpack.c.b16 %v2378, %v2359
  %v3329 = vpack.c.b16 %v2379, %v2360
  %v3330 = vpack.c.b16 %v2380, %v2361
  %v3331 = vpack.c.b16 %v2400, %v2381
  %v3332 = vpack.c.b16 %v2401, %v2382
  %v3333 = vpack.c.b16 %v2402, %v2383
  %v3334 = vpack.c.b16 %v2403, %v2384
  %v3335 = vpack.c.b16 %v2404, %v2385
  %v3336 = vpack.c.b16 %v2405, %v2386
  %v3337 = vpack.c.b16 %v2406, %v2387
  %v3338 = vpack.c.b16 %v2407, %v2388
  %v3339 = vpack.c.b16 %v2408, %v2389
  %v3340 = vpack.c.b16 %v2409, %v2390
  %v3341 = vpack.c.b16 %v2410, %v2391
  %v3342 = vpack.c.b16 %v2411, %v2392
  %v3343 = vpack.c.b16 %v2412, %v2393
  %v3344 = vpack.c.b16 %v2413, %v2394
  %v3345 = vpack.c.b16 %v2414, %v2395
  %v3346 = vpack.c.b16 %v2415, %v2396
  %v3347 = vpack.c.b16 %v2416, %v2397
  %v3348 = vpack.c.b16 %v2417, %v2398
  %v3349 = vpack.c.b16 %v2418, %v2399
  %v3350 = vpack.c.b16 %v2438, %v2419
  %v3351 = vpack.c.b16 %v2439, %v2420
  %v3352 = vpack.c.b16 %v2440, %v2421
  %v3353 = vpack.c.b16 %v2441, %v2422
  %v3354 = vpack.c.b16 %v2442, %v2423
  %v3355 = vpack.c.b16 %v2443, %v2424
  %v3356 = vpack.c.b16 %v2444, %v2425
  %v3357 = vpack.c.b16 %v2445, %v2426
  %v3358 = vpack.c.b16 %v2446, %v2427
  %v3359 = vpack.c.b16 %v2447, %v2428
  %v3360 = vpack.c.b16 %v2448, %v2429
  %v3361 = vpack.c.b16 %v2449, %v2430
  %v3362 = vpack.c.b16 %v2450, %v2431
  %v3363 = vpack.c.b16 %v2451, %v2432
  %v3364 = vpack.c.b16 %v2452, %v2433
  %v3365 = vpack.c.b16 %v2453, %v2434
  %v3366 = vpack.c.b16 %v2454, %v2435
  %v3367 = vpack.c.b16 %v2455, %v2436
  %v3368 = vpack.c.b16 %v2456, %v2437
  %v3369 = vpack.c.b16 %v2476, %v2457
  %v3370 = vpack.c.b16 %v2477, %v2458
  %v3371 = vpack.c.b16 %v2478, %v2459
  %v3372 = vpack.c.b16 %v2479, %v2460
  %v3373 = vpack.c.b16 %v2480, %v2461
  %v3374 = vpack.c.b16 %v2481, %v2462
  %v3375 = vpack.c.b16 %v2482, %v2463
  %v3376 = vpack.c.b16 %v2483, %v2464
  %v3377 = vpack.c.b16 %v2484, %v2465
  %v3378 = vpack.c.b16 %v2485, %v2466
  %v3379 = vpack.c.b16 %v2486, %v2467
  %v3380 = vpack.c.b16 %v2487, %v2468
  %v3381 = vpack.c.b16 %v2488, %v2469
  %v3382 = vpack.c.b16 %v2489, %v2470
  %v3383 = vpack.c.b16 %v2490, %v2471
  %v3384 = vpack.c.b16 %v2491, %v2472
  %v3385 = vpack.c.b16 %v2492, %v2473
  %v3386 = vpack.c.b16 %v2493, %v2474
  %v3387 = vpack.c.b16 %v2494, %v2475
  %v3388 = vpack.c.b16 %v2514, %v2495
  %v3389 = vpack.c.b16 %v2515, %v2496
  %v3390 = vpack.c.b16 %v2516, %v2497
  %v3391 = vpack.c.b16 %v2517, %v2498
  %v3392 = vpack.c.b16 %v2518, %v2499
  %v3393 = vpack.c.b16 %v2519, %v2500
  %v3394 = vpack.c.b16 %v2520, %v2501
  %v3395 = vpack.c.b16 %v2521, %v2502
  %v3396 = vpack.c.b16 %v2522, %v2503
  %v3397 = vpack.c.b16 %v2523, %v2504
  %v3398 = vpack.c.b16 %v2524, %v2505
  %v3399 = vpack.c.b16 %v2525, %v2506
  %v3400 = vpack.c.b16 %v2526, %v2507
  %v3401 = vpack.c.b16 %v2527, %v2508
  %v3402 = vpack.c.b16 %v2528, %v2509
  %v3403 = vpack.c.b16 %v2529, %v2510
  %v3404 = vpack.c.b16 %v2530, %v2511
  %v3405 = vpack.c.b16 %v2531, %v2512
  %v3406 = vpack.c.b16 %v2532, %v2513
  %v3407 = vpack.c.b16 %v2552, %v2533
  %v3408 = vpack.c.b16 %v2553, %v2534
  %v3409 = vpack.c.b16 %v2554, %v2535
  %v3410 = vpack.c.b16 %v2555, %v2536
  %v3411 = vpack.c.b16 %v2556, %v2537
  %v3412 = vpack.c.b16 %v2557, %v2538
  %v3413 = vpack.c.b16 %v2558, %v2539
  %v3414 = vpack.c.b16 %v2559, %v2540
  %v3415 = vpack.c.b16 %v2560, %v2541
  %v3416 = vpack.c.b16 %v2561, %v2542
  %v3417 = vpack.c.b16 %v2562, %v2543
  %v3418 = vpack.c.b16 %v2563, %v2544
  %v3419 = vpack.c.b16 %v2564, %v2545
  %v3420 = vpack.c.b16 %v2565, %v2546
  %v3421 = vpack.c.b16 %v2566, %v2547
  %v3422 = vpack.c.b16 %v2567, %v2548
  %v3423 = vpack.c.b16 %v2568, %v2549
  %v3424 = vpack.c.b16 %v2569, %v2550
  %v3425 = vpack.c.b16 %v2570, %v2551
  %v3426 = vpack.c.b16 %v2590, %v2571
  %v3427 = vpack.c.b16 %v2591, %v2572
  %v3428 = vpack.c.b16 %v2592, %v2573
  %v3429 = vpack.c.b16 %v2593, %v2574
  %v3430 = vpack.c.b16 %v2594, %v2575
  %v3431 = vpack.c.b16 %v2595, %v2576
  %v3432 = vpack.c.b16 %v2596, %v2577
  %v3433 = vpack.c.b16 %v2597, %v2578
  %v3434 = vpack.c.b16 %v2598, %v2579
  %v3435 = vpack.c.b16 %v2599, %v2580
  %v3436 = vpack.c.b16 %v2600, %v2581
  %v3437 = vpack.c.b16 %v2601, %v2582
  %v3438 = vpack.c.b16 %v2602, %v2583
  %v3439 = vpack.c.b16 %v2603, %v2584
  %v3440 = vpack.c.b16 %v2604, %v2585
  %v3441 = vpack.c.b16 %v2605, %v2586
  %v3442 = vpack.c.b16 %v2606, %v2587
  %v3443 = vpack.c.b16 %v2607, %v2588
  %v3444 = vpack.c.b16 %v2608, %v2589
  %v3445 = vpack.c.b16 %v2628, %v2609
  %v3446 = vpack.c.b16 %v2629, %v2610
  %v3447 = vpack.c.b16 %v2630, %v2611
  %v3448 = vpack.c.b16 %v2631, %v2612
  %v3449 = vpack.c.b16 %v2632, %v2613
  %v3450 = vpack.c.b16 %v2633, %v2614
  %v3451 = vpack.c.b16 %v2634, %v2615
  %v3452 = vpack.c.b16 %v2635, %v2616
  %v3453 = vpack.c.b16 %v2636, %v2617
  %v3454 = vpack.c.b16 %v2637, %v2618
  %v3455 = vpack.c.b16 %v2638, %v2619
  %v3456 = vpack.c.b16 %v2639, %v2620
  %v3457 = vpack.c.b16 %v2640, %v2621
  %v3458 = vpack.c.b16 %v2641, %v2622
  %v3459 = vpack.c.b16 %v2642, %v2623
  %v3460 = vpack.c.b16 %v2643, %v2624
  %v3461 = vpack.c.b16 %v2644, %v2625
  %v3462 = vpack.c.b16 %v2645, %v2626
  %v3463 = vpack.c.b16 %v2646, %v2627
  %v3464 = vpack.c.b16 %v2666, %v2647
  %v3465 = vpack.c.b16 %v2667, %v2648
  %v3466 = vpack.c.b16 %v2668, %v2649
  %v3467 = vpack.c.b16 %v2669, %v2650
  %v3468 = vpack.c.b16 %v2670, %v2651
  %v3469 = vpack.c.b16 %v2671, %v2652
  %v3470 = vpack.c.b16 %v2672, %v2653
  %v3471 = vpack.c.b16 %v2673, %v2654
  %v3472 = vpack.c.b16 %v2674, %v2655
  %v3473 = vpack.c.b16 %v2675, %v2656
  %v3474 = vpack.c.b16 %v2676, %v2657
  %v3475 = vpack.c.b16 %v2677, %v2658
  %v3476 = vpack.c.b16 %v2678, %v2659
  %v3477 = vpack.c.b16 %v2679, %v2660
  %v3478 = vpack.c.b16 %v2680, %v2661
  %v3479 = vpack.c.b16 %v2681, %v2662
  %v3480 = vpack.c.b16 %v2682, %v2663
  %v3481 = vpack.c.b16 %v2683, %v2664
  %v3482 = vpack.c.b16 %v2684, %v2665
  %v3483 = vpack.c.b16 %v2704, %v2685
  %v3484 = vpack.c.b16 %v2705, %v2686
  %v3485 = vpack.c.b16 %v2706, %v2687
  %v3486 = vpack.c.b16 %v2707, %v2688
  %v3487 = vpack.c.b16 %v2708, %v2689
  %v3488 = vpack.c.b16 %v2709, %v2690
  %v3489 = vpack.c.b16 %v2710, %v2691
  %v3490 = vpack.c.b16 %v2711, %v2692
  %v3491 = vpack.c.b16 %v2712, %v2693
  %v3492 = vpack.c.b16 %v2713, %v2694
  %v3493 = vpack.c.b16 %v2714, %v2695
  %v3494 = vpack.c.b16 %v2715, %v2696
  %v3495 = vpack.c.b16 %v2716, %v2697
  %v3496 = vpack.c.b16 %v2717, %v2698
  %v3497 = vpack.c.b16 %v2718, %v2699
  %v3498 = vpack.c.b16 %v2719, %v2700
  %v3499 = vpack.c.b16 %v2720, %v2701
  %v3500 = vpack.c.b16 %v2721, %v2702
  %v3501 = vpack.c.b16 %v2722, %v2703
  %v3502 = vpack.c.b16 %v2742, %v2723
  %v3503 = vpack.c.b16 %v2743, %v2724
  %v3504 = vpack.c.b16 %v2744, %v2725
  %v3505 = vpack.c.b16 %v2745, %v2726
  %v3506 = vpack.c.b16 %v2746, %v2727
  %v3507 = vpack.c.b16 %v2747, %v2728
  %v3508 = vpack.c.b16 %v2748, %v2729
  %v3509 = vpack.c.b16 %v2749, %v2730
  %v3510 = vpack.c.b16 %v2750, %v2731
  %v3511 = vpack.c.b16 %v2751, %v2732
  %v3512 = vpack.c.b16 %v2752, %v2733
  %v3513 = vpack.c.b16 %v2753, %v2734
  %v3514 = vpack.c.b16 %v2754, %v2735
  %v3515 = vpack.c.b16 %v2755, %v2736
  %v3516 = vpack.c.b16 %v2756, %v2737
  %v3517 = vpack.c.b16 %v2757, %v2738
  %v3518 = vpack.c.b16 %v2758, %v2739
  %v3519 = vpack.c.b16 %v2759, %v2740
  %v3520 = vpack.c.b16 %v2760, %v2741
  %v3521 = vpack.c.b16 %v2780, %v2761
  %v3522 = vpack.c.b16 %v2781, %v2762
  %v3523 = vpack.c.b16 %v2782, %v2763
  %v3524 = vpack.c.b16 %v2783, %v2764
  %v3525 = vpack.c.b16 %v2784, %v2765
  %v3526 = vpack.c.b16 %v2785, %v2766
  %v3527 = vpack.c.b16 %v2786, %v2767
  %v3528 = vpack.c.b16 %v2787, %v2768
  %v3529 = vpack.c.b16 %v2788, %v2769
  %v3530 = vpack.c.b16 %v2789, %v2770
  %v3531 = vpack.c.b16 %v2790, %v2771
  %v3532 = vpack.c.b16 %v2791, %v2772
  %v3533 = vpack.c.b16 %v2792, %v2773
  %v3534 = vpack.c.b16 %v2793, %v2774
  %v3535 = vpack.c.b16 %v2794, %v2775
  %v3536 = vpack.c.b16 %v2795, %v2776
  %v3537 = vpack.c.b16 %v2796, %v2777
  %v3538 = vpack.c.b16 %v2797, %v2778
  %v3539 = vpack.c.b16 %v2798, %v2779
  %v3540 = vpack.c.b16 %v2818, %v2799
  %v3541 = vpack.c.b16 %v2819, %v2800
  %v3542 = vpack.c.b16 %v2820, %v2801
  %v3543 = vpack.c.b16 %v2821, %v2802
  %v3544 = vpack.c.b16 %v2822, %v2803
  %v3545 = vpack.c.b16 %v2823, %v2804
  %v3546 = vpack.c.b16 %v2824, %v2805
  %v3547 = vpack.c.b16 %v2825, %v2806
  %v3548 = vpack.c.b16 %v2826, %v2807
  %v3549 = vpack.c.b16 %v2827, %v2808
  %v3550 = vpack.c.b16 %v2828, %v2809
  %v3551 = vpack.c.b16 %v2829, %v2810
  %v3552 = vpack.c.b16 %v2830, %v2811
  %v3553 = vpack.c.b16 %v2831, %v2812
  %v3554 = vpack.c.b16 %v2832, %v2813
  %v3555 = vpack.c.b16 %v2833, %v2814
  %v3556 = vpack.c.b16 %v2834, %v2815
  %v3557 = vpack.c.b16 %v2835, %v2816
  %v3558 = vpack.c.b16 %v2836, %v2817
  %v3559 = vpack.c.b16 %v2856, %v2837
  %v3560 = vpack.c.b16 %v2857, %v2838
  %v3561 = vpack.c.b16 %v2858, %v2839
  %v3562 = vpack.c.b16 %v2859, %v2840
  %v3563 = vpack.c.b16 %v2860, %v2841
  %v3564 = vpack.c.b16 %v2861, %v2842
  %v3565 = vpack.c.b16 %v2862, %v2843
  %v3566 = vpack.c.b16 %v2863, %v2844
  %v3567 = vpack.c.b16 %v2864, %v2845
  %v3568 = vpack.c.b16 %v2865, %v2846
  %v3569 = vpack.c.b16 %v2866, %v2847
  %v3570 = vpack.c.b16 %v2867, %v2848
  %v3571 = vpack.c.b16 %v2868, %v2849
  %v3572 = vpack.c.b16 %v2869, %v2850
  %v3573 = vpack.c.b16 %v2870, %v2851
  %v3574 = vpack.c.b16 %v2871, %v2852
  %v3575 = vpack.c.b16 %v2872, %v2853
  %v3576 = vpack.c.b16 %v2873, %v2854
  %v3577 = vpack.c.b16 %v2874, %v2855
  %v3578 = vpack.c.b16 %v2894, %v2875
  %v3579 = vpack.c.b16 %v2895, %v2876
  %v3580 = vpack.c.b16 %v2896, %v2877
  %v3581 = vpack.c.b16 %v2897, %v2878
  %v3582 = vpack.c.b16 %v2898, %v2879
  %v3583 = vpack.c.b16 %v2899, %v2880
  %v3584 = vpack.c.b16 %v2900, %v2881
  %v3585 = vpack.c.b16 %v2901, %v2882
  %v3586 = vpack.c.b16 %v2902, %v2883
  %v3587 = vpack.c.b16 %v2903, %v2884
  %v3588 = vpack.c.b16 %v2904, %v2885
  %v3589 = vpack.c.b16 %v2905, %v2886
  %v3590 = vpack.c.b16 %v2906, %v2887
  %v3591 = vpack.c.b16 %v2907, %v2888
  %v3592 = vpack.c.b16 %v2908, %v2889
  %v3593 = vpack.c.b16 %v2909, %v2890
  %v3594 = vpack.c.b16 %v2910, %v2891
  %v3595 = vpack.c.b16 %v2911, %v2892
  %v3596 = vpack.c.b16 %v2912, %v2893
  %vm4281 = vcmask 523264
  %v4283 = vsel %vm4281, %v820, 0
  %4285 = vmatpush.bf16.msra.mxu0 %v3046
  %4286 = vmatpush.bf16.msra.mxu0 %v3027
  %4287 = vmatpush.bf16.msra.mxu0 %v3008
  %4288 = vmatpush.bf16.msra.mxu0 %v2989
  %4289 = vmatpush.bf16.msra.mxu0 %v2970
  %4290 = vmatpush.bf16.msra.mxu0 %v2951
  %4291 = vmatpush.bf16.msra.mxu0 %v2932
  %4292 = vmatpush.bf16.msra.mxu0 %v2913
  %4293 = vmatmul.bf16.gmra.mxu0 %v816
  %v4294 = vpop.f32.mrf.mxu0
  %v4295 = vadd.f32 %v770, %v4294
  %v4296 = vpop.f32.mrf.mxu0
  %4297 = vdwg.mxu0
  %4298 = vmatpush.bf16.msra.mxu0 %v3198
  %4299 = vmatpush.bf16.msra.mxu0 %v3179
  %4300 = vmatpush.bf16.msra.mxu0 %v3160
  %4301 = vmatpush.bf16.msra.mxu0 %v3141
  %4302 = vmatpush.bf16.msra.mxu0 %v3122
  %4303 = vmatpush.bf16.msra.mxu0 %v3103
  %4304 = vmatpush.bf16.msra.mxu0 %v3084
  %4305 = vmatpush.bf16.msra.mxu0 %v3065
  %4306 = vmatmul.bf16.gmra.mxu0 %v817
  %v4307 = vpop.f32.mrf.mxu0
  %v4308 = vadd.f32 %v4295, %v4307
  %v4309 = vpop.f32.mrf.mxu0
  %4310 = vdwg.mxu0
  %4311 = vmatpush.bf16.msra.mxu0 %v3350
  %4312 = vmatpush.bf16.msra.mxu0 %v3331
  %4313 = vmatpush.bf16.msra.mxu0 %v3312
  %4314 = vmatpush.bf16.msra.mxu0 %v3293
  %4315 = vmatpush.bf16.msra.mxu0 %v3274
  %4316 = vmatpush.bf16.msra.mxu0 %v3255
  %4317 = vmatpush.bf16.msra.mxu0 %v3236
  %4318 = vmatpush.bf16.msra.mxu0 %v3217
  %4319 = vmatmul.bf16.gmra.mxu0 %v818
  %v4320 = vpop.f32.mrf.mxu0
  %v4321 = vadd.f32 %v4308, %v4320
  %v4322 = vpop.f32.mrf.mxu0
  %4323 = vdwg.mxu0
  %4324 = vmatpush.bf16.msra.mxu0 %v3502
  %4325 = vmatpush.bf16.msra.mxu0 %v3483
  %4326 = vmatpush.bf16.msra.mxu0 %v3464
  %4327 = vmatpush.bf16.msra.mxu0 %v3445
  %4328 = vmatpush.bf16.msra.mxu0 %v3426
  %4329 = vmatpush.bf16.msra.mxu0 %v3407
  %4330 = vmatpush.bf16.msra.mxu0 %v3388
  %4331 = vmatpush.bf16.msra.mxu0 %v3369
  %4332 = vmatmul.bf16.gmra.mxu0 %v819
  %v4333 = vpop.f32.mrf.mxu0
  %v4334 = vadd.f32 %v4321, %v4333
  %v4335 = vpop.f32.mrf.mxu0
  %4336 = vdwg.mxu0
  %4337 = vmatpush.bf16.msra.mxu0 0
  %4338 = vmatpush.bf16.msra.mxu0 0
  %4339 = vmatpush.bf16.msra.mxu0 0
  %4340 = vmatpush.bf16.msra.mxu0 0
  %4341 = vmatpush.bf16.msra.mxu0 %v3578
  %4342 = vmatpush.bf16.msra.mxu0 %v3559
  %4343 = vmatpush.bf16.msra.mxu0 %v3540
  %4344 = vmatpush.bf16.msra.mxu0 %v3521
  %4345 = vmatmul.bf16.gmra.mxu0 %v4283
  %v4346 = vpop.f32.mrf.mxu0
  %v4347 = vadd.f32 %v4334, %v4346
  %v4348 = vpop.f32.mrf.mxu0
  %4349 = vdwg.mxu0
  %4350 = vmatpush.bf16.msra.mxu0 %v3047
  %4351 = vmatpush.bf16.msra.mxu0 %v3028
  %4352 = vmatpush.bf16.msra.mxu0 %v3009
  %4353 = vmatpush.bf16.msra.mxu0 %v2990
  %4354 = vmatpush.bf16.msra.mxu0 %v2971
  %4355 = vmatpush.bf16.msra.mxu0 %v2952
  %4356 = vmatpush.bf16.msra.mxu0 %v2933
  %4357 = vmatpush.bf16.msra.mxu0 %v2914
  %4358 = vmatmul.bf16.gmra.mxu0 %v816
  %v4359 = vpop.f32.mrf.mxu0
  %v4360 = vadd.f32 %v771, %v4359
  %v4361 = vpop.f32.mrf.mxu0
  %4362 = vdwg.mxu0
  %4363 = vmatpush.bf16.msra.mxu0 %v3199
  %4364 = vmatpush.bf16.msra.mxu0 %v3180
  %4365 = vmatpush.bf16.msra.mxu0 %v3161
  %4366 = vmatpush.bf16.msra.mxu0 %v3142
  %4367 = vmatpush.bf16.msra.mxu0 %v3123
  %4368 = vmatpush.bf16.msra.mxu0 %v3104
  %4369 = vmatpush.bf16.msra.mxu0 %v3085
  %4370 = vmatpush.bf16.msra.mxu0 %v3066
  %4371 = vmatmul.bf16.gmra.mxu0 %v817
  %v4372 = vpop.f32.mrf.mxu0
  %v4373 = vadd.f32 %v4360, %v4372
  %v4374 = vpop.f32.mrf.mxu0
  %4375 = vdwg.mxu0
  %4376 = vmatpush.bf16.msra.mxu0 %v3351
  %4377 = vmatpush.bf16.msra.mxu0 %v3332
  %4378 = vmatpush.bf16.msra.mxu0 %v3313
  %4379 = vmatpush.bf16.msra.mxu0 %v3294
  %4380 = vmatpush.bf16.msra.mxu0 %v3275
  %4381 = vmatpush.bf16.msra.mxu0 %v3256
  %4382 = vmatpush.bf16.msra.mxu0 %v3237
  %4383 = vmatpush.bf16.msra.mxu0 %v3218
  %4384 = vmatmul.bf16.gmra.mxu0 %v818
  %v4385 = vpop.f32.mrf.mxu0
  %v4386 = vadd.f32 %v4373, %v4385
  %v4387 = vpop.f32.mrf.mxu0
  %4388 = vdwg.mxu0
  %4389 = vmatpush.bf16.msra.mxu0 %v3503
  %4390 = vmatpush.bf16.msra.mxu0 %v3484
  %4391 = vmatpush.bf16.msra.mxu0 %v3465
  %4392 = vmatpush.bf16.msra.mxu0 %v3446
  %4393 = vmatpush.bf16.msra.mxu0 %v3427
  %4394 = vmatpush.bf16.msra.mxu0 %v3408
  %4395 = vmatpush.bf16.msra.mxu0 %v3389
  %4396 = vmatpush.bf16.msra.mxu0 %v3370
  %4397 = vmatmul.bf16.gmra.mxu0 %v819
  %v4398 = vpop.f32.mrf.mxu0
  %v4399 = vadd.f32 %v4386, %v4398
  %v4400 = vpop.f32.mrf.mxu0
  %4401 = vdwg.mxu0
  %4402 = vmatpush.bf16.msra.mxu0 0
  %4403 = vmatpush.bf16.msra.mxu0 0
  %4404 = vmatpush.bf16.msra.mxu0 0
  %4405 = vmatpush.bf16.msra.mxu0 0
  %4406 = vmatpush.bf16.msra.mxu0 %v3579
  %4407 = vmatpush.bf16.msra.mxu0 %v3560
  %4408 = vmatpush.bf16.msra.mxu0 %v3541
  %4409 = vmatpush.bf16.msra.mxu0 %v3522
  %4410 = vmatmul.bf16.gmra.mxu0 %v4283
  %v4411 = vpop.f32.mrf.mxu0
  %v4412 = vadd.f32 %v4399, %v4411
  %v4413 = vpop.f32.mrf.mxu0
  %4414 = vdwg.mxu0
  %4415 = vmatpush.bf16.msra.mxu0 %v3048
  %4416 = vmatpush.bf16.msra.mxu0 %v3029
  %4417 = vmatpush.bf16.msra.mxu0 %v3010
  %4418 = vmatpush.bf16.msra.mxu0 %v2991
  %4419 = vmatpush.bf16.msra.mxu0 %v2972
  %4420 = vmatpush.bf16.msra.mxu0 %v2953
  %4421 = vmatpush.bf16.msra.mxu0 %v2934
  %4422 = vmatpush.bf16.msra.mxu0 %v2915
  %4423 = vmatmul.bf16.gmra.mxu0 %v816
  %v4424 = vpop.f32.mrf.mxu0
  %v4425 = vadd.f32 %v772, %v4424
  %v4426 = vpop.f32.mrf.mxu0
  %4427 = vdwg.mxu0
  %4428 = vmatpush.bf16.msra.mxu0 %v3200
  %4429 = vmatpush.bf16.msra.mxu0 %v3181
  %4430 = vmatpush.bf16.msra.mxu0 %v3162
  %4431 = vmatpush.bf16.msra.mxu0 %v3143
  %4432 = vmatpush.bf16.msra.mxu0 %v3124
  %4433 = vmatpush.bf16.msra.mxu0 %v3105
  %4434 = vmatpush.bf16.msra.mxu0 %v3086
  %4435 = vmatpush.bf16.msra.mxu0 %v3067
  %4436 = vmatmul.bf16.gmra.mxu0 %v817
  %v4437 = vpop.f32.mrf.mxu0
  %v4438 = vadd.f32 %v4425, %v4437
  %v4439 = vpop.f32.mrf.mxu0
  %4440 = vdwg.mxu0
  %4441 = vmatpush.bf16.msra.mxu0 %v3352
  %4442 = vmatpush.bf16.msra.mxu0 %v3333
  %4443 = vmatpush.bf16.msra.mxu0 %v3314
  %4444 = vmatpush.bf16.msra.mxu0 %v3295
  %4445 = vmatpush.bf16.msra.mxu0 %v3276
  %4446 = vmatpush.bf16.msra.mxu0 %v3257
  %4447 = vmatpush.bf16.msra.mxu0 %v3238
  %4448 = vmatpush.bf16.msra.mxu0 %v3219
  %4449 = vmatmul.bf16.gmra.mxu0 %v818
  %v4450 = vpop.f32.mrf.mxu0
  %v4451 = vadd.f32 %v4438, %v4450
  %v4452 = vpop.f32.mrf.mxu0
  %4453 = vdwg.mxu0
  %4454 = vmatpush.bf16.msra.mxu0 %v3504
  %4455 = vmatpush.bf16.msra.mxu0 %v3485
  %4456 = vmatpush.bf16.msra.mxu0 %v3466
  %4457 = vmatpush.bf16.msra.mxu0 %v3447
  %4458 = vmatpush.bf16.msra.mxu0 %v3428
  %4459 = vmatpush.bf16.msra.mxu0 %v3409
  %4460 = vmatpush.bf16.msra.mxu0 %v3390
  %4461 = vmatpush.bf16.msra.mxu0 %v3371
  %4462 = vmatmul.bf16.gmra.mxu0 %v819
  %v4463 = vpop.f32.mrf.mxu0
  %v4464 = vadd.f32 %v4451, %v4463
  %v4465 = vpop.f32.mrf.mxu0
  %4466 = vdwg.mxu0
  %4467 = vmatpush.bf16.msra.mxu0 0
  %4468 = vmatpush.bf16.msra.mxu0 0
  %4469 = vmatpush.bf16.msra.mxu0 0
  %4470 = vmatpush.bf16.msra.mxu0 0
  %4471 = vmatpush.bf16.msra.mxu0 %v3580
  %4472 = vmatpush.bf16.msra.mxu0 %v3561
  %4473 = vmatpush.bf16.msra.mxu0 %v3542
  %4474 = vmatpush.bf16.msra.mxu0 %v3523
  %4475 = vmatmul.bf16.gmra.mxu0 %v4283
  %v4476 = vpop.f32.mrf.mxu0
  %v4477 = vadd.f32 %v4464, %v4476
  %v4478 = vpop.f32.mrf.mxu0
  %4479 = vdwg.mxu0
  %4480 = vmatpush.bf16.msra.mxu0 %v3049
  %4481 = vmatpush.bf16.msra.mxu0 %v3030
  %4482 = vmatpush.bf16.msra.mxu0 %v3011
  %4483 = vmatpush.bf16.msra.mxu0 %v2992
  %4484 = vmatpush.bf16.msra.mxu0 %v2973
  %4485 = vmatpush.bf16.msra.mxu0 %v2954
  %4486 = vmatpush.bf16.msra.mxu0 %v2935
  %4487 = vmatpush.bf16.msra.mxu0 %v2916
  %4488 = vmatmul.bf16.gmra.mxu0 %v816
  %v4489 = vpop.f32.mrf.mxu0
  %v4490 = vadd.f32 %v773, %v4489
  %v4491 = vpop.f32.mrf.mxu0
  %4492 = vdwg.mxu0
  %4493 = vmatpush.bf16.msra.mxu0 %v3201
  %4494 = vmatpush.bf16.msra.mxu0 %v3182
  %4495 = vmatpush.bf16.msra.mxu0 %v3163
  %4496 = vmatpush.bf16.msra.mxu0 %v3144
  %4497 = vmatpush.bf16.msra.mxu0 %v3125
  %4498 = vmatpush.bf16.msra.mxu0 %v3106
  %4499 = vmatpush.bf16.msra.mxu0 %v3087
  %4500 = vmatpush.bf16.msra.mxu0 %v3068
  %4501 = vmatmul.bf16.gmra.mxu0 %v817
  %v4502 = vpop.f32.mrf.mxu0
  %v4503 = vadd.f32 %v4490, %v4502
  %v4504 = vpop.f32.mrf.mxu0
  %4505 = vdwg.mxu0
  %4506 = vmatpush.bf16.msra.mxu0 %v3353
  %4507 = vmatpush.bf16.msra.mxu0 %v3334
  %4508 = vmatpush.bf16.msra.mxu0 %v3315
  %4509 = vmatpush.bf16.msra.mxu0 %v3296
  %4510 = vmatpush.bf16.msra.mxu0 %v3277
  %4511 = vmatpush.bf16.msra.mxu0 %v3258
  %4512 = vmatpush.bf16.msra.mxu0 %v3239
  %4513 = vmatpush.bf16.msra.mxu0 %v3220
  %4514 = vmatmul.bf16.gmra.mxu0 %v818
  %v4515 = vpop.f32.mrf.mxu0
  %v4516 = vadd.f32 %v4503, %v4515
  %v4517 = vpop.f32.mrf.mxu0
  %4518 = vdwg.mxu0
  %4519 = vmatpush.bf16.msra.mxu0 %v3505
  %4520 = vmatpush.bf16.msra.mxu0 %v3486
  %4521 = vmatpush.bf16.msra.mxu0 %v3467
  %4522 = vmatpush.bf16.msra.mxu0 %v3448
  %4523 = vmatpush.bf16.msra.mxu0 %v3429
  %4524 = vmatpush.bf16.msra.mxu0 %v3410
  %4525 = vmatpush.bf16.msra.mxu0 %v3391
  %4526 = vmatpush.bf16.msra.mxu0 %v3372
  %4527 = vmatmul.bf16.gmra.mxu0 %v819
  %v4528 = vpop.f32.mrf.mxu0
  %v4529 = vadd.f32 %v4516, %v4528
  %v4530 = vpop.f32.mrf.mxu0
  %4531 = vdwg.mxu0
  %4532 = vmatpush.bf16.msra.mxu0 0
  %4533 = vmatpush.bf16.msra.mxu0 0
  %4534 = vmatpush.bf16.msra.mxu0 0
  %4535 = vmatpush.bf16.msra.mxu0 0
  %4536 = vmatpush.bf16.msra.mxu0 %v3581
  %4537 = vmatpush.bf16.msra.mxu0 %v3562
  %4538 = vmatpush.bf16.msra.mxu0 %v3543
  %4539 = vmatpush.bf16.msra.mxu0 %v3524
  %4540 = vmatmul.bf16.gmra.mxu0 %v4283
  %v4541 = vpop.f32.mrf.mxu0
  %v4542 = vadd.f32 %v4529, %v4541
  %v4543 = vpop.f32.mrf.mxu0
  %4544 = vdwg.mxu0
  %4545 = vmatpush.bf16.msra.mxu0 %v3050
  %4546 = vmatpush.bf16.msra.mxu0 %v3031
  %4547 = vmatpush.bf16.msra.mxu0 %v3012
  %4548 = vmatpush.bf16.msra.mxu0 %v2993
  %4549 = vmatpush.bf16.msra.mxu0 %v2974
  %4550 = vmatpush.bf16.msra.mxu0 %v2955
  %4551 = vmatpush.bf16.msra.mxu0 %v2936
  %4552 = vmatpush.bf16.msra.mxu0 %v2917
  %4553 = vmatmul.bf16.gmra.mxu0 %v816
  %v4554 = vpop.f32.mrf.mxu0
  %v4555 = vadd.f32 %v774, %v4554
  %v4556 = vpop.f32.mrf.mxu0
  %4557 = vdwg.mxu0
  %4558 = vmatpush.bf16.msra.mxu0 %v3202
  %4559 = vmatpush.bf16.msra.mxu0 %v3183
  %4560 = vmatpush.bf16.msra.mxu0 %v3164
  %4561 = vmatpush.bf16.msra.mxu0 %v3145
  %4562 = vmatpush.bf16.msra.mxu0 %v3126
  %4563 = vmatpush.bf16.msra.mxu0 %v3107
  %4564 = vmatpush.bf16.msra.mxu0 %v3088
  %4565 = vmatpush.bf16.msra.mxu0 %v3069
  %4566 = vmatmul.bf16.gmra.mxu0 %v817
  %v4567 = vpop.f32.mrf.mxu0
  %v4568 = vadd.f32 %v4555, %v4567
  %v4569 = vpop.f32.mrf.mxu0
  %4570 = vdwg.mxu0
  %4571 = vmatpush.bf16.msra.mxu0 %v3354
  %4572 = vmatpush.bf16.msra.mxu0 %v3335
  %4573 = vmatpush.bf16.msra.mxu0 %v3316
  %4574 = vmatpush.bf16.msra.mxu0 %v3297
  %4575 = vmatpush.bf16.msra.mxu0 %v3278
  %4576 = vmatpush.bf16.msra.mxu0 %v3259
  %4577 = vmatpush.bf16.msra.mxu0 %v3240
  %4578 = vmatpush.bf16.msra.mxu0 %v3221
  %4579 = vmatmul.bf16.gmra.mxu0 %v818
  %v4580 = vpop.f32.mrf.mxu0
  %v4581 = vadd.f32 %v4568, %v4580
  %v4582 = vpop.f32.mrf.mxu0
  %4583 = vdwg.mxu0
  %4584 = vmatpush.bf16.msra.mxu0 %v3506
  %4585 = vmatpush.bf16.msra.mxu0 %v3487
  %4586 = vmatpush.bf16.msra.mxu0 %v3468
  %4587 = vmatpush.bf16.msra.mxu0 %v3449
  %4588 = vmatpush.bf16.msra.mxu0 %v3430
  %4589 = vmatpush.bf16.msra.mxu0 %v3411
  %4590 = vmatpush.bf16.msra.mxu0 %v3392
  %4591 = vmatpush.bf16.msra.mxu0 %v3373
  %4592 = vmatmul.bf16.gmra.mxu0 %v819
  %v4593 = vpop.f32.mrf.mxu0
  %v4594 = vadd.f32 %v4581, %v4593
  %v4595 = vpop.f32.mrf.mxu0
  %4596 = vdwg.mxu0
  %4597 = vmatpush.bf16.msra.mxu0 0
  %4598 = vmatpush.bf16.msra.mxu0 0
  %4599 = vmatpush.bf16.msra.mxu0 0
  %4600 = vmatpush.bf16.msra.mxu0 0
  %4601 = vmatpush.bf16.msra.mxu0 %v3582
  %4602 = vmatpush.bf16.msra.mxu0 %v3563
  %4603 = vmatpush.bf16.msra.mxu0 %v3544
  %4604 = vmatpush.bf16.msra.mxu0 %v3525
  %4605 = vmatmul.bf16.gmra.mxu0 %v4283
  %v4606 = vpop.f32.mrf.mxu0
  %v4607 = vadd.f32 %v4594, %v4606
  %v4608 = vpop.f32.mrf.mxu0
  %4609 = vdwg.mxu0
  %4610 = vmatpush.bf16.msra.mxu0 %v3051
  %4611 = vmatpush.bf16.msra.mxu0 %v3032
  %4612 = vmatpush.bf16.msra.mxu0 %v3013
  %4613 = vmatpush.bf16.msra.mxu0 %v2994
  %4614 = vmatpush.bf16.msra.mxu0 %v2975
  %4615 = vmatpush.bf16.msra.mxu0 %v2956
  %4616 = vmatpush.bf16.msra.mxu0 %v2937
  %4617 = vmatpush.bf16.msra.mxu0 %v2918
  %4618 = vmatmul.bf16.gmra.mxu0 %v816
  %v4619 = vpop.f32.mrf.mxu0
  %v4620 = vadd.f32 %v775, %v4619
  %v4621 = vpop.f32.mrf.mxu0
  %4622 = vdwg.mxu0
  %4623 = vmatpush.bf16.msra.mxu0 %v3203
  %4624 = vmatpush.bf16.msra.mxu0 %v3184
  %4625 = vmatpush.bf16.msra.mxu0 %v3165
  %4626 = vmatpush.bf16.msra.mxu0 %v3146
  %4627 = vmatpush.bf16.msra.mxu0 %v3127
  %4628 = vmatpush.bf16.msra.mxu0 %v3108
  %4629 = vmatpush.bf16.msra.mxu0 %v3089
  %4630 = vmatpush.bf16.msra.mxu0 %v3070
  %4631 = vmatmul.bf16.gmra.mxu0 %v817
  %v4632 = vpop.f32.mrf.mxu0
  %v4633 = vadd.f32 %v4620, %v4632
  %v4634 = vpop.f32.mrf.mxu0
  %4635 = vdwg.mxu0
  %4636 = vmatpush.bf16.msra.mxu0 %v3355
  %4637 = vmatpush.bf16.msra.mxu0 %v3336
  %4638 = vmatpush.bf16.msra.mxu0 %v3317
  %4639 = vmatpush.bf16.msra.mxu0 %v3298
  %4640 = vmatpush.bf16.msra.mxu0 %v3279
  %4641 = vmatpush.bf16.msra.mxu0 %v3260
  %4642 = vmatpush.bf16.msra.mxu0 %v3241
  %4643 = vmatpush.bf16.msra.mxu0 %v3222
  %4644 = vmatmul.bf16.gmra.mxu0 %v818
  %v4645 = vpop.f32.mrf.mxu0
  %v4646 = vadd.f32 %v4633, %v4645
  %v4647 = vpop.f32.mrf.mxu0
  %4648 = vdwg.mxu0
  %4649 = vmatpush.bf16.msra.mxu0 %v3507
  %4650 = vmatpush.bf16.msra.mxu0 %v3488
  %4651 = vmatpush.bf16.msra.mxu0 %v3469
  %4652 = vmatpush.bf16.msra.mxu0 %v3450
  %4653 = vmatpush.bf16.msra.mxu0 %v3431
  %4654 = vmatpush.bf16.msra.mxu0 %v3412
  %4655 = vmatpush.bf16.msra.mxu0 %v3393
  %4656 = vmatpush.bf16.msra.mxu0 %v3374
  %4657 = vmatmul.bf16.gmra.mxu0 %v819
  %v4658 = vpop.f32.mrf.mxu0
  %v4659 = vadd.f32 %v4646, %v4658
  %v4660 = vpop.f32.mrf.mxu0
  %4661 = vdwg.mxu0
  %4662 = vmatpush.bf16.msra.mxu0 0
  %4663 = vmatpush.bf16.msra.mxu0 0
  %4664 = vmatpush.bf16.msra.mxu0 0
  %4665 = vmatpush.bf16.msra.mxu0 0
  %4666 = vmatpush.bf16.msra.mxu0 %v3583
  %4667 = vmatpush.bf16.msra.mxu0 %v3564
  %4668 = vmatpush.bf16.msra.mxu0 %v3545
  %4669 = vmatpush.bf16.msra.mxu0 %v3526
  %4670 = vmatmul.bf16.gmra.mxu0 %v4283
  %v4671 = vpop.f32.mrf.mxu0
  %v4672 = vadd.f32 %v4659, %v4671
  %v4673 = vpop.f32.mrf.mxu0
  %4674 = vdwg.mxu0
  %4675 = vmatpush.bf16.msra.mxu0 %v3052
  %4676 = vmatpush.bf16.msra.mxu0 %v3033
  %4677 = vmatpush.bf16.msra.mxu0 %v3014
  %4678 = vmatpush.bf16.msra.mxu0 %v2995
  %4679 = vmatpush.bf16.msra.mxu0 %v2976
  %4680 = vmatpush.bf16.msra.mxu0 %v2957
  %4681 = vmatpush.bf16.msra.mxu0 %v2938
  %4682 = vmatpush.bf16.msra.mxu0 %v2919
  %4683 = vmatmul.bf16.gmra.mxu0 %v816
  %v4684 = vpop.f32.mrf.mxu0
  %v4685 = vadd.f32 %v776, %v4684
  %v4686 = vpop.f32.mrf.mxu0
  %4687 = vdwg.mxu0
  %4688 = vmatpush.bf16.msra.mxu0 %v3204
  %4689 = vmatpush.bf16.msra.mxu0 %v3185
  %4690 = vmatpush.bf16.msra.mxu0 %v3166
  %4691 = vmatpush.bf16.msra.mxu0 %v3147
  %4692 = vmatpush.bf16.msra.mxu0 %v3128
  %4693 = vmatpush.bf16.msra.mxu0 %v3109
  %4694 = vmatpush.bf16.msra.mxu0 %v3090
  %4695 = vmatpush.bf16.msra.mxu0 %v3071
  %4696 = vmatmul.bf16.gmra.mxu0 %v817
  %v4697 = vpop.f32.mrf.mxu0
  %v4698 = vadd.f32 %v4685, %v4697
  %v4699 = vpop.f32.mrf.mxu0
  %4700 = vdwg.mxu0
  %4701 = vmatpush.bf16.msra.mxu0 %v3356
  %4702 = vmatpush.bf16.msra.mxu0 %v3337
  %4703 = vmatpush.bf16.msra.mxu0 %v3318
  %4704 = vmatpush.bf16.msra.mxu0 %v3299
  %4705 = vmatpush.bf16.msra.mxu0 %v3280
  %4706 = vmatpush.bf16.msra.mxu0 %v3261
  %4707 = vmatpush.bf16.msra.mxu0 %v3242
  %4708 = vmatpush.bf16.msra.mxu0 %v3223
  %4709 = vmatmul.bf16.gmra.mxu0 %v818
  %v4710 = vpop.f32.mrf.mxu0
  %v4711 = vadd.f32 %v4698, %v4710
  %v4712 = vpop.f32.mrf.mxu0
  %4713 = vdwg.mxu0
  %4714 = vmatpush.bf16.msra.mxu0 %v3508
  %4715 = vmatpush.bf16.msra.mxu0 %v3489
  %4716 = vmatpush.bf16.msra.mxu0 %v3470
  %4717 = vmatpush.bf16.msra.mxu0 %v3451
  %4718 = vmatpush.bf16.msra.mxu0 %v3432
  %4719 = vmatpush.bf16.msra.mxu0 %v3413
  %4720 = vmatpush.bf16.msra.mxu0 %v3394
  %4721 = vmatpush.bf16.msra.mxu0 %v3375
  %4722 = vmatmul.bf16.gmra.mxu0 %v819
  %v4723 = vpop.f32.mrf.mxu0
  %v4724 = vadd.f32 %v4711, %v4723
  %v4725 = vpop.f32.mrf.mxu0
  %4726 = vdwg.mxu0
  %4727 = vmatpush.bf16.msra.mxu0 0
  %4728 = vmatpush.bf16.msra.mxu0 0
  %4729 = vmatpush.bf16.msra.mxu0 0
  %4730 = vmatpush.bf16.msra.mxu0 0
  %4731 = vmatpush.bf16.msra.mxu0 %v3584
  %4732 = vmatpush.bf16.msra.mxu0 %v3565
  %4733 = vmatpush.bf16.msra.mxu0 %v3546
  %4734 = vmatpush.bf16.msra.mxu0 %v3527
  %4735 = vmatmul.bf16.gmra.mxu0 %v4283
  %v4736 = vpop.f32.mrf.mxu0
  %v4737 = vadd.f32 %v4724, %v4736
  %v4738 = vpop.f32.mrf.mxu0
  %4739 = vdwg.mxu0
  %4740 = vmatpush.bf16.msra.mxu0 %v3053
  %4741 = vmatpush.bf16.msra.mxu0 %v3034
  %4742 = vmatpush.bf16.msra.mxu0 %v3015
  %4743 = vmatpush.bf16.msra.mxu0 %v2996
  %4744 = vmatpush.bf16.msra.mxu0 %v2977
  %4745 = vmatpush.bf16.msra.mxu0 %v2958
  %4746 = vmatpush.bf16.msra.mxu0 %v2939
  %4747 = vmatpush.bf16.msra.mxu0 %v2920
  %4748 = vmatmul.bf16.gmra.mxu0 %v816
  %v4749 = vpop.f32.mrf.mxu0
  %v4750 = vadd.f32 %v777, %v4749
  %v4751 = vpop.f32.mrf.mxu0
  %4752 = vdwg.mxu0
  %4753 = vmatpush.bf16.msra.mxu0 %v3205
  %4754 = vmatpush.bf16.msra.mxu0 %v3186
  %4755 = vmatpush.bf16.msra.mxu0 %v3167
  %4756 = vmatpush.bf16.msra.mxu0 %v3148
  %4757 = vmatpush.bf16.msra.mxu0 %v3129
  %4758 = vmatpush.bf16.msra.mxu0 %v3110
  %4759 = vmatpush.bf16.msra.mxu0 %v3091
  %4760 = vmatpush.bf16.msra.mxu0 %v3072
  %4761 = vmatmul.bf16.gmra.mxu0 %v817
  %v4762 = vpop.f32.mrf.mxu0
  %v4763 = vadd.f32 %v4750, %v4762
  %v4764 = vpop.f32.mrf.mxu0
  %4765 = vdwg.mxu0
  %4766 = vmatpush.bf16.msra.mxu0 %v3357
  %4767 = vmatpush.bf16.msra.mxu0 %v3338
  %4768 = vmatpush.bf16.msra.mxu0 %v3319
  %4769 = vmatpush.bf16.msra.mxu0 %v3300
  %4770 = vmatpush.bf16.msra.mxu0 %v3281
  %4771 = vmatpush.bf16.msra.mxu0 %v3262
  %4772 = vmatpush.bf16.msra.mxu0 %v3243
  %4773 = vmatpush.bf16.msra.mxu0 %v3224
  %4774 = vmatmul.bf16.gmra.mxu0 %v818
  %v4775 = vpop.f32.mrf.mxu0
  %v4776 = vadd.f32 %v4763, %v4775
  %v4777 = vpop.f32.mrf.mxu0
  %4778 = vdwg.mxu0
  %4779 = vmatpush.bf16.msra.mxu0 %v3509
  %4780 = vmatpush.bf16.msra.mxu0 %v3490
  %4781 = vmatpush.bf16.msra.mxu0 %v3471
  %4782 = vmatpush.bf16.msra.mxu0 %v3452
  %4783 = vmatpush.bf16.msra.mxu0 %v3433
  %4784 = vmatpush.bf16.msra.mxu0 %v3414
  %4785 = vmatpush.bf16.msra.mxu0 %v3395
  %4786 = vmatpush.bf16.msra.mxu0 %v3376
  %4787 = vmatmul.bf16.gmra.mxu0 %v819
  %v4788 = vpop.f32.mrf.mxu0
  %v4789 = vadd.f32 %v4776, %v4788
  %v4790 = vpop.f32.mrf.mxu0
  %4791 = vdwg.mxu0
  %4792 = vmatpush.bf16.msra.mxu0 0
  %4793 = vmatpush.bf16.msra.mxu0 0
  %4794 = vmatpush.bf16.msra.mxu0 0
  %4795 = vmatpush.bf16.msra.mxu0 0
  %4796 = vmatpush.bf16.msra.mxu0 %v3585
  %4797 = vmatpush.bf16.msra.mxu0 %v3566
  %4798 = vmatpush.bf16.msra.mxu0 %v3547
  %4799 = vmatpush.bf16.msra.mxu0 %v3528
  %4800 = vmatmul.bf16.gmra.mxu0 %v4283
  %v4801 = vpop.f32.mrf.mxu0
  %v4802 = vadd.f32 %v4789, %v4801
  %v4803 = vpop.f32.mrf.mxu0
  %4804 = vdwg.mxu0
  %4805 = vmatpush.bf16.msra.mxu0 %v3054
  %4806 = vmatpush.bf16.msra.mxu0 %v3035
  %4807 = vmatpush.bf16.msra.mxu0 %v3016
  %4808 = vmatpush.bf16.msra.mxu0 %v2997
  %4809 = vmatpush.bf16.msra.mxu0 %v2978
  %4810 = vmatpush.bf16.msra.mxu0 %v2959
  %4811 = vmatpush.bf16.msra.mxu0 %v2940
  %4812 = vmatpush.bf16.msra.mxu0 %v2921
  %4813 = vmatmul.bf16.gmra.mxu0 %v816
  %v4814 = vpop.f32.mrf.mxu0
  %v4815 = vadd.f32 %v778, %v4814
  %v4816 = vpop.f32.mrf.mxu0
  %4817 = vdwg.mxu0
  %4818 = vmatpush.bf16.msra.mxu0 %v3206
  %4819 = vmatpush.bf16.msra.mxu0 %v3187
  %4820 = vmatpush.bf16.msra.mxu0 %v3168
  %4821 = vmatpush.bf16.msra.mxu0 %v3149
  %4822 = vmatpush.bf16.msra.mxu0 %v3130
  %4823 = vmatpush.bf16.msra.mxu0 %v3111
  %4824 = vmatpush.bf16.msra.mxu0 %v3092
  %4825 = vmatpush.bf16.msra.mxu0 %v3073
  %4826 = vmatmul.bf16.gmra.mxu0 %v817
  %v4827 = vpop.f32.mrf.mxu0
  %v4828 = vadd.f32 %v4815, %v4827
  %v4829 = vpop.f32.mrf.mxu0
  %4830 = vdwg.mxu0
  %4831 = vmatpush.bf16.msra.mxu0 %v3358
  %4832 = vmatpush.bf16.msra.mxu0 %v3339
  %4833 = vmatpush.bf16.msra.mxu0 %v3320
  %4834 = vmatpush.bf16.msra.mxu0 %v3301
  %4835 = vmatpush.bf16.msra.mxu0 %v3282
  %4836 = vmatpush.bf16.msra.mxu0 %v3263
  %4837 = vmatpush.bf16.msra.mxu0 %v3244
  %4838 = vmatpush.bf16.msra.mxu0 %v3225
  %4839 = vmatmul.bf16.gmra.mxu0 %v818
  %v4840 = vpop.f32.mrf.mxu0
  %v4841 = vadd.f32 %v4828, %v4840
  %v4842 = vpop.f32.mrf.mxu0
  %4843 = vdwg.mxu0
  %4844 = vmatpush.bf16.msra.mxu0 %v3510
  %4845 = vmatpush.bf16.msra.mxu0 %v3491
  %4846 = vmatpush.bf16.msra.mxu0 %v3472
  %4847 = vmatpush.bf16.msra.mxu0 %v3453
  %4848 = vmatpush.bf16.msra.mxu0 %v3434
  %4849 = vmatpush.bf16.msra.mxu0 %v3415
  %4850 = vmatpush.bf16.msra.mxu0 %v3396
  %4851 = vmatpush.bf16.msra.mxu0 %v3377
  %4852 = vmatmul.bf16.gmra.mxu0 %v819
  %v4853 = vpop.f32.mrf.mxu0
  %v4854 = vadd.f32 %v4841, %v4853
  %v4855 = vpop.f32.mrf.mxu0
  %4856 = vdwg.mxu0
  %4857 = vmatpush.bf16.msra.mxu0 0
  %4858 = vmatpush.bf16.msra.mxu0 0
  %4859 = vmatpush.bf16.msra.mxu0 0
  %4860 = vmatpush.bf16.msra.mxu0 0
  %4861 = vmatpush.bf16.msra.mxu0 %v3586
  %4862 = vmatpush.bf16.msra.mxu0 %v3567
  %4863 = vmatpush.bf16.msra.mxu0 %v3548
  %4864 = vmatpush.bf16.msra.mxu0 %v3529
  %4865 = vmatmul.bf16.gmra.mxu0 %v4283
  %v4866 = vpop.f32.mrf.mxu0
  %v4867 = vadd.f32 %v4854, %v4866
  %v4868 = vpop.f32.mrf.mxu0
  %4869 = vdwg.mxu0
  %4870 = vmatpush.bf16.msra.mxu0 %v3055
  %4871 = vmatpush.bf16.msra.mxu0 %v3036
  %4872 = vmatpush.bf16.msra.mxu0 %v3017
  %4873 = vmatpush.bf16.msra.mxu0 %v2998
  %4874 = vmatpush.bf16.msra.mxu0 %v2979
  %4875 = vmatpush.bf16.msra.mxu0 %v2960
  %4876 = vmatpush.bf16.msra.mxu0 %v2941
  %4877 = vmatpush.bf16.msra.mxu0 %v2922
  %4878 = vmatmul.bf16.gmra.mxu0 %v816
  %v4879 = vpop.f32.mrf.mxu0
  %v4880 = vadd.f32 %v779, %v4879
  %v4881 = vpop.f32.mrf.mxu0
  %4882 = vdwg.mxu0
  %4883 = vmatpush.bf16.msra.mxu0 %v3207
  %4884 = vmatpush.bf16.msra.mxu0 %v3188
  %4885 = vmatpush.bf16.msra.mxu0 %v3169
  %4886 = vmatpush.bf16.msra.mxu0 %v3150
  %4887 = vmatpush.bf16.msra.mxu0 %v3131
  %4888 = vmatpush.bf16.msra.mxu0 %v3112
  %4889 = vmatpush.bf16.msra.mxu0 %v3093
  %4890 = vmatpush.bf16.msra.mxu0 %v3074
  %4891 = vmatmul.bf16.gmra.mxu0 %v817
  %v4892 = vpop.f32.mrf.mxu0
  %v4893 = vadd.f32 %v4880, %v4892
  %v4894 = vpop.f32.mrf.mxu0
  %4895 = vdwg.mxu0
  %4896 = vmatpush.bf16.msra.mxu0 %v3359
  %4897 = vmatpush.bf16.msra.mxu0 %v3340
  %4898 = vmatpush.bf16.msra.mxu0 %v3321
  %4899 = vmatpush.bf16.msra.mxu0 %v3302
  %4900 = vmatpush.bf16.msra.mxu0 %v3283
  %4901 = vmatpush.bf16.msra.mxu0 %v3264
  %4902 = vmatpush.bf16.msra.mxu0 %v3245
  %4903 = vmatpush.bf16.msra.mxu0 %v3226
  %4904 = vmatmul.bf16.gmra.mxu0 %v818
  %v4905 = vpop.f32.mrf.mxu0
  %v4906 = vadd.f32 %v4893, %v4905
  %v4907 = vpop.f32.mrf.mxu0
  %4908 = vdwg.mxu0
  %4909 = vmatpush.bf16.msra.mxu0 %v3511
  %4910 = vmatpush.bf16.msra.mxu0 %v3492
  %4911 = vmatpush.bf16.msra.mxu0 %v3473
  %4912 = vmatpush.bf16.msra.mxu0 %v3454
  %4913 = vmatpush.bf16.msra.mxu0 %v3435
  %4914 = vmatpush.bf16.msra.mxu0 %v3416
  %4915 = vmatpush.bf16.msra.mxu0 %v3397
  %4916 = vmatpush.bf16.msra.mxu0 %v3378
  %4917 = vmatmul.bf16.gmra.mxu0 %v819
  %v4918 = vpop.f32.mrf.mxu0
  %v4919 = vadd.f32 %v4906, %v4918
  %v4920 = vpop.f32.mrf.mxu0
  %4921 = vdwg.mxu0
  %4922 = vmatpush.bf16.msra.mxu0 0
  %4923 = vmatpush.bf16.msra.mxu0 0
  %4924 = vmatpush.bf16.msra.mxu0 0
  %4925 = vmatpush.bf16.msra.mxu0 0
  %4926 = vmatpush.bf16.msra.mxu0 %v3587
  %4927 = vmatpush.bf16.msra.mxu0 %v3568
  %4928 = vmatpush.bf16.msra.mxu0 %v3549
  %4929 = vmatpush.bf16.msra.mxu0 %v3530
  %4930 = vmatmul.bf16.gmra.mxu0 %v4283
  %v4931 = vpop.f32.mrf.mxu0
  %v4932 = vadd.f32 %v4919, %v4931
  %v4933 = vpop.f32.mrf.mxu0
  %4934 = vdwg.mxu0
  %4935 = vmatpush.bf16.msra.mxu0 %v3056
  %4936 = vmatpush.bf16.msra.mxu0 %v3037
  %4937 = vmatpush.bf16.msra.mxu0 %v3018
  %4938 = vmatpush.bf16.msra.mxu0 %v2999
  %4939 = vmatpush.bf16.msra.mxu0 %v2980
  %4940 = vmatpush.bf16.msra.mxu0 %v2961
  %4941 = vmatpush.bf16.msra.mxu0 %v2942
  %4942 = vmatpush.bf16.msra.mxu0 %v2923
  %4943 = vmatmul.bf16.gmra.mxu0 %v816
  %v4944 = vpop.f32.mrf.mxu0
  %v4945 = vadd.f32 %v780, %v4944
  %v4946 = vpop.f32.mrf.mxu0
  %4947 = vdwg.mxu0
  %4948 = vmatpush.bf16.msra.mxu0 %v3208
  %4949 = vmatpush.bf16.msra.mxu0 %v3189
  %4950 = vmatpush.bf16.msra.mxu0 %v3170
  %4951 = vmatpush.bf16.msra.mxu0 %v3151
  %4952 = vmatpush.bf16.msra.mxu0 %v3132
  %4953 = vmatpush.bf16.msra.mxu0 %v3113
  %4954 = vmatpush.bf16.msra.mxu0 %v3094
  %4955 = vmatpush.bf16.msra.mxu0 %v3075
  %4956 = vmatmul.bf16.gmra.mxu0 %v817
  %v4957 = vpop.f32.mrf.mxu0
  %v4958 = vadd.f32 %v4945, %v4957
  %v4959 = vpop.f32.mrf.mxu0
  %4960 = vdwg.mxu0
  %4961 = vmatpush.bf16.msra.mxu0 %v3360
  %4962 = vmatpush.bf16.msra.mxu0 %v3341
  %4963 = vmatpush.bf16.msra.mxu0 %v3322
  %4964 = vmatpush.bf16.msra.mxu0 %v3303
  %4965 = vmatpush.bf16.msra.mxu0 %v3284
  %4966 = vmatpush.bf16.msra.mxu0 %v3265
  %4967 = vmatpush.bf16.msra.mxu0 %v3246
  %4968 = vmatpush.bf16.msra.mxu0 %v3227
  %4969 = vmatmul.bf16.gmra.mxu0 %v818
  %v4970 = vpop.f32.mrf.mxu0
  %v4971 = vadd.f32 %v4958, %v4970
  %v4972 = vpop.f32.mrf.mxu0
  %4973 = vdwg.mxu0
  %4974 = vmatpush.bf16.msra.mxu0 %v3512
  %4975 = vmatpush.bf16.msra.mxu0 %v3493
  %4976 = vmatpush.bf16.msra.mxu0 %v3474
  %4977 = vmatpush.bf16.msra.mxu0 %v3455
  %4978 = vmatpush.bf16.msra.mxu0 %v3436
  %4979 = vmatpush.bf16.msra.mxu0 %v3417
  %4980 = vmatpush.bf16.msra.mxu0 %v3398
  %4981 = vmatpush.bf16.msra.mxu0 %v3379
  %4982 = vmatmul.bf16.gmra.mxu0 %v819
  %v4983 = vpop.f32.mrf.mxu0
  %v4984 = vadd.f32 %v4971, %v4983
  %v4985 = vpop.f32.mrf.mxu0
  %4986 = vdwg.mxu0
  %4987 = vmatpush.bf16.msra.mxu0 0
  %4988 = vmatpush.bf16.msra.mxu0 0
  %4989 = vmatpush.bf16.msra.mxu0 0
  %4990 = vmatpush.bf16.msra.mxu0 0
  %4991 = vmatpush.bf16.msra.mxu0 %v3588
  %4992 = vmatpush.bf16.msra.mxu0 %v3569
  %4993 = vmatpush.bf16.msra.mxu0 %v3550
  %4994 = vmatpush.bf16.msra.mxu0 %v3531
  %4995 = vmatmul.bf16.gmra.mxu0 %v4283
  %v4996 = vpop.f32.mrf.mxu0
  %v4997 = vadd.f32 %v4984, %v4996
  %v4998 = vpop.f32.mrf.mxu0
  %4999 = vdwg.mxu0
  %5000 = vmatpush.bf16.msra.mxu0 %v3057
  %5001 = vmatpush.bf16.msra.mxu0 %v3038
  %5002 = vmatpush.bf16.msra.mxu0 %v3019
  %5003 = vmatpush.bf16.msra.mxu0 %v3000
  %5004 = vmatpush.bf16.msra.mxu0 %v2981
  %5005 = vmatpush.bf16.msra.mxu0 %v2962
  %5006 = vmatpush.bf16.msra.mxu0 %v2943
  %5007 = vmatpush.bf16.msra.mxu0 %v2924
  %5008 = vmatmul.bf16.gmra.mxu0 %v816
  %v5009 = vpop.f32.mrf.mxu0
  %v5010 = vadd.f32 %v781, %v5009
  %v5011 = vpop.f32.mrf.mxu0
  %5012 = vdwg.mxu0
  %5013 = vmatpush.bf16.msra.mxu0 %v3209
  %5014 = vmatpush.bf16.msra.mxu0 %v3190
  %5015 = vmatpush.bf16.msra.mxu0 %v3171
  %5016 = vmatpush.bf16.msra.mxu0 %v3152
  %5017 = vmatpush.bf16.msra.mxu0 %v3133
  %5018 = vmatpush.bf16.msra.mxu0 %v3114
  %5019 = vmatpush.bf16.msra.mxu0 %v3095
  %5020 = vmatpush.bf16.msra.mxu0 %v3076
  %5021 = vmatmul.bf16.gmra.mxu0 %v817
  %v5022 = vpop.f32.mrf.mxu0
  %v5023 = vadd.f32 %v5010, %v5022
  %v5024 = vpop.f32.mrf.mxu0
  %5025 = vdwg.mxu0
  %5026 = vmatpush.bf16.msra.mxu0 %v3361
  %5027 = vmatpush.bf16.msra.mxu0 %v3342
  %5028 = vmatpush.bf16.msra.mxu0 %v3323
  %5029 = vmatpush.bf16.msra.mxu0 %v3304
  %5030 = vmatpush.bf16.msra.mxu0 %v3285
  %5031 = vmatpush.bf16.msra.mxu0 %v3266
  %5032 = vmatpush.bf16.msra.mxu0 %v3247
  %5033 = vmatpush.bf16.msra.mxu0 %v3228
  %5034 = vmatmul.bf16.gmra.mxu0 %v818
  %v5035 = vpop.f32.mrf.mxu0
  %v5036 = vadd.f32 %v5023, %v5035
  %v5037 = vpop.f32.mrf.mxu0
  %5038 = vdwg.mxu0
  %5039 = vmatpush.bf16.msra.mxu0 %v3513
  %5040 = vmatpush.bf16.msra.mxu0 %v3494
  %5041 = vmatpush.bf16.msra.mxu0 %v3475
  %5042 = vmatpush.bf16.msra.mxu0 %v3456
  %5043 = vmatpush.bf16.msra.mxu0 %v3437
  %5044 = vmatpush.bf16.msra.mxu0 %v3418
  %5045 = vmatpush.bf16.msra.mxu0 %v3399
  %5046 = vmatpush.bf16.msra.mxu0 %v3380
  %5047 = vmatmul.bf16.gmra.mxu0 %v819
  %v5048 = vpop.f32.mrf.mxu0
  %v5049 = vadd.f32 %v5036, %v5048
  %v5050 = vpop.f32.mrf.mxu0
  %5051 = vdwg.mxu0
  %5052 = vmatpush.bf16.msra.mxu0 0
  %5053 = vmatpush.bf16.msra.mxu0 0
  %5054 = vmatpush.bf16.msra.mxu0 0
  %5055 = vmatpush.bf16.msra.mxu0 0
  %5056 = vmatpush.bf16.msra.mxu0 %v3589
  %5057 = vmatpush.bf16.msra.mxu0 %v3570
  %5058 = vmatpush.bf16.msra.mxu0 %v3551
  %5059 = vmatpush.bf16.msra.mxu0 %v3532
  %5060 = vmatmul.bf16.gmra.mxu0 %v4283
  %v5061 = vpop.f32.mrf.mxu0
  %v5062 = vadd.f32 %v5049, %v5061
  %v5063 = vpop.f32.mrf.mxu0
  %5064 = vdwg.mxu0
  %5065 = vmatpush.bf16.msra.mxu0 %v3058
  %5066 = vmatpush.bf16.msra.mxu0 %v3039
  %5067 = vmatpush.bf16.msra.mxu0 %v3020
  %5068 = vmatpush.bf16.msra.mxu0 %v3001
  %5069 = vmatpush.bf16.msra.mxu0 %v2982
  %5070 = vmatpush.bf16.msra.mxu0 %v2963
  %5071 = vmatpush.bf16.msra.mxu0 %v2944
  %5072 = vmatpush.bf16.msra.mxu0 %v2925
  %5073 = vmatmul.bf16.gmra.mxu0 %v816
  %v5074 = vpop.f32.mrf.mxu0
  %v5075 = vadd.f32 %v782, %v5074
  %v5076 = vpop.f32.mrf.mxu0
  %5077 = vdwg.mxu0
  %5078 = vmatpush.bf16.msra.mxu0 %v3210
  %5079 = vmatpush.bf16.msra.mxu0 %v3191
  %5080 = vmatpush.bf16.msra.mxu0 %v3172
  %5081 = vmatpush.bf16.msra.mxu0 %v3153
  %5082 = vmatpush.bf16.msra.mxu0 %v3134
  %5083 = vmatpush.bf16.msra.mxu0 %v3115
  %5084 = vmatpush.bf16.msra.mxu0 %v3096
  %5085 = vmatpush.bf16.msra.mxu0 %v3077
  %5086 = vmatmul.bf16.gmra.mxu0 %v817
  %v5087 = vpop.f32.mrf.mxu0
  %v5088 = vadd.f32 %v5075, %v5087
  %v5089 = vpop.f32.mrf.mxu0
  %5090 = vdwg.mxu0
  %5091 = vmatpush.bf16.msra.mxu0 %v3362
  %5092 = vmatpush.bf16.msra.mxu0 %v3343
  %5093 = vmatpush.bf16.msra.mxu0 %v3324
  %5094 = vmatpush.bf16.msra.mxu0 %v3305
  %5095 = vmatpush.bf16.msra.mxu0 %v3286
  %5096 = vmatpush.bf16.msra.mxu0 %v3267
  %5097 = vmatpush.bf16.msra.mxu0 %v3248
  %5098 = vmatpush.bf16.msra.mxu0 %v3229
  %5099 = vmatmul.bf16.gmra.mxu0 %v818
  %v5100 = vpop.f32.mrf.mxu0
  %v5101 = vadd.f32 %v5088, %v5100
  %v5102 = vpop.f32.mrf.mxu0
  %5103 = vdwg.mxu0
  %5104 = vmatpush.bf16.msra.mxu0 %v3514
  %5105 = vmatpush.bf16.msra.mxu0 %v3495
  %5106 = vmatpush.bf16.msra.mxu0 %v3476
  %5107 = vmatpush.bf16.msra.mxu0 %v3457
  %5108 = vmatpush.bf16.msra.mxu0 %v3438
  %5109 = vmatpush.bf16.msra.mxu0 %v3419
  %5110 = vmatpush.bf16.msra.mxu0 %v3400
  %5111 = vmatpush.bf16.msra.mxu0 %v3381
  %5112 = vmatmul.bf16.gmra.mxu0 %v819
  %v5113 = vpop.f32.mrf.mxu0
  %v5114 = vadd.f32 %v5101, %v5113
  %v5115 = vpop.f32.mrf.mxu0
  %5116 = vdwg.mxu0
  %5117 = vmatpush.bf16.msra.mxu0 0
  %5118 = vmatpush.bf16.msra.mxu0 0
  %5119 = vmatpush.bf16.msra.mxu0 0
  %5120 = vmatpush.bf16.msra.mxu0 0
  %5121 = vmatpush.bf16.msra.mxu0 %v3590
  %5122 = vmatpush.bf16.msra.mxu0 %v3571
  %5123 = vmatpush.bf16.msra.mxu0 %v3552
  %5124 = vmatpush.bf16.msra.mxu0 %v3533
  %5125 = vmatmul.bf16.gmra.mxu0 %v4283
  %v5126 = vpop.f32.mrf.mxu0
  %v5127 = vadd.f32 %v5114, %v5126
  %v5128 = vpop.f32.mrf.mxu0
  %5129 = vdwg.mxu0
  %5130 = vmatpush.bf16.msra.mxu0 %v3059
  %5131 = vmatpush.bf16.msra.mxu0 %v3040
  %5132 = vmatpush.bf16.msra.mxu0 %v3021
  %5133 = vmatpush.bf16.msra.mxu0 %v3002
  %5134 = vmatpush.bf16.msra.mxu0 %v2983
  %5135 = vmatpush.bf16.msra.mxu0 %v2964
  %5136 = vmatpush.bf16.msra.mxu0 %v2945
  %5137 = vmatpush.bf16.msra.mxu0 %v2926
  %5138 = vmatmul.bf16.gmra.mxu0 %v816
  %v5139 = vpop.f32.mrf.mxu0
  %v5140 = vadd.f32 %v783, %v5139
  %v5141 = vpop.f32.mrf.mxu0
  %5142 = vdwg.mxu0
  %5143 = vmatpush.bf16.msra.mxu0 %v3211
  %5144 = vmatpush.bf16.msra.mxu0 %v3192
  %5145 = vmatpush.bf16.msra.mxu0 %v3173
  %5146 = vmatpush.bf16.msra.mxu0 %v3154
  %5147 = vmatpush.bf16.msra.mxu0 %v3135
  %5148 = vmatpush.bf16.msra.mxu0 %v3116
  %5149 = vmatpush.bf16.msra.mxu0 %v3097
  %5150 = vmatpush.bf16.msra.mxu0 %v3078
  %5151 = vmatmul.bf16.gmra.mxu0 %v817
  %v5152 = vpop.f32.mrf.mxu0
  %v5153 = vadd.f32 %v5140, %v5152
  %v5154 = vpop.f32.mrf.mxu0
  %5155 = vdwg.mxu0
  %5156 = vmatpush.bf16.msra.mxu0 %v3363
  %5157 = vmatpush.bf16.msra.mxu0 %v3344
  %5158 = vmatpush.bf16.msra.mxu0 %v3325
  %5159 = vmatpush.bf16.msra.mxu0 %v3306
  %5160 = vmatpush.bf16.msra.mxu0 %v3287
  %5161 = vmatpush.bf16.msra.mxu0 %v3268
  %5162 = vmatpush.bf16.msra.mxu0 %v3249
  %5163 = vmatpush.bf16.msra.mxu0 %v3230
  %5164 = vmatmul.bf16.gmra.mxu0 %v818
  %v5165 = vpop.f32.mrf.mxu0
  %v5166 = vadd.f32 %v5153, %v5165
  %v5167 = vpop.f32.mrf.mxu0
  %5168 = vdwg.mxu0
  %5169 = vmatpush.bf16.msra.mxu0 %v3515
  %5170 = vmatpush.bf16.msra.mxu0 %v3496
  %5171 = vmatpush.bf16.msra.mxu0 %v3477
  %5172 = vmatpush.bf16.msra.mxu0 %v3458
  %5173 = vmatpush.bf16.msra.mxu0 %v3439
  %5174 = vmatpush.bf16.msra.mxu0 %v3420
  %5175 = vmatpush.bf16.msra.mxu0 %v3401
  %5176 = vmatpush.bf16.msra.mxu0 %v3382
  %5177 = vmatmul.bf16.gmra.mxu0 %v819
  %v5178 = vpop.f32.mrf.mxu0
  %v5179 = vadd.f32 %v5166, %v5178
  %v5180 = vpop.f32.mrf.mxu0
  %5181 = vdwg.mxu0
  %5182 = vmatpush.bf16.msra.mxu0 0
  %5183 = vmatpush.bf16.msra.mxu0 0
  %5184 = vmatpush.bf16.msra.mxu0 0
  %5185 = vmatpush.bf16.msra.mxu0 0
  %5186 = vmatpush.bf16.msra.mxu0 %v3591
  %5187 = vmatpush.bf16.msra.mxu0 %v3572
  %5188 = vmatpush.bf16.msra.mxu0 %v3553
  %5189 = vmatpush.bf16.msra.mxu0 %v3534
  %5190 = vmatmul.bf16.gmra.mxu0 %v4283
  %v5191 = vpop.f32.mrf.mxu0
  %v5192 = vadd.f32 %v5179, %v5191
  %v5193 = vpop.f32.mrf.mxu0
  %5194 = vdwg.mxu0
  %5195 = vmatpush.bf16.msra.mxu0 %v3060
  %5196 = vmatpush.bf16.msra.mxu0 %v3041
  %5197 = vmatpush.bf16.msra.mxu0 %v3022
  %5198 = vmatpush.bf16.msra.mxu0 %v3003
  %5199 = vmatpush.bf16.msra.mxu0 %v2984
  %5200 = vmatpush.bf16.msra.mxu0 %v2965
  %5201 = vmatpush.bf16.msra.mxu0 %v2946
  %5202 = vmatpush.bf16.msra.mxu0 %v2927
  %5203 = vmatmul.bf16.gmra.mxu0 %v816
  %v5204 = vpop.f32.mrf.mxu0
  %v5205 = vadd.f32 %v784, %v5204
  %v5206 = vpop.f32.mrf.mxu0
  %5207 = vdwg.mxu0
  %5208 = vmatpush.bf16.msra.mxu0 %v3212
  %5209 = vmatpush.bf16.msra.mxu0 %v3193
  %5210 = vmatpush.bf16.msra.mxu0 %v3174
  %5211 = vmatpush.bf16.msra.mxu0 %v3155
  %5212 = vmatpush.bf16.msra.mxu0 %v3136
  %5213 = vmatpush.bf16.msra.mxu0 %v3117
  %5214 = vmatpush.bf16.msra.mxu0 %v3098
  %5215 = vmatpush.bf16.msra.mxu0 %v3079
  %5216 = vmatmul.bf16.gmra.mxu0 %v817
  %v5217 = vpop.f32.mrf.mxu0
  %v5218 = vadd.f32 %v5205, %v5217
  %v5219 = vpop.f32.mrf.mxu0
  %5220 = vdwg.mxu0
  %5221 = vmatpush.bf16.msra.mxu0 %v3364
  %5222 = vmatpush.bf16.msra.mxu0 %v3345
  %5223 = vmatpush.bf16.msra.mxu0 %v3326
  %5224 = vmatpush.bf16.msra.mxu0 %v3307
  %5225 = vmatpush.bf16.msra.mxu0 %v3288
  %5226 = vmatpush.bf16.msra.mxu0 %v3269
  %5227 = vmatpush.bf16.msra.mxu0 %v3250
  %5228 = vmatpush.bf16.msra.mxu0 %v3231
  %5229 = vmatmul.bf16.gmra.mxu0 %v818
  %v5230 = vpop.f32.mrf.mxu0
  %v5231 = vadd.f32 %v5218, %v5230
  %v5232 = vpop.f32.mrf.mxu0
  %5233 = vdwg.mxu0
  %5234 = vmatpush.bf16.msra.mxu0 %v3516
  %5235 = vmatpush.bf16.msra.mxu0 %v3497
  %5236 = vmatpush.bf16.msra.mxu0 %v3478
  %5237 = vmatpush.bf16.msra.mxu0 %v3459
  %5238 = vmatpush.bf16.msra.mxu0 %v3440
  %5239 = vmatpush.bf16.msra.mxu0 %v3421
  %5240 = vmatpush.bf16.msra.mxu0 %v3402
  %5241 = vmatpush.bf16.msra.mxu0 %v3383
  %5242 = vmatmul.bf16.gmra.mxu0 %v819
  %v5243 = vpop.f32.mrf.mxu0
  %v5244 = vadd.f32 %v5231, %v5243
  %v5245 = vpop.f32.mrf.mxu0
  %5246 = vdwg.mxu0
  %5247 = vmatpush.bf16.msra.mxu0 0
  %5248 = vmatpush.bf16.msra.mxu0 0
  %5249 = vmatpush.bf16.msra.mxu0 0
  %5250 = vmatpush.bf16.msra.mxu0 0
  %5251 = vmatpush.bf16.msra.mxu0 %v3592
  %5252 = vmatpush.bf16.msra.mxu0 %v3573
  %5253 = vmatpush.bf16.msra.mxu0 %v3554
  %5254 = vmatpush.bf16.msra.mxu0 %v3535
  %5255 = vmatmul.bf16.gmra.mxu0 %v4283
  %v5256 = vpop.f32.mrf.mxu0
  %v5257 = vadd.f32 %v5244, %v5256
  %v5258 = vpop.f32.mrf.mxu0
  %5259 = vdwg.mxu0
  %5260 = vmatpush.bf16.msra.mxu0 %v3061
  %5261 = vmatpush.bf16.msra.mxu0 %v3042
  %5262 = vmatpush.bf16.msra.mxu0 %v3023
  %5263 = vmatpush.bf16.msra.mxu0 %v3004
  %5264 = vmatpush.bf16.msra.mxu0 %v2985
  %5265 = vmatpush.bf16.msra.mxu0 %v2966
  %5266 = vmatpush.bf16.msra.mxu0 %v2947
  %5267 = vmatpush.bf16.msra.mxu0 %v2928
  %5268 = vmatmul.bf16.gmra.mxu0 %v816
  %v5269 = vpop.f32.mrf.mxu0
  %v5270 = vadd.f32 %v785, %v5269
  %v5271 = vpop.f32.mrf.mxu0
  %5272 = vdwg.mxu0
  %5273 = vmatpush.bf16.msra.mxu0 %v3213
  %5274 = vmatpush.bf16.msra.mxu0 %v3194
  %5275 = vmatpush.bf16.msra.mxu0 %v3175
  %5276 = vmatpush.bf16.msra.mxu0 %v3156
  %5277 = vmatpush.bf16.msra.mxu0 %v3137
  %5278 = vmatpush.bf16.msra.mxu0 %v3118
  %5279 = vmatpush.bf16.msra.mxu0 %v3099
  %5280 = vmatpush.bf16.msra.mxu0 %v3080
  %5281 = vmatmul.bf16.gmra.mxu0 %v817
  %v5282 = vpop.f32.mrf.mxu0
  %v5283 = vadd.f32 %v5270, %v5282
  %v5284 = vpop.f32.mrf.mxu0
  %5285 = vdwg.mxu0
  %5286 = vmatpush.bf16.msra.mxu0 %v3365
  %5287 = vmatpush.bf16.msra.mxu0 %v3346
  %5288 = vmatpush.bf16.msra.mxu0 %v3327
  %5289 = vmatpush.bf16.msra.mxu0 %v3308
  %5290 = vmatpush.bf16.msra.mxu0 %v3289
  %5291 = vmatpush.bf16.msra.mxu0 %v3270
  %5292 = vmatpush.bf16.msra.mxu0 %v3251
  %5293 = vmatpush.bf16.msra.mxu0 %v3232
  %5294 = vmatmul.bf16.gmra.mxu0 %v818
  %v5295 = vpop.f32.mrf.mxu0
  %v5296 = vadd.f32 %v5283, %v5295
  %v5297 = vpop.f32.mrf.mxu0
  %5298 = vdwg.mxu0
  %5299 = vmatpush.bf16.msra.mxu0 %v3517
  %5300 = vmatpush.bf16.msra.mxu0 %v3498
  %5301 = vmatpush.bf16.msra.mxu0 %v3479
  %5302 = vmatpush.bf16.msra.mxu0 %v3460
  %5303 = vmatpush.bf16.msra.mxu0 %v3441
  %5304 = vmatpush.bf16.msra.mxu0 %v3422
  %5305 = vmatpush.bf16.msra.mxu0 %v3403
  %5306 = vmatpush.bf16.msra.mxu0 %v3384
  %5307 = vmatmul.bf16.gmra.mxu0 %v819
  %v5308 = vpop.f32.mrf.mxu0
  %v5309 = vadd.f32 %v5296, %v5308
  %v5310 = vpop.f32.mrf.mxu0
  %5311 = vdwg.mxu0
  %5312 = vmatpush.bf16.msra.mxu0 0
  %5313 = vmatpush.bf16.msra.mxu0 0
  %5314 = vmatpush.bf16.msra.mxu0 0
  %5315 = vmatpush.bf16.msra.mxu0 0
  %5316 = vmatpush.bf16.msra.mxu0 %v3593
  %5317 = vmatpush.bf16.msra.mxu0 %v3574
  %5318 = vmatpush.bf16.msra.mxu0 %v3555
  %5319 = vmatpush.bf16.msra.mxu0 %v3536
  %5320 = vmatmul.bf16.gmra.mxu0 %v4283
  %v5321 = vpop.f32.mrf.mxu0
  %v5322 = vadd.f32 %v5309, %v5321
  %v5323 = vpop.f32.mrf.mxu0
  %5324 = vdwg.mxu0
  %5325 = vmatpush.bf16.msra.mxu0 %v3062
  %5326 = vmatpush.bf16.msra.mxu0 %v3043
  %5327 = vmatpush.bf16.msra.mxu0 %v3024
  %5328 = vmatpush.bf16.msra.mxu0 %v3005
  %5329 = vmatpush.bf16.msra.mxu0 %v2986
  %5330 = vmatpush.bf16.msra.mxu0 %v2967
  %5331 = vmatpush.bf16.msra.mxu0 %v2948
  %5332 = vmatpush.bf16.msra.mxu0 %v2929
  %5333 = vmatmul.bf16.gmra.mxu0 %v816
  %v5334 = vpop.f32.mrf.mxu0
  %v5335 = vadd.f32 %v786, %v5334
  %v5336 = vpop.f32.mrf.mxu0
  %5337 = vdwg.mxu0
  %5338 = vmatpush.bf16.msra.mxu0 %v3214
  %5339 = vmatpush.bf16.msra.mxu0 %v3195
  %5340 = vmatpush.bf16.msra.mxu0 %v3176
  %5341 = vmatpush.bf16.msra.mxu0 %v3157
  %5342 = vmatpush.bf16.msra.mxu0 %v3138
  %5343 = vmatpush.bf16.msra.mxu0 %v3119
  %5344 = vmatpush.bf16.msra.mxu0 %v3100
  %5345 = vmatpush.bf16.msra.mxu0 %v3081
  %5346 = vmatmul.bf16.gmra.mxu0 %v817
  %v5347 = vpop.f32.mrf.mxu0
  %v5348 = vadd.f32 %v5335, %v5347
  %v5349 = vpop.f32.mrf.mxu0
  %5350 = vdwg.mxu0
  %5351 = vmatpush.bf16.msra.mxu0 %v3366
  %5352 = vmatpush.bf16.msra.mxu0 %v3347
  %5353 = vmatpush.bf16.msra.mxu0 %v3328
  %5354 = vmatpush.bf16.msra.mxu0 %v3309
  %5355 = vmatpush.bf16.msra.mxu0 %v3290
  %5356 = vmatpush.bf16.msra.mxu0 %v3271
  %5357 = vmatpush.bf16.msra.mxu0 %v3252
  %5358 = vmatpush.bf16.msra.mxu0 %v3233
  %5359 = vmatmul.bf16.gmra.mxu0 %v818
  %v5360 = vpop.f32.mrf.mxu0
  %v5361 = vadd.f32 %v5348, %v5360
  %v5362 = vpop.f32.mrf.mxu0
  %5363 = vdwg.mxu0
  %5364 = vmatpush.bf16.msra.mxu0 %v3518
  %5365 = vmatpush.bf16.msra.mxu0 %v3499
  %5366 = vmatpush.bf16.msra.mxu0 %v3480
  %5367 = vmatpush.bf16.msra.mxu0 %v3461
  %5368 = vmatpush.bf16.msra.mxu0 %v3442
  %5369 = vmatpush.bf16.msra.mxu0 %v3423
  %5370 = vmatpush.bf16.msra.mxu0 %v3404
  %5371 = vmatpush.bf16.msra.mxu0 %v3385
  %5372 = vmatmul.bf16.gmra.mxu0 %v819
  %v5373 = vpop.f32.mrf.mxu0
  %v5374 = vadd.f32 %v5361, %v5373
  %v5375 = vpop.f32.mrf.mxu0
  %5376 = vdwg.mxu0
  %5377 = vmatpush.bf16.msra.mxu0 0
  %5378 = vmatpush.bf16.msra.mxu0 0
  %5379 = vmatpush.bf16.msra.mxu0 0
  %5380 = vmatpush.bf16.msra.mxu0 0
  %5381 = vmatpush.bf16.msra.mxu0 %v3594
  %5382 = vmatpush.bf16.msra.mxu0 %v3575
  %5383 = vmatpush.bf16.msra.mxu0 %v3556
  %5384 = vmatpush.bf16.msra.mxu0 %v3537
  %5385 = vmatmul.bf16.gmra.mxu0 %v4283
  %v5386 = vpop.f32.mrf.mxu0
  %v5387 = vadd.f32 %v5374, %v5386
  %v5388 = vpop.f32.mrf.mxu0
  %5389 = vdwg.mxu0
  %5390 = vmatpush.bf16.msra.mxu0 %v3063
  %5391 = vmatpush.bf16.msra.mxu0 %v3044
  %5392 = vmatpush.bf16.msra.mxu0 %v3025
  %5393 = vmatpush.bf16.msra.mxu0 %v3006
  %5394 = vmatpush.bf16.msra.mxu0 %v2987
  %5395 = vmatpush.bf16.msra.mxu0 %v2968
  %5396 = vmatpush.bf16.msra.mxu0 %v2949
  %5397 = vmatpush.bf16.msra.mxu0 %v2930
  %5398 = vmatmul.bf16.gmra.mxu0 %v816
  %v5399 = vpop.f32.mrf.mxu0
  %v5400 = vadd.f32 %v787, %v5399
  %v5401 = vpop.f32.mrf.mxu0
  %5402 = vdwg.mxu0
  %5403 = vmatpush.bf16.msra.mxu0 %v3215
  %5404 = vmatpush.bf16.msra.mxu0 %v3196
  %5405 = vmatpush.bf16.msra.mxu0 %v3177
  %5406 = vmatpush.bf16.msra.mxu0 %v3158
  %5407 = vmatpush.bf16.msra.mxu0 %v3139
  %5408 = vmatpush.bf16.msra.mxu0 %v3120
  %5409 = vmatpush.bf16.msra.mxu0 %v3101
  %5410 = vmatpush.bf16.msra.mxu0 %v3082
  %5411 = vmatmul.bf16.gmra.mxu0 %v817
  %v5412 = vpop.f32.mrf.mxu0
  %v5413 = vadd.f32 %v5400, %v5412
  %v5414 = vpop.f32.mrf.mxu0
  %5415 = vdwg.mxu0
  %5416 = vmatpush.bf16.msra.mxu0 %v3367
  %5417 = vmatpush.bf16.msra.mxu0 %v3348
  %5418 = vmatpush.bf16.msra.mxu0 %v3329
  %5419 = vmatpush.bf16.msra.mxu0 %v3310
  %5420 = vmatpush.bf16.msra.mxu0 %v3291
  %5421 = vmatpush.bf16.msra.mxu0 %v3272
  %5422 = vmatpush.bf16.msra.mxu0 %v3253
  %5423 = vmatpush.bf16.msra.mxu0 %v3234
  %5424 = vmatmul.bf16.gmra.mxu0 %v818
  %v5425 = vpop.f32.mrf.mxu0
  %v5426 = vadd.f32 %v5413, %v5425
  %v5427 = vpop.f32.mrf.mxu0
  %5428 = vdwg.mxu0
  %5429 = vmatpush.bf16.msra.mxu0 %v3519
  %5430 = vmatpush.bf16.msra.mxu0 %v3500
  %5431 = vmatpush.bf16.msra.mxu0 %v3481
  %5432 = vmatpush.bf16.msra.mxu0 %v3462
  %5433 = vmatpush.bf16.msra.mxu0 %v3443
  %5434 = vmatpush.bf16.msra.mxu0 %v3424
  %5435 = vmatpush.bf16.msra.mxu0 %v3405
  %5436 = vmatpush.bf16.msra.mxu0 %v3386
  %5437 = vmatmul.bf16.gmra.mxu0 %v819
  %v5438 = vpop.f32.mrf.mxu0
  %v5439 = vadd.f32 %v5426, %v5438
  %v5440 = vpop.f32.mrf.mxu0
  %5441 = vdwg.mxu0
  %5442 = vmatpush.bf16.msra.mxu0 0
  %5443 = vmatpush.bf16.msra.mxu0 0
  %5444 = vmatpush.bf16.msra.mxu0 0
  %5445 = vmatpush.bf16.msra.mxu0 0
  %5446 = vmatpush.bf16.msra.mxu0 %v3595
  %5447 = vmatpush.bf16.msra.mxu0 %v3576
  %5448 = vmatpush.bf16.msra.mxu0 %v3557
  %5449 = vmatpush.bf16.msra.mxu0 %v3538
  %5450 = vmatmul.bf16.gmra.mxu0 %v4283
  %v5451 = vpop.f32.mrf.mxu0
  %v5452 = vadd.f32 %v5439, %v5451
  %v5453 = vpop.f32.mrf.mxu0
  %5454 = vdwg.mxu0
  %5455 = vmatpush.bf16.msra.mxu0 %v3064
  %5456 = vmatpush.bf16.msra.mxu0 %v3045
  %5457 = vmatpush.bf16.msra.mxu0 %v3026
  %5458 = vmatpush.bf16.msra.mxu0 %v3007
  %5459 = vmatpush.bf16.msra.mxu0 %v2988
  %5460 = vmatpush.bf16.msra.mxu0 %v2969
  %5461 = vmatpush.bf16.msra.mxu0 %v2950
  %5462 = vmatpush.bf16.msra.mxu0 %v2931
  %5463 = vmatmul.bf16.gmra.mxu0 %v816
  %v5464 = vpop.f32.mrf.mxu0
  %v5465 = vadd.f32 %v788, %v5464
  %v5466 = vpop.f32.mrf.mxu0
  %5467 = vdwg.mxu0
  %5468 = vmatpush.bf16.msra.mxu0 %v3216
  %5469 = vmatpush.bf16.msra.mxu0 %v3197
  %5470 = vmatpush.bf16.msra.mxu0 %v3178
  %5471 = vmatpush.bf16.msra.mxu0 %v3159
  %5472 = vmatpush.bf16.msra.mxu0 %v3140
  %5473 = vmatpush.bf16.msra.mxu0 %v3121
  %5474 = vmatpush.bf16.msra.mxu0 %v3102
  %5475 = vmatpush.bf16.msra.mxu0 %v3083
  %5476 = vmatmul.bf16.gmra.mxu0 %v817
  %v5477 = vpop.f32.mrf.mxu0
  %v5478 = vadd.f32 %v5465, %v5477
  %v5479 = vpop.f32.mrf.mxu0
  %5480 = vdwg.mxu0
  %5481 = vmatpush.bf16.msra.mxu0 %v3368
  %5482 = vmatpush.bf16.msra.mxu0 %v3349
  %5483 = vmatpush.bf16.msra.mxu0 %v3330
  %5484 = vmatpush.bf16.msra.mxu0 %v3311
  %5485 = vmatpush.bf16.msra.mxu0 %v3292
  %5486 = vmatpush.bf16.msra.mxu0 %v3273
  %5487 = vmatpush.bf16.msra.mxu0 %v3254
  %5488 = vmatpush.bf16.msra.mxu0 %v3235
  %5489 = vmatmul.bf16.gmra.mxu0 %v818
  %v5490 = vpop.f32.mrf.mxu0
  %v5491 = vadd.f32 %v5478, %v5490
  %v5492 = vpop.f32.mrf.mxu0
  %5493 = vdwg.mxu0
  %5494 = vmatpush.bf16.msra.mxu0 %v3520
  %5495 = vmatpush.bf16.msra.mxu0 %v3501
  %5496 = vmatpush.bf16.msra.mxu0 %v3482
  %5497 = vmatpush.bf16.msra.mxu0 %v3463
  %5498 = vmatpush.bf16.msra.mxu0 %v3444
  %5499 = vmatpush.bf16.msra.mxu0 %v3425
  %5500 = vmatpush.bf16.msra.mxu0 %v3406
  %5501 = vmatpush.bf16.msra.mxu0 %v3387
  %5502 = vmatmul.bf16.gmra.mxu0 %v819
  %v5503 = vpop.f32.mrf.mxu0
  %v5504 = vadd.f32 %v5491, %v5503
  %v5505 = vpop.f32.mrf.mxu0
  %5506 = vdwg.mxu0
  %5507 = vmatpush.bf16.msra.mxu0 0
  %5508 = vmatpush.bf16.msra.mxu0 0
  %5509 = vmatpush.bf16.msra.mxu0 0
  %5510 = vmatpush.bf16.msra.mxu0 0
  %5511 = vmatpush.bf16.msra.mxu0 %v3596
  %5512 = vmatpush.bf16.msra.mxu0 %v3577
  %5513 = vmatpush.bf16.msra.mxu0 %v3558
  %5514 = vmatpush.bf16.msra.mxu0 %v3539
  %5515 = vmatmul.bf16.gmra.mxu0 %v4283
  %v5516 = vpop.f32.mrf.mxu0
  %v5517 = vadd.f32 %v5504, %v5516
  %v5518 = vpop.f32.mrf.mxu0
  %5519 = vdwg.mxu0
  %v5520 = vmax.f32 %v4347, 0.0
  %v5521 = vmax.f32 %v4412, 0.0
  %v5522 = vmax.f32 %v4477, 0.0
  %v5523 = vmax.f32 %v4542, 0.0
  %v5524 = vmax.f32 %v4607, 0.0
  %v5525 = vmax.f32 %v4672, 0.0
  %v5526 = vmax.f32 %v4737, 0.0
  %v5527 = vmax.f32 %v4802, 0.0
  %v5528 = vmax.f32 %v4867, 0.0
  %v5529 = vmax.f32 %v4932, 0.0
  %v5530 = vmax.f32 %v4997, 0.0
  %v5531 = vmax.f32 %v5062, 0.0
  %v5532 = vmax.f32 %v5127, 0.0
  %v5533 = vmax.f32 %v5192, 0.0
  %v5534 = vmax.f32 %v5257, 0.0
  %v5535 = vmax.f32 %v5322, 0.0
  %v5536 = vmax.f32 %v5387, 0.0
  %v5537 = vmax.f32 %v5452, 0.0
  %v5538 = vmax.f32 %v5517, 0.0
  %v5539 = vpack.c.bf16 %v5520, %v5520
  %v5540 = vpack.c.bf16 %v5521, %v5521
  %v5541 = vpack.c.bf16 %v5522, %v5522
  %v5542 = vpack.c.bf16 %v5523, %v5523
  %v5543 = vpack.c.bf16 %v5524, %v5524
  %v5544 = vpack.c.bf16 %v5525, %v5525
  %v5545 = vpack.c.bf16 %v5526, %v5526
  %v5546 = vpack.c.bf16 %v5527, %v5527
  %v5547 = vpack.c.bf16 %v5528, %v5528
  %v5548 = vpack.c.bf16 %v5529, %v5529
  %v5549 = vpack.c.bf16 %v5530, %v5530
  %v5550 = vpack.c.bf16 %v5531, %v5531
  %v5551 = vpack.c.bf16 %v5532, %v5532
  %v5552 = vpack.c.bf16 %v5533, %v5533
  %v5553 = vpack.c.bf16 %v5534, %v5534
  %v5554 = vpack.c.bf16 %v5535, %v5535
  %v5555 = vpack.c.bf16 %v5536, %v5536
  %v5556 = vpack.c.bf16 %v5537, %v5537
  %v5557 = vpack.c.bf16 %v5538, %v5538
  %v5558 = vld [vmem:[%s3] sm:$0xff]
  %v5559 = vld [vmem:[%s3 + $0x8] sm:$0xff]
  %v5560 = vld [vmem:[%s3 + $0x10] sm:$0xf]
  %v5561 = vld [vmem:[%s3 + $0x14] sm:$0xff]
  %v5562 = vld [vmem:[%s3 + $0x1c] sm:$0xff]
  %v5563 = vld [vmem:[%s3 + $0x24] sm:$0xf]
  %v5564 = vld [vmem:[%s3 + $0x28] sm:$0xff]
  %v5565 = vld [vmem:[%s3 + $0x30] sm:$0xff]
  %v5566 = vld [vmem:[%s3 + $0x38] sm:$0xf]
  %v5567 = vld [vmem:[%s3 + $0x3c] sm:$0xff]
  %v5568 = vld [vmem:[%s3 + $0x44] sm:$0xff]
  %v5569 = vld [vmem:[%s3 + $0x4c] sm:$0xf]
  %v5570 = vld [vmem:[%s3 + $0x50] sm:$0xff]
  %v5571 = vld [vmem:[%s3 + $0x58] sm:$0xff]
  %v5572 = vld [vmem:[%s3 + $0x60] sm:$0xf]
  %v5573 = vld [vmem:[%s3 + $0x64] sm:$0xff]
  %v5574 = vld [vmem:[%s3 + $0x6c] sm:$0xff]
  %v5575 = vld [vmem:[%s3 + $0x74] sm:$0xf]
  %v5576 = vld [vmem:[%s3 + $0x78] sm:$0xff]
  %v5577 = vld [vmem:[%s3 + $0x80] sm:$0xff]
  %v5578 = vld [vmem:[%s3 + $0x88] sm:$0xf]
  %v5579 = vld [vmem:[%s3 + $0x8c] sm:$0xff]
  %v5580 = vld [vmem:[%s3 + $0x94] sm:$0xff]
  %v5581 = vld [vmem:[%s3 + $0x9c] sm:$0xf]
  %v5582 = vld [vmem:[%s3 + $0xa0] sm:$0xff]
  %v5583 = vld [vmem:[%s3 + $0xa8] sm:$0xff]
  %v5584 = vld [vmem:[%s3 + $0xb0] sm:$0xf]
  %v5585 = vld [vmem:[%s3 + $0xb4] sm:$0xff]
  %v5586 = vld [vmem:[%s3 + $0xbc] sm:$0xff]
  %v5587 = vld [vmem:[%s3 + $0xc4] sm:$0xf]
  %v5588 = vld [vmem:[%s3 + $0xc8] sm:$0xff]
  %v5589 = vld [vmem:[%s3 + $0xd0] sm:$0xff]
  %v5590 = vld [vmem:[%s3 + $0xd8] sm:$0xf]
  %v5591 = vld [vmem:[%s3 + $0xdc] sm:$0xff]
  %v5592 = vld [vmem:[%s3 + $0xe4] sm:$0xff]
  %v5593 = vld [vmem:[%s3 + $0xec] sm:$0xf]
  %v5594 = vld [vmem:[%s3 + $0xf0] sm:$0xff]
  %v5595 = vld [vmem:[%s3 + $0xf8] sm:$0xff]
  %v5596 = vld [vmem:[%s3 + $0x100] sm:$0xf]
  %v5597 = vld [vmem:[%s3 + $0x104] sm:$0xff]
  %v5598 = vld [vmem:[%s3 + $0x10c] sm:$0xff]
  %v5599 = vld [vmem:[%s3 + $0x114] sm:$0xf]
  %v5600 = vld [vmem:[%s3 + $0x118] sm:$0xff]
  %v5601 = vld [vmem:[%s3 + $0x120] sm:$0xff]
  %v5602 = vld [vmem:[%s3 + $0x128] sm:$0xf]
  %v5603 = vld [vmem:[%s3 + $0x12c] sm:$0xff]
  %v5604 = vld [vmem:[%s3 + $0x134] sm:$0xff]
  %v5605 = vld [vmem:[%s3 + $0x13c] sm:$0xf]
  %v5606 = vld [vmem:[%s3 + $0x140] sm:$0xff]
  %v5607 = vld [vmem:[%s3 + $0x148] sm:$0xff]
  %v5608 = vld [vmem:[%s3 + $0x150] sm:$0xf]
  %v5609 = vld [vmem:[%s3 + $0x154] sm:$0xff]
  %v5610 = vld [vmem:[%s3 + $0x15c] sm:$0xff]
  %v5611 = vld [vmem:[%s3 + $0x164] sm:$0xf]
  %v5612 = vld [vmem:[%s3 + $0x168] sm:$0xff]
  %v5613 = vld [vmem:[%s3 + $0x170] sm:$0xff]
  %v5614 = vld [vmem:[%s3 + $0x178] sm:$0xf]
  %v5615 = vld [vmem:[%s3 + $0x17c] sm:$0xff]
  %v5616 = vld [vmem:[%s3 + $0x184] sm:$0xff]
  %v5617 = vld [vmem:[%s3 + $0x18c] sm:$0xf]
  %v5618 = vld [vmem:[%s3 + $0x190] sm:$0xff]
  %v5619 = vld [vmem:[%s3 + $0x198] sm:$0xff]
  %v5620 = vld [vmem:[%s3 + $0x1a0] sm:$0xf]
  %v5621 = vld [vmem:[%s3 + $0x1a4] sm:$0xff]
  %v5622 = vld [vmem:[%s3 + $0x1ac] sm:$0xff]
  %v5623 = vld [vmem:[%s3 + $0x1b4] sm:$0xf]
  %v5624 = vld [vmem:[%s3 + $0x1b8] sm:$0xff]
  %v5625 = vld [vmem:[%s3 + $0x1c0] sm:$0xff]
  %v5626 = vld [vmem:[%s3 + $0x1c8] sm:$0xf]
  %v5627 = vld [vmem:[%s3 + $0x1cc] sm:$0xff]
  %v5628 = vld [vmem:[%s3 + $0x1d4] sm:$0xff]
  %v5629 = vld [vmem:[%s3 + $0x1dc] sm:$0xf]
  %v5630 = vld [vmem:[%s3 + $0x1e0] sm:$0xff]
  %v5631 = vld [vmem:[%s3 + $0x1e8] sm:$0xff]
  %v5632 = vld [vmem:[%s3 + $0x1f0] sm:$0xf]
  %v5633 = vld [vmem:[%s3 + $0x1f4] sm:$0xff]
  %v5634 = vld [vmem:[%s3 + $0x1fc] sm:$0xff]
  %v5635 = vld [vmem:[%s3 + $0x204] sm:$0xf]
  %v5636 = vld [vmem:[%s3 + $0x208] sm:$0xff]
  %v5637 = vld [vmem:[%s3 + $0x210] sm:$0xff]
  %v5638 = vld [vmem:[%s3 + $0x218] sm:$0xf]
  %v5639 = vld [vmem:[%s3 + $0x21c] sm:$0xff]
  %v5640 = vld [vmem:[%s3 + $0x224] sm:$0xff]
  %v5641 = vld [vmem:[%s3 + $0x22c] sm:$0xf]
  %v5642 = vld [vmem:[%s3 + $0x230] sm:$0xff]
  %v5643 = vld [vmem:[%s3 + $0x238] sm:$0xff]
  %v5644 = vld [vmem:[%s3 + $0x240] sm:$0xf]
  %v5645 = vld [vmem:[%s3 + $0x244] sm:$0xff]
  %v5646 = vld [vmem:[%s3 + $0x24c] sm:$0xff]
  %v5647 = vld [vmem:[%s3 + $0x254] sm:$0xf]
  %v5648 = vld [vmem:[%s3 + $0x258] sm:$0xff]
  %v5649 = vld [vmem:[%s3 + $0x260] sm:$0xff]
  %v5650 = vld [vmem:[%s3 + $0x268] sm:$0xf]
  %v5651 = vld [vmem:[%s3 + $0x26c] sm:$0xff]
  %v5652 = vld [vmem:[%s3 + $0x274] sm:$0xff]
  %v5653 = vld [vmem:[%s3 + $0x27c] sm:$0xf]
  %v5654 = vld [vmem:[%s3 + $0x280] sm:$0xff]
  %v5655 = vld [vmem:[%s3 + $0x288] sm:$0xff]
  %v5656 = vld [vmem:[%s3 + $0x290] sm:$0xf]
  %v5657 = vld [vmem:[%s3 + $0x294] sm:$0xff]
  %v5658 = vld [vmem:[%s3 + $0x29c] sm:$0xff]
  %v5659 = vld [vmem:[%s3 + $0x2a4] sm:$0xf]
  %v5660 = vld [vmem:[%s3 + $0x2a8] sm:$0xff]
  %v5661 = vld [vmem:[%s3 + $0x2b0] sm:$0xff]
  %v5662 = vld [vmem:[%s3 + $0x2b8] sm:$0xf]
  %v5663 = vld [vmem:[%s3 + $0x2bc] sm:$0xff]
  %v5664 = vld [vmem:[%s3 + $0x2c4] sm:$0xff]
  %v5665 = vld [vmem:[%s3 + $0x2cc] sm:$0xf]
  %v5666 = vld [vmem:[%s3 + $0x2d0] sm:$0xff]
  %v5667 = vld [vmem:[%s3 + $0x2d8] sm:$0xff]
  %v5668 = vld [vmem:[%s3 + $0x2e0] sm:$0xf]
  %v5669 = vld [vmem:[%s3 + $0x2e4] sm:$0xff]
  %v5670 = vld [vmem:[%s3 + $0x2ec] sm:$0xff]
  %v5671 = vld [vmem:[%s3 + $0x2f4] sm:$0xf]
  %v5672 = vld [vmem:[%s3 + $0x2f8] sm:$0xff]
  %v5673 = vld [vmem:[%s3 + $0x300] sm:$0xff]
  %v5674 = vld [vmem:[%s3 + $0x308] sm:$0xf]
  %v5675 = vld [vmem:[%s3 + $0x30c] sm:$0xff]
  %v5676 = vld [vmem:[%s3 + $0x314] sm:$0xff]
  %v5677 = vld [vmem:[%s3 + $0x31c] sm:$0xf]
  %v5678 = vld [vmem:[%s3 + $0x320] sm:$0xff]
  %v5679 = vld [vmem:[%s3 + $0x328] sm:$0xff]
  %v5680 = vld [vmem:[%s3 + $0x330] sm:$0xf]
  %v5681 = vld [vmem:[%s3 + $0x334] sm:$0xff]
  %v5682 = vld [vmem:[%s3 + $0x33c] sm:$0xff]
  %v5683 = vld [vmem:[%s3 + $0x344] sm:$0xf]
  %v5684 = vld [vmem:[%s3 + $0x348] sm:$0xff]
  %v5685 = vld [vmem:[%s3 + $0x350] sm:$0xff]
  %v5686 = vld [vmem:[%s3 + $0x358] sm:$0xf]
  %v5687 = vld [vmem:[%s3 + $0x35c] sm:$0xff]
  %v5688 = vld [vmem:[%s3 + $0x364] sm:$0xff]
  %v5689 = vld [vmem:[%s3 + $0x36c] sm:$0xf]
  %v5690 = vld [vmem:[%s3 + $0x370] sm:$0xff]
  %v5691 = vld [vmem:[%s3 + $0x378] sm:$0xff]
  %v5692 = vld [vmem:[%s3 + $0x380] sm:$0xf]
  %v5693 = vld [vmem:[%s3 + $0x384] sm:$0xff]
  %v5694 = vld [vmem:[%s3 + $0x38c] sm:$0xff]
  %v5695 = vld [vmem:[%s3 + $0x394] sm:$0xf]
  %v5696 = vld [vmem:[%s3 + $0x398] sm:$0xff]
  %v5697 = vld [vmem:[%s3 + $0x3a0] sm:$0xff]
  %v5698 = vld [vmem:[%s3 + $0x3a8] sm:$0xf]
  %v5699 = vld [vmem:[%s3 + $0x3ac] sm:$0xff]
  %v5700 = vld [vmem:[%s3 + $0x3b4] sm:$0xff]
  %v5701 = vld [vmem:[%s3 + $0x3bc] sm:$0xf]
  %v5702 = vld [vmem:[%s3 + $0x3c0] sm:$0xff]
  %v5703 = vld [vmem:[%s3 + $0x3c8] sm:$0xff]
  %v5704 = vld [vmem:[%s3 + $0x3d0] sm:$0xf]
  %v5705 = vld [vmem:[%s3 + $0x3d4] sm:$0xff]
  %v5706 = vld [vmem:[%s3 + $0x3dc] sm:$0xff]
  %v5707 = vld [vmem:[%s3 + $0x3e4] sm:$0xf]
  %v5708 = vld [vmem:[%s3 + $0x3e8] sm:$0xff]
  %v5709 = vld [vmem:[%s3 + $0x3f0] sm:$0xff]
  %v5710 = vld [vmem:[%s3 + $0x3f8] sm:$0xf]
  %v5711 = vld [vmem:[%s3 + $0x3fc] sm:$0xff]
  %v5712 = vld [vmem:[%s3 + $0x404] sm:$0xff]
  %v5713 = vld [vmem:[%s3 + $0x40c] sm:$0xf]
  %v5714 = vld [vmem:[%s3 + $0x410] sm:$0xff]
  %v5715 = vld [vmem:[%s3 + $0x418] sm:$0xff]
  %v5716 = vld [vmem:[%s3 + $0x420] sm:$0xf]
  %v5717 = vld [vmem:[%s3 + $0x424] sm:$0xff]
  %v5718 = vld [vmem:[%s3 + $0x42c] sm:$0xff]
  %v5719 = vld [vmem:[%s3 + $0x434] sm:$0xf]
  %v5720 = vld [vmem:[%s3 + $0x438] sm:$0xff]
  %v5721 = vld [vmem:[%s3 + $0x440] sm:$0xff]
  %v5722 = vld [vmem:[%s3 + $0x448] sm:$0xf]
  %v5723 = vld [vmem:[%s3 + $0x44c] sm:$0xff]
  %v5724 = vld [vmem:[%s3 + $0x454] sm:$0xff]
  %v5725 = vld [vmem:[%s3 + $0x45c] sm:$0xf]
  %v5726 = vld [vmem:[%s3 + $0x460] sm:$0xff]
  %v5727 = vld [vmem:[%s3 + $0x468] sm:$0xff]
  %v5728 = vld [vmem:[%s3 + $0x470] sm:$0xf]
  %v5729 = vld [vmem:[%s3 + $0x474] sm:$0xff]
  %v5730 = vld [vmem:[%s3 + $0x47c] sm:$0xff]
  %v5731 = vld [vmem:[%s3 + $0x484] sm:$0xf]
  %v5732 = vld [vmem:[%s3 + $0x488] sm:$0xff]
  %v5733 = vld [vmem:[%s3 + $0x490] sm:$0xff]
  %v5734 = vld [vmem:[%s3 + $0x498] sm:$0xf]
  %v5735 = vld [vmem:[%s3 + $0x49c] sm:$0xff]
  %v5736 = vld [vmem:[%s3 + $0x4a4] sm:$0xff]
  %v5737 = vld [vmem:[%s3 + $0x4ac] sm:$0xf]
  %v5738 = vld [vmem:[%s3 + $0x4b0] sm:$0xff]
  %v5739 = vld [vmem:[%s3 + $0x4b8] sm:$0xff]
  %v5740 = vld [vmem:[%s3 + $0x4c0] sm:$0xf]
  %v5741 = vld [vmem:[%s3 + $0x4c4] sm:$0xff]
  %v5742 = vld [vmem:[%s3 + $0x4cc] sm:$0xff]
  %v5743 = vld [vmem:[%s3 + $0x4d4] sm:$0xf]
  %v5744 = vld [vmem:[%s3 + $0x4d8] sm:$0xff]
  %v5745 = vld [vmem:[%s3 + $0x4e0] sm:$0xff]
  %v5746 = vld [vmem:[%s3 + $0x4e8] sm:$0xf]
  %v5747 = vld [vmem:[%s3 + $0x4ec] sm:$0xff]
  %v5748 = vld [vmem:[%s3 + $0x4f4] sm:$0xff]
  %v5749 = vld [vmem:[%s3 + $0x4fc] sm:$0xf]
  %v5750 = vld [vmem:[%s3 + $0x500] sm:$0xff]
  %v5751 = vld [vmem:[%s3 + $0x508] sm:$0xff]
  %v5752 = vld [vmem:[%s3 + $0x510] sm:$0xf]
  %v5753 = vld [vmem:[%s3 + $0x514] sm:$0xff]
  %v5754 = vld [vmem:[%s3 + $0x51c] sm:$0xff]
  %v5755 = vld [vmem:[%s3 + $0x524] sm:$0xf]
  %v5756 = vld [vmem:[%s3 + $0x528] sm:$0xff]
  %v5757 = vld [vmem:[%s3 + $0x530] sm:$0xff]
  %v5758 = vld [vmem:[%s3 + $0x538] sm:$0xf]
  %v5759 = vld [vmem:[%s3 + $0x53c] sm:$0xff]
  %v5760 = vld [vmem:[%s3 + $0x544] sm:$0xff]
  %v5761 = vld [vmem:[%s3 + $0x54c] sm:$0xf]
  %v5762 = vld [vmem:[%s3 + $0x550] sm:$0xff]
  %v5763 = vld [vmem:[%s3 + $0x558] sm:$0xff]
  %v5764 = vld [vmem:[%s3 + $0x560] sm:$0xf]
  %v5765 = vld [vmem:[%s3 + $0x564] sm:$0xff]
  %v5766 = vld [vmem:[%s3 + $0x56c] sm:$0xff]
  %v5767 = vld [vmem:[%s3 + $0x574] sm:$0xf]
  %v5768 = vld [vmem:[%s3 + $0x578] sm:$0xff]
  %v5769 = vld [vmem:[%s3 + $0x580] sm:$0xff]
  %v5770 = vld [vmem:[%s3 + $0x588] sm:$0xf]
  %v5771 = vld [vmem:[%s3 + $0x58c] sm:$0xff]
  %v5772 = vld [vmem:[%s3 + $0x594] sm:$0xff]
  %v5773 = vld [vmem:[%s3 + $0x59c] sm:$0xf]
  %v5774 = vld [vmem:[%s3 + $0x5a0] sm:$0xff]
  %v5775 = vld [vmem:[%s3 + $0x5a8] sm:$0xff]
  %v5776 = vld [vmem:[%s3 + $0x5b0] sm:$0xf]
  %v5777 = vld [vmem:[%s3 + $0x5b4] sm:$0xff]
  %v5778 = vld [vmem:[%s3 + $0x5bc] sm:$0xff]
  %v5779 = vld [vmem:[%s3 + $0x5c4] sm:$0xf]
  %v5780 = vld [vmem:[%s3 + $0x5c8] sm:$0xff]
  %v5781 = vld [vmem:[%s3 + $0x5d0] sm:$0xff]
  %v5782 = vld [vmem:[%s3 + $0x5d8] sm:$0xf]
  %v5783 = vld [vmem:[%s3 + $0x5dc] sm:$0xff]
  %v5784 = vld [vmem:[%s3 + $0x5e4] sm:$0xff]
  %v5785 = vld [vmem:[%s3 + $0x5ec] sm:$0xf]
  %v5786 = vld [vmem:[%s3 + $0x5f0] sm:$0xff]
  %v5787 = vld [vmem:[%s3 + $0x5f8] sm:$0xff]
  %v5788 = vld [vmem:[%s3 + $0x600] sm:$0xf]
  %v5789 = vld [vmem:[%s3 + $0x604] sm:$0xff]
  %v5790 = vld [vmem:[%s3 + $0x60c] sm:$0xff]
  %v5791 = vld [vmem:[%s3 + $0x614] sm:$0xf]
  %v5792 = vld [vmem:[%s3 + $0x618] sm:$0xff]
  %v5793 = vld [vmem:[%s3 + $0x620] sm:$0xff]
  %v5794 = vld [vmem:[%s3 + $0x628] sm:$0xf]
  %v5795 = vld [vmem:[%s3 + $0x62c] sm:$0xff]
  %v5796 = vld [vmem:[%s3 + $0x634] sm:$0xff]
  %v5797 = vld [vmem:[%s3 + $0x63c] sm:$0xf]
  %v5798 = vld [vmem:[%s3 + $0x640] sm:$0xff]
  %v5799 = vld [vmem:[%s3 + $0x648] sm:$0xff]
  %v5800 = vld [vmem:[%s3 + $0x650] sm:$0xf]
  %v5801 = vld [vmem:[%s3 + $0x654] sm:$0xff]
  %v5802 = vld [vmem:[%s3 + $0x65c] sm:$0xff]
  %v5803 = vld [vmem:[%s3 + $0x664] sm:$0xf]
  %v5804 = vld [vmem:[%s3 + $0x668] sm:$0xff]
  %v5805 = vld [vmem:[%s3 + $0x670] sm:$0xff]
  %v5806 = vld [vmem:[%s3 + $0x678] sm:$0xf]
  %v5807 = vld [vmem:[%s3 + $0x67c] sm:$0xff]
  %v5808 = vld [vmem:[%s3 + $0x684] sm:$0xff]
  %v5809 = vld [vmem:[%s3 + $0x68c] sm:$0xf]
  %v5810 = vld [vmem:[%s3 + $0x690] sm:$0xff]
  %v5811 = vld [vmem:[%s3 + $0x698] sm:$0xff]
  %v5812 = vld [vmem:[%s3 + $0x6a0] sm:$0xf]
  %v5813 = vld [vmem:[%s3 + $0x6a4] sm:$0xff]
  %v5814 = vld [vmem:[%s3 + $0x6ac] sm:$0xff]
  %v5815 = vld [vmem:[%s3 + $0x6b4] sm:$0xf]
  %v5816 = vld [vmem:[%s3 + $0x6b8] sm:$0xff]
  %v5817 = vld [vmem:[%s3 + $0x6c0] sm:$0xff]
  %v5818 = vld [vmem:[%s3 + $0x6c8] sm:$0xf]
  %v5819 = vld [vmem:[%s3 + $0x6cc] sm:$0xff]
  %v5820 = vld [vmem:[%s3 + $0x6d4] sm:$0xff]
  %v5821 = vld [vmem:[%s3 + $0x6dc] sm:$0xf]
  %v5822 = vld [vmem:[%s3 + $0x6e0] sm:$0xff]
  %v5823 = vld [vmem:[%s3 + $0x6e8] sm:$0xff]
  %v5824 = vld [vmem:[%s3 + $0x6f0] sm:$0xf]
  %v5825 = vld [vmem:[%s3 + $0x6f4] sm:$0xff]
  %v5826 = vld [vmem:[%s3 + $0x6fc] sm:$0xff]
  %v5827 = vld [vmem:[%s3 + $0x704] sm:$0xf]
  %v5828 = vld [vmem:[%s3 + $0x708] sm:$0xff]
  %v5829 = vld [vmem:[%s3 + $0x710] sm:$0xff]
  %v5830 = vld [vmem:[%s3 + $0x718] sm:$0xf]
  %v5831 = vld [vmem:[%s3 + $0x71c] sm:$0xff]
  %v5832 = vld [vmem:[%s3 + $0x724] sm:$0xff]
  %v5833 = vld [vmem:[%s3 + $0x72c] sm:$0xf]
  %v5834 = vld [vmem:[%s3 + $0x730] sm:$0xff]
  %v5835 = vld [vmem:[%s3 + $0x738] sm:$0xff]
  %v5836 = vld [vmem:[%s3 + $0x740] sm:$0xf]
  %v5837 = vld [vmem:[%s3 + $0x744] sm:$0xff]
  %v5838 = vld [vmem:[%s3 + $0x74c] sm:$0xff]
  %v5839 = vld [vmem:[%s3 + $0x754] sm:$0xf]
  %v5840 = vld [vmem:[%s3 + $0x758] sm:$0xff]
  %v5841 = vld [vmem:[%s3 + $0x760] sm:$0xff]
  %v5842 = vld [vmem:[%s3 + $0x768] sm:$0xf]
  %v5843 = vld [vmem:[%s3 + $0x76c] sm:$0xff]
  %v5844 = vld [vmem:[%s3 + $0x774] sm:$0xff]
  %v5845 = vld [vmem:[%s3 + $0x77c] sm:$0xf]
  %v5846 = vld [vmem:[%s3 + $0x780] sm:$0xff]
  %v5847 = vld [vmem:[%s3 + $0x788] sm:$0xff]
  %v5848 = vld [vmem:[%s3 + $0x790] sm:$0xf]
  %v5849 = vld [vmem:[%s3 + $0x794] sm:$0xff]
  %v5850 = vld [vmem:[%s3 + $0x79c] sm:$0xff]
  %v5851 = vld [vmem:[%s3 + $0x7a4] sm:$0xf]
  %v5852 = vld [vmem:[%s3 + $0x7a8] sm:$0xff]
  %v5853 = vld [vmem:[%s3 + $0x7b0] sm:$0xff]
  %v5854 = vld [vmem:[%s3 + $0x7b8] sm:$0xf]
  %v5855 = vld [vmem:[%s3 + $0x7bc] sm:$0xff]
  %v5856 = vld [vmem:[%s3 + $0x7c4] sm:$0xff]
  %v5857 = vld [vmem:[%s3 + $0x7cc] sm:$0xf]
  %v5858 = vld [vmem:[%s3 + $0x7d0] sm:$0xff]
  %v5859 = vld [vmem:[%s3 + $0x7d8] sm:$0xff]
  %v5860 = vld [vmem:[%s3 + $0x7e0] sm:$0xf]
  %v5861 = vld [vmem:[%s3 + $0x7e4] sm:$0xff]
  %v5862 = vld [vmem:[%s3 + $0x7ec] sm:$0xff]
  %v5863 = vld [vmem:[%s3 + $0x7f4] sm:$0xf]
  %v5864 = vld [vmem:[%s3 + $0x7f8] sm:$0xff]
  %v5865 = vld [vmem:[%s3 + $0x800] sm:$0xff]
  %v5866 = vld [vmem:[%s3 + $0x808] sm:$0xf]
  %v5867 = vld [vmem:[%s3 + $0x80c] sm:$0xff]
  %v5868 = vld [vmem:[%s3 + $0x814] sm:$0xff]
  %v5869 = vld [vmem:[%s3 + $0x81c] sm:$0xf]
  %v5870 = vld [vmem:[%s3 + $0x820] sm:$0xff]
  %v5871 = vld [vmem:[%s3 + $0x828] sm:$0xff]
  %v5872 = vld [vmem:[%s3 + $0x830] sm:$0xf]
  %v5873 = vld [vmem:[%s3 + $0x834] sm:$0xff]
  %v5874 = vld [vmem:[%s3 + $0x83c] sm:$0xff]
  %v5875 = vld [vmem:[%s3 + $0x844] sm:$0xf]
  %v5876 = vld [vmem:[%s3 + $0x848] sm:$0xff]
  %v5877 = vld [vmem:[%s3 + $0x850] sm:$0xff]
  %v5878 = vld [vmem:[%s3 + $0x858] sm:$0xf]
  %v5879 = vld [vmem:[%s3 + $0x85c] sm:$0xff]
  %v5880 = vld [vmem:[%s3 + $0x864] sm:$0xff]
  %v5881 = vld [vmem:[%s3 + $0x86c] sm:$0xf]
  %v5882 = vld [vmem:[%s3 + $0x870] sm:$0xff]
  %v5883 = vld [vmem:[%s3 + $0x878] sm:$0xff]
  %v5884 = vld [vmem:[%s3 + $0x880] sm:$0xf]
  %v5885 = vld [vmem:[%s3 + $0x884] sm:$0xff]
  %v5886 = vld [vmem:[%s3 + $0x88c] sm:$0xff]
  %v5887 = vld [vmem:[%s3 + $0x894] sm:$0xf]
  %v5888 = vld [vmem:[%s3 + $0x898] sm:$0xff]
  %v5889 = vld [vmem:[%s3 + $0x8a0] sm:$0xff]
  %v5890 = vld [vmem:[%s3 + $0x8a8] sm:$0xf]
  %v5891 = vld [vmem:[%s3 + $0x8ac] sm:$0xff]
  %v5892 = vld [vmem:[%s3 + $0x8b4] sm:$0xff]
  %v5893 = vld [vmem:[%s3 + $0x8bc] sm:$0xf]
  %v5894 = vld [vmem:[%s3 + $0x8c0] sm:$0xff]
  %v5895 = vld [vmem:[%s3 + $0x8c8] sm:$0xff]
  %v5896 = vld [vmem:[%s3 + $0x8d0] sm:$0xf]
  %v5897 = vld [vmem:[%s3 + $0x8d4] sm:$0xff]
  %v5898 = vld [vmem:[%s3 + $0x8dc] sm:$0xff]
  %v5899 = vld [vmem:[%s3 + $0x8e4] sm:$0xf]
  %v5900 = vld [vmem:[%s3 + $0x8e8] sm:$0xff]
  %v5901 = vld [vmem:[%s3 + $0x8f0] sm:$0xff]
  %v5902 = vld [vmem:[%s3 + $0x8f8] sm:$0xf]
  %v5903 = vld [vmem:[%s3 + $0x8fc] sm:$0xff]
  %v5904 = vld [vmem:[%s3 + $0x904] sm:$0xff]
  %v5905 = vld [vmem:[%s3 + $0x90c] sm:$0xf]
  %v5906 = vld [vmem:[%s3 + $0x910] sm:$0xff]
  %v5907 = vld [vmem:[%s3 + $0x918] sm:$0xff]
  %v5908 = vld [vmem:[%s3 + $0x920] sm:$0xf]
  %v5909 = vld [vmem:[%s3 + $0x924] sm:$0xff]
  %v5910 = vld [vmem:[%s3 + $0x92c] sm:$0xff]
  %v5911 = vld [vmem:[%s3 + $0x934] sm:$0xf]
  %v5912 = vld [vmem:[%s3 + $0x938] sm:$0xff]
  %v5913 = vld [vmem:[%s3 + $0x940] sm:$0xff]
  %v5914 = vld [vmem:[%s3 + $0x948] sm:$0xf]
  %v5915 = vld [vmem:[%s3 + $0x94c] sm:$0xff]
  %v5916 = vld [vmem:[%s3 + $0x954] sm:$0xff]
  %v5917 = vld [vmem:[%s3 + $0x95c] sm:$0xf]
  %v5918 = vld [vmem:[%s3 + $0x960] sm:$0xff]
  %v5919 = vld [vmem:[%s3 + $0x968] sm:$0xff]
  %v5920 = vld [vmem:[%s3 + $0x970] sm:$0xf]
  %v5921 = vld [vmem:[%s3 + $0x974] sm:$0xff]
  %v5922 = vld [vmem:[%s3 + $0x97c] sm:$0xff]
  %v5923 = vld [vmem:[%s3 + $0x984] sm:$0xf]
  %v5924 = vld [vmem:[%s3 + $0x988] sm:$0xff]
  %v5925 = vld [vmem:[%s3 + $0x990] sm:$0xff]
  %v5926 = vld [vmem:[%s3 + $0x998] sm:$0xf]
  %v5927 = vld [vmem:[%s3 + $0x99c] sm:$0xff]
  %v5928 = vld [vmem:[%s3 + $0x9a4] sm:$0xff]
  %v5929 = vld [vmem:[%s3 + $0x9ac] sm:$0xf]
  %v5930 = vld [vmem:[%s3 + $0x9b0] sm:$0xff]
  %v5931 = vld [vmem:[%s3 + $0x9b8] sm:$0xff]
  %v5932 = vld [vmem:[%s3 + $0x9c0] sm:$0xf]
  %v5933 = vld [vmem:[%s3 + $0x9c4] sm:$0xff]
  %v5934 = vld [vmem:[%s3 + $0x9cc] sm:$0xff]
  %v5935 = vld [vmem:[%s3 + $0x9d4] sm:$0xf]
  %v5936 = vld [vmem:[%s3 + $0x9d8] sm:$0xff]
  %v5937 = vld [vmem:[%s3 + $0x9e0] sm:$0xff]
  %v5938 = vld [vmem:[%s3 + $0x9e8] sm:$0xf]
  %v5939 = vld [vmem:[%s3 + $0x9ec] sm:$0xff]
  %v5940 = vld [vmem:[%s3 + $0x9f4] sm:$0xff]
  %v5941 = vld [vmem:[%s3 + $0x9fc] sm:$0xf]
  %v5942 = vld [vmem:[%s3 + $0xa00] sm:$0xff]
  %v5943 = vld [vmem:[%s3 + $0xa08] sm:$0xff]
  %v5944 = vld [vmem:[%s3 + $0xa10] sm:$0xf]
  %v5945 = vld [vmem:[%s3 + $0xa14] sm:$0xff]
  %v5946 = vld [vmem:[%s3 + $0xa1c] sm:$0xff]
  %v5947 = vld [vmem:[%s3 + $0xa24] sm:$0xf]
  %v5948 = vld [vmem:[%s3 + $0xa28] sm:$0xff]
  %v5949 = vld [vmem:[%s3 + $0xa30] sm:$0xff]
  %v5950 = vld [vmem:[%s3 + $0xa38] sm:$0xf]
  %v5951 = vld [vmem:[%s3 + $0xa3c] sm:$0xff]
  %v5952 = vld [vmem:[%s3 + $0xa44] sm:$0xff]
  %v5953 = vld [vmem:[%s3 + $0xa4c] sm:$0xf]
  %v5954 = vld [vmem:[%s3 + $0xa50] sm:$0xff]
  %v5955 = vld [vmem:[%s3 + $0xa58] sm:$0xff]
  %v5956 = vld [vmem:[%s3 + $0xa60] sm:$0xf]
  %v5957 = vld [vmem:[%s3 + $0xa64] sm:$0xff]
  %v5958 = vld [vmem:[%s3 + $0xa6c] sm:$0xff]
  %v5959 = vld [vmem:[%s3 + $0xa74] sm:$0xf]
  %v5960 = vld [vmem:[%s3 + $0xa78] sm:$0xff]
  %v5961 = vld [vmem:[%s3 + $0xa80] sm:$0xff]
  %v5962 = vld [vmem:[%s3 + $0xa88] sm:$0xf]
  %v5963 = vld [vmem:[%s3 + $0xa8c] sm:$0xff]
  %v5964 = vld [vmem:[%s3 + $0xa94] sm:$0xff]
  %v5965 = vld [vmem:[%s3 + $0xa9c] sm:$0xf]
  %v5966 = vld [vmem:[%s3 + $0xaa0] sm:$0xff]
  %v5967 = vld [vmem:[%s3 + $0xaa8] sm:$0xff]
  %v5968 = vld [vmem:[%s3 + $0xab0] sm:$0xf]
  %v5969 = vld [vmem:[%s3 + $0xab4] sm:$0xff]
  %v5970 = vld [vmem:[%s3 + $0xabc] sm:$0xff]
  %v5971 = vld [vmem:[%s3 + $0xac4] sm:$0xf]
  %v5972 = vld [vmem:[%s3 + $0xac8] sm:$0xff]
  %v5973 = vld [vmem:[%s3 + $0xad0] sm:$0xff]
  %v5974 = vld [vmem:[%s3 + $0xad8] sm:$0xf]
  %v5975 = vld [vmem:[%s3 + $0xadc] sm:$0xff]
  %v5976 = vld [vmem:[%s3 + $0xae4] sm:$0xff]
  %v5977 = vld [vmem:[%s3 + $0xaec] sm:$0xf]
  %v5978 = vld [vmem:[%s3 + $0xaf0] sm:$0xff]
  %v5979 = vld [vmem:[%s3 + $0xaf8] sm:$0xff]
  %v5980 = vld [vmem:[%s3 + $0xb00] sm:$0xf]
  %v5981 = vld [vmem:[%s3 + $0xb04] sm:$0xff]
  %v5982 = vld [vmem:[%s3 + $0xb0c] sm:$0xff]
  %v5983 = vld [vmem:[%s3 + $0xb14] sm:$0xf]
  %v5984 = vld [vmem:[%s3 + $0xb18] sm:$0xff]
  %v5985 = vld [vmem:[%s3 + $0xb20] sm:$0xff]
  %v5986 = vld [vmem:[%s3 + $0xb28] sm:$0xf]
  %v5987 = vld [vmem:[%s3 + $0xb2c] sm:$0xff]
  %v5988 = vld [vmem:[%s3 + $0xb34] sm:$0xff]
  %v5989 = vld [vmem:[%s3 + $0xb3c] sm:$0xf]
  %v5990 = vld [vmem:[%s3 + $0xb40] sm:$0xff]
  %v5991 = vld [vmem:[%s3 + $0xb48] sm:$0xff]
  %v5992 = vld [vmem:[%s3 + $0xb50] sm:$0xf]
  %v5993 = vld [vmem:[%s3 + $0xb54] sm:$0xff]
  %v5994 = vld [vmem:[%s3 + $0xb5c] sm:$0xff]
  %v5995 = vld [vmem:[%s3 + $0xb64] sm:$0xf]
  %v5996 = vld [vmem:[%s3 + $0xb68] sm:$0xff]
  %v5997 = vld [vmem:[%s3 + $0xb70] sm:$0xff]
  %v5998 = vld [vmem:[%s3 + $0xb78] sm:$0xf]
  %v5999 = vld [vmem:[%s3 + $0xb7c] sm:$0xff]
  %v6000 = vld [vmem:[%s3 + $0xb84] sm:$0xff]
  %v6001 = vld [vmem:[%s3 + $0xb8c] sm:$0xf]
  %v6002 = vld [vmem:[%s3 + $0xb90] sm:$0xff]
  %v6003 = vld [vmem:[%s3 + $0xb98] sm:$0xff]
  %v6004 = vld [vmem:[%s3 + $0xba0] sm:$0xf]
  %v6005 = vld [vmem:[%s3 + $0xba4] sm:$0xff]
  %v6006 = vld [vmem:[%s3 + $0xbac] sm:$0xff]
  %v6007 = vld [vmem:[%s3 + $0xbb4] sm:$0xf]
  %v6008 = vld [vmem:[%s3 + $0xbb8] sm:$0xff]
  %v6009 = vld [vmem:[%s3 + $0xbc0] sm:$0xff]
  %v6010 = vld [vmem:[%s3 + $0xbc8] sm:$0xf]
  %v6011 = vld [vmem:[%s3 + $0xbcc] sm:$0xff]
  %v6012 = vld [vmem:[%s3 + $0xbd4] sm:$0xff]
  %v6013 = vld [vmem:[%s3 + $0xbdc] sm:$0xf]
  %v6014 = vld [vmem:[%s3 + $0xbe0] sm:$0xff]
  %v6015 = vld [vmem:[%s3 + $0xbe8] sm:$0xff]
  %v6016 = vld [vmem:[%s3 + $0xbf0] sm:$0xf]
  %v6017 = vld [vmem:[%s3 + $0xbf4] sm:$0xff]
  %v6018 = vld [vmem:[%s3 + $0xbfc] sm:$0xff]
  %v6019 = vld [vmem:[%s3 + $0xc04] sm:$0xf]
  %v6020 = vld [vmem:[%s3 + $0xc08] sm:$0xff]
  %v6021 = vld [vmem:[%s3 + $0xc10] sm:$0xff]
  %v6022 = vld [vmem:[%s3 + $0xc18] sm:$0xf]
  %v6023 = vld [vmem:[%s3 + $0xc1c] sm:$0xff]
  %v6024 = vld [vmem:[%s3 + $0xc24] sm:$0xff]
  %v6025 = vld [vmem:[%s3 + $0xc2c] sm:$0xf]
  %v6026 = vld [vmem:[%s3 + $0xc30] sm:$0xff]
  %v6027 = vld [vmem:[%s3 + $0xc38] sm:$0xff]
  %v6028 = vld [vmem:[%s3 + $0xc40] sm:$0xf]
  %v6029 = vld [vmem:[%s3 + $0xc44] sm:$0xff]
  %v6030 = vld [vmem:[%s3 + $0xc4c] sm:$0xff]
  %v6031 = vld [vmem:[%s3 + $0xc54] sm:$0xf]
  %v6032 = vld [vmem:[%s3 + $0xc58] sm:$0xff]
  %v6033 = vld [vmem:[%s3 + $0xc60] sm:$0xff]
  %v6034 = vld [vmem:[%s3 + $0xc68] sm:$0xf]
  %v6035 = vld [vmem:[%s3 + $0xc6c] sm:$0xff]
  %v6036 = vld [vmem:[%s3 + $0xc74] sm:$0xff]
  %v6037 = vld [vmem:[%s3 + $0xc7c] sm:$0xf]
  %v6038 = vld [vmem:[%s3 + $0xc80] sm:$0xff]
  %v6039 = vld [vmem:[%s3 + $0xc88] sm:$0xff]
  %v6040 = vld [vmem:[%s3 + $0xc90] sm:$0xf]
  %v6041 = vld [vmem:[%s3 + $0xc94] sm:$0xff]
  %v6042 = vld [vmem:[%s3 + $0xc9c] sm:$0xff]
  %v6043 = vld [vmem:[%s3 + $0xca4] sm:$0xf]
  %v6044 = vld [vmem:[%s3 + $0xca8] sm:$0xff]
  %v6045 = vld [vmem:[%s3 + $0xcb0] sm:$0xff]
  %v6046 = vld [vmem:[%s3 + $0xcb8] sm:$0xf]
  %v6047 = vld [vmem:[%s3 + $0xcbc] sm:$0xff]
  %v6048 = vld [vmem:[%s3 + $0xcc4] sm:$0xff]
  %v6049 = vld [vmem:[%s3 + $0xccc] sm:$0xf]
  %v6050 = vld [vmem:[%s3 + $0xcd0] sm:$0xff]
  %v6051 = vld [vmem:[%s3 + $0xcd8] sm:$0xff]
  %v6052 = vld [vmem:[%s3 + $0xce0] sm:$0xf]
  %v6053 = vld [vmem:[%s3 + $0xce4] sm:$0xff]
  %v6054 = vld [vmem:[%s3 + $0xcec] sm:$0xff]
  %v6055 = vld [vmem:[%s3 + $0xcf4] sm:$0xf]
  %v6056 = vld [vmem:[%s3 + $0xcf8] sm:$0xff]
  %v6057 = vld [vmem:[%s3 + $0xd00] sm:$0xff]
  %v6058 = vld [vmem:[%s3 + $0xd08] sm:$0xf]
  %v6059 = vld [vmem:[%s3 + $0xd0c] sm:$0xff]
  %v6060 = vld [vmem:[%s3 + $0xd14] sm:$0xff]
  %v6061 = vld [vmem:[%s3 + $0xd1c] sm:$0xf]
  %v6062 = vld [vmem:[%s3 + $0xd20] sm:$0xff]
  %v6063 = vld [vmem:[%s3 + $0xd28] sm:$0xff]
  %v6064 = vld [vmem:[%s3 + $0xd30] sm:$0xf]
  %v6065 = vld [vmem:[%s3 + $0xd34] sm:$0xff]
  %v6066 = vld [vmem:[%s3 + $0xd3c] sm:$0xff]
  %v6067 = vld [vmem:[%s3 + $0xd44] sm:$0xf]
  %v6068 = vld [vmem:[%s3 + $0xd48] sm:$0xff]
  %v6069 = vld [vmem:[%s3 + $0xd50] sm:$0xff]
  %v6070 = vld [vmem:[%s3 + $0xd58] sm:$0xf]
  %v6071 = vld [vmem:[%s3 + $0xd5c] sm:$0xff]
  %v6072 = vld [vmem:[%s3 + $0xd64] sm:$0xff]
  %v6073 = vld [vmem:[%s3 + $0xd6c] sm:$0xf]
  %v6074 = vld [vmem:[%s3 + $0xd70] sm:$0xff]
  %v6075 = vld [vmem:[%s3 + $0xd78] sm:$0xff]
  %v6076 = vld [vmem:[%s3 + $0xd80] sm:$0xf]
  %v6077 = vld [vmem:[%s3 + $0xd84] sm:$0xff]
  %v6078 = vld [vmem:[%s3 + $0xd8c] sm:$0xff]
  %v6079 = vld [vmem:[%s3 + $0xd94] sm:$0xf]
  %v6080 = vld [vmem:[%s3 + $0xd98] sm:$0xff]
  %v6081 = vld [vmem:[%s3 + $0xda0] sm:$0xff]
  %v6082 = vld [vmem:[%s3 + $0xda8] sm:$0xf]
  %v6083 = vld [vmem:[%s3 + $0xdac] sm:$0xff]
  %v6084 = vld [vmem:[%s3 + $0xdb4] sm:$0xff]
  %v6085 = vld [vmem:[%s3 + $0xdbc] sm:$0xf]
  %v6086 = vld [vmem:[%s3 + $0xdc0] sm:$0xff]
  %v6087 = vld [vmem:[%s3 + $0xdc8] sm:$0xff]
  %v6088 = vld [vmem:[%s3 + $0xdd0] sm:$0xf]
  %v6089 = vld [vmem:[%s3 + $0xdd4] sm:$0xff]
  %v6090 = vld [vmem:[%s3 + $0xddc] sm:$0xff]
  %v6091 = vld [vmem:[%s3 + $0xde4] sm:$0xf]
  %v6092 = vld [vmem:[%s3 + $0xde8] sm:$0xff]
  %v6093 = vld [vmem:[%s3 + $0xdf0] sm:$0xff]
  %v6094 = vld [vmem:[%s3 + $0xdf8] sm:$0xf]
  %v6095 = vld [vmem:[%s3 + $0xdfc] sm:$0xff]
  %v6096 = vld [vmem:[%s3 + $0xe04] sm:$0xff]
  %v6097 = vld [vmem:[%s3 + $0xe0c] sm:$0xf]
  %v6098 = vld [vmem:[%s3 + $0xe10] sm:$0xff]
  %v6099 = vld [vmem:[%s3 + $0xe18] sm:$0xff]
  %v6100 = vld [vmem:[%s3 + $0xe20] sm:$0xf]
  %v6101 = vld [vmem:[%s3 + $0xe24] sm:$0xff]
  %v6102 = vld [vmem:[%s3 + $0xe2c] sm:$0xff]
  %v6103 = vld [vmem:[%s3 + $0xe34] sm:$0xf]
  %v6104 = vld [vmem:[%s3 + $0xe38] sm:$0xff]
  %v6105 = vld [vmem:[%s3 + $0xe40] sm:$0xff]
  %v6106 = vld [vmem:[%s3 + $0xe48] sm:$0xf]
  %v6107 = vld [vmem:[%s3 + $0xe4c] sm:$0xff]
  %v6108 = vld [vmem:[%s3 + $0xe54] sm:$0xff]
  %v6109 = vld [vmem:[%s3 + $0xe5c] sm:$0xf]
  %v6110 = vld [vmem:[%s3 + $0xe60] sm:$0xff]
  %v6111 = vld [vmem:[%s3 + $0xe68] sm:$0xff]
  %v6112 = vld [vmem:[%s3 + $0xe70] sm:$0xf]
  %v6113 = vld [vmem:[%s3 + $0xe74] sm:$0xff]
  %v6114 = vld [vmem:[%s3 + $0xe7c] sm:$0xff]
  %v6115 = vld [vmem:[%s3 + $0xe84] sm:$0xf]
  %v6116 = vld [vmem:[%s3 + $0xe88] sm:$0xff]
  %v6117 = vld [vmem:[%s3 + $0xe90] sm:$0xff]
  %v6118 = vld [vmem:[%s3 + $0xe98] sm:$0xf]
  %v6119 = vld [vmem:[%s3 + $0xe9c] sm:$0xff]
  %v6120 = vld [vmem:[%s3 + $0xea4] sm:$0xff]
  %v6121 = vld [vmem:[%s3 + $0xeac] sm:$0xf]
  %v6122 = vld [vmem:[%s3 + $0xeb0] sm:$0xff]
  %v6123 = vld [vmem:[%s3 + $0xeb8] sm:$0xff]
  %v6124 = vld [vmem:[%s3 + $0xec0] sm:$0xf]
  %v6125 = vld [vmem:[%s3 + $0xec4] sm:$0xff]
  %v6126 = vld [vmem:[%s3 + $0xecc] sm:$0xff]
  %v6127 = vld [vmem:[%s3 + $0xed4] sm:$0xf]
  %v6128 = vld [vmem:[%s3 + $0xed8] sm:$0xff]
  %v6129 = vld [vmem:[%s3 + $0xee0] sm:$0xff]
  %v6130 = vld [vmem:[%s3 + $0xee8] sm:$0xf]
  %v6131 = vld [vmem:[%s3 + $0xeec] sm:$0xff]
  %v6132 = vld [vmem:[%s3 + $0xef4] sm:$0xff]
  %v6133 = vld [vmem:[%s3 + $0xefc] sm:$0xf]
  %v6134 = vld [vmem:[%s3 + $0xf00] sm:$0xff]
  %v6135 = vld [vmem:[%s3 + $0xf08] sm:$0xff]
  %v6136 = vld [vmem:[%s3 + $0xf10] sm:$0xf]
  %v6137 = vld [vmem:[%s3 + $0xf14] sm:$0xff]
  %v6138 = vld [vmem:[%s3 + $0xf1c] sm:$0xff]
  %v6139 = vld [vmem:[%s3 + $0xf24] sm:$0xf]
  %v6140 = vld [vmem:[%s3 + $0xf28] sm:$0xff]
  %v6141 = vld [vmem:[%s3 + $0xf30] sm:$0xff]
  %v6142 = vld [vmem:[%s3 + $0xf38] sm:$0xf]
  %v6143 = vld [vmem:[%s3 + $0xf3c] sm:$0xff]
  %v6144 = vld [vmem:[%s3 + $0xf44] sm:$0xff]
  %v6145 = vld [vmem:[%s3 + $0xf4c] sm:$0xf]
  %v6146 = vld [vmem:[%s3 + $0xf50] sm:$0xff]
  %v6147 = vld [vmem:[%s3 + $0xf58] sm:$0xff]
  %v6148 = vld [vmem:[%s3 + $0xf60] sm:$0xf]
  %v6149 = vld [vmem:[%s3 + $0xf64] sm:$0xff]
  %v6150 = vld [vmem:[%s3 + $0xf6c] sm:$0xff]
  %v6151 = vld [vmem:[%s3 + $0xf74] sm:$0xf]
  %v6152 = vld [vmem:[%s3 + $0xf78] sm:$0xff]
  %v6153 = vld [vmem:[%s3 + $0xf80] sm:$0xff]
  %v6154 = vld [vmem:[%s3 + $0xf88] sm:$0xf]
  %v6155 = vld [vmem:[%s3 + $0xf8c] sm:$0xff]
  %v6156 = vld [vmem:[%s3 + $0xf94] sm:$0xff]
  %v6157 = vld [vmem:[%s3 + $0xf9c] sm:$0xf]
  %v6158 = vld [vmem:[%s3 + $0xfa0] sm:$0xff]
  %v6159 = vld [vmem:[%s3 + $0xfa8] sm:$0xff]
  %v6160 = vld [vmem:[%s3 + $0xfb0] sm:$0xf]
  %v6161 = vld [vmem:[%s3 + $0xfb4] sm:$0xff]
  %v6162 = vld [vmem:[%s3 + $0xfbc] sm:$0xff]
  %v6163 = vld [vmem:[%s3 + $0xfc4] sm:$0xf]
  %v6164 = vld [vmem:[%s3 + $0xfc8] sm:$0xff]
  %v6165 = vld [vmem:[%s3 + $0xfd0] sm:$0xff]
  %v6166 = vld [vmem:[%s3 + $0xfd8] sm:$0xf]
  %v6167 = vld [vmem:[%s3 + $0xfdc] sm:$0xff]
  %v6168 = vld [vmem:[%s3 + $0xfe4] sm:$0xff]
  %v6169 = vld [vmem:[%s3 + $0xfec] sm:$0xf]
  %v6170 = vld [vmem:[%s3 + $0xff0] sm:$0xff]
  %v6171 = vld [vmem:[%s3 + $0xff8] sm:$0xff]
  %v6172 = vld [vmem:[%s3 + $0x1000] sm:$0xf]
  %v6173 = vld [vmem:[%s3 + $0x1004] sm:$0xff]
  %v6174 = vld [vmem:[%s3 + $0x100c] sm:$0xff]
  %v6175 = vld [vmem:[%s3 + $0x1014] sm:$0xf]
  %v6176 = vld [vmem:[%s3 + $0x1018] sm:$0xff]
  %v6177 = vld [vmem:[%s3 + $0x1020] sm:$0xff]
  %v6178 = vld [vmem:[%s3 + $0x1028] sm:$0xf]
  %v6179 = vld [vmem:[%s3 + $0x102c] sm:$0xff]
  %v6180 = vld [vmem:[%s3 + $0x1034] sm:$0xff]
  %v6181 = vld [vmem:[%s3 + $0x103c] sm:$0xf]
  %v6182 = vld [vmem:[%s3 + $0x1040] sm:$0xff]
  %v6183 = vld [vmem:[%s3 + $0x1048] sm:$0xff]
  %v6184 = vld [vmem:[%s3 + $0x1050] sm:$0xf]
  %v6185 = vld [vmem:[%s3 + $0x1054] sm:$0xff]
  %v6186 = vld [vmem:[%s3 + $0x105c] sm:$0xff]
  %v6187 = vld [vmem:[%s3 + $0x1064] sm:$0xf]
  %v6188 = vld [vmem:[%s3 + $0x1068] sm:$0xff]
  %v6189 = vld [vmem:[%s3 + $0x1070] sm:$0xff]
  %v6190 = vld [vmem:[%s3 + $0x1078] sm:$0xf]
  %v6191 = vld [vmem:[%s3 + $0x107c] sm:$0xff]
  %v6192 = vld [vmem:[%s3 + $0x1084] sm:$0xff]
  %v6193 = vld [vmem:[%s3 + $0x108c] sm:$0xf]
  %v6194 = vld [vmem:[%s3 + $0x1090] sm:$0xff]
  %v6195 = vld [vmem:[%s3 + $0x1098] sm:$0xff]
  %v6196 = vld [vmem:[%s3 + $0x10a0] sm:$0xf]
  %v6197 = vld [vmem:[%s3 + $0x10a4] sm:$0xff]
  %v6198 = vld [vmem:[%s3 + $0x10ac] sm:$0xff]
  %v6199 = vld [vmem:[%s3 + $0x10b4] sm:$0xf]
  %v6200 = vld [vmem:[%s3 + $0x10b8] sm:$0xff]
  %v6201 = vld [vmem:[%s3 + $0x10c0] sm:$0xff]
  %v6202 = vld [vmem:[%s3 + $0x10c8] sm:$0xf]
  %v6203 = vld [vmem:[%s3 + $0x10cc] sm:$0xff]
  %v6204 = vld [vmem:[%s3 + $0x10d4] sm:$0xff]
  %v6205 = vld [vmem:[%s3 + $0x10dc] sm:$0xf]
  %v6206 = vld [vmem:[%s3 + $0x10e0] sm:$0xff]
  %v6207 = vld [vmem:[%s3 + $0x10e8] sm:$0xff]
  %v6208 = vld [vmem:[%s3 + $0x10f0] sm:$0xf]
  %v6209 = vld [vmem:[%s3 + $0x10f4] sm:$0xff]
  %v6210 = vld [vmem:[%s3 + $0x10fc] sm:$0xff]
  %v6211 = vld [vmem:[%s3 + $0x1104] sm:$0xf]
  %v6212 = vld [vmem:[%s3 + $0x1108] sm:$0xff]
  %v6213 = vld [vmem:[%s3 + $0x1110] sm:$0xff]
  %v6214 = vld [vmem:[%s3 + $0x1118] sm:$0xf]
  %v6215 = vld [vmem:[%s3 + $0x111c] sm:$0xff]
  %v6216 = vld [vmem:[%s3 + $0x1124] sm:$0xff]
  %v6217 = vld [vmem:[%s3 + $0x112c] sm:$0xf]
  %v6218 = vld [vmem:[%s3 + $0x1130] sm:$0xff]
  %v6219 = vld [vmem:[%s3 + $0x1138] sm:$0xff]
  %v6220 = vld [vmem:[%s3 + $0x1140] sm:$0xf]
  %v6221 = vld [vmem:[%s3 + $0x1144] sm:$0xff]
  %v6222 = vld [vmem:[%s3 + $0x114c] sm:$0xff]
  %v6223 = vld [vmem:[%s3 + $0x1154] sm:$0xf]
  %v6224 = vld [vmem:[%s3 + $0x1158] sm:$0xff]
  %v6225 = vld [vmem:[%s3 + $0x1160] sm:$0xff]
  %v6226 = vld [vmem:[%s3 + $0x1168] sm:$0xf]
  %v6227 = vld [vmem:[%s3 + $0x116c] sm:$0xff]
  %v6228 = vld [vmem:[%s3 + $0x1174] sm:$0xff]
  %v6229 = vld [vmem:[%s3 + $0x117c] sm:$0xf]
  %v6230 = vld [vmem:[%s3 + $0x1180] sm:$0xff]
  %v6231 = vld [vmem:[%s3 + $0x1188] sm:$0xff]
  %v6232 = vld [vmem:[%s3 + $0x1190] sm:$0xf]
  %v6233 = vld [vmem:[%s3 + $0x1194] sm:$0xff]
  %v6234 = vld [vmem:[%s3 + $0x119c] sm:$0xff]
  %v6235 = vld [vmem:[%s3 + $0x11a4] sm:$0xf]
  %v6236 = vld [vmem:[%s3 + $0x11a8] sm:$0xff]
  %v6237 = vld [vmem:[%s3 + $0x11b0] sm:$0xff]
  %v6238 = vld [vmem:[%s3 + $0x11b8] sm:$0xf]
  %v6239 = vld [vmem:[%s3 + $0x11bc] sm:$0xff]
  %v6240 = vld [vmem:[%s3 + $0x11c4] sm:$0xff]
  %v6241 = vld [vmem:[%s3 + $0x11cc] sm:$0xf]
  %v6242 = vld [vmem:[%s3 + $0x11d0] sm:$0xff]
  %v6243 = vld [vmem:[%s3 + $0x11d8] sm:$0xff]
  %v6244 = vld [vmem:[%s3 + $0x11e0] sm:$0xf]
  %v6245 = vld [vmem:[%s3 + $0x11e4] sm:$0xff]
  %v6246 = vld [vmem:[%s3 + $0x11ec] sm:$0xff]
  %v6247 = vld [vmem:[%s3 + $0x11f4] sm:$0xf]
  %v6248 = vld [vmem:[%s3 + $0x11f8] sm:$0xff]
  %v6249 = vld [vmem:[%s3 + $0x1200] sm:$0xff]
  %v6250 = vld [vmem:[%s3 + $0x1208] sm:$0xf]
  %v6251 = vld [vmem:[%s3 + $0x120c] sm:$0xff]
  %v6252 = vld [vmem:[%s3 + $0x1214] sm:$0xff]
  %v6253 = vld [vmem:[%s3 + $0x121c] sm:$0xf]
  %v6254 = vld [vmem:[%s3 + $0x1220] sm:$0xff]
  %v6255 = vld [vmem:[%s3 + $0x1228] sm:$0xff]
  %v6256 = vld [vmem:[%s3 + $0x1230] sm:$0xf]
  %v6257 = vld [vmem:[%s3 + $0x1234] sm:$0xff]
  %v6258 = vld [vmem:[%s3 + $0x123c] sm:$0xff]
  %v6259 = vld [vmem:[%s3 + $0x1244] sm:$0xf]
  %v6260 = vld [vmem:[%s3 + $0x1248] sm:$0xff]
  %v6261 = vld [vmem:[%s3 + $0x1250] sm:$0xff]
  %v6262 = vld [vmem:[%s3 + $0x1258] sm:$0xf]
  %v6263 = vld [vmem:[%s3 + $0x125c] sm:$0xff]
  %v6264 = vld [vmem:[%s3 + $0x1264] sm:$0xff]
  %v6265 = vld [vmem:[%s3 + $0x126c] sm:$0xf]
  %v6266 = vld [vmem:[%s3 + $0x1270] sm:$0xff]
  %v6267 = vld [vmem:[%s3 + $0x1278] sm:$0xff]
  %v6268 = vld [vmem:[%s3 + $0x1280] sm:$0xf]
  %v6269 = vld [vmem:[%s3 + $0x1284] sm:$0xff]
  %v6270 = vld [vmem:[%s3 + $0x128c] sm:$0xff]
  %v6271 = vld [vmem:[%s3 + $0x1294] sm:$0xf]
  %v6272 = vld [vmem:[%s3 + $0x1298] sm:$0xff]
  %v6273 = vld [vmem:[%s3 + $0x12a0] sm:$0xff]
  %v6274 = vld [vmem:[%s3 + $0x12a8] sm:$0xf]
  %v6275 = vld [vmem:[%s3 + $0x12ac] sm:$0xff]
  %v6276 = vld [vmem:[%s3 + $0x12b4] sm:$0xff]
  %v6277 = vld [vmem:[%s3 + $0x12bc] sm:$0xf]
  %v6278 = vld [vmem:[%s3 + $0x12c0] sm:$0xff]
  %v6279 = vld [vmem:[%s3 + $0x12c8] sm:$0xff]
  %v6280 = vld [vmem:[%s3 + $0x12d0] sm:$0xf]
  %v6281 = vld [vmem:[%s3 + $0x12d4] sm:$0xff]
  %v6282 = vld [vmem:[%s3 + $0x12dc] sm:$0xff]
  %v6283 = vld [vmem:[%s3 + $0x12e4] sm:$0xf]
  %v6284 = vld [vmem:[%s3 + $0x12e8] sm:$0xff]
  %v6285 = vld [vmem:[%s3 + $0x12f0] sm:$0xff]
  %v6286 = vld [vmem:[%s3 + $0x12f8] sm:$0xf]
  %v6287 = vld [vmem:[%s3 + $0x12fc] sm:$0xff]
  %v6288 = vld [vmem:[%s3 + $0x1304] sm:$0xff]
  %v6289 = vld [vmem:[%s3 + $0x130c] sm:$0xf]
  %v6290 = vld [vmem:[%s3 + $0x1310] sm:$0xff]
  %v6291 = vld [vmem:[%s3 + $0x1318] sm:$0xff]
  %v6292 = vld [vmem:[%s3 + $0x1320] sm:$0xf]
  %v6293 = vld [vmem:[%s3 + $0x1324] sm:$0xff]
  %v6294 = vld [vmem:[%s3 + $0x132c] sm:$0xff]
  %v6295 = vld [vmem:[%s3 + $0x1334] sm:$0xf]
  %v6296 = vld [vmem:[%s3 + $0x1338] sm:$0xff]
  %v6297 = vld [vmem:[%s3 + $0x1340] sm:$0xff]
  %v6298 = vld [vmem:[%s3 + $0x1348] sm:$0xf]
  %v6299 = vld [vmem:[%s3 + $0x134c] sm:$0xff]
  %v6300 = vld [vmem:[%s3 + $0x1354] sm:$0xff]
  %v6301 = vld [vmem:[%s3 + $0x135c] sm:$0xf]
  %v6302 = vld [vmem:[%s3 + $0x1360] sm:$0xff]
  %v6303 = vld [vmem:[%s3 + $0x1368] sm:$0xff]
  %v6304 = vld [vmem:[%s3 + $0x1370] sm:$0xf]
  %v6305 = vld [vmem:[%s3 + $0x1374] sm:$0xff]
  %v6306 = vld [vmem:[%s3 + $0x137c] sm:$0xff]
  %v6307 = vld [vmem:[%s3 + $0x1384] sm:$0xf]
  %v6308 = vld [vmem:[%s3 + $0x1388] sm:$0xff]
  %v6309 = vld [vmem:[%s3 + $0x1390] sm:$0xff]
  %v6310 = vld [vmem:[%s3 + $0x1398] sm:$0xf]
  %v6311 = vld [vmem:[%s3 + $0x139c] sm:$0xff]
  %v6312 = vld [vmem:[%s3 + $0x13a4] sm:$0xff]
  %v6313 = vld [vmem:[%s3 + $0x13ac] sm:$0xf]
  %v6314 = vld [vmem:[%s3 + $0x13b0] sm:$0xff]
  %v6315 = vld [vmem:[%s3 + $0x13b8] sm:$0xff]
  %v6316 = vld [vmem:[%s3 + $0x13c0] sm:$0xf]
  %v6317 = vld [vmem:[%s3 + $0x13c4] sm:$0xff]
  %v6318 = vld [vmem:[%s3 + $0x13cc] sm:$0xff]
  %v6319 = vld [vmem:[%s3 + $0x13d4] sm:$0xf]
  %v6320 = vld [vmem:[%s3 + $0x13d8] sm:$0xff]
  %v6321 = vld [vmem:[%s3 + $0x13e0] sm:$0xff]
  %v6322 = vld [vmem:[%s3 + $0x13e8] sm:$0xf]
  %v6323 = vld [vmem:[%s3 + $0x13ec] sm:$0xff]
  %v6324 = vld [vmem:[%s3 + $0x13f4] sm:$0xff]
  %v6325 = vld [vmem:[%s3 + $0x13fc] sm:$0xf]
  %v6326 = vld [vmem:[%s3 + $0x1400] sm:$0xff]
  %v6327 = vld [vmem:[%s3 + $0x1408] sm:$0xff]
  %v6328 = vld [vmem:[%s3 + $0x1410] sm:$0xf]
  %v6329 = vld [vmem:[%s3 + $0x1414] sm:$0xff]
  %v6330 = vld [vmem:[%s3 + $0x141c] sm:$0xff]
  %v6331 = vld [vmem:[%s3 + $0x1424] sm:$0xf]
  %v6332 = vld [vmem:[%s3 + $0x1428] sm:$0xff]
  %v6333 = vld [vmem:[%s3 + $0x1430] sm:$0xff]
  %v6334 = vld [vmem:[%s3 + $0x1438] sm:$0xf]
  %v6335 = vld [vmem:[%s3 + $0x143c] sm:$0xff]
  %v6336 = vld [vmem:[%s3 + $0x1444] sm:$0xff]
  %v6337 = vld [vmem:[%s3 + $0x144c] sm:$0xf]
  %v6338 = vld [vmem:[%s3 + $0x1450] sm:$0xff]
  %v6339 = vld [vmem:[%s3 + $0x1458] sm:$0xff]
  %v6340 = vld [vmem:[%s3 + $0x1460] sm:$0xf]
  %v6341 = vld [vmem:[%s3 + $0x1464] sm:$0xff]
  %v6342 = vld [vmem:[%s3 + $0x146c] sm:$0xff]
  %v6343 = vld [vmem:[%s3 + $0x1474] sm:$0xf]
  %v6344 = vld [vmem:[%s3 + $0x1478] sm:$0xff]
  %v6345 = vld [vmem:[%s3 + $0x1480] sm:$0xff]
  %v6346 = vld [vmem:[%s3 + $0x1488] sm:$0xf]
  %v6347 = vld [vmem:[%s3 + $0x148c] sm:$0xff]
  %v6348 = vld [vmem:[%s3 + $0x1494] sm:$0xff]
  %v6349 = vld [vmem:[%s3 + $0x149c] sm:$0xf]
  %v6350 = vld [vmem:[%s3 + $0x14a0] sm:$0xff]
  %v6351 = vld [vmem:[%s3 + $0x14a8] sm:$0xff]
  %v6352 = vld [vmem:[%s3 + $0x14b0] sm:$0xf]
  %v6353 = vld [vmem:[%s3 + $0x14b4] sm:$0xff]
  %v6354 = vld [vmem:[%s3 + $0x14bc] sm:$0xff]
  %v6355 = vld [vmem:[%s3 + $0x14c4] sm:$0xf]
  %v6356 = vld [vmem:[%s3 + $0x14c8] sm:$0xff]
  %v6357 = vld [vmem:[%s3 + $0x14d0] sm:$0xff]
  %v6358 = vld [vmem:[%s3 + $0x14d8] sm:$0xf]
  %v6359 = vld [vmem:[%s3 + $0x14dc] sm:$0xff]
  %v6360 = vld [vmem:[%s3 + $0x14e4] sm:$0xff]
  %v6361 = vld [vmem:[%s3 + $0x14ec] sm:$0xf]
  %v6362 = vld [vmem:[%s3 + $0x14f0] sm:$0xff]
  %v6363 = vld [vmem:[%s3 + $0x14f8] sm:$0xff]
  %v6364 = vld [vmem:[%s3 + $0x1500] sm:$0xf]
  %v6365 = vld [vmem:[%s3 + $0x1504] sm:$0xff]
  %v6366 = vld [vmem:[%s3 + $0x150c] sm:$0xff]
  %v6367 = vld [vmem:[%s3 + $0x1514] sm:$0xf]
  %v6368 = vld [vmem:[%s3 + $0x1518] sm:$0xff]
  %v6369 = vld [vmem:[%s3 + $0x1520] sm:$0xff]
  %v6370 = vld [vmem:[%s3 + $0x1528] sm:$0xf]
  %v6371 = vld [vmem:[%s3 + $0x152c] sm:$0xff]
  %v6372 = vld [vmem:[%s3 + $0x1534] sm:$0xff]
  %v6373 = vld [vmem:[%s3 + $0x153c] sm:$0xf]
  %v6374 = vld [vmem:[%s3 + $0x1540] sm:$0xff]
  %v6375 = vld [vmem:[%s3 + $0x1548] sm:$0xff]
  %v6376 = vld [vmem:[%s3 + $0x1550] sm:$0xf]
  %v6377 = vld [vmem:[%s3 + $0x1554] sm:$0xff]
  %v6378 = vld [vmem:[%s3 + $0x155c] sm:$0xff]
  %v6379 = vld [vmem:[%s3 + $0x1564] sm:$0xf]
  %v6380 = vld [vmem:[%s3 + $0x1568] sm:$0xff]
  %v6381 = vld [vmem:[%s3 + $0x1570] sm:$0xff]
  %v6382 = vld [vmem:[%s3 + $0x1578] sm:$0xf]
  %v6383 = vld [vmem:[%s3 + $0x157c] sm:$0xff]
  %v6384 = vld [vmem:[%s3 + $0x1584] sm:$0xff]
  %v6385 = vld [vmem:[%s3 + $0x158c] sm:$0xf]
  %v6386 = vld [vmem:[%s3 + $0x1590] sm:$0xff]
  %v6387 = vld [vmem:[%s3 + $0x1598] sm:$0xff]
  %v6388 = vld [vmem:[%s3 + $0x15a0] sm:$0xf]
  %v6389 = vld [vmem:[%s3 + $0x15a4] sm:$0xff]
  %v6390 = vld [vmem:[%s3 + $0x15ac] sm:$0xff]
  %v6391 = vld [vmem:[%s3 + $0x15b4] sm:$0xf]
  %v6392 = vld [vmem:[%s3 + $0x15b8] sm:$0xff]
  %v6393 = vld [vmem:[%s3 + $0x15c0] sm:$0xff]
  %v6394 = vld [vmem:[%s3 + $0x15c8] sm:$0xf]
  %v6395 = vld [vmem:[%s3 + $0x15cc] sm:$0xff]
  %v6396 = vld [vmem:[%s3 + $0x15d4] sm:$0xff]
  %v6397 = vld [vmem:[%s3 + $0x15dc] sm:$0xf]
  %v6398 = vld [vmem:[%s3 + $0x15e0] sm:$0xff]
  %v6399 = vld [vmem:[%s3 + $0x15e8] sm:$0xff]
  %v6400 = vld [vmem:[%s3 + $0x15f0] sm:$0xf]
  %v6401 = vld [vmem:[%s3 + $0x15f4] sm:$0xff]
  %v6402 = vld [vmem:[%s3 + $0x15fc] sm:$0xff]
  %v6403 = vld [vmem:[%s3 + $0x1604] sm:$0xf]
  %v6404 = vld [vmem:[%s3 + $0x1608] sm:$0xff]
  %v6405 = vld [vmem:[%s3 + $0x1610] sm:$0xff]
  %v6406 = vld [vmem:[%s3 + $0x1618] sm:$0xf]
  %v6407 = vld [vmem:[%s3 + $0x161c] sm:$0xff]
  %v6408 = vld [vmem:[%s3 + $0x1624] sm:$0xff]
  %v6409 = vld [vmem:[%s3 + $0x162c] sm:$0xf]
  %v6410 = vld [vmem:[%s3 + $0x1630] sm:$0xff]
  %v6411 = vld [vmem:[%s3 + $0x1638] sm:$0xff]
  %v6412 = vld [vmem:[%s3 + $0x1640] sm:$0xf]
  %v6413 = vld [vmem:[%s3 + $0x1644] sm:$0xff]
  %v6414 = vld [vmem:[%s3 + $0x164c] sm:$0xff]
  %v6415 = vld [vmem:[%s3 + $0x1654] sm:$0xf]
  %v6416 = vld [vmem:[%s3 + $0x1658] sm:$0xff]
  %v6417 = vld [vmem:[%s3 + $0x1660] sm:$0xff]
  %v6418 = vld [vmem:[%s3 + $0x1668] sm:$0xf]
  %v6419 = vld [vmem:[%s3 + $0x166c] sm:$0xff]
  %v6420 = vld [vmem:[%s3 + $0x1674] sm:$0xff]
  %v6421 = vld [vmem:[%s3 + $0x167c] sm:$0xf]
  %v6422 = vld [vmem:[%s3 + $0x1680] sm:$0xff]
  %v6423 = vld [vmem:[%s3 + $0x1688] sm:$0xff]
  %v6424 = vld [vmem:[%s3 + $0x1690] sm:$0xf]
  %v6425 = vld [vmem:[%s3 + $0x1694] sm:$0xff]
  %v6426 = vld [vmem:[%s3 + $0x169c] sm:$0xff]
  %v6427 = vld [vmem:[%s3 + $0x16a4] sm:$0xf]
  %v6428 = vld [vmem:[%s3 + $0x16a8] sm:$0xff]
  %v6429 = vld [vmem:[%s3 + $0x16b0] sm:$0xff]
  %v6430 = vld [vmem:[%s3 + $0x16b8] sm:$0xf]
  %v6431 = vld [vmem:[%s3 + $0x16bc] sm:$0xff]
  %v6432 = vld [vmem:[%s3 + $0x16c4] sm:$0xff]
  %v6433 = vld [vmem:[%s3 + $0x16cc] sm:$0xf]
  %v6434 = vld [vmem:[%s3 + $0x16d0] sm:$0xff]
  %v6435 = vld [vmem:[%s3 + $0x16d8] sm:$0xff]
  %v6436 = vld [vmem:[%s3 + $0x16e0] sm:$0xf]
  %v6437 = vld [vmem:[%s3 + $0x16e4] sm:$0xff]
  %v6438 = vld [vmem:[%s3 + $0x16ec] sm:$0xff]
  %v6439 = vld [vmem:[%s3 + $0x16f4] sm:$0xf]
  %v6440 = vld [vmem:[%s3 + $0x16f8] sm:$0xff]
  %v6441 = vld [vmem:[%s3 + $0x1700] sm:$0xff]
  %v6442 = vld [vmem:[%s3 + $0x1708] sm:$0xf]
  %v6443 = vld [vmem:[%s3 + $0x170c] sm:$0xff]
  %v6444 = vld [vmem:[%s3 + $0x1714] sm:$0xff]
  %v6445 = vld [vmem:[%s3 + $0x171c] sm:$0xf]
  %v6446 = vld [vmem:[%s3 + $0x1720] sm:$0xff]
  %v6447 = vld [vmem:[%s3 + $0x1728] sm:$0xff]
  %v6448 = vld [vmem:[%s3 + $0x1730] sm:$0xf]
  %v6449 = vld [vmem:[%s3 + $0x1734] sm:$0xff]
  %v6450 = vld [vmem:[%s3 + $0x173c] sm:$0xff]
  %v6451 = vld [vmem:[%s3 + $0x1744] sm:$0xf]
  %v6452 = vld [vmem:[%s3 + $0x1748] sm:$0xff]
  %v6453 = vld [vmem:[%s3 + $0x1750] sm:$0xff]
  %v6454 = vld [vmem:[%s3 + $0x1758] sm:$0xf]
  %v6455 = vld [vmem:[%s3 + $0x175c] sm:$0xff]
  %v6456 = vld [vmem:[%s3 + $0x1764] sm:$0xff]
  %v6457 = vld [vmem:[%s3 + $0x176c] sm:$0xf]
  %v6458 = vld [vmem:[%s4] sm:$0x1f]
  %v6460 = vperm.slane %v6458, 0
  %v6461 = vperm.slane %v6458, 1
  %v6462 = vperm.slane %v6458, 2
  %v6463 = vperm.slane %v6458, 3
  %v6464 = vperm.slane %v6458, 4
  %v7370 = vunpack.c.l.b16 %v5558
  %v7371 = vunpack.c.h.b16 %v5558
  %v7372 = vunpack.c.l.b16 %v5559
  %v7373 = vunpack.c.h.b16 %v5559
  %v7374 = vunpack.c.l.b16 %v5560
  %v7375 = vunpack.c.l.b16 %v5561
  %v7376 = vunpack.c.h.b16 %v5561
  %v7377 = vunpack.c.l.b16 %v5562
  %v7378 = vunpack.c.h.b16 %v5562
  %v7379 = vunpack.c.l.b16 %v5563
  %v7380 = vunpack.c.l.b16 %v5564
  %v7381 = vunpack.c.h.b16 %v5564
  %v7382 = vunpack.c.l.b16 %v5565
  %v7383 = vunpack.c.h.b16 %v5565
  %v7384 = vunpack.c.l.b16 %v5566
  %v7385 = vunpack.c.l.b16 %v5567
  %v7386 = vunpack.c.h.b16 %v5567
  %v7387 = vunpack.c.l.b16 %v5568
  %v7388 = vunpack.c.h.b16 %v5568
  %v7389 = vunpack.c.l.b16 %v5569
  %v7390 = vunpack.c.l.b16 %v5570
  %v7391 = vunpack.c.h.b16 %v5570
  %v7392 = vunpack.c.l.b16 %v5571
  %v7393 = vunpack.c.h.b16 %v5571
  %v7394 = vunpack.c.l.b16 %v5572
  %v7395 = vunpack.c.l.b16 %v5573
  %v7396 = vunpack.c.h.b16 %v5573
  %v7397 = vunpack.c.l.b16 %v5574
  %v7398 = vunpack.c.h.b16 %v5574
  %v7399 = vunpack.c.l.b16 %v5575
  %v7400 = vunpack.c.l.b16 %v5576
  %v7401 = vunpack.c.h.b16 %v5576
  %v7402 = vunpack.c.l.b16 %v5577
  %v7403 = vunpack.c.h.b16 %v5577
  %v7404 = vunpack.c.l.b16 %v5578
  %v7405 = vunpack.c.l.b16 %v5579
  %v7406 = vunpack.c.h.b16 %v5579
  %v7407 = vunpack.c.l.b16 %v5580
  %v7408 = vunpack.c.h.b16 %v5580
  %v7409 = vunpack.c.l.b16 %v5581
  %v7410 = vunpack.c.l.b16 %v5582
  %v7411 = vunpack.c.h.b16 %v5582
  %v7412 = vunpack.c.l.b16 %v5583
  %v7413 = vunpack.c.h.b16 %v5583
  %v7414 = vunpack.c.l.b16 %v5584
  %v7415 = vunpack.c.l.b16 %v5585
  %v7416 = vunpack.c.h.b16 %v5585
  %v7417 = vunpack.c.l.b16 %v5586
  %v7418 = vunpack.c.h.b16 %v5586
  %v7419 = vunpack.c.l.b16 %v5587
  %v7420 = vunpack.c.l.b16 %v5588
  %v7421 = vunpack.c.h.b16 %v5588
  %v7422 = vunpack.c.l.b16 %v5589
  %v7423 = vunpack.c.h.b16 %v5589
  %v7424 = vunpack.c.l.b16 %v5590
  %v7425 = vunpack.c.l.b16 %v5591
  %v7426 = vunpack.c.h.b16 %v5591
  %v7427 = vunpack.c.l.b16 %v5592
  %v7428 = vunpack.c.h.b16 %v5592
  %v7429 = vunpack.c.l.b16 %v5593
  %v7430 = vunpack.c.l.b16 %v5594
  %v7431 = vunpack.c.h.b16 %v5594
  %v7432 = vunpack.c.l.b16 %v5595
  %v7433 = vunpack.c.h.b16 %v5595
  %v7434 = vunpack.c.l.b16 %v5596
  %v7435 = vunpack.c.l.b16 %v5597
  %v7436 = vunpack.c.h.b16 %v5597
  %v7437 = vunpack.c.l.b16 %v5598
  %v7438 = vunpack.c.h.b16 %v5598
  %v7439 = vunpack.c.l.b16 %v5599
  %v7440 = vunpack.c.l.b16 %v5600
  %v7441 = vunpack.c.h.b16 %v5600
  %v7442 = vunpack.c.l.b16 %v5601
  %v7443 = vunpack.c.h.b16 %v5601
  %v7444 = vunpack.c.l.b16 %v5602
  %v7445 = vunpack.c.l.b16 %v5603
  %v7446 = vunpack.c.h.b16 %v5603
  %v7447 = vunpack.c.l.b16 %v5604
  %v7448 = vunpack.c.h.b16 %v5604
  %v7449 = vunpack.c.l.b16 %v5605
  %v7450 = vunpack.c.l.b16 %v5606
  %v7451 = vunpack.c.h.b16 %v5606
  %v7452 = vunpack.c.l.b16 %v5607
  %v7453 = vunpack.c.h.b16 %v5607
  %v7454 = vunpack.c.l.b16 %v5608
  %v7455 = vunpack.c.l.b16 %v5609
  %v7456 = vunpack.c.h.b16 %v5609
  %v7457 = vunpack.c.l.b16 %v5610
  %v7458 = vunpack.c.h.b16 %v5610
  %v7459 = vunpack.c.l.b16 %v5611
  %v7460 = vunpack.c.l.b16 %v5612
  %v7461 = vunpack.c.h.b16 %v5612
  %v7462 = vunpack.c.l.b16 %v5613
  %v7463 = vunpack.c.h.b16 %v5613
  %v7464 = vunpack.c.l.b16 %v5614
  %v7465 = vunpack.c.l.b16 %v5615
  %v7466 = vunpack.c.h.b16 %v5615
  %v7467 = vunpack.c.l.b16 %v5616
  %v7468 = vunpack.c.h.b16 %v5616
  %v7469 = vunpack.c.l.b16 %v5617
  %v7470 = vunpack.c.l.b16 %v5618
  %v7471 = vunpack.c.h.b16 %v5618
  %v7472 = vunpack.c.l.b16 %v5619
  %v7473 = vunpack.c.h.b16 %v5619
  %v7474 = vunpack.c.l.b16 %v5620
  %v7475 = vunpack.c.l.b16 %v5621
  %v7476 = vunpack.c.h.b16 %v5621
  %v7477 = vunpack.c.l.b16 %v5622
  %v7478 = vunpack.c.h.b16 %v5622
  %v7479 = vunpack.c.l.b16 %v5623
  %v7480 = vunpack.c.l.b16 %v5624
  %v7481 = vunpack.c.h.b16 %v5624
  %v7482 = vunpack.c.l.b16 %v5625
  %v7483 = vunpack.c.h.b16 %v5625
  %v7484 = vunpack.c.l.b16 %v5626
  %v7485 = vunpack.c.l.b16 %v5627
  %v7486 = vunpack.c.h.b16 %v5627
  %v7487 = vunpack.c.l.b16 %v5628
  %v7488 = vunpack.c.h.b16 %v5628
  %v7489 = vunpack.c.l.b16 %v5629
  %v7490 = vunpack.c.l.b16 %v5630
  %v7491 = vunpack.c.h.b16 %v5630
  %v7492 = vunpack.c.l.b16 %v5631
  %v7493 = vunpack.c.h.b16 %v5631
  %v7494 = vunpack.c.l.b16 %v5632
  %v7495 = vunpack.c.l.b16 %v5633
  %v7496 = vunpack.c.h.b16 %v5633
  %v7497 = vunpack.c.l.b16 %v5634
  %v7498 = vunpack.c.h.b16 %v5634
  %v7499 = vunpack.c.l.b16 %v5635
  %v7500 = vunpack.c.l.b16 %v5636
  %v7501 = vunpack.c.h.b16 %v5636
  %v7502 = vunpack.c.l.b16 %v5637
  %v7503 = vunpack.c.h.b16 %v5637
  %v7504 = vunpack.c.l.b16 %v5638
  %v7505 = vunpack.c.l.b16 %v5639
  %v7506 = vunpack.c.h.b16 %v5639
  %v7507 = vunpack.c.l.b16 %v5640
  %v7508 = vunpack.c.h.b16 %v5640
  %v7509 = vunpack.c.l.b16 %v5641
  %v7510 = vunpack.c.l.b16 %v5642
  %v7511 = vunpack.c.h.b16 %v5642
  %v7512 = vunpack.c.l.b16 %v5643
  %v7513 = vunpack.c.h.b16 %v5643
  %v7514 = vunpack.c.l.b16 %v5644
  %v7515 = vunpack.c.l.b16 %v5645
  %v7516 = vunpack.c.h.b16 %v5645
  %v7517 = vunpack.c.l.b16 %v5646
  %v7518 = vunpack.c.h.b16 %v5646
  %v7519 = vunpack.c.l.b16 %v5647
  %v7520 = vunpack.c.l.b16 %v5648
  %v7521 = vunpack.c.h.b16 %v5648
  %v7522 = vunpack.c.l.b16 %v5649
  %v7523 = vunpack.c.h.b16 %v5649
  %v7524 = vunpack.c.l.b16 %v5650
  %v7525 = vunpack.c.l.b16 %v5651
  %v7526 = vunpack.c.h.b16 %v5651
  %v7527 = vunpack.c.l.b16 %v5652
  %v7528 = vunpack.c.h.b16 %v5652
  %v7529 = vunpack.c.l.b16 %v5653
  %v7530 = vunpack.c.l.b16 %v5654
  %v7531 = vunpack.c.h.b16 %v5654
  %v7532 = vunpack.c.l.b16 %v5655
  %v7533 = vunpack.c.h.b16 %v5655
  %v7534 = vunpack.c.l.b16 %v5656
  %v7535 = vunpack.c.l.b16 %v5657
  %v7536 = vunpack.c.h.b16 %v5657
  %v7537 = vunpack.c.l.b16 %v5658
  %v7538 = vunpack.c.h.b16 %v5658
  %v7539 = vunpack.c.l.b16 %v5659
  %v7540 = vunpack.c.l.b16 %v5660
  %v7541 = vunpack.c.h.b16 %v5660
  %v7542 = vunpack.c.l.b16 %v5661
  %v7543 = vunpack.c.h.b16 %v5661
  %v7544 = vunpack.c.l.b16 %v5662
  %v7545 = vunpack.c.l.b16 %v5663
  %v7546 = vunpack.c.h.b16 %v5663
  %v7547 = vunpack.c.l.b16 %v5664
  %v7548 = vunpack.c.h.b16 %v5664
  %v7549 = vunpack.c.l.b16 %v5665
  %v7550 = vunpack.c.l.b16 %v5666
  %v7551 = vunpack.c.h.b16 %v5666
  %v7552 = vunpack.c.l.b16 %v5667
  %v7553 = vunpack.c.h.b16 %v5667
  %v7554 = vunpack.c.l.b16 %v5668
  %v7555 = vunpack.c.l.b16 %v5669
  %v7556 = vunpack.c.h.b16 %v5669
  %v7557 = vunpack.c.l.b16 %v5670
  %v7558 = vunpack.c.h.b16 %v5670
  %v7559 = vunpack.c.l.b16 %v5671
  %v7560 = vunpack.c.l.b16 %v5672
  %v7561 = vunpack.c.h.b16 %v5672
  %v7562 = vunpack.c.l.b16 %v5673
  %v7563 = vunpack.c.h.b16 %v5673
  %v7564 = vunpack.c.l.b16 %v5674
  %v7565 = vunpack.c.l.b16 %v5675
  %v7566 = vunpack.c.h.b16 %v5675
  %v7567 = vunpack.c.l.b16 %v5676
  %v7568 = vunpack.c.h.b16 %v5676
  %v7569 = vunpack.c.l.b16 %v5677
  %v7570 = vunpack.c.l.b16 %v5678
  %v7571 = vunpack.c.h.b16 %v5678
  %v7572 = vunpack.c.l.b16 %v5679
  %v7573 = vunpack.c.h.b16 %v5679
  %v7574 = vunpack.c.l.b16 %v5680
  %v7575 = vunpack.c.l.b16 %v5681
  %v7576 = vunpack.c.h.b16 %v5681
  %v7577 = vunpack.c.l.b16 %v5682
  %v7578 = vunpack.c.h.b16 %v5682
  %v7579 = vunpack.c.l.b16 %v5683
  %v7580 = vunpack.c.l.b16 %v5684
  %v7581 = vunpack.c.h.b16 %v5684
  %v7582 = vunpack.c.l.b16 %v5685
  %v7583 = vunpack.c.h.b16 %v5685
  %v7584 = vunpack.c.l.b16 %v5686
  %v7585 = vunpack.c.l.b16 %v5687
  %v7586 = vunpack.c.h.b16 %v5687
  %v7587 = vunpack.c.l.b16 %v5688
  %v7588 = vunpack.c.h.b16 %v5688
  %v7589 = vunpack.c.l.b16 %v5689
  %v7590 = vunpack.c.l.b16 %v5690
  %v7591 = vunpack.c.h.b16 %v5690
  %v7592 = vunpack.c.l.b16 %v5691
  %v7593 = vunpack.c.h.b16 %v5691
  %v7594 = vunpack.c.l.b16 %v5692
  %v7595 = vunpack.c.l.b16 %v5693
  %v7596 = vunpack.c.h.b16 %v5693
  %v7597 = vunpack.c.l.b16 %v5694
  %v7598 = vunpack.c.h.b16 %v5694
  %v7599 = vunpack.c.l.b16 %v5695
  %v7600 = vunpack.c.l.b16 %v5696
  %v7601 = vunpack.c.h.b16 %v5696
  %v7602 = vunpack.c.l.b16 %v5697
  %v7603 = vunpack.c.h.b16 %v5697
  %v7604 = vunpack.c.l.b16 %v5698
  %v7605 = vunpack.c.l.b16 %v5699
  %v7606 = vunpack.c.h.b16 %v5699
  %v7607 = vunpack.c.l.b16 %v5700
  %v7608 = vunpack.c.h.b16 %v5700
  %v7609 = vunpack.c.l.b16 %v5701
  %v7610 = vunpack.c.l.b16 %v5702
  %v7611 = vunpack.c.h.b16 %v5702
  %v7612 = vunpack.c.l.b16 %v5703
  %v7613 = vunpack.c.h.b16 %v5703
  %v7614 = vunpack.c.l.b16 %v5704
  %v7615 = vunpack.c.l.b16 %v5705
  %v7616 = vunpack.c.h.b16 %v5705
  %v7617 = vunpack.c.l.b16 %v5706
  %v7618 = vunpack.c.h.b16 %v5706
  %v7619 = vunpack.c.l.b16 %v5707
  %v7620 = vunpack.c.l.b16 %v5708
  %v7621 = vunpack.c.h.b16 %v5708
  %v7622 = vunpack.c.l.b16 %v5709
  %v7623 = vunpack.c.h.b16 %v5709
  %v7624 = vunpack.c.l.b16 %v5710
  %v7625 = vunpack.c.l.b16 %v5711
  %v7626 = vunpack.c.h.b16 %v5711
  %v7627 = vunpack.c.l.b16 %v5712
  %v7628 = vunpack.c.h.b16 %v5712
  %v7629 = vunpack.c.l.b16 %v5713
  %v7630 = vunpack.c.l.b16 %v5714
  %v7631 = vunpack.c.h.b16 %v5714
  %v7632 = vunpack.c.l.b16 %v5715
  %v7633 = vunpack.c.h.b16 %v5715
  %v7634 = vunpack.c.l.b16 %v5716
  %v7635 = vunpack.c.l.b16 %v5717
  %v7636 = vunpack.c.h.b16 %v5717
  %v7637 = vunpack.c.l.b16 %v5718
  %v7638 = vunpack.c.h.b16 %v5718
  %v7639 = vunpack.c.l.b16 %v5719
  %v7640 = vunpack.c.l.b16 %v5720
  %v7641 = vunpack.c.h.b16 %v5720
  %v7642 = vunpack.c.l.b16 %v5721
  %v7643 = vunpack.c.h.b16 %v5721
  %v7644 = vunpack.c.l.b16 %v5722
  %v7645 = vunpack.c.l.b16 %v5723
  %v7646 = vunpack.c.h.b16 %v5723
  %v7647 = vunpack.c.l.b16 %v5724
  %v7648 = vunpack.c.h.b16 %v5724
  %v7649 = vunpack.c.l.b16 %v5725
  %v7650 = vunpack.c.l.b16 %v5726
  %v7651 = vunpack.c.h.b16 %v5726
  %v7652 = vunpack.c.l.b16 %v5727
  %v7653 = vunpack.c.h.b16 %v5727
  %v7654 = vunpack.c.l.b16 %v5728
  %v7655 = vunpack.c.l.b16 %v5729
  %v7656 = vunpack.c.h.b16 %v5729
  %v7657 = vunpack.c.l.b16 %v5730
  %v7658 = vunpack.c.h.b16 %v5730
  %v7659 = vunpack.c.l.b16 %v5731
  %v7660 = vunpack.c.l.b16 %v5732
  %v7661 = vunpack.c.h.b16 %v5732
  %v7662 = vunpack.c.l.b16 %v5733
  %v7663 = vunpack.c.h.b16 %v5733
  %v7664 = vunpack.c.l.b16 %v5734
  %v7665 = vunpack.c.l.b16 %v5735
  %v7666 = vunpack.c.h.b16 %v5735
  %v7667 = vunpack.c.l.b16 %v5736
  %v7668 = vunpack.c.h.b16 %v5736
  %v7669 = vunpack.c.l.b16 %v5737
  %v7670 = vunpack.c.l.b16 %v5738
  %v7671 = vunpack.c.h.b16 %v5738
  %v7672 = vunpack.c.l.b16 %v5739
  %v7673 = vunpack.c.h.b16 %v5739
  %v7674 = vunpack.c.l.b16 %v5740
  %v7675 = vunpack.c.l.b16 %v5741
  %v7676 = vunpack.c.h.b16 %v5741
  %v7677 = vunpack.c.l.b16 %v5742
  %v7678 = vunpack.c.h.b16 %v5742
  %v7679 = vunpack.c.l.b16 %v5743
  %v7680 = vunpack.c.l.b16 %v5744
  %v7681 = vunpack.c.h.b16 %v5744
  %v7682 = vunpack.c.l.b16 %v5745
  %v7683 = vunpack.c.h.b16 %v5745
  %v7684 = vunpack.c.l.b16 %v5746
  %v7685 = vunpack.c.l.b16 %v5747
  %v7686 = vunpack.c.h.b16 %v5747
  %v7687 = vunpack.c.l.b16 %v5748
  %v7688 = vunpack.c.h.b16 %v5748
  %v7689 = vunpack.c.l.b16 %v5749
  %v7690 = vunpack.c.l.b16 %v5750
  %v7691 = vunpack.c.h.b16 %v5750
  %v7692 = vunpack.c.l.b16 %v5751
  %v7693 = vunpack.c.h.b16 %v5751
  %v7694 = vunpack.c.l.b16 %v5752
  %v7695 = vunpack.c.l.b16 %v5753
  %v7696 = vunpack.c.h.b16 %v5753
  %v7697 = vunpack.c.l.b16 %v5754
  %v7698 = vunpack.c.h.b16 %v5754
  %v7699 = vunpack.c.l.b16 %v5755
  %v7700 = vunpack.c.l.b16 %v5756
  %v7701 = vunpack.c.h.b16 %v5756
  %v7702 = vunpack.c.l.b16 %v5757
  %v7703 = vunpack.c.h.b16 %v5757
  %v7704 = vunpack.c.l.b16 %v5758
  %v7705 = vunpack.c.l.b16 %v5759
  %v7706 = vunpack.c.h.b16 %v5759
  %v7707 = vunpack.c.l.b16 %v5760
  %v7708 = vunpack.c.h.b16 %v5760
  %v7709 = vunpack.c.l.b16 %v5761
  %v7710 = vunpack.c.l.b16 %v5762
  %v7711 = vunpack.c.h.b16 %v5762
  %v7712 = vunpack.c.l.b16 %v5763
  %v7713 = vunpack.c.h.b16 %v5763
  %v7714 = vunpack.c.l.b16 %v5764
  %v7715 = vunpack.c.l.b16 %v5765
  %v7716 = vunpack.c.h.b16 %v5765
  %v7717 = vunpack.c.l.b16 %v5766
  %v7718 = vunpack.c.h.b16 %v5766
  %v7719 = vunpack.c.l.b16 %v5767
  %v7720 = vunpack.c.l.b16 %v5768
  %v7721 = vunpack.c.h.b16 %v5768
  %v7722 = vunpack.c.l.b16 %v5769
  %v7723 = vunpack.c.h.b16 %v5769
  %v7724 = vunpack.c.l.b16 %v5770
  %v7725 = vunpack.c.l.b16 %v5771
  %v7726 = vunpack.c.h.b16 %v5771
  %v7727 = vunpack.c.l.b16 %v5772
  %v7728 = vunpack.c.h.b16 %v5772
  %v7729 = vunpack.c.l.b16 %v5773
  %v7730 = vunpack.c.l.b16 %v5774
  %v7731 = vunpack.c.h.b16 %v5774
  %v7732 = vunpack.c.l.b16 %v5775
  %v7733 = vunpack.c.h.b16 %v5775
  %v7734 = vunpack.c.l.b16 %v5776
  %v7735 = vunpack.c.l.b16 %v5777
  %v7736 = vunpack.c.h.b16 %v5777
  %v7737 = vunpack.c.l.b16 %v5778
  %v7738 = vunpack.c.h.b16 %v5778
  %v7739 = vunpack.c.l.b16 %v5779
  %v7740 = vunpack.c.l.b16 %v5780
  %v7741 = vunpack.c.h.b16 %v5780
  %v7742 = vunpack.c.l.b16 %v5781
  %v7743 = vunpack.c.h.b16 %v5781
  %v7744 = vunpack.c.l.b16 %v5782
  %v7745 = vunpack.c.l.b16 %v5783
  %v7746 = vunpack.c.h.b16 %v5783
  %v7747 = vunpack.c.l.b16 %v5784
  %v7748 = vunpack.c.h.b16 %v5784
  %v7749 = vunpack.c.l.b16 %v5785
  %v7750 = vunpack.c.l.b16 %v5786
  %v7751 = vunpack.c.h.b16 %v5786
  %v7752 = vunpack.c.l.b16 %v5787
  %v7753 = vunpack.c.h.b16 %v5787
  %v7754 = vunpack.c.l.b16 %v5788
  %v7755 = vunpack.c.l.b16 %v5789
  %v7756 = vunpack.c.h.b16 %v5789
  %v7757 = vunpack.c.l.b16 %v5790
  %v7758 = vunpack.c.h.b16 %v5790
  %v7759 = vunpack.c.l.b16 %v5791
  %v7760 = vunpack.c.l.b16 %v5792
  %v7761 = vunpack.c.h.b16 %v5792
  %v7762 = vunpack.c.l.b16 %v5793
  %v7763 = vunpack.c.h.b16 %v5793
  %v7764 = vunpack.c.l.b16 %v5794
  %v7765 = vunpack.c.l.b16 %v5795
  %v7766 = vunpack.c.h.b16 %v5795
  %v7767 = vunpack.c.l.b16 %v5796
  %v7768 = vunpack.c.h.b16 %v5796
  %v7769 = vunpack.c.l.b16 %v5797
  %v7770 = vunpack.c.l.b16 %v5798
  %v7771 = vunpack.c.h.b16 %v5798
  %v7772 = vunpack.c.l.b16 %v5799
  %v7773 = vunpack.c.h.b16 %v5799
  %v7774 = vunpack.c.l.b16 %v5800
  %v7775 = vunpack.c.l.b16 %v5801
  %v7776 = vunpack.c.h.b16 %v5801
  %v7777 = vunpack.c.l.b16 %v5802
  %v7778 = vunpack.c.h.b16 %v5802
  %v7779 = vunpack.c.l.b16 %v5803
  %v7780 = vunpack.c.l.b16 %v5804
  %v7781 = vunpack.c.h.b16 %v5804
  %v7782 = vunpack.c.l.b16 %v5805
  %v7783 = vunpack.c.h.b16 %v5805
  %v7784 = vunpack.c.l.b16 %v5806
  %v7785 = vunpack.c.l.b16 %v5807
  %v7786 = vunpack.c.h.b16 %v5807
  %v7787 = vunpack.c.l.b16 %v5808
  %v7788 = vunpack.c.h.b16 %v5808
  %v7789 = vunpack.c.l.b16 %v5809
  %v7790 = vunpack.c.l.b16 %v5810
  %v7791 = vunpack.c.h.b16 %v5810
  %v7792 = vunpack.c.l.b16 %v5811
  %v7793 = vunpack.c.h.b16 %v5811
  %v7794 = vunpack.c.l.b16 %v5812
  %v7795 = vunpack.c.l.b16 %v5813
  %v7796 = vunpack.c.h.b16 %v5813
  %v7797 = vunpack.c.l.b16 %v5814
  %v7798 = vunpack.c.h.b16 %v5814
  %v7799 = vunpack.c.l.b16 %v5815
  %v7800 = vunpack.c.l.b16 %v5816
  %v7801 = vunpack.c.h.b16 %v5816
  %v7802 = vunpack.c.l.b16 %v5817
  %v7803 = vunpack.c.h.b16 %v5817
  %v7804 = vunpack.c.l.b16 %v5818
  %v7805 = vunpack.c.l.b16 %v5819
  %v7806 = vunpack.c.h.b16 %v5819
  %v7807 = vunpack.c.l.b16 %v5820
  %v7808 = vunpack.c.h.b16 %v5820
  %v7809 = vunpack.c.l.b16 %v5821
  %v7810 = vunpack.c.l.b16 %v5822
  %v7811 = vunpack.c.h.b16 %v5822
  %v7812 = vunpack.c.l.b16 %v5823
  %v7813 = vunpack.c.h.b16 %v5823
  %v7814 = vunpack.c.l.b16 %v5824
  %v7815 = vunpack.c.l.b16 %v5825
  %v7816 = vunpack.c.h.b16 %v5825
  %v7817 = vunpack.c.l.b16 %v5826
  %v7818 = vunpack.c.h.b16 %v5826
  %v7819 = vunpack.c.l.b16 %v5827
  %v7820 = vunpack.c.l.b16 %v5828
  %v7821 = vunpack.c.h.b16 %v5828
  %v7822 = vunpack.c.l.b16 %v5829
  %v7823 = vunpack.c.h.b16 %v5829
  %v7824 = vunpack.c.l.b16 %v5830
  %v7825 = vunpack.c.l.b16 %v5831
  %v7826 = vunpack.c.h.b16 %v5831
  %v7827 = vunpack.c.l.b16 %v5832
  %v7828 = vunpack.c.h.b16 %v5832
  %v7829 = vunpack.c.l.b16 %v5833
  %v7830 = vunpack.c.l.b16 %v5834
  %v7831 = vunpack.c.h.b16 %v5834
  %v7832 = vunpack.c.l.b16 %v5835
  %v7833 = vunpack.c.h.b16 %v5835
  %v7834 = vunpack.c.l.b16 %v5836
  %v7835 = vunpack.c.l.b16 %v5837
  %v7836 = vunpack.c.h.b16 %v5837
  %v7837 = vunpack.c.l.b16 %v5838
  %v7838 = vunpack.c.h.b16 %v5838
  %v7839 = vunpack.c.l.b16 %v5839
  %v7840 = vunpack.c.l.b16 %v5840
  %v7841 = vunpack.c.h.b16 %v5840
  %v7842 = vunpack.c.l.b16 %v5841
  %v7843 = vunpack.c.h.b16 %v5841
  %v7844 = vunpack.c.l.b16 %v5842
  %v7845 = vunpack.c.l.b16 %v5843
  %v7846 = vunpack.c.h.b16 %v5843
  %v7847 = vunpack.c.l.b16 %v5844
  %v7848 = vunpack.c.h.b16 %v5844
  %v7849 = vunpack.c.l.b16 %v5845
  %v7850 = vunpack.c.l.b16 %v5846
  %v7851 = vunpack.c.h.b16 %v5846
  %v7852 = vunpack.c.l.b16 %v5847
  %v7853 = vunpack.c.h.b16 %v5847
  %v7854 = vunpack.c.l.b16 %v5848
  %v7855 = vunpack.c.l.b16 %v5849
  %v7856 = vunpack.c.h.b16 %v5849
  %v7857 = vunpack.c.l.b16 %v5850
  %v7858 = vunpack.c.h.b16 %v5850
  %v7859 = vunpack.c.l.b16 %v5851
  %v7860 = vunpack.c.l.b16 %v5852
  %v7861 = vunpack.c.h.b16 %v5852
  %v7862 = vunpack.c.l.b16 %v5853
  %v7863 = vunpack.c.h.b16 %v5853
  %v7864 = vunpack.c.l.b16 %v5854
  %v7865 = vunpack.c.l.b16 %v5855
  %v7866 = vunpack.c.h.b16 %v5855
  %v7867 = vunpack.c.l.b16 %v5856
  %v7868 = vunpack.c.h.b16 %v5856
  %v7869 = vunpack.c.l.b16 %v5857
  %v7870 = vunpack.c.l.b16 %v5858
  %v7871 = vunpack.c.h.b16 %v5858
  %v7872 = vunpack.c.l.b16 %v5859
  %v7873 = vunpack.c.h.b16 %v5859
  %v7874 = vunpack.c.l.b16 %v5860
  %v7875 = vunpack.c.l.b16 %v5861
  %v7876 = vunpack.c.h.b16 %v5861
  %v7877 = vunpack.c.l.b16 %v5862
  %v7878 = vunpack.c.h.b16 %v5862
  %v7879 = vunpack.c.l.b16 %v5863
  %v7880 = vunpack.c.l.b16 %v5864
  %v7881 = vunpack.c.h.b16 %v5864
  %v7882 = vunpack.c.l.b16 %v5865
  %v7883 = vunpack.c.h.b16 %v5865
  %v7884 = vunpack.c.l.b16 %v5866
  %v7885 = vunpack.c.l.b16 %v5867
  %v7886 = vunpack.c.h.b16 %v5867
  %v7887 = vunpack.c.l.b16 %v5868
  %v7888 = vunpack.c.h.b16 %v5868
  %v7889 = vunpack.c.l.b16 %v5869
  %v7890 = vunpack.c.l.b16 %v5870
  %v7891 = vunpack.c.h.b16 %v5870
  %v7892 = vunpack.c.l.b16 %v5871
  %v7893 = vunpack.c.h.b16 %v5871
  %v7894 = vunpack.c.l.b16 %v5872
  %v7895 = vunpack.c.l.b16 %v5873
  %v7896 = vunpack.c.h.b16 %v5873
  %v7897 = vunpack.c.l.b16 %v5874
  %v7898 = vunpack.c.h.b16 %v5874
  %v7899 = vunpack.c.l.b16 %v5875
  %v7900 = vunpack.c.l.b16 %v5876
  %v7901 = vunpack.c.h.b16 %v5876
  %v7902 = vunpack.c.l.b16 %v5877
  %v7903 = vunpack.c.h.b16 %v5877
  %v7904 = vunpack.c.l.b16 %v5878
  %v7905 = vunpack.c.l.b16 %v5879
  %v7906 = vunpack.c.h.b16 %v5879
  %v7907 = vunpack.c.l.b16 %v5880
  %v7908 = vunpack.c.h.b16 %v5880
  %v7909 = vunpack.c.l.b16 %v5881
  %v7910 = vunpack.c.l.b16 %v5882
  %v7911 = vunpack.c.h.b16 %v5882
  %v7912 = vunpack.c.l.b16 %v5883
  %v7913 = vunpack.c.h.b16 %v5883
  %v7914 = vunpack.c.l.b16 %v5884
  %v7915 = vunpack.c.l.b16 %v5885
  %v7916 = vunpack.c.h.b16 %v5885
  %v7917 = vunpack.c.l.b16 %v5886
  %v7918 = vunpack.c.h.b16 %v5886
  %v7919 = vunpack.c.l.b16 %v5887
  %v7920 = vunpack.c.l.b16 %v5888
  %v7921 = vunpack.c.h.b16 %v5888
  %v7922 = vunpack.c.l.b16 %v5889
  %v7923 = vunpack.c.h.b16 %v5889
  %v7924 = vunpack.c.l.b16 %v5890
  %v7925 = vunpack.c.l.b16 %v5891
  %v7926 = vunpack.c.h.b16 %v5891
  %v7927 = vunpack.c.l.b16 %v5892
  %v7928 = vunpack.c.h.b16 %v5892
  %v7929 = vunpack.c.l.b16 %v5893
  %v7930 = vunpack.c.l.b16 %v5894
  %v7931 = vunpack.c.h.b16 %v5894
  %v7932 = vunpack.c.l.b16 %v5895
  %v7933 = vunpack.c.h.b16 %v5895
  %v7934 = vunpack.c.l.b16 %v5896
  %v7935 = vunpack.c.l.b16 %v5897
  %v7936 = vunpack.c.h.b16 %v5897
  %v7937 = vunpack.c.l.b16 %v5898
  %v7938 = vunpack.c.h.b16 %v5898
  %v7939 = vunpack.c.l.b16 %v5899
  %v7940 = vunpack.c.l.b16 %v5900
  %v7941 = vunpack.c.h.b16 %v5900
  %v7942 = vunpack.c.l.b16 %v5901
  %v7943 = vunpack.c.h.b16 %v5901
  %v7944 = vunpack.c.l.b16 %v5902
  %v7945 = vunpack.c.l.b16 %v5903
  %v7946 = vunpack.c.h.b16 %v5903
  %v7947 = vunpack.c.l.b16 %v5904
  %v7948 = vunpack.c.h.b16 %v5904
  %v7949 = vunpack.c.l.b16 %v5905
  %v7950 = vunpack.c.l.b16 %v5906
  %v7951 = vunpack.c.h.b16 %v5906
  %v7952 = vunpack.c.l.b16 %v5907
  %v7953 = vunpack.c.h.b16 %v5907
  %v7954 = vunpack.c.l.b16 %v5908
  %v7955 = vunpack.c.l.b16 %v5909
  %v7956 = vunpack.c.h.b16 %v5909
  %v7957 = vunpack.c.l.b16 %v5910
  %v7958 = vunpack.c.h.b16 %v5910
  %v7959 = vunpack.c.l.b16 %v5911
  %v7960 = vunpack.c.l.b16 %v5912
  %v7961 = vunpack.c.h.b16 %v5912
  %v7962 = vunpack.c.l.b16 %v5913
  %v7963 = vunpack.c.h.b16 %v5913
  %v7964 = vunpack.c.l.b16 %v5914
  %v7965 = vunpack.c.l.b16 %v5915
  %v7966 = vunpack.c.h.b16 %v5915
  %v7967 = vunpack.c.l.b16 %v5916
  %v7968 = vunpack.c.h.b16 %v5916
  %v7969 = vunpack.c.l.b16 %v5917
  %v7970 = vunpack.c.l.b16 %v5918
  %v7971 = vunpack.c.h.b16 %v5918
  %v7972 = vunpack.c.l.b16 %v5919
  %v7973 = vunpack.c.h.b16 %v5919
  %v7974 = vunpack.c.l.b16 %v5920
  %v7975 = vunpack.c.l.b16 %v5921
  %v7976 = vunpack.c.h.b16 %v5921
  %v7977 = vunpack.c.l.b16 %v5922
  %v7978 = vunpack.c.h.b16 %v5922
  %v7979 = vunpack.c.l.b16 %v5923
  %v7980 = vunpack.c.l.b16 %v5924
  %v7981 = vunpack.c.h.b16 %v5924
  %v7982 = vunpack.c.l.b16 %v5925
  %v7983 = vunpack.c.h.b16 %v5925
  %v7984 = vunpack.c.l.b16 %v5926
  %v7985 = vunpack.c.l.b16 %v5927
  %v7986 = vunpack.c.h.b16 %v5927
  %v7987 = vunpack.c.l.b16 %v5928
  %v7988 = vunpack.c.h.b16 %v5928
  %v7989 = vunpack.c.l.b16 %v5929
  %v7990 = vunpack.c.l.b16 %v5930
  %v7991 = vunpack.c.h.b16 %v5930
  %v7992 = vunpack.c.l.b16 %v5931
  %v7993 = vunpack.c.h.b16 %v5931
  %v7994 = vunpack.c.l.b16 %v5932
  %v7995 = vunpack.c.l.b16 %v5933
  %v7996 = vunpack.c.h.b16 %v5933
  %v7997 = vunpack.c.l.b16 %v5934
  %v7998 = vunpack.c.h.b16 %v5934
  %v7999 = vunpack.c.l.b16 %v5935
  %v8000 = vunpack.c.l.b16 %v5936
  %v8001 = vunpack.c.h.b16 %v5936
  %v8002 = vunpack.c.l.b16 %v5937
  %v8003 = vunpack.c.h.b16 %v5937
  %v8004 = vunpack.c.l.b16 %v5938
  %v8005 = vunpack.c.l.b16 %v5939
  %v8006 = vunpack.c.h.b16 %v5939
  %v8007 = vunpack.c.l.b16 %v5940
  %v8008 = vunpack.c.h.b16 %v5940
  %v8009 = vunpack.c.l.b16 %v5941
  %v8010 = vunpack.c.l.b16 %v5942
  %v8011 = vunpack.c.h.b16 %v5942
  %v8012 = vunpack.c.l.b16 %v5943
  %v8013 = vunpack.c.h.b16 %v5943
  %v8014 = vunpack.c.l.b16 %v5944
  %v8015 = vunpack.c.l.b16 %v5945
  %v8016 = vunpack.c.h.b16 %v5945
  %v8017 = vunpack.c.l.b16 %v5946
  %v8018 = vunpack.c.h.b16 %v5946
  %v8019 = vunpack.c.l.b16 %v5947
  %v8020 = vunpack.c.l.b16 %v5948
  %v8021 = vunpack.c.h.b16 %v5948
  %v8022 = vunpack.c.l.b16 %v5949
  %v8023 = vunpack.c.h.b16 %v5949
  %v8024 = vunpack.c.l.b16 %v5950
  %v8025 = vunpack.c.l.b16 %v5951
  %v8026 = vunpack.c.h.b16 %v5951
  %v8027 = vunpack.c.l.b16 %v5952
  %v8028 = vunpack.c.h.b16 %v5952
  %v8029 = vunpack.c.l.b16 %v5953
  %v8030 = vunpack.c.l.b16 %v5954
  %v8031 = vunpack.c.h.b16 %v5954
  %v8032 = vunpack.c.l.b16 %v5955
  %v8033 = vunpack.c.h.b16 %v5955
  %v8034 = vunpack.c.l.b16 %v5956
  %v8035 = vunpack.c.l.b16 %v5957
  %v8036 = vunpack.c.h.b16 %v5957
  %v8037 = vunpack.c.l.b16 %v5958
  %v8038 = vunpack.c.h.b16 %v5958
  %v8039 = vunpack.c.l.b16 %v5959
  %v8040 = vunpack.c.l.b16 %v5960
  %v8041 = vunpack.c.h.b16 %v5960
  %v8042 = vunpack.c.l.b16 %v5961
  %v8043 = vunpack.c.h.b16 %v5961
  %v8044 = vunpack.c.l.b16 %v5962
  %v8045 = vunpack.c.l.b16 %v5963
  %v8046 = vunpack.c.h.b16 %v5963
  %v8047 = vunpack.c.l.b16 %v5964
  %v8048 = vunpack.c.h.b16 %v5964
  %v8049 = vunpack.c.l.b16 %v5965
  %v8050 = vunpack.c.l.b16 %v5966
  %v8051 = vunpack.c.h.b16 %v5966
  %v8052 = vunpack.c.l.b16 %v5967
  %v8053 = vunpack.c.h.b16 %v5967
  %v8054 = vunpack.c.l.b16 %v5968
  %v8055 = vunpack.c.l.b16 %v5969
  %v8056 = vunpack.c.h.b16 %v5969
  %v8057 = vunpack.c.l.b16 %v5970
  %v8058 = vunpack.c.h.b16 %v5970
  %v8059 = vunpack.c.l.b16 %v5971
  %v8060 = vunpack.c.l.b16 %v5972
  %v8061 = vunpack.c.h.b16 %v5972
  %v8062 = vunpack.c.l.b16 %v5973
  %v8063 = vunpack.c.h.b16 %v5973
  %v8064 = vunpack.c.l.b16 %v5974
  %v8065 = vunpack.c.l.b16 %v5975
  %v8066 = vunpack.c.h.b16 %v5975
  %v8067 = vunpack.c.l.b16 %v5976
  %v8068 = vunpack.c.h.b16 %v5976
  %v8069 = vunpack.c.l.b16 %v5977
  %v8070 = vunpack.c.l.b16 %v5978
  %v8071 = vunpack.c.h.b16 %v5978
  %v8072 = vunpack.c.l.b16 %v5979
  %v8073 = vunpack.c.h.b16 %v5979
  %v8074 = vunpack.c.l.b16 %v5980
  %v8075 = vunpack.c.l.b16 %v5981
  %v8076 = vunpack.c.h.b16 %v5981
  %v8077 = vunpack.c.l.b16 %v5982
  %v8078 = vunpack.c.h.b16 %v5982
  %v8079 = vunpack.c.l.b16 %v5983
  %v8080 = vunpack.c.l.b16 %v5984
  %v8081 = vunpack.c.h.b16 %v5984
  %v8082 = vunpack.c.l.b16 %v5985
  %v8083 = vunpack.c.h.b16 %v5985
  %v8084 = vunpack.c.l.b16 %v5986
  %v8085 = vunpack.c.l.b16 %v5987
  %v8086 = vunpack.c.h.b16 %v5987
  %v8087 = vunpack.c.l.b16 %v5988
  %v8088 = vunpack.c.h.b16 %v5988
  %v8089 = vunpack.c.l.b16 %v5989
  %v8090 = vunpack.c.l.b16 %v5990
  %v8091 = vunpack.c.h.b16 %v5990
  %v8092 = vunpack.c.l.b16 %v5991
  %v8093 = vunpack.c.h.b16 %v5991
  %v8094 = vunpack.c.l.b16 %v5992
  %v8095 = vunpack.c.l.b16 %v5993
  %v8096 = vunpack.c.h.b16 %v5993
  %v8097 = vunpack.c.l.b16 %v5994
  %v8098 = vunpack.c.h.b16 %v5994
  %v8099 = vunpack.c.l.b16 %v5995
  %v8100 = vunpack.c.l.b16 %v5996
  %v8101 = vunpack.c.h.b16 %v5996
  %v8102 = vunpack.c.l.b16 %v5997
  %v8103 = vunpack.c.h.b16 %v5997
  %v8104 = vunpack.c.l.b16 %v5998
  %v8105 = vunpack.c.l.b16 %v5999
  %v8106 = vunpack.c.h.b16 %v5999
  %v8107 = vunpack.c.l.b16 %v6000
  %v8108 = vunpack.c.h.b16 %v6000
  %v8109 = vunpack.c.l.b16 %v6001
  %v8110 = vunpack.c.l.b16 %v6002
  %v8111 = vunpack.c.h.b16 %v6002
  %v8112 = vunpack.c.l.b16 %v6003
  %v8113 = vunpack.c.h.b16 %v6003
  %v8114 = vunpack.c.l.b16 %v6004
  %v8115 = vunpack.c.l.b16 %v6005
  %v8116 = vunpack.c.h.b16 %v6005
  %v8117 = vunpack.c.l.b16 %v6006
  %v8118 = vunpack.c.h.b16 %v6006
  %v8119 = vunpack.c.l.b16 %v6007
  %v8120 = vunpack.c.l.b16 %v6008
  %v8121 = vunpack.c.h.b16 %v6008
  %v8122 = vunpack.c.l.b16 %v6009
  %v8123 = vunpack.c.h.b16 %v6009
  %v8124 = vunpack.c.l.b16 %v6010
  %v8125 = vunpack.c.l.b16 %v6011
  %v8126 = vunpack.c.h.b16 %v6011
  %v8127 = vunpack.c.l.b16 %v6012
  %v8128 = vunpack.c.h.b16 %v6012
  %v8129 = vunpack.c.l.b16 %v6013
  %v8130 = vunpack.c.l.b16 %v6014
  %v8131 = vunpack.c.h.b16 %v6014
  %v8132 = vunpack.c.l.b16 %v6015
  %v8133 = vunpack.c.h.b16 %v6015
  %v8134 = vunpack.c.l.b16 %v6016
  %v8135 = vunpack.c.l.b16 %v6017
  %v8136 = vunpack.c.h.b16 %v6017
  %v8137 = vunpack.c.l.b16 %v6018
  %v8138 = vunpack.c.h.b16 %v6018
  %v8139 = vunpack.c.l.b16 %v6019
  %v8140 = vunpack.c.l.b16 %v6020
  %v8141 = vunpack.c.h.b16 %v6020
  %v8142 = vunpack.c.l.b16 %v6021
  %v8143 = vunpack.c.h.b16 %v6021
  %v8144 = vunpack.c.l.b16 %v6022
  %v8145 = vunpack.c.l.b16 %v6023
  %v8146 = vunpack.c.h.b16 %v6023
  %v8147 = vunpack.c.l.b16 %v6024
  %v8148 = vunpack.c.h.b16 %v6024
  %v8149 = vunpack.c.l.b16 %v6025
  %v8150 = vunpack.c.l.b16 %v6026
  %v8151 = vunpack.c.h.b16 %v6026
  %v8152 = vunpack.c.l.b16 %v6027
  %v8153 = vunpack.c.h.b16 %v6027
  %v8154 = vunpack.c.l.b16 %v6028
  %v8155 = vunpack.c.l.b16 %v6029
  %v8156 = vunpack.c.h.b16 %v6029
  %v8157 = vunpack.c.l.b16 %v6030
  %v8158 = vunpack.c.h.b16 %v6030
  %v8159 = vunpack.c.l.b16 %v6031
  %v8160 = vunpack.c.l.b16 %v6032
  %v8161 = vunpack.c.h.b16 %v6032
  %v8162 = vunpack.c.l.b16 %v6033
  %v8163 = vunpack.c.h.b16 %v6033
  %v8164 = vunpack.c.l.b16 %v6034
  %v8165 = vunpack.c.l.b16 %v6035
  %v8166 = vunpack.c.h.b16 %v6035
  %v8167 = vunpack.c.l.b16 %v6036
  %v8168 = vunpack.c.h.b16 %v6036
  %v8169 = vunpack.c.l.b16 %v6037
  %v8170 = vunpack.c.l.b16 %v6038
  %v8171 = vunpack.c.h.b16 %v6038
  %v8172 = vunpack.c.l.b16 %v6039
  %v8173 = vunpack.c.h.b16 %v6039
  %v8174 = vunpack.c.l.b16 %v6040
  %v8175 = vunpack.c.l.b16 %v6041
  %v8176 = vunpack.c.h.b16 %v6041
  %v8177 = vunpack.c.l.b16 %v6042
  %v8178 = vunpack.c.h.b16 %v6042
  %v8179 = vunpack.c.l.b16 %v6043
  %v8180 = vunpack.c.l.b16 %v6044
  %v8181 = vunpack.c.h.b16 %v6044
  %v8182 = vunpack.c.l.b16 %v6045
  %v8183 = vunpack.c.h.b16 %v6045
  %v8184 = vunpack.c.l.b16 %v6046
  %v8185 = vunpack.c.l.b16 %v6047
  %v8186 = vunpack.c.h.b16 %v6047
  %v8187 = vunpack.c.l.b16 %v6048
  %v8188 = vunpack.c.h.b16 %v6048
  %v8189 = vunpack.c.l.b16 %v6049
  %v8190 = vunpack.c.l.b16 %v6050
  %v8191 = vunpack.c.h.b16 %v6050
  %v8192 = vunpack.c.l.b16 %v6051
  %v8193 = vunpack.c.h.b16 %v6051
  %v8194 = vunpack.c.l.b16 %v6052
  %v8195 = vunpack.c.l.b16 %v6053
  %v8196 = vunpack.c.h.b16 %v6053
  %v8197 = vunpack.c.l.b16 %v6054
  %v8198 = vunpack.c.h.b16 %v6054
  %v8199 = vunpack.c.l.b16 %v6055
  %v8200 = vunpack.c.l.b16 %v6056
  %v8201 = vunpack.c.h.b16 %v6056
  %v8202 = vunpack.c.l.b16 %v6057
  %v8203 = vunpack.c.h.b16 %v6057
  %v8204 = vunpack.c.l.b16 %v6058
  %v8205 = vunpack.c.l.b16 %v6059
  %v8206 = vunpack.c.h.b16 %v6059
  %v8207 = vunpack.c.l.b16 %v6060
  %v8208 = vunpack.c.h.b16 %v6060
  %v8209 = vunpack.c.l.b16 %v6061
  %v8210 = vunpack.c.l.b16 %v6062
  %v8211 = vunpack.c.h.b16 %v6062
  %v8212 = vunpack.c.l.b16 %v6063
  %v8213 = vunpack.c.h.b16 %v6063
  %v8214 = vunpack.c.l.b16 %v6064
  %v8215 = vunpack.c.l.b16 %v6065
  %v8216 = vunpack.c.h.b16 %v6065
  %v8217 = vunpack.c.l.b16 %v6066
  %v8218 = vunpack.c.h.b16 %v6066
  %v8219 = vunpack.c.l.b16 %v6067
  %v8220 = vunpack.c.l.b16 %v6068
  %v8221 = vunpack.c.h.b16 %v6068
  %v8222 = vunpack.c.l.b16 %v6069
  %v8223 = vunpack.c.h.b16 %v6069
  %v8224 = vunpack.c.l.b16 %v6070
  %v8225 = vunpack.c.l.b16 %v6071
  %v8226 = vunpack.c.h.b16 %v6071
  %v8227 = vunpack.c.l.b16 %v6072
  %v8228 = vunpack.c.h.b16 %v6072
  %v8229 = vunpack.c.l.b16 %v6073
  %v8230 = vunpack.c.l.b16 %v6074
  %v8231 = vunpack.c.h.b16 %v6074
  %v8232 = vunpack.c.l.b16 %v6075
  %v8233 = vunpack.c.h.b16 %v6075
  %v8234 = vunpack.c.l.b16 %v6076
  %v8235 = vunpack.c.l.b16 %v6077
  %v8236 = vunpack.c.h.b16 %v6077
  %v8237 = vunpack.c.l.b16 %v6078
  %v8238 = vunpack.c.h.b16 %v6078
  %v8239 = vunpack.c.l.b16 %v6079
  %v8240 = vunpack.c.l.b16 %v6080
  %v8241 = vunpack.c.h.b16 %v6080
  %v8242 = vunpack.c.l.b16 %v6081
  %v8243 = vunpack.c.h.b16 %v6081
  %v8244 = vunpack.c.l.b16 %v6082
  %v8245 = vunpack.c.l.b16 %v6083
  %v8246 = vunpack.c.h.b16 %v6083
  %v8247 = vunpack.c.l.b16 %v6084
  %v8248 = vunpack.c.h.b16 %v6084
  %v8249 = vunpack.c.l.b16 %v6085
  %v8250 = vunpack.c.l.b16 %v6086
  %v8251 = vunpack.c.h.b16 %v6086
  %v8252 = vunpack.c.l.b16 %v6087
  %v8253 = vunpack.c.h.b16 %v6087
  %v8254 = vunpack.c.l.b16 %v6088
  %v8255 = vunpack.c.l.b16 %v6089
  %v8256 = vunpack.c.h.b16 %v6089
  %v8257 = vunpack.c.l.b16 %v6090
  %v8258 = vunpack.c.h.b16 %v6090
  %v8259 = vunpack.c.l.b16 %v6091
  %v8260 = vunpack.c.l.b16 %v6092
  %v8261 = vunpack.c.h.b16 %v6092
  %v8262 = vunpack.c.l.b16 %v6093
  %v8263 = vunpack.c.h.b16 %v6093
  %v8264 = vunpack.c.l.b16 %v6094
  %v8265 = vunpack.c.l.b16 %v6095
  %v8266 = vunpack.c.h.b16 %v6095
  %v8267 = vunpack.c.l.b16 %v6096
  %v8268 = vunpack.c.h.b16 %v6096
  %v8269 = vunpack.c.l.b16 %v6097
  %v8270 = vunpack.c.l.b16 %v6098
  %v8271 = vunpack.c.h.b16 %v6098
  %v8272 = vunpack.c.l.b16 %v6099
  %v8273 = vunpack.c.h.b16 %v6099
  %v8274 = vunpack.c.l.b16 %v6100
  %v8275 = vunpack.c.l.b16 %v6101
  %v8276 = vunpack.c.h.b16 %v6101
  %v8277 = vunpack.c.l.b16 %v6102
  %v8278 = vunpack.c.h.b16 %v6102
  %v8279 = vunpack.c.l.b16 %v6103
  %v8280 = vunpack.c.l.b16 %v6104
  %v8281 = vunpack.c.h.b16 %v6104
  %v8282 = vunpack.c.l.b16 %v6105
  %v8283 = vunpack.c.h.b16 %v6105
  %v8284 = vunpack.c.l.b16 %v6106
  %v8285 = vunpack.c.l.b16 %v6107
  %v8286 = vunpack.c.h.b16 %v6107
  %v8287 = vunpack.c.l.b16 %v6108
  %v8288 = vunpack.c.h.b16 %v6108
  %v8289 = vunpack.c.l.b16 %v6109
  %v8290 = vunpack.c.l.b16 %v6110
  %v8291 = vunpack.c.h.b16 %v6110
  %v8292 = vunpack.c.l.b16 %v6111
  %v8293 = vunpack.c.h.b16 %v6111
  %v8294 = vunpack.c.l.b16 %v6112
  %v8295 = vunpack.c.l.b16 %v6113
  %v8296 = vunpack.c.h.b16 %v6113
  %v8297 = vunpack.c.l.b16 %v6114
  %v8298 = vunpack.c.h.b16 %v6114
  %v8299 = vunpack.c.l.b16 %v6115
  %v8300 = vunpack.c.l.b16 %v6116
  %v8301 = vunpack.c.h.b16 %v6116
  %v8302 = vunpack.c.l.b16 %v6117
  %v8303 = vunpack.c.h.b16 %v6117
  %v8304 = vunpack.c.l.b16 %v6118
  %v8305 = vunpack.c.l.b16 %v6119
  %v8306 = vunpack.c.h.b16 %v6119
  %v8307 = vunpack.c.l.b16 %v6120
  %v8308 = vunpack.c.h.b16 %v6120
  %v8309 = vunpack.c.l.b16 %v6121
  %v8310 = vunpack.c.l.b16 %v6122
  %v8311 = vunpack.c.h.b16 %v6122
  %v8312 = vunpack.c.l.b16 %v6123
  %v8313 = vunpack.c.h.b16 %v6123
  %v8314 = vunpack.c.l.b16 %v6124
  %v8315 = vunpack.c.l.b16 %v6125
  %v8316 = vunpack.c.h.b16 %v6125
  %v8317 = vunpack.c.l.b16 %v6126
  %v8318 = vunpack.c.h.b16 %v6126
  %v8319 = vunpack.c.l.b16 %v6127
  %v8320 = vunpack.c.l.b16 %v6128
  %v8321 = vunpack.c.h.b16 %v6128
  %v8322 = vunpack.c.l.b16 %v6129
  %v8323 = vunpack.c.h.b16 %v6129
  %v8324 = vunpack.c.l.b16 %v6130
  %v8325 = vunpack.c.l.b16 %v6131
  %v8326 = vunpack.c.h.b16 %v6131
  %v8327 = vunpack.c.l.b16 %v6132
  %v8328 = vunpack.c.h.b16 %v6132
  %v8329 = vunpack.c.l.b16 %v6133
  %v8330 = vunpack.c.l.b16 %v6134
  %v8331 = vunpack.c.h.b16 %v6134
  %v8332 = vunpack.c.l.b16 %v6135
  %v8333 = vunpack.c.h.b16 %v6135
  %v8334 = vunpack.c.l.b16 %v6136
  %v8335 = vunpack.c.l.b16 %v6137
  %v8336 = vunpack.c.h.b16 %v6137
  %v8337 = vunpack.c.l.b16 %v6138
  %v8338 = vunpack.c.h.b16 %v6138
  %v8339 = vunpack.c.l.b16 %v6139
  %v8340 = vunpack.c.l.b16 %v6140
  %v8341 = vunpack.c.h.b16 %v6140
  %v8342 = vunpack.c.l.b16 %v6141
  %v8343 = vunpack.c.h.b16 %v6141
  %v8344 = vunpack.c.l.b16 %v6142
  %v8345 = vunpack.c.l.b16 %v6143
  %v8346 = vunpack.c.h.b16 %v6143
  %v8347 = vunpack.c.l.b16 %v6144
  %v8348 = vunpack.c.h.b16 %v6144
  %v8349 = vunpack.c.l.b16 %v6145
  %v8350 = vunpack.c.l.b16 %v6146
  %v8351 = vunpack.c.h.b16 %v6146
  %v8352 = vunpack.c.l.b16 %v6147
  %v8353 = vunpack.c.h.b16 %v6147
  %v8354 = vunpack.c.l.b16 %v6148
  %v8355 = vunpack.c.l.b16 %v6149
  %v8356 = vunpack.c.h.b16 %v6149
  %v8357 = vunpack.c.l.b16 %v6150
  %v8358 = vunpack.c.h.b16 %v6150
  %v8359 = vunpack.c.l.b16 %v6151
  %v8360 = vunpack.c.l.b16 %v6152
  %v8361 = vunpack.c.h.b16 %v6152
  %v8362 = vunpack.c.l.b16 %v6153
  %v8363 = vunpack.c.h.b16 %v6153
  %v8364 = vunpack.c.l.b16 %v6154
  %v8365 = vunpack.c.l.b16 %v6155
  %v8366 = vunpack.c.h.b16 %v6155
  %v8367 = vunpack.c.l.b16 %v6156
  %v8368 = vunpack.c.h.b16 %v6156
  %v8369 = vunpack.c.l.b16 %v6157
  %v8370 = vunpack.c.l.b16 %v6158
  %v8371 = vunpack.c.h.b16 %v6158
  %v8372 = vunpack.c.l.b16 %v6159
  %v8373 = vunpack.c.h.b16 %v6159
  %v8374 = vunpack.c.l.b16 %v6160
  %v8375 = vunpack.c.l.b16 %v6161
  %v8376 = vunpack.c.h.b16 %v6161
  %v8377 = vunpack.c.l.b16 %v6162
  %v8378 = vunpack.c.h.b16 %v6162
  %v8379 = vunpack.c.l.b16 %v6163
  %v8380 = vunpack.c.l.b16 %v6164
  %v8381 = vunpack.c.h.b16 %v6164
  %v8382 = vunpack.c.l.b16 %v6165
  %v8383 = vunpack.c.h.b16 %v6165
  %v8384 = vunpack.c.l.b16 %v6166
  %v8385 = vunpack.c.l.b16 %v6167
  %v8386 = vunpack.c.h.b16 %v6167
  %v8387 = vunpack.c.l.b16 %v6168
  %v8388 = vunpack.c.h.b16 %v6168
  %v8389 = vunpack.c.l.b16 %v6169
  %v8390 = vunpack.c.l.b16 %v6170
  %v8391 = vunpack.c.h.b16 %v6170
  %v8392 = vunpack.c.l.b16 %v6171
  %v8393 = vunpack.c.h.b16 %v6171
  %v8394 = vunpack.c.l.b16 %v6172
  %v8395 = vunpack.c.l.b16 %v6173
  %v8396 = vunpack.c.h.b16 %v6173
  %v8397 = vunpack.c.l.b16 %v6174
  %v8398 = vunpack.c.h.b16 %v6174
  %v8399 = vunpack.c.l.b16 %v6175
  %v8400 = vunpack.c.l.b16 %v6176
  %v8401 = vunpack.c.h.b16 %v6176
  %v8402 = vunpack.c.l.b16 %v6177
  %v8403 = vunpack.c.h.b16 %v6177
  %v8404 = vunpack.c.l.b16 %v6178
  %v8405 = vunpack.c.l.b16 %v6179
  %v8406 = vunpack.c.h.b16 %v6179
  %v8407 = vunpack.c.l.b16 %v6180
  %v8408 = vunpack.c.h.b16 %v6180
  %v8409 = vunpack.c.l.b16 %v6181
  %v8410 = vunpack.c.l.b16 %v6182
  %v8411 = vunpack.c.h.b16 %v6182
  %v8412 = vunpack.c.l.b16 %v6183
  %v8413 = vunpack.c.h.b16 %v6183
  %v8414 = vunpack.c.l.b16 %v6184
  %v8415 = vunpack.c.l.b16 %v6185
  %v8416 = vunpack.c.h.b16 %v6185
  %v8417 = vunpack.c.l.b16 %v6186
  %v8418 = vunpack.c.h.b16 %v6186
  %v8419 = vunpack.c.l.b16 %v6187
  %v8420 = vunpack.c.l.b16 %v6188
  %v8421 = vunpack.c.h.b16 %v6188
  %v8422 = vunpack.c.l.b16 %v6189
  %v8423 = vunpack.c.h.b16 %v6189
  %v8424 = vunpack.c.l.b16 %v6190
  %v8425 = vunpack.c.l.b16 %v6191
  %v8426 = vunpack.c.h.b16 %v6191
  %v8427 = vunpack.c.l.b16 %v6192
  %v8428 = vunpack.c.h.b16 %v6192
  %v8429 = vunpack.c.l.b16 %v6193
  %v8430 = vunpack.c.l.b16 %v6194
  %v8431 = vunpack.c.h.b16 %v6194
  %v8432 = vunpack.c.l.b16 %v6195
  %v8433 = vunpack.c.h.b16 %v6195
  %v8434 = vunpack.c.l.b16 %v6196
  %v8435 = vunpack.c.l.b16 %v6197
  %v8436 = vunpack.c.h.b16 %v6197
  %v8437 = vunpack.c.l.b16 %v6198
  %v8438 = vunpack.c.h.b16 %v6198
  %v8439 = vunpack.c.l.b16 %v6199
  %v8440 = vunpack.c.l.b16 %v6200
  %v8441 = vunpack.c.h.b16 %v6200
  %v8442 = vunpack.c.l.b16 %v6201
  %v8443 = vunpack.c.h.b16 %v6201
  %v8444 = vunpack.c.l.b16 %v6202
  %v8445 = vunpack.c.l.b16 %v6203
  %v8446 = vunpack.c.h.b16 %v6203
  %v8447 = vunpack.c.l.b16 %v6204
  %v8448 = vunpack.c.h.b16 %v6204
  %v8449 = vunpack.c.l.b16 %v6205
  %v8450 = vunpack.c.l.b16 %v6206
  %v8451 = vunpack.c.h.b16 %v6206
  %v8452 = vunpack.c.l.b16 %v6207
  %v8453 = vunpack.c.h.b16 %v6207
  %v8454 = vunpack.c.l.b16 %v6208
  %v8455 = vunpack.c.l.b16 %v6209
  %v8456 = vunpack.c.h.b16 %v6209
  %v8457 = vunpack.c.l.b16 %v6210
  %v8458 = vunpack.c.h.b16 %v6210
  %v8459 = vunpack.c.l.b16 %v6211
  %v8460 = vunpack.c.l.b16 %v6212
  %v8461 = vunpack.c.h.b16 %v6212
  %v8462 = vunpack.c.l.b16 %v6213
  %v8463 = vunpack.c.h.b16 %v6213
  %v8464 = vunpack.c.l.b16 %v6214
  %v8465 = vunpack.c.l.b16 %v6215
  %v8466 = vunpack.c.h.b16 %v6215
  %v8467 = vunpack.c.l.b16 %v6216
  %v8468 = vunpack.c.h.b16 %v6216
  %v8469 = vunpack.c.l.b16 %v6217
  %v8470 = vunpack.c.l.b16 %v6218
  %v8471 = vunpack.c.h.b16 %v6218
  %v8472 = vunpack.c.l.b16 %v6219
  %v8473 = vunpack.c.h.b16 %v6219
  %v8474 = vunpack.c.l.b16 %v6220
  %v8475 = vunpack.c.l.b16 %v6221
  %v8476 = vunpack.c.h.b16 %v6221
  %v8477 = vunpack.c.l.b16 %v6222
  %v8478 = vunpack.c.h.b16 %v6222
  %v8479 = vunpack.c.l.b16 %v6223
  %v8480 = vunpack.c.l.b16 %v6224
  %v8481 = vunpack.c.h.b16 %v6224
  %v8482 = vunpack.c.l.b16 %v6225
  %v8483 = vunpack.c.h.b16 %v6225
  %v8484 = vunpack.c.l.b16 %v6226
  %v8485 = vunpack.c.l.b16 %v6227
  %v8486 = vunpack.c.h.b16 %v6227
  %v8487 = vunpack.c.l.b16 %v6228
  %v8488 = vunpack.c.h.b16 %v6228
  %v8489 = vunpack.c.l.b16 %v6229
  %v8490 = vunpack.c.l.b16 %v6230
  %v8491 = vunpack.c.h.b16 %v6230
  %v8492 = vunpack.c.l.b16 %v6231
  %v8493 = vunpack.c.h.b16 %v6231
  %v8494 = vunpack.c.l.b16 %v6232
  %v8495 = vunpack.c.l.b16 %v6233
  %v8496 = vunpack.c.h.b16 %v6233
  %v8497 = vunpack.c.l.b16 %v6234
  %v8498 = vunpack.c.h.b16 %v6234
  %v8499 = vunpack.c.l.b16 %v6235
  %v8500 = vunpack.c.l.b16 %v6236
  %v8501 = vunpack.c.h.b16 %v6236
  %v8502 = vunpack.c.l.b16 %v6237
  %v8503 = vunpack.c.h.b16 %v6237
  %v8504 = vunpack.c.l.b16 %v6238
  %v8505 = vunpack.c.l.b16 %v6239
  %v8506 = vunpack.c.h.b16 %v6239
  %v8507 = vunpack.c.l.b16 %v6240
  %v8508 = vunpack.c.h.b16 %v6240
  %v8509 = vunpack.c.l.b16 %v6241
  %v8510 = vunpack.c.l.b16 %v6242
  %v8511 = vunpack.c.h.b16 %v6242
  %v8512 = vunpack.c.l.b16 %v6243
  %v8513 = vunpack.c.h.b16 %v6243
  %v8514 = vunpack.c.l.b16 %v6244
  %v8515 = vunpack.c.l.b16 %v6245
  %v8516 = vunpack.c.h.b16 %v6245
  %v8517 = vunpack.c.l.b16 %v6246
  %v8518 = vunpack.c.h.b16 %v6246
  %v8519 = vunpack.c.l.b16 %v6247
  %v8520 = vunpack.c.l.b16 %v6248
  %v8521 = vunpack.c.h.b16 %v6248
  %v8522 = vunpack.c.l.b16 %v6249
  %v8523 = vunpack.c.h.b16 %v6249
  %v8524 = vunpack.c.l.b16 %v6250
  %v8525 = vunpack.c.l.b16 %v6251
  %v8526 = vunpack.c.h.b16 %v6251
  %v8527 = vunpack.c.l.b16 %v6252
  %v8528 = vunpack.c.h.b16 %v6252
  %v8529 = vunpack.c.l.b16 %v6253
  %v8530 = vunpack.c.l.b16 %v6254
  %v8531 = vunpack.c.h.b16 %v6254
  %v8532 = vunpack.c.l.b16 %v6255
  %v8533 = vunpack.c.h.b16 %v6255
  %v8534 = vunpack.c.l.b16 %v6256
  %v8535 = vunpack.c.l.b16 %v6257
  %v8536 = vunpack.c.h.b16 %v6257
  %v8537 = vunpack.c.l.b16 %v6258
  %v8538 = vunpack.c.h.b16 %v6258
  %v8539 = vunpack.c.l.b16 %v6259
  %v8540 = vunpack.c.l.b16 %v6260
  %v8541 = vunpack.c.h.b16 %v6260
  %v8542 = vunpack.c.l.b16 %v6261
  %v8543 = vunpack.c.h.b16 %v6261
  %v8544 = vunpack.c.l.b16 %v6262
  %v8545 = vunpack.c.l.b16 %v6263
  %v8546 = vunpack.c.h.b16 %v6263
  %v8547 = vunpack.c.l.b16 %v6264
  %v8548 = vunpack.c.h.b16 %v6264
  %v8549 = vunpack.c.l.b16 %v6265
  %v8550 = vunpack.c.l.b16 %v6266
  %v8551 = vunpack.c.h.b16 %v6266
  %v8552 = vunpack.c.l.b16 %v6267
  %v8553 = vunpack.c.h.b16 %v6267
  %v8554 = vunpack.c.l.b16 %v6268
  %v8555 = vunpack.c.l.b16 %v6269
  %v8556 = vunpack.c.h.b16 %v6269
  %v8557 = vunpack.c.l.b16 %v6270
  %v8558 = vunpack.c.h.b16 %v6270
  %v8559 = vunpack.c.l.b16 %v6271
  %v8560 = vunpack.c.l.b16 %v6272
  %v8561 = vunpack.c.h.b16 %v6272
  %v8562 = vunpack.c.l.b16 %v6273
  %v8563 = vunpack.c.h.b16 %v6273
  %v8564 = vunpack.c.l.b16 %v6274
  %v8565 = vunpack.c.l.b16 %v6275
  %v8566 = vunpack.c.h.b16 %v6275
  %v8567 = vunpack.c.l.b16 %v6276
  %v8568 = vunpack.c.h.b16 %v6276
  %v8569 = vunpack.c.l.b16 %v6277
  %v8570 = vunpack.c.l.b16 %v6278
  %v8571 = vunpack.c.h.b16 %v6278
  %v8572 = vunpack.c.l.b16 %v6279
  %v8573 = vunpack.c.h.b16 %v6279
  %v8574 = vunpack.c.l.b16 %v6280
  %v8575 = vunpack.c.l.b16 %v6281
  %v8576 = vunpack.c.h.b16 %v6281
  %v8577 = vunpack.c.l.b16 %v6282
  %v8578 = vunpack.c.h.b16 %v6282
  %v8579 = vunpack.c.l.b16 %v6283
  %v8580 = vunpack.c.l.b16 %v6284
  %v8581 = vunpack.c.h.b16 %v6284
  %v8582 = vunpack.c.l.b16 %v6285
  %v8583 = vunpack.c.h.b16 %v6285
  %v8584 = vunpack.c.l.b16 %v6286
  %v8585 = vunpack.c.l.b16 %v6287
  %v8586 = vunpack.c.h.b16 %v6287
  %v8587 = vunpack.c.l.b16 %v6288
  %v8588 = vunpack.c.h.b16 %v6288
  %v8589 = vunpack.c.l.b16 %v6289
  %v8590 = vunpack.c.l.b16 %v6290
  %v8591 = vunpack.c.h.b16 %v6290
  %v8592 = vunpack.c.l.b16 %v6291
  %v8593 = vunpack.c.h.b16 %v6291
  %v8594 = vunpack.c.l.b16 %v6292
  %v8595 = vunpack.c.l.b16 %v6293
  %v8596 = vunpack.c.h.b16 %v6293
  %v8597 = vunpack.c.l.b16 %v6294
  %v8598 = vunpack.c.h.b16 %v6294
  %v8599 = vunpack.c.l.b16 %v6295
  %v8600 = vunpack.c.l.b16 %v6296
  %v8601 = vunpack.c.h.b16 %v6296
  %v8602 = vunpack.c.l.b16 %v6297
  %v8603 = vunpack.c.h.b16 %v6297
  %v8604 = vunpack.c.l.b16 %v6298
  %v8605 = vunpack.c.l.b16 %v6299
  %v8606 = vunpack.c.h.b16 %v6299
  %v8607 = vunpack.c.l.b16 %v6300
  %v8608 = vunpack.c.h.b16 %v6300
  %v8609 = vunpack.c.l.b16 %v6301
  %v8610 = vunpack.c.l.b16 %v6302
  %v8611 = vunpack.c.h.b16 %v6302
  %v8612 = vunpack.c.l.b16 %v6303
  %v8613 = vunpack.c.h.b16 %v6303
  %v8614 = vunpack.c.l.b16 %v6304
  %v8615 = vunpack.c.l.b16 %v6305
  %v8616 = vunpack.c.h.b16 %v6305
  %v8617 = vunpack.c.l.b16 %v6306
  %v8618 = vunpack.c.h.b16 %v6306
  %v8619 = vunpack.c.l.b16 %v6307
  %v8620 = vunpack.c.l.b16 %v6308
  %v8621 = vunpack.c.h.b16 %v6308
  %v8622 = vunpack.c.l.b16 %v6309
  %v8623 = vunpack.c.h.b16 %v6309
  %v8624 = vunpack.c.l.b16 %v6310
  %v8625 = vunpack.c.l.b16 %v6311
  %v8626 = vunpack.c.h.b16 %v6311
  %v8627 = vunpack.c.l.b16 %v6312
  %v8628 = vunpack.c.h.b16 %v6312
  %v8629 = vunpack.c.l.b16 %v6313
  %v8630 = vunpack.c.l.b16 %v6314
  %v8631 = vunpack.c.h.b16 %v6314
  %v8632 = vunpack.c.l.b16 %v6315
  %v8633 = vunpack.c.h.b16 %v6315
  %v8634 = vunpack.c.l.b16 %v6316
  %v8635 = vunpack.c.l.b16 %v6317
  %v8636 = vunpack.c.h.b16 %v6317
  %v8637 = vunpack.c.l.b16 %v6318
  %v8638 = vunpack.c.h.b16 %v6318
  %v8639 = vunpack.c.l.b16 %v6319
  %v8640 = vunpack.c.l.b16 %v6320
  %v8641 = vunpack.c.h.b16 %v6320
  %v8642 = vunpack.c.l.b16 %v6321
  %v8643 = vunpack.c.h.b16 %v6321
  %v8644 = vunpack.c.l.b16 %v6322
  %v8645 = vunpack.c.l.b16 %v6323
  %v8646 = vunpack.c.h.b16 %v6323
  %v8647 = vunpack.c.l.b16 %v6324
  %v8648 = vunpack.c.h.b16 %v6324
  %v8649 = vunpack.c.l.b16 %v6325
  %v8650 = vunpack.c.l.b16 %v6326
  %v8651 = vunpack.c.h.b16 %v6326
  %v8652 = vunpack.c.l.b16 %v6327
  %v8653 = vunpack.c.h.b16 %v6327
  %v8654 = vunpack.c.l.b16 %v6328
  %v8655 = vunpack.c.l.b16 %v6329
  %v8656 = vunpack.c.h.b16 %v6329
  %v8657 = vunpack.c.l.b16 %v6330
  %v8658 = vunpack.c.h.b16 %v6330
  %v8659 = vunpack.c.l.b16 %v6331
  %v8660 = vunpack.c.l.b16 %v6332
  %v8661 = vunpack.c.h.b16 %v6332
  %v8662 = vunpack.c.l.b16 %v6333
  %v8663 = vunpack.c.h.b16 %v6333
  %v8664 = vunpack.c.l.b16 %v6334
  %v8665 = vunpack.c.l.b16 %v6335
  %v8666 = vunpack.c.h.b16 %v6335
  %v8667 = vunpack.c.l.b16 %v6336
  %v8668 = vunpack.c.h.b16 %v6336
  %v8669 = vunpack.c.l.b16 %v6337
  %v8670 = vunpack.c.l.b16 %v6338
  %v8671 = vunpack.c.h.b16 %v6338
  %v8672 = vunpack.c.l.b16 %v6339
  %v8673 = vunpack.c.h.b16 %v6339
  %v8674 = vunpack.c.l.b16 %v6340
  %v8675 = vunpack.c.l.b16 %v6341
  %v8676 = vunpack.c.h.b16 %v6341
  %v8677 = vunpack.c.l.b16 %v6342
  %v8678 = vunpack.c.h.b16 %v6342
  %v8679 = vunpack.c.l.b16 %v6343
  %v8680 = vunpack.c.l.b16 %v6344
  %v8681 = vunpack.c.h.b16 %v6344
  %v8682 = vunpack.c.l.b16 %v6345
  %v8683 = vunpack.c.h.b16 %v6345
  %v8684 = vunpack.c.l.b16 %v6346
  %v8685 = vunpack.c.l.b16 %v6347
  %v8686 = vunpack.c.h.b16 %v6347
  %v8687 = vunpack.c.l.b16 %v6348
  %v8688 = vunpack.c.h.b16 %v6348
  %v8689 = vunpack.c.l.b16 %v6349
  %v8690 = vunpack.c.l.b16 %v6350
  %v8691 = vunpack.c.h.b16 %v6350
  %v8692 = vunpack.c.l.b16 %v6351
  %v8693 = vunpack.c.h.b16 %v6351
  %v8694 = vunpack.c.l.b16 %v6352
  %v8695 = vunpack.c.l.b16 %v6353
  %v8696 = vunpack.c.h.b16 %v6353
  %v8697 = vunpack.c.l.b16 %v6354
  %v8698 = vunpack.c.h.b16 %v6354
  %v8699 = vunpack.c.l.b16 %v6355
  %v8700 = vunpack.c.l.b16 %v6356
  %v8701 = vunpack.c.h.b16 %v6356
  %v8702 = vunpack.c.l.b16 %v6357
  %v8703 = vunpack.c.h.b16 %v6357
  %v8704 = vunpack.c.l.b16 %v6358
  %v8705 = vunpack.c.l.b16 %v6359
  %v8706 = vunpack.c.h.b16 %v6359
  %v8707 = vunpack.c.l.b16 %v6360
  %v8708 = vunpack.c.h.b16 %v6360
  %v8709 = vunpack.c.l.b16 %v6361
  %v8710 = vunpack.c.l.b16 %v6362
  %v8711 = vunpack.c.h.b16 %v6362
  %v8712 = vunpack.c.l.b16 %v6363
  %v8713 = vunpack.c.h.b16 %v6363
  %v8714 = vunpack.c.l.b16 %v6364
  %v8715 = vunpack.c.l.b16 %v6365
  %v8716 = vunpack.c.h.b16 %v6365
  %v8717 = vunpack.c.l.b16 %v6366
  %v8718 = vunpack.c.h.b16 %v6366
  %v8719 = vunpack.c.l.b16 %v6367
  %v8720 = vunpack.c.l.b16 %v6368
  %v8721 = vunpack.c.h.b16 %v6368
  %v8722 = vunpack.c.l.b16 %v6369
  %v8723 = vunpack.c.h.b16 %v6369
  %v8724 = vunpack.c.l.b16 %v6370
  %v8725 = vunpack.c.l.b16 %v6371
  %v8726 = vunpack.c.h.b16 %v6371
  %v8727 = vunpack.c.l.b16 %v6372
  %v8728 = vunpack.c.h.b16 %v6372
  %v8729 = vunpack.c.l.b16 %v6373
  %v8730 = vunpack.c.l.b16 %v6374
  %v8731 = vunpack.c.h.b16 %v6374
  %v8732 = vunpack.c.l.b16 %v6375
  %v8733 = vunpack.c.h.b16 %v6375
  %v8734 = vunpack.c.l.b16 %v6376
  %v8735 = vunpack.c.l.b16 %v6377
  %v8736 = vunpack.c.h.b16 %v6377
  %v8737 = vunpack.c.l.b16 %v6378
  %v8738 = vunpack.c.h.b16 %v6378
  %v8739 = vunpack.c.l.b16 %v6379
  %v8740 = vunpack.c.l.b16 %v6380
  %v8741 = vunpack.c.h.b16 %v6380
  %v8742 = vunpack.c.l.b16 %v6381
  %v8743 = vunpack.c.h.b16 %v6381
  %v8744 = vunpack.c.l.b16 %v6382
  %v8745 = vunpack.c.l.b16 %v6383
  %v8746 = vunpack.c.h.b16 %v6383
  %v8747 = vunpack.c.l.b16 %v6384
  %v8748 = vunpack.c.h.b16 %v6384
  %v8749 = vunpack.c.l.b16 %v6385
  %v8750 = vunpack.c.l.b16 %v6386
  %v8751 = vunpack.c.h.b16 %v6386
  %v8752 = vunpack.c.l.b16 %v6387
  %v8753 = vunpack.c.h.b16 %v6387
  %v8754 = vunpack.c.l.b16 %v6388
  %v8755 = vunpack.c.l.b16 %v6389
  %v8756 = vunpack.c.h.b16 %v6389
  %v8757 = vunpack.c.l.b16 %v6390
  %v8758 = vunpack.c.h.b16 %v6390
  %v8759 = vunpack.c.l.b16 %v6391
  %v8760 = vunpack.c.l.b16 %v6392
  %v8761 = vunpack.c.h.b16 %v6392
  %v8762 = vunpack.c.l.b16 %v6393
  %v8763 = vunpack.c.h.b16 %v6393
  %v8764 = vunpack.c.l.b16 %v6394
  %v8765 = vunpack.c.l.b16 %v6395
  %v8766 = vunpack.c.h.b16 %v6395
  %v8767 = vunpack.c.l.b16 %v6396
  %v8768 = vunpack.c.h.b16 %v6396
  %v8769 = vunpack.c.l.b16 %v6397
  %v8770 = vunpack.c.l.b16 %v6398
  %v8771 = vunpack.c.h.b16 %v6398
  %v8772 = vunpack.c.l.b16 %v6399
  %v8773 = vunpack.c.h.b16 %v6399
  %v8774 = vunpack.c.l.b16 %v6400
  %v8775 = vunpack.c.l.b16 %v6401
  %v8776 = vunpack.c.h.b16 %v6401
  %v8777 = vunpack.c.l.b16 %v6402
  %v8778 = vunpack.c.h.b16 %v6402
  %v8779 = vunpack.c.l.b16 %v6403
  %v8780 = vunpack.c.l.b16 %v6404
  %v8781 = vunpack.c.h.b16 %v6404
  %v8782 = vunpack.c.l.b16 %v6405
  %v8783 = vunpack.c.h.b16 %v6405
  %v8784 = vunpack.c.l.b16 %v6406
  %v8785 = vunpack.c.l.b16 %v6407
  %v8786 = vunpack.c.h.b16 %v6407
  %v8787 = vunpack.c.l.b16 %v6408
  %v8788 = vunpack.c.h.b16 %v6408
  %v8789 = vunpack.c.l.b16 %v6409
  %v8790 = vunpack.c.l.b16 %v6410
  %v8791 = vunpack.c.h.b16 %v6410
  %v8792 = vunpack.c.l.b16 %v6411
  %v8793 = vunpack.c.h.b16 %v6411
  %v8794 = vunpack.c.l.b16 %v6412
  %v8795 = vunpack.c.l.b16 %v6413
  %v8796 = vunpack.c.h.b16 %v6413
  %v8797 = vunpack.c.l.b16 %v6414
  %v8798 = vunpack.c.h.b16 %v6414
  %v8799 = vunpack.c.l.b16 %v6415
  %v8800 = vunpack.c.l.b16 %v6416
  %v8801 = vunpack.c.h.b16 %v6416
  %v8802 = vunpack.c.l.b16 %v6417
  %v8803 = vunpack.c.h.b16 %v6417
  %v8804 = vunpack.c.l.b16 %v6418
  %v8805 = vunpack.c.l.b16 %v6419
  %v8806 = vunpack.c.h.b16 %v6419
  %v8807 = vunpack.c.l.b16 %v6420
  %v8808 = vunpack.c.h.b16 %v6420
  %v8809 = vunpack.c.l.b16 %v6421
  %v8810 = vunpack.c.l.b16 %v6422
  %v8811 = vunpack.c.h.b16 %v6422
  %v8812 = vunpack.c.l.b16 %v6423
  %v8813 = vunpack.c.h.b16 %v6423
  %v8814 = vunpack.c.l.b16 %v6424
  %v8815 = vunpack.c.l.b16 %v6425
  %v8816 = vunpack.c.h.b16 %v6425
  %v8817 = vunpack.c.l.b16 %v6426
  %v8818 = vunpack.c.h.b16 %v6426
  %v8819 = vunpack.c.l.b16 %v6427
  %v8820 = vunpack.c.l.b16 %v6428
  %v8821 = vunpack.c.h.b16 %v6428
  %v8822 = vunpack.c.l.b16 %v6429
  %v8823 = vunpack.c.h.b16 %v6429
  %v8824 = vunpack.c.l.b16 %v6430
  %v8825 = vunpack.c.l.b16 %v6431
  %v8826 = vunpack.c.h.b16 %v6431
  %v8827 = vunpack.c.l.b16 %v6432
  %v8828 = vunpack.c.h.b16 %v6432
  %v8829 = vunpack.c.l.b16 %v6433
  %v8830 = vunpack.c.l.b16 %v6434
  %v8831 = vunpack.c.h.b16 %v6434
  %v8832 = vunpack.c.l.b16 %v6435
  %v8833 = vunpack.c.h.b16 %v6435
  %v8834 = vunpack.c.l.b16 %v6436
  %v8835 = vunpack.c.l.b16 %v6437
  %v8836 = vunpack.c.h.b16 %v6437
  %v8837 = vunpack.c.l.b16 %v6438
  %v8838 = vunpack.c.h.b16 %v6438
  %v8839 = vunpack.c.l.b16 %v6439
  %v8840 = vunpack.c.l.b16 %v6440
  %v8841 = vunpack.c.h.b16 %v6440
  %v8842 = vunpack.c.l.b16 %v6441
  %v8843 = vunpack.c.h.b16 %v6441
  %v8844 = vunpack.c.l.b16 %v6442
  %v8845 = vunpack.c.l.b16 %v6443
  %v8846 = vunpack.c.h.b16 %v6443
  %v8847 = vunpack.c.l.b16 %v6444
  %v8848 = vunpack.c.h.b16 %v6444
  %v8849 = vunpack.c.l.b16 %v6445
  %v8850 = vunpack.c.l.b16 %v6446
  %v8851 = vunpack.c.h.b16 %v6446
  %v8852 = vunpack.c.l.b16 %v6447
  %v8853 = vunpack.c.h.b16 %v6447
  %v8854 = vunpack.c.l.b16 %v6448
  %v8855 = vunpack.c.l.b16 %v6449
  %v8856 = vunpack.c.h.b16 %v6449
  %v8857 = vunpack.c.l.b16 %v6450
  %v8858 = vunpack.c.h.b16 %v6450
  %v8859 = vunpack.c.l.b16 %v6451
  %v8860 = vunpack.c.l.b16 %v6452
  %v8861 = vunpack.c.h.b16 %v6452
  %v8862 = vunpack.c.l.b16 %v6453
  %v8863 = vunpack.c.h.b16 %v6453
  %v8864 = vunpack.c.l.b16 %v6454
  %v8865 = vunpack.c.l.b16 %v6455
  %v8866 = vunpack.c.h.b16 %v6455
  %v8867 = vunpack.c.l.b16 %v6456
  %v8868 = vunpack.c.h.b16 %v6456
  %v8869 = vunpack.c.l.b16 %v6457
  %v8870 = vpack.c.b16 %v7375, %v7370
  %v8871 = vpack.c.b16 %v7376, %v7371
  %v8872 = vpack.c.b16 %v7377, %v7372
  %v8873 = vpack.c.b16 %v7378, %v7373
  %v8874 = vpack.c.b16 %v7379, %v7374
  %v8875 = vpack.c.b16 %v7385, %v7380
  %v8876 = vpack.c.b16 %v7386, %v7381
  %v8877 = vpack.c.b16 %v7387, %v7382
  %v8878 = vpack.c.b16 %v7388, %v7383
  %v8879 = vpack.c.b16 %v7389, %v7384
  %v8880 = vpack.c.b16 %v7395, %v7390
  %v8881 = vpack.c.b16 %v7396, %v7391
  %v8882 = vpack.c.b16 %v7397, %v7392
  %v8883 = vpack.c.b16 %v7398, %v7393
  %v8884 = vpack.c.b16 %v7399, %v7394
  %v8885 = vpack.c.b16 %v7405, %v7400
  %v8886 = vpack.c.b16 %v7406, %v7401
  %v8887 = vpack.c.b16 %v7407, %v7402
  %v8888 = vpack.c.b16 %v7408, %v7403
  %v8889 = vpack.c.b16 %v7409, %v7404
  %v8890 = vpack.c.b16 %v7415, %v7410
  %v8891 = vpack.c.b16 %v7416, %v7411
  %v8892 = vpack.c.b16 %v7417, %v7412
  %v8893 = vpack.c.b16 %v7418, %v7413
  %v8894 = vpack.c.b16 %v7419, %v7414
  %v8895 = vpack.c.b16 %v7425, %v7420
  %v8896 = vpack.c.b16 %v7426, %v7421
  %v8897 = vpack.c.b16 %v7427, %v7422
  %v8898 = vpack.c.b16 %v7428, %v7423
  %v8899 = vpack.c.b16 %v7429, %v7424
  %v8900 = vpack.c.b16 %v7435, %v7430
  %v8901 = vpack.c.b16 %v7436, %v7431
  %v8902 = vpack.c.b16 %v7437, %v7432
  %v8903 = vpack.c.b16 %v7438, %v7433
  %v8904 = vpack.c.b16 %v7439, %v7434
  %v8905 = vpack.c.b16 %v7445, %v7440
  %v8906 = vpack.c.b16 %v7446, %v7441
  %v8907 = vpack.c.b16 %v7447, %v7442
  %v8908 = vpack.c.b16 %v7448, %v7443
  %v8909 = vpack.c.b16 %v7449, %v7444
  %v8910 = vpack.c.b16 %v7455, %v7450
  %v8911 = vpack.c.b16 %v7456, %v7451
  %v8912 = vpack.c.b16 %v7457, %v7452
  %v8913 = vpack.c.b16 %v7458, %v7453
  %v8914 = vpack.c.b16 %v7459, %v7454
  %v8915 = vpack.c.b16 %v7465, %v7460
  %v8916 = vpack.c.b16 %v7466, %v7461
  %v8917 = vpack.c.b16 %v7467, %v7462
  %v8918 = vpack.c.b16 %v7468, %v7463
  %v8919 = vpack.c.b16 %v7469, %v7464
  %v8920 = vpack.c.b16 %v7475, %v7470
  %v8921 = vpack.c.b16 %v7476, %v7471
  %v8922 = vpack.c.b16 %v7477, %v7472
  %v8923 = vpack.c.b16 %v7478, %v7473
  %v8924 = vpack.c.b16 %v7479, %v7474
  %v8925 = vpack.c.b16 %v7485, %v7480
  %v8926 = vpack.c.b16 %v7486, %v7481
  %v8927 = vpack.c.b16 %v7487, %v7482
  %v8928 = vpack.c.b16 %v7488, %v7483
  %v8929 = vpack.c.b16 %v7489, %v7484
  %v8930 = vpack.c.b16 %v7495, %v7490
  %v8931 = vpack.c.b16 %v7496, %v7491
  %v8932 = vpack.c.b16 %v7497, %v7492
  %v8933 = vpack.c.b16 %v7498, %v7493
  %v8934 = vpack.c.b16 %v7499, %v7494
  %v8935 = vpack.c.b16 %v7505, %v7500
  %v8936 = vpack.c.b16 %v7506, %v7501
  %v8937 = vpack.c.b16 %v7507, %v7502
  %v8938 = vpack.c.b16 %v7508, %v7503
  %v8939 = vpack.c.b16 %v7509, %v7504
  %v8940 = vpack.c.b16 %v7515, %v7510
  %v8941 = vpack.c.b16 %v7516, %v7511
  %v8942 = vpack.c.b16 %v7517, %v7512
  %v8943 = vpack.c.b16 %v7518, %v7513
  %v8944 = vpack.c.b16 %v7519, %v7514
  %v8945 = vpack.c.b16 %v7525, %v7520
  %v8946 = vpack.c.b16 %v7526, %v7521
  %v8947 = vpack.c.b16 %v7527, %v7522
  %v8948 = vpack.c.b16 %v7528, %v7523
  %v8949 = vpack.c.b16 %v7529, %v7524
  %v8950 = vpack.c.b16 %v7535, %v7530
  %v8951 = vpack.c.b16 %v7536, %v7531
  %v8952 = vpack.c.b16 %v7537, %v7532
  %v8953 = vpack.c.b16 %v7538, %v7533
  %v8954 = vpack.c.b16 %v7539, %v7534
  %v8955 = vpack.c.b16 %v7545, %v7540
  %v8956 = vpack.c.b16 %v7546, %v7541
  %v8957 = vpack.c.b16 %v7547, %v7542
  %v8958 = vpack.c.b16 %v7548, %v7543
  %v8959 = vpack.c.b16 %v7549, %v7544
  %v8960 = vpack.c.b16 %v7555, %v7550
  %v8961 = vpack.c.b16 %v7556, %v7551
  %v8962 = vpack.c.b16 %v7557, %v7552
  %v8963 = vpack.c.b16 %v7558, %v7553
  %v8964 = vpack.c.b16 %v7559, %v7554
  %v8965 = vpack.c.b16 %v7565, %v7560
  %v8966 = vpack.c.b16 %v7566, %v7561
  %v8967 = vpack.c.b16 %v7567, %v7562
  %v8968 = vpack.c.b16 %v7568, %v7563
  %v8969 = vpack.c.b16 %v7569, %v7564
  %v8970 = vpack.c.b16 %v7575, %v7570
  %v8971 = vpack.c.b16 %v7576, %v7571
  %v8972 = vpack.c.b16 %v7577, %v7572
  %v8973 = vpack.c.b16 %v7578, %v7573
  %v8974 = vpack.c.b16 %v7579, %v7574
  %v8975 = vpack.c.b16 %v7585, %v7580
  %v8976 = vpack.c.b16 %v7586, %v7581
  %v8977 = vpack.c.b16 %v7587, %v7582
  %v8978 = vpack.c.b16 %v7588, %v7583
  %v8979 = vpack.c.b16 %v7589, %v7584
  %v8980 = vpack.c.b16 %v7595, %v7590
  %v8981 = vpack.c.b16 %v7596, %v7591
  %v8982 = vpack.c.b16 %v7597, %v7592
  %v8983 = vpack.c.b16 %v7598, %v7593
  %v8984 = vpack.c.b16 %v7599, %v7594
  %v8985 = vpack.c.b16 %v7605, %v7600
  %v8986 = vpack.c.b16 %v7606, %v7601
  %v8987 = vpack.c.b16 %v7607, %v7602
  %v8988 = vpack.c.b16 %v7608, %v7603
  %v8989 = vpack.c.b16 %v7609, %v7604
  %v8990 = vpack.c.b16 %v7615, %v7610
  %v8991 = vpack.c.b16 %v7616, %v7611
  %v8992 = vpack.c.b16 %v7617, %v7612
  %v8993 = vpack.c.b16 %v7618, %v7613
  %v8994 = vpack.c.b16 %v7619, %v7614
  %v8995 = vpack.c.b16 %v7625, %v7620
  %v8996 = vpack.c.b16 %v7626, %v7621
  %v8997 = vpack.c.b16 %v7627, %v7622
  %v8998 = vpack.c.b16 %v7628, %v7623
  %v8999 = vpack.c.b16 %v7629, %v7624
  %v9000 = vpack.c.b16 %v7635, %v7630
  %v9001 = vpack.c.b16 %v7636, %v7631
  %v9002 = vpack.c.b16 %v7637, %v7632
  %v9003 = vpack.c.b16 %v7638, %v7633
  %v9004 = vpack.c.b16 %v7639, %v7634
  %v9005 = vpack.c.b16 %v7645, %v7640
  %v9006 = vpack.c.b16 %v7646, %v7641
  %v9007 = vpack.c.b16 %v7647, %v7642
  %v9008 = vpack.c.b16 %v7648, %v7643
  %v9009 = vpack.c.b16 %v7649, %v7644
  %v9010 = vpack.c.b16 %v7655, %v7650
  %v9011 = vpack.c.b16 %v7656, %v7651
  %v9012 = vpack.c.b16 %v7657, %v7652
  %v9013 = vpack.c.b16 %v7658, %v7653
  %v9014 = vpack.c.b16 %v7659, %v7654
  %v9015 = vpack.c.b16 %v7665, %v7660
  %v9016 = vpack.c.b16 %v7666, %v7661
  %v9017 = vpack.c.b16 %v7667, %v7662
  %v9018 = vpack.c.b16 %v7668, %v7663
  %v9019 = vpack.c.b16 %v7669, %v7664
  %v9020 = vpack.c.b16 %v7675, %v7670
  %v9021 = vpack.c.b16 %v7676, %v7671
  %v9022 = vpack.c.b16 %v7677, %v7672
  %v9023 = vpack.c.b16 %v7678, %v7673
  %v9024 = vpack.c.b16 %v7679, %v7674
  %v9025 = vpack.c.b16 %v7685, %v7680
  %v9026 = vpack.c.b16 %v7686, %v7681
  %v9027 = vpack.c.b16 %v7687, %v7682
  %v9028 = vpack.c.b16 %v7688, %v7683
  %v9029 = vpack.c.b16 %v7689, %v7684
  %v9030 = vpack.c.b16 %v7695, %v7690
  %v9031 = vpack.c.b16 %v7696, %v7691
  %v9032 = vpack.c.b16 %v7697, %v7692
  %v9033 = vpack.c.b16 %v7698, %v7693
  %v9034 = vpack.c.b16 %v7699, %v7694
  %v9035 = vpack.c.b16 %v7705, %v7700
  %v9036 = vpack.c.b16 %v7706, %v7701
  %v9037 = vpack.c.b16 %v7707, %v7702
  %v9038 = vpack.c.b16 %v7708, %v7703
  %v9039 = vpack.c.b16 %v7709, %v7704
  %v9040 = vpack.c.b16 %v7715, %v7710
  %v9041 = vpack.c.b16 %v7716, %v7711
  %v9042 = vpack.c.b16 %v7717, %v7712
  %v9043 = vpack.c.b16 %v7718, %v7713
  %v9044 = vpack.c.b16 %v7719, %v7714
  %v9045 = vpack.c.b16 %v7725, %v7720
  %v9046 = vpack.c.b16 %v7726, %v7721
  %v9047 = vpack.c.b16 %v7727, %v7722
  %v9048 = vpack.c.b16 %v7728, %v7723
  %v9049 = vpack.c.b16 %v7729, %v7724
  %v9050 = vpack.c.b16 %v7735, %v7730
  %v9051 = vpack.c.b16 %v7736, %v7731
  %v9052 = vpack.c.b16 %v7737, %v7732
  %v9053 = vpack.c.b16 %v7738, %v7733
  %v9054 = vpack.c.b16 %v7739, %v7734
  %v9055 = vpack.c.b16 %v7745, %v7740
  %v9056 = vpack.c.b16 %v7746, %v7741
  %v9057 = vpack.c.b16 %v7747, %v7742
  %v9058 = vpack.c.b16 %v7748, %v7743
  %v9059 = vpack.c.b16 %v7749, %v7744
  %v9060 = vpack.c.b16 %v7755, %v7750
  %v9061 = vpack.c.b16 %v7756, %v7751
  %v9062 = vpack.c.b16 %v7757, %v7752
  %v9063 = vpack.c.b16 %v7758, %v7753
  %v9064 = vpack.c.b16 %v7759, %v7754
  %v9065 = vpack.c.b16 %v7765, %v7760
  %v9066 = vpack.c.b16 %v7766, %v7761
  %v9067 = vpack.c.b16 %v7767, %v7762
  %v9068 = vpack.c.b16 %v7768, %v7763
  %v9069 = vpack.c.b16 %v7769, %v7764
  %v9070 = vpack.c.b16 %v7775, %v7770
  %v9071 = vpack.c.b16 %v7776, %v7771
  %v9072 = vpack.c.b16 %v7777, %v7772
  %v9073 = vpack.c.b16 %v7778, %v7773
  %v9074 = vpack.c.b16 %v7779, %v7774
  %v9075 = vpack.c.b16 %v7785, %v7780
  %v9076 = vpack.c.b16 %v7786, %v7781
  %v9077 = vpack.c.b16 %v7787, %v7782
  %v9078 = vpack.c.b16 %v7788, %v7783
  %v9079 = vpack.c.b16 %v7789, %v7784
  %v9080 = vpack.c.b16 %v7795, %v7790
  %v9081 = vpack.c.b16 %v7796, %v7791
  %v9082 = vpack.c.b16 %v7797, %v7792
  %v9083 = vpack.c.b16 %v7798, %v7793
  %v9084 = vpack.c.b16 %v7799, %v7794
  %v9085 = vpack.c.b16 %v7805, %v7800
  %v9086 = vpack.c.b16 %v7806, %v7801
  %v9087 = vpack.c.b16 %v7807, %v7802
  %v9088 = vpack.c.b16 %v7808, %v7803
  %v9089 = vpack.c.b16 %v7809, %v7804
  %v9090 = vpack.c.b16 %v7815, %v7810
  %v9091 = vpack.c.b16 %v7816, %v7811
  %v9092 = vpack.c.b16 %v7817, %v7812
  %v9093 = vpack.c.b16 %v7818, %v7813
  %v9094 = vpack.c.b16 %v7819, %v7814
  %v9095 = vpack.c.b16 %v7825, %v7820
  %v9096 = vpack.c.b16 %v7826, %v7821
  %v9097 = vpack.c.b16 %v7827, %v7822
  %v9098 = vpack.c.b16 %v7828, %v7823
  %v9099 = vpack.c.b16 %v7829, %v7824
  %v9100 = vpack.c.b16 %v7835, %v7830
  %v9101 = vpack.c.b16 %v7836, %v7831
  %v9102 = vpack.c.b16 %v7837, %v7832
  %v9103 = vpack.c.b16 %v7838, %v7833
  %v9104 = vpack.c.b16 %v7839, %v7834
  %v9105 = vpack.c.b16 %v7845, %v7840
  %v9106 = vpack.c.b16 %v7846, %v7841
  %v9107 = vpack.c.b16 %v7847, %v7842
  %v9108 = vpack.c.b16 %v7848, %v7843
  %v9109 = vpack.c.b16 %v7849, %v7844
  %v9110 = vpack.c.b16 %v7855, %v7850
  %v9111 = vpack.c.b16 %v7856, %v7851
  %v9112 = vpack.c.b16 %v7857, %v7852
  %v9113 = vpack.c.b16 %v7858, %v7853
  %v9114 = vpack.c.b16 %v7859, %v7854
  %v9115 = vpack.c.b16 %v7865, %v7860
  %v9116 = vpack.c.b16 %v7866, %v7861
  %v9117 = vpack.c.b16 %v7867, %v7862
  %v9118 = vpack.c.b16 %v7868, %v7863
  %v9119 = vpack.c.b16 %v7869, %v7864
  %v9120 = vpack.c.b16 %v7875, %v7870
  %v9121 = vpack.c.b16 %v7876, %v7871
  %v9122 = vpack.c.b16 %v7877, %v7872
  %v9123 = vpack.c.b16 %v7878, %v7873
  %v9124 = vpack.c.b16 %v7879, %v7874
  %v9125 = vpack.c.b16 %v7885, %v7880
  %v9126 = vpack.c.b16 %v7886, %v7881
  %v9127 = vpack.c.b16 %v7887, %v7882
  %v9128 = vpack.c.b16 %v7888, %v7883
  %v9129 = vpack.c.b16 %v7889, %v7884
  %v9130 = vpack.c.b16 %v7895, %v7890
  %v9131 = vpack.c.b16 %v7896, %v7891
  %v9132 = vpack.c.b16 %v7897, %v7892
  %v9133 = vpack.c.b16 %v7898, %v7893
  %v9134 = vpack.c.b16 %v7899, %v7894
  %v9135 = vpack.c.b16 %v7905, %v7900
  %v9136 = vpack.c.b16 %v7906, %v7901
  %v9137 = vpack.c.b16 %v7907, %v7902
  %v9138 = vpack.c.b16 %v7908, %v7903
  %v9139 = vpack.c.b16 %v7909, %v7904
  %v9140 = vpack.c.b16 %v7915, %v7910
  %v9141 = vpack.c.b16 %v7916, %v7911
  %v9142 = vpack.c.b16 %v7917, %v7912
  %v9143 = vpack.c.b16 %v7918, %v7913
  %v9144 = vpack.c.b16 %v7919, %v7914
  %v9145 = vpack.c.b16 %v7925, %v7920
  %v9146 = vpack.c.b16 %v7926, %v7921
  %v9147 = vpack.c.b16 %v7927, %v7922
  %v9148 = vpack.c.b16 %v7928, %v7923
  %v9149 = vpack.c.b16 %v7929, %v7924
  %v9150 = vpack.c.b16 %v7935, %v7930
  %v9151 = vpack.c.b16 %v7936, %v7931
  %v9152 = vpack.c.b16 %v7937, %v7932
  %v9153 = vpack.c.b16 %v7938, %v7933
  %v9154 = vpack.c.b16 %v7939, %v7934
  %v9155 = vpack.c.b16 %v7945, %v7940
  %v9156 = vpack.c.b16 %v7946, %v7941
  %v9157 = vpack.c.b16 %v7947, %v7942
  %v9158 = vpack.c.b16 %v7948, %v7943
  %v9159 = vpack.c.b16 %v7949, %v7944
  %v9160 = vpack.c.b16 %v7955, %v7950
  %v9161 = vpack.c.b16 %v7956, %v7951
  %v9162 = vpack.c.b16 %v7957, %v7952
  %v9163 = vpack.c.b16 %v7958, %v7953
  %v9164 = vpack.c.b16 %v7959, %v7954
  %v9165 = vpack.c.b16 %v7965, %v7960
  %v9166 = vpack.c.b16 %v7966, %v7961
  %v9167 = vpack.c.b16 %v7967, %v7962
  %v9168 = vpack.c.b16 %v7968, %v7963
  %v9169 = vpack.c.b16 %v7969, %v7964
  %v9170 = vpack.c.b16 %v7975, %v7970
  %v9171 = vpack.c.b16 %v7976, %v7971
  %v9172 = vpack.c.b16 %v7977, %v7972
  %v9173 = vpack.c.b16 %v7978, %v7973
  %v9174 = vpack.c.b16 %v7979, %v7974
  %v9175 = vpack.c.b16 %v7985, %v7980
  %v9176 = vpack.c.b16 %v7986, %v7981
  %v9177 = vpack.c.b16 %v7987, %v7982
  %v9178 = vpack.c.b16 %v7988, %v7983
  %v9179 = vpack.c.b16 %v7989, %v7984
  %v9180 = vpack.c.b16 %v7995, %v7990
  %v9181 = vpack.c.b16 %v7996, %v7991
  %v9182 = vpack.c.b16 %v7997, %v7992
  %v9183 = vpack.c.b16 %v7998, %v7993
  %v9184 = vpack.c.b16 %v7999, %v7994
  %v9185 = vpack.c.b16 %v8005, %v8000
  %v9186 = vpack.c.b16 %v8006, %v8001
  %v9187 = vpack.c.b16 %v8007, %v8002
  %v9188 = vpack.c.b16 %v8008, %v8003
  %v9189 = vpack.c.b16 %v8009, %v8004
  %v9190 = vpack.c.b16 %v8015, %v8010
  %v9191 = vpack.c.b16 %v8016, %v8011
  %v9192 = vpack.c.b16 %v8017, %v8012
  %v9193 = vpack.c.b16 %v8018, %v8013
  %v9194 = vpack.c.b16 %v8019, %v8014
  %v9195 = vpack.c.b16 %v8025, %v8020
  %v9196 = vpack.c.b16 %v8026, %v8021
  %v9197 = vpack.c.b16 %v8027, %v8022
  %v9198 = vpack.c.b16 %v8028, %v8023
  %v9199 = vpack.c.b16 %v8029, %v8024
  %v9200 = vpack.c.b16 %v8035, %v8030
  %v9201 = vpack.c.b16 %v8036, %v8031
  %v9202 = vpack.c.b16 %v8037, %v8032
  %v9203 = vpack.c.b16 %v8038, %v8033
  %v9204 = vpack.c.b16 %v8039, %v8034
  %v9205 = vpack.c.b16 %v8045, %v8040
  %v9206 = vpack.c.b16 %v8046, %v8041
  %v9207 = vpack.c.b16 %v8047, %v8042
  %v9208 = vpack.c.b16 %v8048, %v8043
  %v9209 = vpack.c.b16 %v8049, %v8044
  %v9210 = vpack.c.b16 %v8055, %v8050
  %v9211 = vpack.c.b16 %v8056, %v8051
  %v9212 = vpack.c.b16 %v8057, %v8052
  %v9213 = vpack.c.b16 %v8058, %v8053
  %v9214 = vpack.c.b16 %v8059, %v8054
  %v9215 = vpack.c.b16 %v8065, %v8060
  %v9216 = vpack.c.b16 %v8066, %v8061
  %v9217 = vpack.c.b16 %v8067, %v8062
  %v9218 = vpack.c.b16 %v8068, %v8063
  %v9219 = vpack.c.b16 %v8069, %v8064
  %v9220 = vpack.c.b16 %v8075, %v8070
  %v9221 = vpack.c.b16 %v8076, %v8071
  %v9222 = vpack.c.b16 %v8077, %v8072
  %v9223 = vpack.c.b16 %v8078, %v8073
  %v9224 = vpack.c.b16 %v8079, %v8074
  %v9225 = vpack.c.b16 %v8085, %v8080
  %v9226 = vpack.c.b16 %v8086, %v8081
  %v9227 = vpack.c.b16 %v8087, %v8082
  %v9228 = vpack.c.b16 %v8088, %v8083
  %v9229 = vpack.c.b16 %v8089, %v8084
  %v9230 = vpack.c.b16 %v8095, %v8090
  %v9231 = vpack.c.b16 %v8096, %v8091
  %v9232 = vpack.c.b16 %v8097, %v8092
  %v9233 = vpack.c.b16 %v8098, %v8093
  %v9234 = vpack.c.b16 %v8099, %v8094
  %v9235 = vpack.c.b16 %v8105, %v8100
  %v9236 = vpack.c.b16 %v8106, %v8101
  %v9237 = vpack.c.b16 %v8107, %v8102
  %v9238 = vpack.c.b16 %v8108, %v8103
  %v9239 = vpack.c.b16 %v8109, %v8104
  %v9240 = vpack.c.b16 %v8115, %v8110
  %v9241 = vpack.c.b16 %v8116, %v8111
  %v9242 = vpack.c.b16 %v8117, %v8112
  %v9243 = vpack.c.b16 %v8118, %v8113
  %v9244 = vpack.c.b16 %v8119, %v8114
  %v9245 = vpack.c.b16 %v8125, %v8120
  %v9246 = vpack.c.b16 %v8126, %v8121
  %v9247 = vpack.c.b16 %v8127, %v8122
  %v9248 = vpack.c.b16 %v8128, %v8123
  %v9249 = vpack.c.b16 %v8129, %v8124
  %v9250 = vpack.c.b16 %v8135, %v8130
  %v9251 = vpack.c.b16 %v8136, %v8131
  %v9252 = vpack.c.b16 %v8137, %v8132
  %v9253 = vpack.c.b16 %v8138, %v8133
  %v9254 = vpack.c.b16 %v8139, %v8134
  %v9255 = vpack.c.b16 %v8145, %v8140
  %v9256 = vpack.c.b16 %v8146, %v8141
  %v9257 = vpack.c.b16 %v8147, %v8142
  %v9258 = vpack.c.b16 %v8148, %v8143
  %v9259 = vpack.c.b16 %v8149, %v8144
  %v9260 = vpack.c.b16 %v8155, %v8150
  %v9261 = vpack.c.b16 %v8156, %v8151
  %v9262 = vpack.c.b16 %v8157, %v8152
  %v9263 = vpack.c.b16 %v8158, %v8153
  %v9264 = vpack.c.b16 %v8159, %v8154
  %v9265 = vpack.c.b16 %v8165, %v8160
  %v9266 = vpack.c.b16 %v8166, %v8161
  %v9267 = vpack.c.b16 %v8167, %v8162
  %v9268 = vpack.c.b16 %v8168, %v8163
  %v9269 = vpack.c.b16 %v8169, %v8164
  %v9270 = vpack.c.b16 %v8175, %v8170
  %v9271 = vpack.c.b16 %v8176, %v8171
  %v9272 = vpack.c.b16 %v8177, %v8172
  %v9273 = vpack.c.b16 %v8178, %v8173
  %v9274 = vpack.c.b16 %v8179, %v8174
  %v9275 = vpack.c.b16 %v8185, %v8180
  %v9276 = vpack.c.b16 %v8186, %v8181
  %v9277 = vpack.c.b16 %v8187, %v8182
  %v9278 = vpack.c.b16 %v8188, %v8183
  %v9279 = vpack.c.b16 %v8189, %v8184
  %v9280 = vpack.c.b16 %v8195, %v8190
  %v9281 = vpack.c.b16 %v8196, %v8191
  %v9282 = vpack.c.b16 %v8197, %v8192
  %v9283 = vpack.c.b16 %v8198, %v8193
  %v9284 = vpack.c.b16 %v8199, %v8194
  %v9285 = vpack.c.b16 %v8205, %v8200
  %v9286 = vpack.c.b16 %v8206, %v8201
  %v9287 = vpack.c.b16 %v8207, %v8202
  %v9288 = vpack.c.b16 %v8208, %v8203
  %v9289 = vpack.c.b16 %v8209, %v8204
  %v9290 = vpack.c.b16 %v8215, %v8210
  %v9291 = vpack.c.b16 %v8216, %v8211
  %v9292 = vpack.c.b16 %v8217, %v8212
  %v9293 = vpack.c.b16 %v8218, %v8213
  %v9294 = vpack.c.b16 %v8219, %v8214
  %v9295 = vpack.c.b16 %v8225, %v8220
  %v9296 = vpack.c.b16 %v8226, %v8221
  %v9297 = vpack.c.b16 %v8227, %v8222
  %v9298 = vpack.c.b16 %v8228, %v8223
  %v9299 = vpack.c.b16 %v8229, %v8224
  %v9300 = vpack.c.b16 %v8235, %v8230
  %v9301 = vpack.c.b16 %v8236, %v8231
  %v9302 = vpack.c.b16 %v8237, %v8232
  %v9303 = vpack.c.b16 %v8238, %v8233
  %v9304 = vpack.c.b16 %v8239, %v8234
  %v9305 = vpack.c.b16 %v8245, %v8240
  %v9306 = vpack.c.b16 %v8246, %v8241
  %v9307 = vpack.c.b16 %v8247, %v8242
  %v9308 = vpack.c.b16 %v8248, %v8243
  %v9309 = vpack.c.b16 %v8249, %v8244
  %v9310 = vpack.c.b16 %v8255, %v8250
  %v9311 = vpack.c.b16 %v8256, %v8251
  %v9312 = vpack.c.b16 %v8257, %v8252
  %v9313 = vpack.c.b16 %v8258, %v8253
  %v9314 = vpack.c.b16 %v8259, %v8254
  %v9315 = vpack.c.b16 %v8265, %v8260
  %v9316 = vpack.c.b16 %v8266, %v8261
  %v9317 = vpack.c.b16 %v8267, %v8262
  %v9318 = vpack.c.b16 %v8268, %v8263
  %v9319 = vpack.c.b16 %v8269, %v8264
  %v9320 = vpack.c.b16 %v8275, %v8270
  %v9321 = vpack.c.b16 %v8276, %v8271
  %v9322 = vpack.c.b16 %v8277, %v8272
  %v9323 = vpack.c.b16 %v8278, %v8273
  %v9324 = vpack.c.b16 %v8279, %v8274
  %v9325 = vpack.c.b16 %v8285, %v8280
  %v9326 = vpack.c.b16 %v8286, %v8281
  %v9327 = vpack.c.b16 %v8287, %v8282
  %v9328 = vpack.c.b16 %v8288, %v8283
  %v9329 = vpack.c.b16 %v8289, %v8284
  %v9330 = vpack.c.b16 %v8295, %v8290
  %v9331 = vpack.c.b16 %v8296, %v8291
  %v9332 = vpack.c.b16 %v8297, %v8292
  %v9333 = vpack.c.b16 %v8298, %v8293
  %v9334 = vpack.c.b16 %v8299, %v8294
  %v9335 = vpack.c.b16 %v8305, %v8300
  %v9336 = vpack.c.b16 %v8306, %v8301
  %v9337 = vpack.c.b16 %v8307, %v8302
  %v9338 = vpack.c.b16 %v8308, %v8303
  %v9339 = vpack.c.b16 %v8309, %v8304
  %v9340 = vpack.c.b16 %v8315, %v8310
  %v9341 = vpack.c.b16 %v8316, %v8311
  %v9342 = vpack.c.b16 %v8317, %v8312
  %v9343 = vpack.c.b16 %v8318, %v8313
  %v9344 = vpack.c.b16 %v8319, %v8314
  %v9345 = vpack.c.b16 %v8325, %v8320
  %v9346 = vpack.c.b16 %v8326, %v8321
  %v9347 = vpack.c.b16 %v8327, %v8322
  %v9348 = vpack.c.b16 %v8328, %v8323
  %v9349 = vpack.c.b16 %v8329, %v8324
  %v9350 = vpack.c.b16 %v8335, %v8330
  %v9351 = vpack.c.b16 %v8336, %v8331
  %v9352 = vpack.c.b16 %v8337, %v8332
  %v9353 = vpack.c.b16 %v8338, %v8333
  %v9354 = vpack.c.b16 %v8339, %v8334
  %v9355 = vpack.c.b16 %v8345, %v8340
  %v9356 = vpack.c.b16 %v8346, %v8341
  %v9357 = vpack.c.b16 %v8347, %v8342
  %v9358 = vpack.c.b16 %v8348, %v8343
  %v9359 = vpack.c.b16 %v8349, %v8344
  %v9360 = vpack.c.b16 %v8355, %v8350
  %v9361 = vpack.c.b16 %v8356, %v8351
  %v9362 = vpack.c.b16 %v8357, %v8352
  %v9363 = vpack.c.b16 %v8358, %v8353
  %v9364 = vpack.c.b16 %v8359, %v8354
  %v9365 = vpack.c.b16 %v8365, %v8360
  %v9366 = vpack.c.b16 %v8366, %v8361
  %v9367 = vpack.c.b16 %v8367, %v8362
  %v9368 = vpack.c.b16 %v8368, %v8363
  %v9369 = vpack.c.b16 %v8369, %v8364
  %v9370 = vpack.c.b16 %v8375, %v8370
  %v9371 = vpack.c.b16 %v8376, %v8371
  %v9372 = vpack.c.b16 %v8377, %v8372
  %v9373 = vpack.c.b16 %v8378, %v8373
  %v9374 = vpack.c.b16 %v8379, %v8374
  %v9375 = vpack.c.b16 %v8385, %v8380
  %v9376 = vpack.c.b16 %v8386, %v8381
  %v9377 = vpack.c.b16 %v8387, %v8382
  %v9378 = vpack.c.b16 %v8388, %v8383
  %v9379 = vpack.c.b16 %v8389, %v8384
  %v9380 = vpack.c.b16 %v8395, %v8390
  %v9381 = vpack.c.b16 %v8396, %v8391
  %v9382 = vpack.c.b16 %v8397, %v8392
  %v9383 = vpack.c.b16 %v8398, %v8393
  %v9384 = vpack.c.b16 %v8399, %v8394
  %v9385 = vpack.c.b16 %v8405, %v8400
  %v9386 = vpack.c.b16 %v8406, %v8401
  %v9387 = vpack.c.b16 %v8407, %v8402
  %v9388 = vpack.c.b16 %v8408, %v8403
  %v9389 = vpack.c.b16 %v8409, %v8404
  %v9390 = vpack.c.b16 %v8415, %v8410
  %v9391 = vpack.c.b16 %v8416, %v8411
  %v9392 = vpack.c.b16 %v8417, %v8412
  %v9393 = vpack.c.b16 %v8418, %v8413
  %v9394 = vpack.c.b16 %v8419, %v8414
  %v9395 = vpack.c.b16 %v8425, %v8420
  %v9396 = vpack.c.b16 %v8426, %v8421
  %v9397 = vpack.c.b16 %v8427, %v8422
  %v9398 = vpack.c.b16 %v8428, %v8423
  %v9399 = vpack.c.b16 %v8429, %v8424
  %v9400 = vpack.c.b16 %v8435, %v8430
  %v9401 = vpack.c.b16 %v8436, %v8431
  %v9402 = vpack.c.b16 %v8437, %v8432
  %v9403 = vpack.c.b16 %v8438, %v8433
  %v9404 = vpack.c.b16 %v8439, %v8434
  %v9405 = vpack.c.b16 %v8445, %v8440
  %v9406 = vpack.c.b16 %v8446, %v8441
  %v9407 = vpack.c.b16 %v8447, %v8442
  %v9408 = vpack.c.b16 %v8448, %v8443
  %v9409 = vpack.c.b16 %v8449, %v8444
  %v9410 = vpack.c.b16 %v8455, %v8450
  %v9411 = vpack.c.b16 %v8456, %v8451
  %v9412 = vpack.c.b16 %v8457, %v8452
  %v9413 = vpack.c.b16 %v8458, %v8453
  %v9414 = vpack.c.b16 %v8459, %v8454
  %v9415 = vpack.c.b16 %v8465, %v8460
  %v9416 = vpack.c.b16 %v8466, %v8461
  %v9417 = vpack.c.b16 %v8467, %v8462
  %v9418 = vpack.c.b16 %v8468, %v8463
  %v9419 = vpack.c.b16 %v8469, %v8464
  %v9420 = vpack.c.b16 %v8475, %v8470
  %v9421 = vpack.c.b16 %v8476, %v8471
  %v9422 = vpack.c.b16 %v8477, %v8472
  %v9423 = vpack.c.b16 %v8478, %v8473
  %v9424 = vpack.c.b16 %v8479, %v8474
  %v9425 = vpack.c.b16 %v8485, %v8480
  %v9426 = vpack.c.b16 %v8486, %v8481
  %v9427 = vpack.c.b16 %v8487, %v8482
  %v9428 = vpack.c.b16 %v8488, %v8483
  %v9429 = vpack.c.b16 %v8489, %v8484
  %v9430 = vpack.c.b16 %v8495, %v8490
  %v9431 = vpack.c.b16 %v8496, %v8491
  %v9432 = vpack.c.b16 %v8497, %v8492
  %v9433 = vpack.c.b16 %v8498, %v8493
  %v9434 = vpack.c.b16 %v8499, %v8494
  %v9435 = vpack.c.b16 %v8505, %v8500
  %v9436 = vpack.c.b16 %v8506, %v8501
  %v9437 = vpack.c.b16 %v8507, %v8502
  %v9438 = vpack.c.b16 %v8508, %v8503
  %v9439 = vpack.c.b16 %v8509, %v8504
  %v9440 = vpack.c.b16 %v8515, %v8510
  %v9441 = vpack.c.b16 %v8516, %v8511
  %v9442 = vpack.c.b16 %v8517, %v8512
  %v9443 = vpack.c.b16 %v8518, %v8513
  %v9444 = vpack.c.b16 %v8519, %v8514
  %v9445 = vpack.c.b16 %v8525, %v8520
  %v9446 = vpack.c.b16 %v8526, %v8521
  %v9447 = vpack.c.b16 %v8527, %v8522
  %v9448 = vpack.c.b16 %v8528, %v8523
  %v9449 = vpack.c.b16 %v8529, %v8524
  %v9450 = vpack.c.b16 %v8535, %v8530
  %v9451 = vpack.c.b16 %v8536, %v8531
  %v9452 = vpack.c.b16 %v8537, %v8532
  %v9453 = vpack.c.b16 %v8538, %v8533
  %v9454 = vpack.c.b16 %v8539, %v8534
  %v9455 = vpack.c.b16 %v8545, %v8540
  %v9456 = vpack.c.b16 %v8546, %v8541
  %v9457 = vpack.c.b16 %v8547, %v8542
  %v9458 = vpack.c.b16 %v8548, %v8543
  %v9459 = vpack.c.b16 %v8549, %v8544
  %v9460 = vpack.c.b16 %v8555, %v8550
  %v9461 = vpack.c.b16 %v8556, %v8551
  %v9462 = vpack.c.b16 %v8557, %v8552
  %v9463 = vpack.c.b16 %v8558, %v8553
  %v9464 = vpack.c.b16 %v8559, %v8554
  %v9465 = vpack.c.b16 %v8565, %v8560
  %v9466 = vpack.c.b16 %v8566, %v8561
  %v9467 = vpack.c.b16 %v8567, %v8562
  %v9468 = vpack.c.b16 %v8568, %v8563
  %v9469 = vpack.c.b16 %v8569, %v8564
  %v9470 = vpack.c.b16 %v8575, %v8570
  %v9471 = vpack.c.b16 %v8576, %v8571
  %v9472 = vpack.c.b16 %v8577, %v8572
  %v9473 = vpack.c.b16 %v8578, %v8573
  %v9474 = vpack.c.b16 %v8579, %v8574
  %v9475 = vpack.c.b16 %v8585, %v8580
  %v9476 = vpack.c.b16 %v8586, %v8581
  %v9477 = vpack.c.b16 %v8587, %v8582
  %v9478 = vpack.c.b16 %v8588, %v8583
  %v9479 = vpack.c.b16 %v8589, %v8584
  %v9480 = vpack.c.b16 %v8595, %v8590
  %v9481 = vpack.c.b16 %v8596, %v8591
  %v9482 = vpack.c.b16 %v8597, %v8592
  %v9483 = vpack.c.b16 %v8598, %v8593
  %v9484 = vpack.c.b16 %v8599, %v8594
  %v9485 = vpack.c.b16 %v8605, %v8600
  %v9486 = vpack.c.b16 %v8606, %v8601
  %v9487 = vpack.c.b16 %v8607, %v8602
  %v9488 = vpack.c.b16 %v8608, %v8603
  %v9489 = vpack.c.b16 %v8609, %v8604
  %v9490 = vpack.c.b16 %v8615, %v8610
  %v9491 = vpack.c.b16 %v8616, %v8611
  %v9492 = vpack.c.b16 %v8617, %v8612
  %v9493 = vpack.c.b16 %v8618, %v8613
  %v9494 = vpack.c.b16 %v8619, %v8614
  %v9495 = vpack.c.b16 %v8625, %v8620
  %v9496 = vpack.c.b16 %v8626, %v8621
  %v9497 = vpack.c.b16 %v8627, %v8622
  %v9498 = vpack.c.b16 %v8628, %v8623
  %v9499 = vpack.c.b16 %v8629, %v8624
  %v9500 = vpack.c.b16 %v8635, %v8630
  %v9501 = vpack.c.b16 %v8636, %v8631
  %v9502 = vpack.c.b16 %v8637, %v8632
  %v9503 = vpack.c.b16 %v8638, %v8633
  %v9504 = vpack.c.b16 %v8639, %v8634
  %v9505 = vpack.c.b16 %v8645, %v8640
  %v9506 = vpack.c.b16 %v8646, %v8641
  %v9507 = vpack.c.b16 %v8647, %v8642
  %v9508 = vpack.c.b16 %v8648, %v8643
  %v9509 = vpack.c.b16 %v8649, %v8644
  %v9510 = vpack.c.b16 %v8655, %v8650
  %v9511 = vpack.c.b16 %v8656, %v8651
  %v9512 = vpack.c.b16 %v8657, %v8652
  %v9513 = vpack.c.b16 %v8658, %v8653
  %v9514 = vpack.c.b16 %v8659, %v8654
  %v9515 = vpack.c.b16 %v8665, %v8660
  %v9516 = vpack.c.b16 %v8666, %v8661
  %v9517 = vpack.c.b16 %v8667, %v8662
  %v9518 = vpack.c.b16 %v8668, %v8663
  %v9519 = vpack.c.b16 %v8669, %v8664
  %v9520 = vpack.c.b16 %v8675, %v8670
  %v9521 = vpack.c.b16 %v8676, %v8671
  %v9522 = vpack.c.b16 %v8677, %v8672
  %v9523 = vpack.c.b16 %v8678, %v8673
  %v9524 = vpack.c.b16 %v8679, %v8674
  %v9525 = vpack.c.b16 %v8685, %v8680
  %v9526 = vpack.c.b16 %v8686, %v8681
  %v9527 = vpack.c.b16 %v8687, %v8682
  %v9528 = vpack.c.b16 %v8688, %v8683
  %v9529 = vpack.c.b16 %v8689, %v8684
  %v9530 = vpack.c.b16 %v8695, %v8690
  %v9531 = vpack.c.b16 %v8696, %v8691
  %v9532 = vpack.c.b16 %v8697, %v8692
  %v9533 = vpack.c.b16 %v8698, %v8693
  %v9534 = vpack.c.b16 %v8699, %v8694
  %v9535 = vpack.c.b16 %v8705, %v8700
  %v9536 = vpack.c.b16 %v8706, %v8701
  %v9537 = vpack.c.b16 %v8707, %v8702
  %v9538 = vpack.c.b16 %v8708, %v8703
  %v9539 = vpack.c.b16 %v8709, %v8704
  %v9540 = vpack.c.b16 %v8715, %v8710
  %v9541 = vpack.c.b16 %v8716, %v8711
  %v9542 = vpack.c.b16 %v8717, %v8712
  %v9543 = vpack.c.b16 %v8718, %v8713
  %v9544 = vpack.c.b16 %v8719, %v8714
  %v9545 = vpack.c.b16 %v8725, %v8720
  %v9546 = vpack.c.b16 %v8726, %v8721
  %v9547 = vpack.c.b16 %v8727, %v8722
  %v9548 = vpack.c.b16 %v8728, %v8723
  %v9549 = vpack.c.b16 %v8729, %v8724
  %v9550 = vpack.c.b16 %v8735, %v8730
  %v9551 = vpack.c.b16 %v8736, %v8731
  %v9552 = vpack.c.b16 %v8737, %v8732
  %v9553 = vpack.c.b16 %v8738, %v8733
  %v9554 = vpack.c.b16 %v8739, %v8734
  %v9555 = vpack.c.b16 %v8745, %v8740
  %v9556 = vpack.c.b16 %v8746, %v8741
  %v9557 = vpack.c.b16 %v8747, %v8742
  %v9558 = vpack.c.b16 %v8748, %v8743
  %v9559 = vpack.c.b16 %v8749, %v8744
  %v9560 = vpack.c.b16 %v8755, %v8750
  %v9561 = vpack.c.b16 %v8756, %v8751
  %v9562 = vpack.c.b16 %v8757, %v8752
  %v9563 = vpack.c.b16 %v8758, %v8753
  %v9564 = vpack.c.b16 %v8759, %v8754
  %v9565 = vpack.c.b16 %v8765, %v8760
  %v9566 = vpack.c.b16 %v8766, %v8761
  %v9567 = vpack.c.b16 %v8767, %v8762
  %v9568 = vpack.c.b16 %v8768, %v8763
  %v9569 = vpack.c.b16 %v8769, %v8764
  %v9570 = vpack.c.b16 %v8775, %v8770
  %v9571 = vpack.c.b16 %v8776, %v8771
  %v9572 = vpack.c.b16 %v8777, %v8772
  %v9573 = vpack.c.b16 %v8778, %v8773
  %v9574 = vpack.c.b16 %v8779, %v8774
  %v9575 = vpack.c.b16 %v8785, %v8780
  %v9576 = vpack.c.b16 %v8786, %v8781
  %v9577 = vpack.c.b16 %v8787, %v8782
  %v9578 = vpack.c.b16 %v8788, %v8783
  %v9579 = vpack.c.b16 %v8789, %v8784
  %v9580 = vpack.c.b16 %v8795, %v8790
  %v9581 = vpack.c.b16 %v8796, %v8791
  %v9582 = vpack.c.b16 %v8797, %v8792
  %v9583 = vpack.c.b16 %v8798, %v8793
  %v9584 = vpack.c.b16 %v8799, %v8794
  %v9585 = vpack.c.b16 %v8805, %v8800
  %v9586 = vpack.c.b16 %v8806, %v8801
  %v9587 = vpack.c.b16 %v8807, %v8802
  %v9588 = vpack.c.b16 %v8808, %v8803
  %v9589 = vpack.c.b16 %v8809, %v8804
  %v9590 = vpack.c.b16 %v8815, %v8810
  %v9591 = vpack.c.b16 %v8816, %v8811
  %v9592 = vpack.c.b16 %v8817, %v8812
  %v9593 = vpack.c.b16 %v8818, %v8813
  %v9594 = vpack.c.b16 %v8819, %v8814
  %v9595 = vpack.c.b16 %v8825, %v8820
  %v9596 = vpack.c.b16 %v8826, %v8821
  %v9597 = vpack.c.b16 %v8827, %v8822
  %v9598 = vpack.c.b16 %v8828, %v8823
  %v9599 = vpack.c.b16 %v8829, %v8824
  %v9600 = vpack.c.b16 %v8835, %v8830
  %v9601 = vpack.c.b16 %v8836, %v8831
  %v9602 = vpack.c.b16 %v8837, %v8832
  %v9603 = vpack.c.b16 %v8838, %v8833
  %v9604 = vpack.c.b16 %v8839, %v8834
  %v9605 = vpack.c.b16 %v8845, %v8840
  %v9606 = vpack.c.b16 %v8846, %v8841
  %v9607 = vpack.c.b16 %v8847, %v8842
  %v9608 = vpack.c.b16 %v8848, %v8843
  %v9609 = vpack.c.b16 %v8849, %v8844
  %v9610 = vpack.c.b16 %v8855, %v8850
  %v9611 = vpack.c.b16 %v8856, %v8851
  %v9612 = vpack.c.b16 %v8857, %v8852
  %v9613 = vpack.c.b16 %v8858, %v8853
  %v9614 = vpack.c.b16 %v8859, %v8854
  %v9615 = vpack.c.b16 %v8865, %v8860
  %v9616 = vpack.c.b16 %v8866, %v8861
  %v9617 = vpack.c.b16 %v8867, %v8862
  %v9618 = vpack.c.b16 %v8868, %v8863
  %v9619 = vpack.c.b16 %v8869, %v8864
  %vm10370 = vcmask 785408
  %v10372 = vsel %vm10370, %v5557, 0
  %10374 = vmatpush.bf16.msra.mxu0 %v8905
  %10375 = vmatpush.bf16.msra.mxu0 %v8900
  %10376 = vmatpush.bf16.msra.mxu0 %v8895
  %10377 = vmatpush.bf16.msra.mxu0 %v8890
  %10378 = vmatpush.bf16.msra.mxu0 %v8885
  %10379 = vmatpush.bf16.msra.mxu0 %v8880
  %10380 = vmatpush.bf16.msra.mxu0 %v8875
  %10381 = vmatpush.bf16.msra.mxu0 %v8870
  %10382 = vmatmul.bf16.gmra.mxu0 %v5539
  %v10383 = vpop.f32.mrf.mxu0
  %v10384 = vadd.f32 %v6460, %v10383
  %v10385 = vpop.f32.mrf.mxu0
  %10386 = vdwg.mxu0
  %10387 = vmatpush.bf16.msra.mxu0 %v8945
  %10388 = vmatpush.bf16.msra.mxu0 %v8940
  %10389 = vmatpush.bf16.msra.mxu0 %v8935
  %10390 = vmatpush.bf16.msra.mxu0 %v8930
  %10391 = vmatpush.bf16.msra.mxu0 %v8925
  %10392 = vmatpush.bf16.msra.mxu0 %v8920
  %10393 = vmatpush.bf16.msra.mxu0 %v8915
  %10394 = vmatpush.bf16.msra.mxu0 %v8910
  %10395 = vmatmul.bf16.gmra.mxu0 %v5540
  %v10396 = vpop.f32.mrf.mxu0
  %v10397 = vadd.f32 %v10384, %v10396
  %v10398 = vpop.f32.mrf.mxu0
  %10399 = vdwg.mxu0
  %10400 = vmatpush.bf16.msra.mxu0 %v8985
  %10401 = vmatpush.bf16.msra.mxu0 %v8980
  %10402 = vmatpush.bf16.msra.mxu0 %v8975
  %10403 = vmatpush.bf16.msra.mxu0 %v8970
  %10404 = vmatpush.bf16.msra.mxu0 %v8965
  %10405 = vmatpush.bf16.msra.mxu0 %v8960
  %10406 = vmatpush.bf16.msra.mxu0 %v8955
  %10407 = vmatpush.bf16.msra.mxu0 %v8950
  %10408 = vmatmul.bf16.gmra.mxu0 %v5541
  %v10409 = vpop.f32.mrf.mxu0
  %v10410 = vadd.f32 %v10397, %v10409
  %v10411 = vpop.f32.mrf.mxu0
  %10412 = vdwg.mxu0
  %10413 = vmatpush.bf16.msra.mxu0 %v9025
  %10414 = vmatpush.bf16.msra.mxu0 %v9020
  %10415 = vmatpush.bf16.msra.mxu0 %v9015
  %10416 = vmatpush.bf16.msra.mxu0 %v9010
  %10417 = vmatpush.bf16.msra.mxu0 %v9005
  %10418 = vmatpush.bf16.msra.mxu0 %v9000
  %10419 = vmatpush.bf16.msra.mxu0 %v8995
  %10420 = vmatpush.bf16.msra.mxu0 %v8990
  %10421 = vmatmul.bf16.gmra.mxu0 %v5542
  %v10422 = vpop.f32.mrf.mxu0
  %v10423 = vadd.f32 %v10410, %v10422
  %v10424 = vpop.f32.mrf.mxu0
  %10425 = vdwg.mxu0
  %10426 = vmatpush.bf16.msra.mxu0 %v9065
  %10427 = vmatpush.bf16.msra.mxu0 %v9060
  %10428 = vmatpush.bf16.msra.mxu0 %v9055
  %10429 = vmatpush.bf16.msra.mxu0 %v9050
  %10430 = vmatpush.bf16.msra.mxu0 %v9045
  %10431 = vmatpush.bf16.msra.mxu0 %v9040
  %10432 = vmatpush.bf16.msra.mxu0 %v9035
  %10433 = vmatpush.bf16.msra.mxu0 %v9030
  %10434 = vmatmul.bf16.gmra.mxu0 %v5543
  %v10435 = vpop.f32.mrf.mxu0
  %v10436 = vadd.f32 %v10423, %v10435
  %v10437 = vpop.f32.mrf.mxu0
  %10438 = vdwg.mxu0
  %10439 = vmatpush.bf16.msra.mxu0 %v9105
  %10440 = vmatpush.bf16.msra.mxu0 %v9100
  %10441 = vmatpush.bf16.msra.mxu0 %v9095
  %10442 = vmatpush.bf16.msra.mxu0 %v9090
  %10443 = vmatpush.bf16.msra.mxu0 %v9085
  %10444 = vmatpush.bf16.msra.mxu0 %v9080
  %10445 = vmatpush.bf16.msra.mxu0 %v9075
  %10446 = vmatpush.bf16.msra.mxu0 %v9070
  %10447 = vmatmul.bf16.gmra.mxu0 %v5544
  %v10448 = vpop.f32.mrf.mxu0
  %v10449 = vadd.f32 %v10436, %v10448
  %v10450 = vpop.f32.mrf.mxu0
  %10451 = vdwg.mxu0
  %10452 = vmatpush.bf16.msra.mxu0 %v9145
  %10453 = vmatpush.bf16.msra.mxu0 %v9140
  %10454 = vmatpush.bf16.msra.mxu0 %v9135
  %10455 = vmatpush.bf16.msra.mxu0 %v9130
  %10456 = vmatpush.bf16.msra.mxu0 %v9125
  %10457 = vmatpush.bf16.msra.mxu0 %v9120
  %10458 = vmatpush.bf16.msra.mxu0 %v9115
  %10459 = vmatpush.bf16.msra.mxu0 %v9110
  %10460 = vmatmul.bf16.gmra.mxu0 %v5545
  %v10461 = vpop.f32.mrf.mxu0
  %v10462 = vadd.f32 %v10449, %v10461
  %v10463 = vpop.f32.mrf.mxu0
  %10464 = vdwg.mxu0
  %10465 = vmatpush.bf16.msra.mxu0 %v9185
  %10466 = vmatpush.bf16.msra.mxu0 %v9180
  %10467 = vmatpush.bf16.msra.mxu0 %v9175
  %10468 = vmatpush.bf16.msra.mxu0 %v9170
  %10469 = vmatpush.bf16.msra.mxu0 %v9165
  %10470 = vmatpush.bf16.msra.mxu0 %v9160
  %10471 = vmatpush.bf16.msra.mxu0 %v9155
  %10472 = vmatpush.bf16.msra.mxu0 %v9150
  %10473 = vmatmul.bf16.gmra.mxu0 %v5546
  %v10474 = vpop.f32.mrf.mxu0
  %v10475 = vadd.f32 %v10462, %v10474
  %v10476 = vpop.f32.mrf.mxu0
  %10477 = vdwg.mxu0
  %10478 = vmatpush.bf16.msra.mxu0 %v9225
  %10479 = vmatpush.bf16.msra.mxu0 %v9220
  %10480 = vmatpush.bf16.msra.mxu0 %v9215
  %10481 = vmatpush.bf16.msra.mxu0 %v9210
  %10482 = vmatpush.bf16.msra.mxu0 %v9205
  %10483 = vmatpush.bf16.msra.mxu0 %v9200
  %10484 = vmatpush.bf16.msra.mxu0 %v9195
  %10485 = vmatpush.bf16.msra.mxu0 %v9190
  %10486 = vmatmul.bf16.gmra.mxu0 %v5547
  %v10487 = vpop.f32.mrf.mxu0
  %v10488 = vadd.f32 %v10475, %v10487
  %v10489 = vpop.f32.mrf.mxu0
  %10490 = vdwg.mxu0
  %10491 = vmatpush.bf16.msra.mxu0 %v9265
  %10492 = vmatpush.bf16.msra.mxu0 %v9260
  %10493 = vmatpush.bf16.msra.mxu0 %v9255
  %10494 = vmatpush.bf16.msra.mxu0 %v9250
  %10495 = vmatpush.bf16.msra.mxu0 %v9245
  %10496 = vmatpush.bf16.msra.mxu0 %v9240
  %10497 = vmatpush.bf16.msra.mxu0 %v9235
  %10498 = vmatpush.bf16.msra.mxu0 %v9230
  %10499 = vmatmul.bf16.gmra.mxu0 %v5548
  %v10500 = vpop.f32.mrf.mxu0
  %v10501 = vadd.f32 %v10488, %v10500
  %v10502 = vpop.f32.mrf.mxu0
  %10503 = vdwg.mxu0
  %10504 = vmatpush.bf16.msra.mxu0 %v9305
  %10505 = vmatpush.bf16.msra.mxu0 %v9300
  %10506 = vmatpush.bf16.msra.mxu0 %v9295
  %10507 = vmatpush.bf16.msra.mxu0 %v9290
  %10508 = vmatpush.bf16.msra.mxu0 %v9285
  %10509 = vmatpush.bf16.msra.mxu0 %v9280
  %10510 = vmatpush.bf16.msra.mxu0 %v9275
  %10511 = vmatpush.bf16.msra.mxu0 %v9270
  %10512 = vmatmul.bf16.gmra.mxu0 %v5549
  %v10513 = vpop.f32.mrf.mxu0
  %v10514 = vadd.f32 %v10501, %v10513
  %v10515 = vpop.f32.mrf.mxu0
  %10516 = vdwg.mxu0
  %10517 = vmatpush.bf16.msra.mxu0 %v9345
  %10518 = vmatpush.bf16.msra.mxu0 %v9340
  %10519 = vmatpush.bf16.msra.mxu0 %v9335
  %10520 = vmatpush.bf16.msra.mxu0 %v9330
  %10521 = vmatpush.bf16.msra.mxu0 %v9325
  %10522 = vmatpush.bf16.msra.mxu0 %v9320
  %10523 = vmatpush.bf16.msra.mxu0 %v9315
  %10524 = vmatpush.bf16.msra.mxu0 %v9310
  %10525 = vmatmul.bf16.gmra.mxu0 %v5550
  %v10526 = vpop.f32.mrf.mxu0
  %v10527 = vadd.f32 %v10514, %v10526
  %v10528 = vpop.f32.mrf.mxu0
  %10529 = vdwg.mxu0
  %10530 = vmatpush.bf16.msra.mxu0 %v9385
  %10531 = vmatpush.bf16.msra.mxu0 %v9380
  %10532 = vmatpush.bf16.msra.mxu0 %v9375
  %10533 = vmatpush.bf16.msra.mxu0 %v9370
  %10534 = vmatpush.bf16.msra.mxu0 %v9365
  %10535 = vmatpush.bf16.msra.mxu0 %v9360
  %10536 = vmatpush.bf16.msra.mxu0 %v9355
  %10537 = vmatpush.bf16.msra.mxu0 %v9350
  %10538 = vmatmul.bf16.gmra.mxu0 %v5551
  %v10539 = vpop.f32.mrf.mxu0
  %v10540 = vadd.f32 %v10527, %v10539
  %v10541 = vpop.f32.mrf.mxu0
  %10542 = vdwg.mxu0
  %10543 = vmatpush.bf16.msra.mxu0 %v9425
  %10544 = vmatpush.bf16.msra.mxu0 %v9420
  %10545 = vmatpush.bf16.msra.mxu0 %v9415
  %10546 = vmatpush.bf16.msra.mxu0 %v9410
  %10547 = vmatpush.bf16.msra.mxu0 %v9405
  %10548 = vmatpush.bf16.msra.mxu0 %v9400
  %10549 = vmatpush.bf16.msra.mxu0 %v9395
  %10550 = vmatpush.bf16.msra.mxu0 %v9390
  %10551 = vmatmul.bf16.gmra.mxu0 %v5552
  %v10552 = vpop.f32.mrf.mxu0
  %v10553 = vadd.f32 %v10540, %v10552
  %v10554 = vpop.f32.mrf.mxu0
  %10555 = vdwg.mxu0
  %10556 = vmatpush.bf16.msra.mxu0 %v9465
  %10557 = vmatpush.bf16.msra.mxu0 %v9460
  %10558 = vmatpush.bf16.msra.mxu0 %v9455
  %10559 = vmatpush.bf16.msra.mxu0 %v9450
  %10560 = vmatpush.bf16.msra.mxu0 %v9445
  %10561 = vmatpush.bf16.msra.mxu0 %v9440
  %10562 = vmatpush.bf16.msra.mxu0 %v9435
  %10563 = vmatpush.bf16.msra.mxu0 %v9430
  %10564 = vmatmul.bf16.gmra.mxu0 %v5553
  %v10565 = vpop.f32.mrf.mxu0
  %v10566 = vadd.f32 %v10553, %v10565
  %v10567 = vpop.f32.mrf.mxu0
  %10568 = vdwg.mxu0
  %10569 = vmatpush.bf16.msra.mxu0 %v9505
  %10570 = vmatpush.bf16.msra.mxu0 %v9500
  %10571 = vmatpush.bf16.msra.mxu0 %v9495
  %10572 = vmatpush.bf16.msra.mxu0 %v9490
  %10573 = vmatpush.bf16.msra.mxu0 %v9485
  %10574 = vmatpush.bf16.msra.mxu0 %v9480
  %10575 = vmatpush.bf16.msra.mxu0 %v9475
  %10576 = vmatpush.bf16.msra.mxu0 %v9470
  %10577 = vmatmul.bf16.gmra.mxu0 %v5554
  %v10578 = vpop.f32.mrf.mxu0
  %v10579 = vadd.f32 %v10566, %v10578
  %v10580 = vpop.f32.mrf.mxu0
  %10581 = vdwg.mxu0
  %10582 = vmatpush.bf16.msra.mxu0 %v9545
  %10583 = vmatpush.bf16.msra.mxu0 %v9540
  %10584 = vmatpush.bf16.msra.mxu0 %v9535
  %10585 = vmatpush.bf16.msra.mxu0 %v9530
  %10586 = vmatpush.bf16.msra.mxu0 %v9525
  %10587 = vmatpush.bf16.msra.mxu0 %v9520
  %10588 = vmatpush.bf16.msra.mxu0 %v9515
  %10589 = vmatpush.bf16.msra.mxu0 %v9510
  %10590 = vmatmul.bf16.gmra.mxu0 %v5555
  %v10591 = vpop.f32.mrf.mxu0
  %v10592 = vadd.f32 %v10579, %v10591
  %v10593 = vpop.f32.mrf.mxu0
  %10594 = vdwg.mxu0
  %10595 = vmatpush.bf16.msra.mxu0 %v9585
  %10596 = vmatpush.bf16.msra.mxu0 %v9580
  %10597 = vmatpush.bf16.msra.mxu0 %v9575
  %10598 = vmatpush.bf16.msra.mxu0 %v9570
  %10599 = vmatpush.bf16.msra.mxu0 %v9565
  %10600 = vmatpush.bf16.msra.mxu0 %v9560
  %10601 = vmatpush.bf16.msra.mxu0 %v9555
  %10602 = vmatpush.bf16.msra.mxu0 %v9550
  %10603 = vmatmul.bf16.gmra.mxu0 %v5556
  %v10604 = vpop.f32.mrf.mxu0
  %v10605 = vadd.f32 %v10592, %v10604
  %v10606 = vpop.f32.mrf.mxu0
  %10607 = vdwg.mxu0
  %10608 = vmatpush.bf16.msra.mxu0 0
  %10609 = vmatpush.bf16.msra.mxu0 0
  %10610 = vmatpush.bf16.msra.mxu0 %v9615
  %10611 = vmatpush.bf16.msra.mxu0 %v9610
  %10612 = vmatpush.bf16.msra.mxu0 %v9605
  %10613 = vmatpush.bf16.msra.mxu0 %v9600
  %10614 = vmatpush.bf16.msra.mxu0 %v9595
  %10615 = vmatpush.bf16.msra.mxu0 %v9590
  %10616 = vmatmul.bf16.gmra.mxu0 %v10372
  %v10617 = vpop.f32.mrf.mxu0
  %v10618 = vadd.f32 %v10605, %v10617
  %v10619 = vpop.f32.mrf.mxu0
  %10620 = vdwg.mxu0
  %10621 = vmatpush.bf16.msra.mxu0 %v8906
  %10622 = vmatpush.bf16.msra.mxu0 %v8901
  %10623 = vmatpush.bf16.msra.mxu0 %v8896
  %10624 = vmatpush.bf16.msra.mxu0 %v8891
  %10625 = vmatpush.bf16.msra.mxu0 %v8886
  %10626 = vmatpush.bf16.msra.mxu0 %v8881
  %10627 = vmatpush.bf16.msra.mxu0 %v8876
  %10628 = vmatpush.bf16.msra.mxu0 %v8871
  %10629 = vmatmul.bf16.gmra.mxu0 %v5539
  %v10630 = vpop.f32.mrf.mxu0
  %v10631 = vadd.f32 %v6461, %v10630
  %v10632 = vpop.f32.mrf.mxu0
  %10633 = vdwg.mxu0
  %10634 = vmatpush.bf16.msra.mxu0 %v8946
  %10635 = vmatpush.bf16.msra.mxu0 %v8941
  %10636 = vmatpush.bf16.msra.mxu0 %v8936
  %10637 = vmatpush.bf16.msra.mxu0 %v8931
  %10638 = vmatpush.bf16.msra.mxu0 %v8926
  %10639 = vmatpush.bf16.msra.mxu0 %v8921
  %10640 = vmatpush.bf16.msra.mxu0 %v8916
  %10641 = vmatpush.bf16.msra.mxu0 %v8911
  %10642 = vmatmul.bf16.gmra.mxu0 %v5540
  %v10643 = vpop.f32.mrf.mxu0
  %v10644 = vadd.f32 %v10631, %v10643
  %v10645 = vpop.f32.mrf.mxu0
  %10646 = vdwg.mxu0
  %10647 = vmatpush.bf16.msra.mxu0 %v8986
  %10648 = vmatpush.bf16.msra.mxu0 %v8981
  %10649 = vmatpush.bf16.msra.mxu0 %v8976
  %10650 = vmatpush.bf16.msra.mxu0 %v8971
  %10651 = vmatpush.bf16.msra.mxu0 %v8966
  %10652 = vmatpush.bf16.msra.mxu0 %v8961
  %10653 = vmatpush.bf16.msra.mxu0 %v8956
  %10654 = vmatpush.bf16.msra.mxu0 %v8951
  %10655 = vmatmul.bf16.gmra.mxu0 %v5541
  %v10656 = vpop.f32.mrf.mxu0
  %v10657 = vadd.f32 %v10644, %v10656
  %v10658 = vpop.f32.mrf.mxu0
  %10659 = vdwg.mxu0
  %10660 = vmatpush.bf16.msra.mxu0 %v9026
  %10661 = vmatpush.bf16.msra.mxu0 %v9021
  %10662 = vmatpush.bf16.msra.mxu0 %v9016
  %10663 = vmatpush.bf16.msra.mxu0 %v9011
  %10664 = vmatpush.bf16.msra.mxu0 %v9006
  %10665 = vmatpush.bf16.msra.mxu0 %v9001
  %10666 = vmatpush.bf16.msra.mxu0 %v8996
  %10667 = vmatpush.bf16.msra.mxu0 %v8991
  %10668 = vmatmul.bf16.gmra.mxu0 %v5542
  %v10669 = vpop.f32.mrf.mxu0
  %v10670 = vadd.f32 %v10657, %v10669
  %v10671 = vpop.f32.mrf.mxu0
  %10672 = vdwg.mxu0
  %10673 = vmatpush.bf16.msra.mxu0 %v9066
  %10674 = vmatpush.bf16.msra.mxu0 %v9061
  %10675 = vmatpush.bf16.msra.mxu0 %v9056
  %10676 = vmatpush.bf16.msra.mxu0 %v9051
  %10677 = vmatpush.bf16.msra.mxu0 %v9046
  %10678 = vmatpush.bf16.msra.mxu0 %v9041
  %10679 = vmatpush.bf16.msra.mxu0 %v9036
  %10680 = vmatpush.bf16.msra.mxu0 %v9031
  %10681 = vmatmul.bf16.gmra.mxu0 %v5543
  %v10682 = vpop.f32.mrf.mxu0
  %v10683 = vadd.f32 %v10670, %v10682
  %v10684 = vpop.f32.mrf.mxu0
  %10685 = vdwg.mxu0
  %10686 = vmatpush.bf16.msra.mxu0 %v9106
  %10687 = vmatpush.bf16.msra.mxu0 %v9101
  %10688 = vmatpush.bf16.msra.mxu0 %v9096
  %10689 = vmatpush.bf16.msra.mxu0 %v9091
  %10690 = vmatpush.bf16.msra.mxu0 %v9086
  %10691 = vmatpush.bf16.msra.mxu0 %v9081
  %10692 = vmatpush.bf16.msra.mxu0 %v9076
  %10693 = vmatpush.bf16.msra.mxu0 %v9071
  %10694 = vmatmul.bf16.gmra.mxu0 %v5544
  %v10695 = vpop.f32.mrf.mxu0
  %v10696 = vadd.f32 %v10683, %v10695
  %v10697 = vpop.f32.mrf.mxu0
  %10698 = vdwg.mxu0
  %10699 = vmatpush.bf16.msra.mxu0 %v9146
  %10700 = vmatpush.bf16.msra.mxu0 %v9141
  %10701 = vmatpush.bf16.msra.mxu0 %v9136
  %10702 = vmatpush.bf16.msra.mxu0 %v9131
  %10703 = vmatpush.bf16.msra.mxu0 %v9126
  %10704 = vmatpush.bf16.msra.mxu0 %v9121
  %10705 = vmatpush.bf16.msra.mxu0 %v9116
  %10706 = vmatpush.bf16.msra.mxu0 %v9111
  %10707 = vmatmul.bf16.gmra.mxu0 %v5545
  %v10708 = vpop.f32.mrf.mxu0
  %v10709 = vadd.f32 %v10696, %v10708
  %v10710 = vpop.f32.mrf.mxu0
  %10711 = vdwg.mxu0
  %10712 = vmatpush.bf16.msra.mxu0 %v9186
  %10713 = vmatpush.bf16.msra.mxu0 %v9181
  %10714 = vmatpush.bf16.msra.mxu0 %v9176
  %10715 = vmatpush.bf16.msra.mxu0 %v9171
  %10716 = vmatpush.bf16.msra.mxu0 %v9166
  %10717 = vmatpush.bf16.msra.mxu0 %v9161
  %10718 = vmatpush.bf16.msra.mxu0 %v9156
  %10719 = vmatpush.bf16.msra.mxu0 %v9151
  %10720 = vmatmul.bf16.gmra.mxu0 %v5546
  %v10721 = vpop.f32.mrf.mxu0
  %v10722 = vadd.f32 %v10709, %v10721
  %v10723 = vpop.f32.mrf.mxu0
  %10724 = vdwg.mxu0
  %10725 = vmatpush.bf16.msra.mxu0 %v9226
  %10726 = vmatpush.bf16.msra.mxu0 %v9221
  %10727 = vmatpush.bf16.msra.mxu0 %v9216
  %10728 = vmatpush.bf16.msra.mxu0 %v9211
  %10729 = vmatpush.bf16.msra.mxu0 %v9206
  %10730 = vmatpush.bf16.msra.mxu0 %v9201
  %10731 = vmatpush.bf16.msra.mxu0 %v9196
  %10732 = vmatpush.bf16.msra.mxu0 %v9191
  %10733 = vmatmul.bf16.gmra.mxu0 %v5547
  %v10734 = vpop.f32.mrf.mxu0
  %v10735 = vadd.f32 %v10722, %v10734
  %v10736 = vpop.f32.mrf.mxu0
  %10737 = vdwg.mxu0
  %10738 = vmatpush.bf16.msra.mxu0 %v9266
  %10739 = vmatpush.bf16.msra.mxu0 %v9261
  %10740 = vmatpush.bf16.msra.mxu0 %v9256
  %10741 = vmatpush.bf16.msra.mxu0 %v9251
  %10742 = vmatpush.bf16.msra.mxu0 %v9246
  %10743 = vmatpush.bf16.msra.mxu0 %v9241
  %10744 = vmatpush.bf16.msra.mxu0 %v9236
  %10745 = vmatpush.bf16.msra.mxu0 %v9231
  %10746 = vmatmul.bf16.gmra.mxu0 %v5548
  %v10747 = vpop.f32.mrf.mxu0
  %v10748 = vadd.f32 %v10735, %v10747
  %v10749 = vpop.f32.mrf.mxu0
  %10750 = vdwg.mxu0
  %10751 = vmatpush.bf16.msra.mxu0 %v9306
  %10752 = vmatpush.bf16.msra.mxu0 %v9301
  %10753 = vmatpush.bf16.msra.mxu0 %v9296
  %10754 = vmatpush.bf16.msra.mxu0 %v9291
  %10755 = vmatpush.bf16.msra.mxu0 %v9286
  %10756 = vmatpush.bf16.msra.mxu0 %v9281
  %10757 = vmatpush.bf16.msra.mxu0 %v9276
  %10758 = vmatpush.bf16.msra.mxu0 %v9271
  %10759 = vmatmul.bf16.gmra.mxu0 %v5549
  %v10760 = vpop.f32.mrf.mxu0
  %v10761 = vadd.f32 %v10748, %v10760
  %v10762 = vpop.f32.mrf.mxu0
  %10763 = vdwg.mxu0
  %10764 = vmatpush.bf16.msra.mxu0 %v9346
  %10765 = vmatpush.bf16.msra.mxu0 %v9341
  %10766 = vmatpush.bf16.msra.mxu0 %v9336
  %10767 = vmatpush.bf16.msra.mxu0 %v9331
  %10768 = vmatpush.bf16.msra.mxu0 %v9326
  %10769 = vmatpush.bf16.msra.mxu0 %v9321
  %10770 = vmatpush.bf16.msra.mxu0 %v9316
  %10771 = vmatpush.bf16.msra.mxu0 %v9311
  %10772 = vmatmul.bf16.gmra.mxu0 %v5550
  %v10773 = vpop.f32.mrf.mxu0
  %v10774 = vadd.f32 %v10761, %v10773
  %v10775 = vpop.f32.mrf.mxu0
  %10776 = vdwg.mxu0
  %10777 = vmatpush.bf16.msra.mxu0 %v9386
  %10778 = vmatpush.bf16.msra.mxu0 %v9381
  %10779 = vmatpush.bf16.msra.mxu0 %v9376
  %10780 = vmatpush.bf16.msra.mxu0 %v9371
  %10781 = vmatpush.bf16.msra.mxu0 %v9366
  %10782 = vmatpush.bf16.msra.mxu0 %v9361
  %10783 = vmatpush.bf16.msra.mxu0 %v9356
  %10784 = vmatpush.bf16.msra.mxu0 %v9351
  %10785 = vmatmul.bf16.gmra.mxu0 %v5551
  %v10786 = vpop.f32.mrf.mxu0
  %v10787 = vadd.f32 %v10774, %v10786
  %v10788 = vpop.f32.mrf.mxu0
  %10789 = vdwg.mxu0
  %10790 = vmatpush.bf16.msra.mxu0 %v9426
  %10791 = vmatpush.bf16.msra.mxu0 %v9421
  %10792 = vmatpush.bf16.msra.mxu0 %v9416
  %10793 = vmatpush.bf16.msra.mxu0 %v9411
  %10794 = vmatpush.bf16.msra.mxu0 %v9406
  %10795 = vmatpush.bf16.msra.mxu0 %v9401
  %10796 = vmatpush.bf16.msra.mxu0 %v9396
  %10797 = vmatpush.bf16.msra.mxu0 %v9391
  %10798 = vmatmul.bf16.gmra.mxu0 %v5552
  %v10799 = vpop.f32.mrf.mxu0
  %v10800 = vadd.f32 %v10787, %v10799
  %v10801 = vpop.f32.mrf.mxu0
  %10802 = vdwg.mxu0
  %10803 = vmatpush.bf16.msra.mxu0 %v9466
  %10804 = vmatpush.bf16.msra.mxu0 %v9461
  %10805 = vmatpush.bf16.msra.mxu0 %v9456
  %10806 = vmatpush.bf16.msra.mxu0 %v9451
  %10807 = vmatpush.bf16.msra.mxu0 %v9446
  %10808 = vmatpush.bf16.msra.mxu0 %v9441
  %10809 = vmatpush.bf16.msra.mxu0 %v9436
  %10810 = vmatpush.bf16.msra.mxu0 %v9431
  %10811 = vmatmul.bf16.gmra.mxu0 %v5553
  %v10812 = vpop.f32.mrf.mxu0
  %v10813 = vadd.f32 %v10800, %v10812
  %v10814 = vpop.f32.mrf.mxu0
  %10815 = vdwg.mxu0
  %10816 = vmatpush.bf16.msra.mxu0 %v9506
  %10817 = vmatpush.bf16.msra.mxu0 %v9501
  %10818 = vmatpush.bf16.msra.mxu0 %v9496
  %10819 = vmatpush.bf16.msra.mxu0 %v9491
  %10820 = vmatpush.bf16.msra.mxu0 %v9486
  %10821 = vmatpush.bf16.msra.mxu0 %v9481
  %10822 = vmatpush.bf16.msra.mxu0 %v9476
  %10823 = vmatpush.bf16.msra.mxu0 %v9471
  %10824 = vmatmul.bf16.gmra.mxu0 %v5554
  %v10825 = vpop.f32.mrf.mxu0
  %v10826 = vadd.f32 %v10813, %v10825
  %v10827 = vpop.f32.mrf.mxu0
  %10828 = vdwg.mxu0
  %10829 = vmatpush.bf16.msra.mxu0 %v9546
  %10830 = vmatpush.bf16.msra.mxu0 %v9541
  %10831 = vmatpush.bf16.msra.mxu0 %v9536
  %10832 = vmatpush.bf16.msra.mxu0 %v9531
  %10833 = vmatpush.bf16.msra.mxu0 %v9526
  %10834 = vmatpush.bf16.msra.mxu0 %v9521
  %10835 = vmatpush.bf16.msra.mxu0 %v9516
  %10836 = vmatpush.bf16.msra.mxu0 %v9511
  %10837 = vmatmul.bf16.gmra.mxu0 %v5555
  %v10838 = vpop.f32.mrf.mxu0
  %v10839 = vadd.f32 %v10826, %v10838
  %v10840 = vpop.f32.mrf.mxu0
  %10841 = vdwg.mxu0
  %10842 = vmatpush.bf16.msra.mxu0 %v9586
  %10843 = vmatpush.bf16.msra.mxu0 %v9581
  %10844 = vmatpush.bf16.msra.mxu0 %v9576
  %10845 = vmatpush.bf16.msra.mxu0 %v9571
  %10846 = vmatpush.bf16.msra.mxu0 %v9566
  %10847 = vmatpush.bf16.msra.mxu0 %v9561
  %10848 = vmatpush.bf16.msra.mxu0 %v9556
  %10849 = vmatpush.bf16.msra.mxu0 %v9551
  %10850 = vmatmul.bf16.gmra.mxu0 %v5556
  %v10851 = vpop.f32.mrf.mxu0
  %v10852 = vadd.f32 %v10839, %v10851
  %v10853 = vpop.f32.mrf.mxu0
  %10854 = vdwg.mxu0
  %10855 = vmatpush.bf16.msra.mxu0 0
  %10856 = vmatpush.bf16.msra.mxu0 0
  %10857 = vmatpush.bf16.msra.mxu0 %v9616
  %10858 = vmatpush.bf16.msra.mxu0 %v9611
  %10859 = vmatpush.bf16.msra.mxu0 %v9606
  %10860 = vmatpush.bf16.msra.mxu0 %v9601
  %10861 = vmatpush.bf16.msra.mxu0 %v9596
  %10862 = vmatpush.bf16.msra.mxu0 %v9591
  %10863 = vmatmul.bf16.gmra.mxu0 %v10372
  %v10864 = vpop.f32.mrf.mxu0
  %v10865 = vadd.f32 %v10852, %v10864
  %v10866 = vpop.f32.mrf.mxu0
  %10867 = vdwg.mxu0
  %10868 = vmatpush.bf16.msra.mxu0 %v8907
  %10869 = vmatpush.bf16.msra.mxu0 %v8902
  %10870 = vmatpush.bf16.msra.mxu0 %v8897
  %10871 = vmatpush.bf16.msra.mxu0 %v8892
  %10872 = vmatpush.bf16.msra.mxu0 %v8887
  %10873 = vmatpush.bf16.msra.mxu0 %v8882
  %10874 = vmatpush.bf16.msra.mxu0 %v8877
  %10875 = vmatpush.bf16.msra.mxu0 %v8872
  %10876 = vmatmul.bf16.gmra.mxu0 %v5539
  %v10877 = vpop.f32.mrf.mxu0
  %v10878 = vadd.f32 %v6462, %v10877
  %v10879 = vpop.f32.mrf.mxu0
  %10880 = vdwg.mxu0
  %10881 = vmatpush.bf16.msra.mxu0 %v8947
  %10882 = vmatpush.bf16.msra.mxu0 %v8942
  %10883 = vmatpush.bf16.msra.mxu0 %v8937
  %10884 = vmatpush.bf16.msra.mxu0 %v8932
  %10885 = vmatpush.bf16.msra.mxu0 %v8927
  %10886 = vmatpush.bf16.msra.mxu0 %v8922
  %10887 = vmatpush.bf16.msra.mxu0 %v8917
  %10888 = vmatpush.bf16.msra.mxu0 %v8912
  %10889 = vmatmul.bf16.gmra.mxu0 %v5540
  %v10890 = vpop.f32.mrf.mxu0
  %v10891 = vadd.f32 %v10878, %v10890
  %v10892 = vpop.f32.mrf.mxu0
  %10893 = vdwg.mxu0
  %10894 = vmatpush.bf16.msra.mxu0 %v8987
  %10895 = vmatpush.bf16.msra.mxu0 %v8982
  %10896 = vmatpush.bf16.msra.mxu0 %v8977
  %10897 = vmatpush.bf16.msra.mxu0 %v8972
  %10898 = vmatpush.bf16.msra.mxu0 %v8967
  %10899 = vmatpush.bf16.msra.mxu0 %v8962
  %10900 = vmatpush.bf16.msra.mxu0 %v8957
  %10901 = vmatpush.bf16.msra.mxu0 %v8952
  %10902 = vmatmul.bf16.gmra.mxu0 %v5541
  %v10903 = vpop.f32.mrf.mxu0
  %v10904 = vadd.f32 %v10891, %v10903
  %v10905 = vpop.f32.mrf.mxu0
  %10906 = vdwg.mxu0
  %10907 = vmatpush.bf16.msra.mxu0 %v9027
  %10908 = vmatpush.bf16.msra.mxu0 %v9022
  %10909 = vmatpush.bf16.msra.mxu0 %v9017
  %10910 = vmatpush.bf16.msra.mxu0 %v9012
  %10911 = vmatpush.bf16.msra.mxu0 %v9007
  %10912 = vmatpush.bf16.msra.mxu0 %v9002
  %10913 = vmatpush.bf16.msra.mxu0 %v8997
  %10914 = vmatpush.bf16.msra.mxu0 %v8992
  %10915 = vmatmul.bf16.gmra.mxu0 %v5542
  %v10916 = vpop.f32.mrf.mxu0
  %v10917 = vadd.f32 %v10904, %v10916
  %v10918 = vpop.f32.mrf.mxu0
  %10919 = vdwg.mxu0
  %10920 = vmatpush.bf16.msra.mxu0 %v9067
  %10921 = vmatpush.bf16.msra.mxu0 %v9062
  %10922 = vmatpush.bf16.msra.mxu0 %v9057
  %10923 = vmatpush.bf16.msra.mxu0 %v9052
  %10924 = vmatpush.bf16.msra.mxu0 %v9047
  %10925 = vmatpush.bf16.msra.mxu0 %v9042
  %10926 = vmatpush.bf16.msra.mxu0 %v9037
  %10927 = vmatpush.bf16.msra.mxu0 %v9032
  %10928 = vmatmul.bf16.gmra.mxu0 %v5543
  %v10929 = vpop.f32.mrf.mxu0
  %v10930 = vadd.f32 %v10917, %v10929
  %v10931 = vpop.f32.mrf.mxu0
  %10932 = vdwg.mxu0
  %10933 = vmatpush.bf16.msra.mxu0 %v9107
  %10934 = vmatpush.bf16.msra.mxu0 %v9102
  %10935 = vmatpush.bf16.msra.mxu0 %v9097
  %10936 = vmatpush.bf16.msra.mxu0 %v9092
  %10937 = vmatpush.bf16.msra.mxu0 %v9087
  %10938 = vmatpush.bf16.msra.mxu0 %v9082
  %10939 = vmatpush.bf16.msra.mxu0 %v9077
  %10940 = vmatpush.bf16.msra.mxu0 %v9072
  %10941 = vmatmul.bf16.gmra.mxu0 %v5544
  %v10942 = vpop.f32.mrf.mxu0
  %v10943 = vadd.f32 %v10930, %v10942
  %v10944 = vpop.f32.mrf.mxu0
  %10945 = vdwg.mxu0
  %10946 = vmatpush.bf16.msra.mxu0 %v9147
  %10947 = vmatpush.bf16.msra.mxu0 %v9142
  %10948 = vmatpush.bf16.msra.mxu0 %v9137
  %10949 = vmatpush.bf16.msra.mxu0 %v9132
  %10950 = vmatpush.bf16.msra.mxu0 %v9127
  %10951 = vmatpush.bf16.msra.mxu0 %v9122
  %10952 = vmatpush.bf16.msra.mxu0 %v9117
  %10953 = vmatpush.bf16.msra.mxu0 %v9112
  %10954 = vmatmul.bf16.gmra.mxu0 %v5545
  %v10955 = vpop.f32.mrf.mxu0
  %v10956 = vadd.f32 %v10943, %v10955
  %v10957 = vpop.f32.mrf.mxu0
  %10958 = vdwg.mxu0
  %10959 = vmatpush.bf16.msra.mxu0 %v9187
  %10960 = vmatpush.bf16.msra.mxu0 %v9182
  %10961 = vmatpush.bf16.msra.mxu0 %v9177
  %10962 = vmatpush.bf16.msra.mxu0 %v9172
  %10963 = vmatpush.bf16.msra.mxu0 %v9167
  %10964 = vmatpush.bf16.msra.mxu0 %v9162
  %10965 = vmatpush.bf16.msra.mxu0 %v9157
  %10966 = vmatpush.bf16.msra.mxu0 %v9152
  %10967 = vmatmul.bf16.gmra.mxu0 %v5546
  %v10968 = vpop.f32.mrf.mxu0
  %v10969 = vadd.f32 %v10956, %v10968
  %v10970 = vpop.f32.mrf.mxu0
  %10971 = vdwg.mxu0
  %10972 = vmatpush.bf16.msra.mxu0 %v9227
  %10973 = vmatpush.bf16.msra.mxu0 %v9222
  %10974 = vmatpush.bf16.msra.mxu0 %v9217
  %10975 = vmatpush.bf16.msra.mxu0 %v9212
  %10976 = vmatpush.bf16.msra.mxu0 %v9207
  %10977 = vmatpush.bf16.msra.mxu0 %v9202
  %10978 = vmatpush.bf16.msra.mxu0 %v9197
  %10979 = vmatpush.bf16.msra.mxu0 %v9192
  %10980 = vmatmul.bf16.gmra.mxu0 %v5547
  %v10981 = vpop.f32.mrf.mxu0
  %v10982 = vadd.f32 %v10969, %v10981
  %v10983 = vpop.f32.mrf.mxu0
  %10984 = vdwg.mxu0
  %10985 = vmatpush.bf16.msra.mxu0 %v9267
  %10986 = vmatpush.bf16.msra.mxu0 %v9262
  %10987 = vmatpush.bf16.msra.mxu0 %v9257
  %10988 = vmatpush.bf16.msra.mxu0 %v9252
  %10989 = vmatpush.bf16.msra.mxu0 %v9247
  %10990 = vmatpush.bf16.msra.mxu0 %v9242
  %10991 = vmatpush.bf16.msra.mxu0 %v9237
  %10992 = vmatpush.bf16.msra.mxu0 %v9232
  %10993 = vmatmul.bf16.gmra.mxu0 %v5548
  %v10994 = vpop.f32.mrf.mxu0
  %v10995 = vadd.f32 %v10982, %v10994
  %v10996 = vpop.f32.mrf.mxu0
  %10997 = vdwg.mxu0
  %10998 = vmatpush.bf16.msra.mxu0 %v9307
  %10999 = vmatpush.bf16.msra.mxu0 %v9302
  %11000 = vmatpush.bf16.msra.mxu0 %v9297
  %11001 = vmatpush.bf16.msra.mxu0 %v9292
  %11002 = vmatpush.bf16.msra.mxu0 %v9287
  %11003 = vmatpush.bf16.msra.mxu0 %v9282
  %11004 = vmatpush.bf16.msra.mxu0 %v9277
  %11005 = vmatpush.bf16.msra.mxu0 %v9272
  %11006 = vmatmul.bf16.gmra.mxu0 %v5549
  %v11007 = vpop.f32.mrf.mxu0
  %v11008 = vadd.f32 %v10995, %v11007
  %v11009 = vpop.f32.mrf.mxu0
  %11010 = vdwg.mxu0
  %11011 = vmatpush.bf16.msra.mxu0 %v9347
  %11012 = vmatpush.bf16.msra.mxu0 %v9342
  %11013 = vmatpush.bf16.msra.mxu0 %v9337
  %11014 = vmatpush.bf16.msra.mxu0 %v9332
  %11015 = vmatpush.bf16.msra.mxu0 %v9327
  %11016 = vmatpush.bf16.msra.mxu0 %v9322
  %11017 = vmatpush.bf16.msra.mxu0 %v9317
  %11018 = vmatpush.bf16.msra.mxu0 %v9312
  %11019 = vmatmul.bf16.gmra.mxu0 %v5550
  %v11020 = vpop.f32.mrf.mxu0
  %v11021 = vadd.f32 %v11008, %v11020
  %v11022 = vpop.f32.mrf.mxu0
  %11023 = vdwg.mxu0
  %11024 = vmatpush.bf16.msra.mxu0 %v9387
  %11025 = vmatpush.bf16.msra.mxu0 %v9382
  %11026 = vmatpush.bf16.msra.mxu0 %v9377
  %11027 = vmatpush.bf16.msra.mxu0 %v9372
  %11028 = vmatpush.bf16.msra.mxu0 %v9367
  %11029 = vmatpush.bf16.msra.mxu0 %v9362
  %11030 = vmatpush.bf16.msra.mxu0 %v9357
  %11031 = vmatpush.bf16.msra.mxu0 %v9352
  %11032 = vmatmul.bf16.gmra.mxu0 %v5551
  %v11033 = vpop.f32.mrf.mxu0
  %v11034 = vadd.f32 %v11021, %v11033
  %v11035 = vpop.f32.mrf.mxu0
  %11036 = vdwg.mxu0
  %11037 = vmatpush.bf16.msra.mxu0 %v9427
  %11038 = vmatpush.bf16.msra.mxu0 %v9422
  %11039 = vmatpush.bf16.msra.mxu0 %v9417
  %11040 = vmatpush.bf16.msra.mxu0 %v9412
  %11041 = vmatpush.bf16.msra.mxu0 %v9407
  %11042 = vmatpush.bf16.msra.mxu0 %v9402
  %11043 = vmatpush.bf16.msra.mxu0 %v9397
  %11044 = vmatpush.bf16.msra.mxu0 %v9392
  %11045 = vmatmul.bf16.gmra.mxu0 %v5552
  %v11046 = vpop.f32.mrf.mxu0
  %v11047 = vadd.f32 %v11034, %v11046
  %v11048 = vpop.f32.mrf.mxu0
  %11049 = vdwg.mxu0
  %11050 = vmatpush.bf16.msra.mxu0 %v9467
  %11051 = vmatpush.bf16.msra.mxu0 %v9462
  %11052 = vmatpush.bf16.msra.mxu0 %v9457
  %11053 = vmatpush.bf16.msra.mxu0 %v9452
  %11054 = vmatpush.bf16.msra.mxu0 %v9447
  %11055 = vmatpush.bf16.msra.mxu0 %v9442
  %11056 = vmatpush.bf16.msra.mxu0 %v9437
  %11057 = vmatpush.bf16.msra.mxu0 %v9432
  %11058 = vmatmul.bf16.gmra.mxu0 %v5553
  %v11059 = vpop.f32.mrf.mxu0
  %v11060 = vadd.f32 %v11047, %v11059
  %v11061 = vpop.f32.mrf.mxu0
  %11062 = vdwg.mxu0
  %11063 = vmatpush.bf16.msra.mxu0 %v9507
  %11064 = vmatpush.bf16.msra.mxu0 %v9502
  %11065 = vmatpush.bf16.msra.mxu0 %v9497
  %11066 = vmatpush.bf16.msra.mxu0 %v9492
  %11067 = vmatpush.bf16.msra.mxu0 %v9487
  %11068 = vmatpush.bf16.msra.mxu0 %v9482
  %11069 = vmatpush.bf16.msra.mxu0 %v9477
  %11070 = vmatpush.bf16.msra.mxu0 %v9472
  %11071 = vmatmul.bf16.gmra.mxu0 %v5554
  %v11072 = vpop.f32.mrf.mxu0
  %v11073 = vadd.f32 %v11060, %v11072
  %v11074 = vpop.f32.mrf.mxu0
  %11075 = vdwg.mxu0
  %11076 = vmatpush.bf16.msra.mxu0 %v9547
  %11077 = vmatpush.bf16.msra.mxu0 %v9542
  %11078 = vmatpush.bf16.msra.mxu0 %v9537
  %11079 = vmatpush.bf16.msra.mxu0 %v9532
  %11080 = vmatpush.bf16.msra.mxu0 %v9527
  %11081 = vmatpush.bf16.msra.mxu0 %v9522
  %11082 = vmatpush.bf16.msra.mxu0 %v9517
  %11083 = vmatpush.bf16.msra.mxu0 %v9512
  %11084 = vmatmul.bf16.gmra.mxu0 %v5555
  %v11085 = vpop.f32.mrf.mxu0
  %v11086 = vadd.f32 %v11073, %v11085
  %v11087 = vpop.f32.mrf.mxu0
  %11088 = vdwg.mxu0
  %11089 = vmatpush.bf16.msra.mxu0 %v9587
  %11090 = vmatpush.bf16.msra.mxu0 %v9582
  %11091 = vmatpush.bf16.msra.mxu0 %v9577
  %11092 = vmatpush.bf16.msra.mxu0 %v9572
  %11093 = vmatpush.bf16.msra.mxu0 %v9567
  %11094 = vmatpush.bf16.msra.mxu0 %v9562
  %11095 = vmatpush.bf16.msra.mxu0 %v9557
  %11096 = vmatpush.bf16.msra.mxu0 %v9552
  %11097 = vmatmul.bf16.gmra.mxu0 %v5556
  %v11098 = vpop.f32.mrf.mxu0
  %v11099 = vadd.f32 %v11086, %v11098
  %v11100 = vpop.f32.mrf.mxu0
  %11101 = vdwg.mxu0
  %11102 = vmatpush.bf16.msra.mxu0 0
  %11103 = vmatpush.bf16.msra.mxu0 0
  %11104 = vmatpush.bf16.msra.mxu0 %v9617
  %11105 = vmatpush.bf16.msra.mxu0 %v9612
  %11106 = vmatpush.bf16.msra.mxu0 %v9607
  %11107 = vmatpush.bf16.msra.mxu0 %v9602
  %11108 = vmatpush.bf16.msra.mxu0 %v9597
  %11109 = vmatpush.bf16.msra.mxu0 %v9592
  %11110 = vmatmul.bf16.gmra.mxu0 %v10372
  %v11111 = vpop.f32.mrf.mxu0
  %v11112 = vadd.f32 %v11099, %v11111
  %v11113 = vpop.f32.mrf.mxu0
  %11114 = vdwg.mxu0
  %11115 = vmatpush.bf16.msra.mxu0 %v8908
  %11116 = vmatpush.bf16.msra.mxu0 %v8903
  %11117 = vmatpush.bf16.msra.mxu0 %v8898
  %11118 = vmatpush.bf16.msra.mxu0 %v8893
  %11119 = vmatpush.bf16.msra.mxu0 %v8888
  %11120 = vmatpush.bf16.msra.mxu0 %v8883
  %11121 = vmatpush.bf16.msra.mxu0 %v8878
  %11122 = vmatpush.bf16.msra.mxu0 %v8873
  %11123 = vmatmul.bf16.gmra.mxu0 %v5539
  %v11124 = vpop.f32.mrf.mxu0
  %v11125 = vadd.f32 %v6463, %v11124
  %v11126 = vpop.f32.mrf.mxu0
  %11127 = vdwg.mxu0
  %11128 = vmatpush.bf16.msra.mxu0 %v8948
  %11129 = vmatpush.bf16.msra.mxu0 %v8943
  %11130 = vmatpush.bf16.msra.mxu0 %v8938
  %11131 = vmatpush.bf16.msra.mxu0 %v8933
  %11132 = vmatpush.bf16.msra.mxu0 %v8928
  %11133 = vmatpush.bf16.msra.mxu0 %v8923
  %11134 = vmatpush.bf16.msra.mxu0 %v8918
  %11135 = vmatpush.bf16.msra.mxu0 %v8913
  %11136 = vmatmul.bf16.gmra.mxu0 %v5540
  %v11137 = vpop.f32.mrf.mxu0
  %v11138 = vadd.f32 %v11125, %v11137
  %v11139 = vpop.f32.mrf.mxu0
  %11140 = vdwg.mxu0
  %11141 = vmatpush.bf16.msra.mxu0 %v8988
  %11142 = vmatpush.bf16.msra.mxu0 %v8983
  %11143 = vmatpush.bf16.msra.mxu0 %v8978
  %11144 = vmatpush.bf16.msra.mxu0 %v8973
  %11145 = vmatpush.bf16.msra.mxu0 %v8968
  %11146 = vmatpush.bf16.msra.mxu0 %v8963
  %11147 = vmatpush.bf16.msra.mxu0 %v8958
  %11148 = vmatpush.bf16.msra.mxu0 %v8953
  %11149 = vmatmul.bf16.gmra.mxu0 %v5541
  %v11150 = vpop.f32.mrf.mxu0
  %v11151 = vadd.f32 %v11138, %v11150
  %v11152 = vpop.f32.mrf.mxu0
  %11153 = vdwg.mxu0
  %11154 = vmatpush.bf16.msra.mxu0 %v9028
  %11155 = vmatpush.bf16.msra.mxu0 %v9023
  %11156 = vmatpush.bf16.msra.mxu0 %v9018
  %11157 = vmatpush.bf16.msra.mxu0 %v9013
  %11158 = vmatpush.bf16.msra.mxu0 %v9008
  %11159 = vmatpush.bf16.msra.mxu0 %v9003
  %11160 = vmatpush.bf16.msra.mxu0 %v8998
  %11161 = vmatpush.bf16.msra.mxu0 %v8993
  %11162 = vmatmul.bf16.gmra.mxu0 %v5542
  %v11163 = vpop.f32.mrf.mxu0
  %v11164 = vadd.f32 %v11151, %v11163
  %v11165 = vpop.f32.mrf.mxu0
  %11166 = vdwg.mxu0
  %11167 = vmatpush.bf16.msra.mxu0 %v9068
  %11168 = vmatpush.bf16.msra.mxu0 %v9063
  %11169 = vmatpush.bf16.msra.mxu0 %v9058
  %11170 = vmatpush.bf16.msra.mxu0 %v9053
  %11171 = vmatpush.bf16.msra.mxu0 %v9048
  %11172 = vmatpush.bf16.msra.mxu0 %v9043
  %11173 = vmatpush.bf16.msra.mxu0 %v9038
  %11174 = vmatpush.bf16.msra.mxu0 %v9033
  %11175 = vmatmul.bf16.gmra.mxu0 %v5543
  %v11176 = vpop.f32.mrf.mxu0
  %v11177 = vadd.f32 %v11164, %v11176
  %v11178 = vpop.f32.mrf.mxu0
  %11179 = vdwg.mxu0
  %11180 = vmatpush.bf16.msra.mxu0 %v9108
  %11181 = vmatpush.bf16.msra.mxu0 %v9103
  %11182 = vmatpush.bf16.msra.mxu0 %v9098
  %11183 = vmatpush.bf16.msra.mxu0 %v9093
  %11184 = vmatpush.bf16.msra.mxu0 %v9088
  %11185 = vmatpush.bf16.msra.mxu0 %v9083
  %11186 = vmatpush.bf16.msra.mxu0 %v9078
  %11187 = vmatpush.bf16.msra.mxu0 %v9073
  %11188 = vmatmul.bf16.gmra.mxu0 %v5544
  %v11189 = vpop.f32.mrf.mxu0
  %v11190 = vadd.f32 %v11177, %v11189
  %v11191 = vpop.f32.mrf.mxu0
  %11192 = vdwg.mxu0
  %11193 = vmatpush.bf16.msra.mxu0 %v9148
  %11194 = vmatpush.bf16.msra.mxu0 %v9143
  %11195 = vmatpush.bf16.msra.mxu0 %v9138
  %11196 = vmatpush.bf16.msra.mxu0 %v9133
  %11197 = vmatpush.bf16.msra.mxu0 %v9128
  %11198 = vmatpush.bf16.msra.mxu0 %v9123
  %11199 = vmatpush.bf16.msra.mxu0 %v9118
  %11200 = vmatpush.bf16.msra.mxu0 %v9113
  %11201 = vmatmul.bf16.gmra.mxu0 %v5545
  %v11202 = vpop.f32.mrf.mxu0
  %v11203 = vadd.f32 %v11190, %v11202
  %v11204 = vpop.f32.mrf.mxu0
  %11205 = vdwg.mxu0
  %11206 = vmatpush.bf16.msra.mxu0 %v9188
  %11207 = vmatpush.bf16.msra.mxu0 %v9183
  %11208 = vmatpush.bf16.msra.mxu0 %v9178
  %11209 = vmatpush.bf16.msra.mxu0 %v9173
  %11210 = vmatpush.bf16.msra.mxu0 %v9168
  %11211 = vmatpush.bf16.msra.mxu0 %v9163
  %11212 = vmatpush.bf16.msra.mxu0 %v9158
  %11213 = vmatpush.bf16.msra.mxu0 %v9153
  %11214 = vmatmul.bf16.gmra.mxu0 %v5546
  %v11215 = vpop.f32.mrf.mxu0
  %v11216 = vadd.f32 %v11203, %v11215
  %v11217 = vpop.f32.mrf.mxu0
  %11218 = vdwg.mxu0
  %11219 = vmatpush.bf16.msra.mxu0 %v9228
  %11220 = vmatpush.bf16.msra.mxu0 %v9223
  %11221 = vmatpush.bf16.msra.mxu0 %v9218
  %11222 = vmatpush.bf16.msra.mxu0 %v9213
  %11223 = vmatpush.bf16.msra.mxu0 %v9208
  %11224 = vmatpush.bf16.msra.mxu0 %v9203
  %11225 = vmatpush.bf16.msra.mxu0 %v9198
  %11226 = vmatpush.bf16.msra.mxu0 %v9193
  %11227 = vmatmul.bf16.gmra.mxu0 %v5547
  %v11228 = vpop.f32.mrf.mxu0
  %v11229 = vadd.f32 %v11216, %v11228
  %v11230 = vpop.f32.mrf.mxu0
  %11231 = vdwg.mxu0
  %11232 = vmatpush.bf16.msra.mxu0 %v9268
  %11233 = vmatpush.bf16.msra.mxu0 %v9263
  %11234 = vmatpush.bf16.msra.mxu0 %v9258
  %11235 = vmatpush.bf16.msra.mxu0 %v9253
  %11236 = vmatpush.bf16.msra.mxu0 %v9248
  %11237 = vmatpush.bf16.msra.mxu0 %v9243
  %11238 = vmatpush.bf16.msra.mxu0 %v9238
  %11239 = vmatpush.bf16.msra.mxu0 %v9233
  %11240 = vmatmul.bf16.gmra.mxu0 %v5548
  %v11241 = vpop.f32.mrf.mxu0
  %v11242 = vadd.f32 %v11229, %v11241
  %v11243 = vpop.f32.mrf.mxu0
  %11244 = vdwg.mxu0
  %11245 = vmatpush.bf16.msra.mxu0 %v9308
  %11246 = vmatpush.bf16.msra.mxu0 %v9303
  %11247 = vmatpush.bf16.msra.mxu0 %v9298
  %11248 = vmatpush.bf16.msra.mxu0 %v9293
  %11249 = vmatpush.bf16.msra.mxu0 %v9288
  %11250 = vmatpush.bf16.msra.mxu0 %v9283
  %11251 = vmatpush.bf16.msra.mxu0 %v9278
  %11252 = vmatpush.bf16.msra.mxu0 %v9273
  %11253 = vmatmul.bf16.gmra.mxu0 %v5549
  %v11254 = vpop.f32.mrf.mxu0
  %v11255 = vadd.f32 %v11242, %v11254
  %v11256 = vpop.f32.mrf.mxu0
  %11257 = vdwg.mxu0
  %11258 = vmatpush.bf16.msra.mxu0 %v9348
  %11259 = vmatpush.bf16.msra.mxu0 %v9343
  %11260 = vmatpush.bf16.msra.mxu0 %v9338
  %11261 = vmatpush.bf16.msra.mxu0 %v9333
  %11262 = vmatpush.bf16.msra.mxu0 %v9328
  %11263 = vmatpush.bf16.msra.mxu0 %v9323
  %11264 = vmatpush.bf16.msra.mxu0 %v9318
  %11265 = vmatpush.bf16.msra.mxu0 %v9313
  %11266 = vmatmul.bf16.gmra.mxu0 %v5550
  %v11267 = vpop.f32.mrf.mxu0
  %v11268 = vadd.f32 %v11255, %v11267
  %v11269 = vpop.f32.mrf.mxu0
  %11270 = vdwg.mxu0
  %11271 = vmatpush.bf16.msra.mxu0 %v9388
  %11272 = vmatpush.bf16.msra.mxu0 %v9383
  %11273 = vmatpush.bf16.msra.mxu0 %v9378
  %11274 = vmatpush.bf16.msra.mxu0 %v9373
  %11275 = vmatpush.bf16.msra.mxu0 %v9368
  %11276 = vmatpush.bf16.msra.mxu0 %v9363
  %11277 = vmatpush.bf16.msra.mxu0 %v9358
  %11278 = vmatpush.bf16.msra.mxu0 %v9353
  %11279 = vmatmul.bf16.gmra.mxu0 %v5551
  %v11280 = vpop.f32.mrf.mxu0
  %v11281 = vadd.f32 %v11268, %v11280
  %v11282 = vpop.f32.mrf.mxu0
  %11283 = vdwg.mxu0
  %11284 = vmatpush.bf16.msra.mxu0 %v9428
  %11285 = vmatpush.bf16.msra.mxu0 %v9423
  %11286 = vmatpush.bf16.msra.mxu0 %v9418
  %11287 = vmatpush.bf16.msra.mxu0 %v9413
  %11288 = vmatpush.bf16.msra.mxu0 %v9408
  %11289 = vmatpush.bf16.msra.mxu0 %v9403
  %11290 = vmatpush.bf16.msra.mxu0 %v9398
  %11291 = vmatpush.bf16.msra.mxu0 %v9393
  %11292 = vmatmul.bf16.gmra.mxu0 %v5552
  %v11293 = vpop.f32.mrf.mxu0
  %v11294 = vadd.f32 %v11281, %v11293
  %v11295 = vpop.f32.mrf.mxu0
  %11296 = vdwg.mxu0
  %11297 = vmatpush.bf16.msra.mxu0 %v9468
  %11298 = vmatpush.bf16.msra.mxu0 %v9463
  %11299 = vmatpush.bf16.msra.mxu0 %v9458
  %11300 = vmatpush.bf16.msra.mxu0 %v9453
  %11301 = vmatpush.bf16.msra.mxu0 %v9448
  %11302 = vmatpush.bf16.msra.mxu0 %v9443
  %11303 = vmatpush.bf16.msra.mxu0 %v9438
  %11304 = vmatpush.bf16.msra.mxu0 %v9433
  %11305 = vmatmul.bf16.gmra.mxu0 %v5553
  %v11306 = vpop.f32.mrf.mxu0
  %v11307 = vadd.f32 %v11294, %v11306
  %v11308 = vpop.f32.mrf.mxu0
  %11309 = vdwg.mxu0
  %11310 = vmatpush.bf16.msra.mxu0 %v9508
  %11311 = vmatpush.bf16.msra.mxu0 %v9503
  %11312 = vmatpush.bf16.msra.mxu0 %v9498
  %11313 = vmatpush.bf16.msra.mxu0 %v9493
  %11314 = vmatpush.bf16.msra.mxu0 %v9488
  %11315 = vmatpush.bf16.msra.mxu0 %v9483
  %11316 = vmatpush.bf16.msra.mxu0 %v9478
  %11317 = vmatpush.bf16.msra.mxu0 %v9473
  %11318 = vmatmul.bf16.gmra.mxu0 %v5554
  %v11319 = vpop.f32.mrf.mxu0
  %v11320 = vadd.f32 %v11307, %v11319
  %v11321 = vpop.f32.mrf.mxu0
  %11322 = vdwg.mxu0
  %11323 = vmatpush.bf16.msra.mxu0 %v9548
  %11324 = vmatpush.bf16.msra.mxu0 %v9543
  %11325 = vmatpush.bf16.msra.mxu0 %v9538
  %11326 = vmatpush.bf16.msra.mxu0 %v9533
  %11327 = vmatpush.bf16.msra.mxu0 %v9528
  %11328 = vmatpush.bf16.msra.mxu0 %v9523
  %11329 = vmatpush.bf16.msra.mxu0 %v9518
  %11330 = vmatpush.bf16.msra.mxu0 %v9513
  %11331 = vmatmul.bf16.gmra.mxu0 %v5555
  %v11332 = vpop.f32.mrf.mxu0
  %v11333 = vadd.f32 %v11320, %v11332
  %v11334 = vpop.f32.mrf.mxu0
  %11335 = vdwg.mxu0
  %11336 = vmatpush.bf16.msra.mxu0 %v9588
  %11337 = vmatpush.bf16.msra.mxu0 %v9583
  %11338 = vmatpush.bf16.msra.mxu0 %v9578
  %11339 = vmatpush.bf16.msra.mxu0 %v9573
  %11340 = vmatpush.bf16.msra.mxu0 %v9568
  %11341 = vmatpush.bf16.msra.mxu0 %v9563
  %11342 = vmatpush.bf16.msra.mxu0 %v9558
  %11343 = vmatpush.bf16.msra.mxu0 %v9553
  %11344 = vmatmul.bf16.gmra.mxu0 %v5556
  %v11345 = vpop.f32.mrf.mxu0
  %v11346 = vadd.f32 %v11333, %v11345
  %v11347 = vpop.f32.mrf.mxu0
  %11348 = vdwg.mxu0
  %11349 = vmatpush.bf16.msra.mxu0 0
  %11350 = vmatpush.bf16.msra.mxu0 0
  %11351 = vmatpush.bf16.msra.mxu0 %v9618
  %11352 = vmatpush.bf16.msra.mxu0 %v9613
  %11353 = vmatpush.bf16.msra.mxu0 %v9608
  %11354 = vmatpush.bf16.msra.mxu0 %v9603
  %11355 = vmatpush.bf16.msra.mxu0 %v9598
  %11356 = vmatpush.bf16.msra.mxu0 %v9593
  %11357 = vmatmul.bf16.gmra.mxu0 %v10372
  %v11358 = vpop.f32.mrf.mxu0
  %v11359 = vadd.f32 %v11346, %v11358
  %v11360 = vpop.f32.mrf.mxu0
  %11361 = vdwg.mxu0
  %11362 = vmatpush.bf16.msra.mxu0 %v8909
  %11363 = vmatpush.bf16.msra.mxu0 %v8904
  %11364 = vmatpush.bf16.msra.mxu0 %v8899
  %11365 = vmatpush.bf16.msra.mxu0 %v8894
  %11366 = vmatpush.bf16.msra.mxu0 %v8889
  %11367 = vmatpush.bf16.msra.mxu0 %v8884
  %11368 = vmatpush.bf16.msra.mxu0 %v8879
  %11369 = vmatpush.bf16.msra.mxu0 %v8874
  %11370 = vmatmul.bf16.gmra.mxu0 %v5539
  %v11371 = vpop.f32.mrf.mxu0
  %v11372 = vadd.f32 %v6464, %v11371
  %v11373 = vpop.f32.mrf.mxu0
  %11374 = vdwg.mxu0
  %11375 = vmatpush.bf16.msra.mxu0 %v8949
  %11376 = vmatpush.bf16.msra.mxu0 %v8944
  %11377 = vmatpush.bf16.msra.mxu0 %v8939
  %11378 = vmatpush.bf16.msra.mxu0 %v8934
  %11379 = vmatpush.bf16.msra.mxu0 %v8929
  %11380 = vmatpush.bf16.msra.mxu0 %v8924
  %11381 = vmatpush.bf16.msra.mxu0 %v8919
  %11382 = vmatpush.bf16.msra.mxu0 %v8914
  %11383 = vmatmul.bf16.gmra.mxu0 %v5540
  %v11384 = vpop.f32.mrf.mxu0
  %v11385 = vadd.f32 %v11372, %v11384
  %v11386 = vpop.f32.mrf.mxu0
  %11387 = vdwg.mxu0
  %11388 = vmatpush.bf16.msra.mxu0 %v8989
  %11389 = vmatpush.bf16.msra.mxu0 %v8984
  %11390 = vmatpush.bf16.msra.mxu0 %v8979
  %11391 = vmatpush.bf16.msra.mxu0 %v8974
  %11392 = vmatpush.bf16.msra.mxu0 %v8969
  %11393 = vmatpush.bf16.msra.mxu0 %v8964
  %11394 = vmatpush.bf16.msra.mxu0 %v8959
  %11395 = vmatpush.bf16.msra.mxu0 %v8954
  %11396 = vmatmul.bf16.gmra.mxu0 %v5541
  %v11397 = vpop.f32.mrf.mxu0
  %v11398 = vadd.f32 %v11385, %v11397
  %v11399 = vpop.f32.mrf.mxu0
  %11400 = vdwg.mxu0
  %11401 = vmatpush.bf16.msra.mxu0 %v9029
  %11402 = vmatpush.bf16.msra.mxu0 %v9024
  %11403 = vmatpush.bf16.msra.mxu0 %v9019
  %11404 = vmatpush.bf16.msra.mxu0 %v9014
  %11405 = vmatpush.bf16.msra.mxu0 %v9009
  %11406 = vmatpush.bf16.msra.mxu0 %v9004
  %11407 = vmatpush.bf16.msra.mxu0 %v8999
  %11408 = vmatpush.bf16.msra.mxu0 %v8994
  %11409 = vmatmul.bf16.gmra.mxu0 %v5542
  %v11410 = vpop.f32.mrf.mxu0
  %v11411 = vadd.f32 %v11398, %v11410
  %v11412 = vpop.f32.mrf.mxu0
  %11413 = vdwg.mxu0
  %11414 = vmatpush.bf16.msra.mxu0 %v9069
  %11415 = vmatpush.bf16.msra.mxu0 %v9064
  %11416 = vmatpush.bf16.msra.mxu0 %v9059
  %11417 = vmatpush.bf16.msra.mxu0 %v9054
  %11418 = vmatpush.bf16.msra.mxu0 %v9049
  %11419 = vmatpush.bf16.msra.mxu0 %v9044
  %11420 = vmatpush.bf16.msra.mxu0 %v9039
  %11421 = vmatpush.bf16.msra.mxu0 %v9034
  %11422 = vmatmul.bf16.gmra.mxu0 %v5543
  %v11423 = vpop.f32.mrf.mxu0
  %v11424 = vadd.f32 %v11411, %v11423
  %v11425 = vpop.f32.mrf.mxu0
  %11426 = vdwg.mxu0
  %11427 = vmatpush.bf16.msra.mxu0 %v9109
  %11428 = vmatpush.bf16.msra.mxu0 %v9104
  %11429 = vmatpush.bf16.msra.mxu0 %v9099
  %11430 = vmatpush.bf16.msra.mxu0 %v9094
  %11431 = vmatpush.bf16.msra.mxu0 %v9089
  %11432 = vmatpush.bf16.msra.mxu0 %v9084
  %11433 = vmatpush.bf16.msra.mxu0 %v9079
  %11434 = vmatpush.bf16.msra.mxu0 %v9074
  %11435 = vmatmul.bf16.gmra.mxu0 %v5544
  %v11436 = vpop.f32.mrf.mxu0
  %v11437 = vadd.f32 %v11424, %v11436
  %v11438 = vpop.f32.mrf.mxu0
  %11439 = vdwg.mxu0
  %11440 = vmatpush.bf16.msra.mxu0 %v9149
  %11441 = vmatpush.bf16.msra.mxu0 %v9144
  %11442 = vmatpush.bf16.msra.mxu0 %v9139
  %11443 = vmatpush.bf16.msra.mxu0 %v9134
  %11444 = vmatpush.bf16.msra.mxu0 %v9129
  %11445 = vmatpush.bf16.msra.mxu0 %v9124
  %11446 = vmatpush.bf16.msra.mxu0 %v9119
  %11447 = vmatpush.bf16.msra.mxu0 %v9114
  %11448 = vmatmul.bf16.gmra.mxu0 %v5545
  %v11449 = vpop.f32.mrf.mxu0
  %v11450 = vadd.f32 %v11437, %v11449
  %v11451 = vpop.f32.mrf.mxu0
  %11452 = vdwg.mxu0
  %11453 = vmatpush.bf16.msra.mxu0 %v9189
  %11454 = vmatpush.bf16.msra.mxu0 %v9184
  %11455 = vmatpush.bf16.msra.mxu0 %v9179
  %11456 = vmatpush.bf16.msra.mxu0 %v9174
  %11457 = vmatpush.bf16.msra.mxu0 %v9169
  %11458 = vmatpush.bf16.msra.mxu0 %v9164
  %11459 = vmatpush.bf16.msra.mxu0 %v9159
  %11460 = vmatpush.bf16.msra.mxu0 %v9154
  %11461 = vmatmul.bf16.gmra.mxu0 %v5546
  %v11462 = vpop.f32.mrf.mxu0
  %v11463 = vadd.f32 %v11450, %v11462
  %v11464 = vpop.f32.mrf.mxu0
  %11465 = vdwg.mxu0
  %11466 = vmatpush.bf16.msra.mxu0 %v9229
  %11467 = vmatpush.bf16.msra.mxu0 %v9224
  %11468 = vmatpush.bf16.msra.mxu0 %v9219
  %11469 = vmatpush.bf16.msra.mxu0 %v9214
  %11470 = vmatpush.bf16.msra.mxu0 %v9209
  %11471 = vmatpush.bf16.msra.mxu0 %v9204
  %11472 = vmatpush.bf16.msra.mxu0 %v9199
  %11473 = vmatpush.bf16.msra.mxu0 %v9194
  %11474 = vmatmul.bf16.gmra.mxu0 %v5547
  %v11475 = vpop.f32.mrf.mxu0
  %v11476 = vadd.f32 %v11463, %v11475
  %v11477 = vpop.f32.mrf.mxu0
  %11478 = vdwg.mxu0
  %11479 = vmatpush.bf16.msra.mxu0 %v9269
  %11480 = vmatpush.bf16.msra.mxu0 %v9264
  %11481 = vmatpush.bf16.msra.mxu0 %v9259
  %11482 = vmatpush.bf16.msra.mxu0 %v9254
  %11483 = vmatpush.bf16.msra.mxu0 %v9249
  %11484 = vmatpush.bf16.msra.mxu0 %v9244
  %11485 = vmatpush.bf16.msra.mxu0 %v9239
  %11486 = vmatpush.bf16.msra.mxu0 %v9234
  %11487 = vmatmul.bf16.gmra.mxu0 %v5548
  %v11488 = vpop.f32.mrf.mxu0
  %v11489 = vadd.f32 %v11476, %v11488
  %v11490 = vpop.f32.mrf.mxu0
  %11491 = vdwg.mxu0
  %11492 = vmatpush.bf16.msra.mxu0 %v9309
  %11493 = vmatpush.bf16.msra.mxu0 %v9304
  %11494 = vmatpush.bf16.msra.mxu0 %v9299
  %11495 = vmatpush.bf16.msra.mxu0 %v9294
  %11496 = vmatpush.bf16.msra.mxu0 %v9289
  %11497 = vmatpush.bf16.msra.mxu0 %v9284
  %11498 = vmatpush.bf16.msra.mxu0 %v9279
  %11499 = vmatpush.bf16.msra.mxu0 %v9274
  %11500 = vmatmul.bf16.gmra.mxu0 %v5549
  %v11501 = vpop.f32.mrf.mxu0
  %v11502 = vadd.f32 %v11489, %v11501
  %v11503 = vpop.f32.mrf.mxu0
  %11504 = vdwg.mxu0
  %11505 = vmatpush.bf16.msra.mxu0 %v9349
  %11506 = vmatpush.bf16.msra.mxu0 %v9344
  %11507 = vmatpush.bf16.msra.mxu0 %v9339
  %11508 = vmatpush.bf16.msra.mxu0 %v9334
  %11509 = vmatpush.bf16.msra.mxu0 %v9329
  %11510 = vmatpush.bf16.msra.mxu0 %v9324
  %11511 = vmatpush.bf16.msra.mxu0 %v9319
  %11512 = vmatpush.bf16.msra.mxu0 %v9314
  %11513 = vmatmul.bf16.gmra.mxu0 %v5550
  %v11514 = vpop.f32.mrf.mxu0
  %v11515 = vadd.f32 %v11502, %v11514
  %v11516 = vpop.f32.mrf.mxu0
  %11517 = vdwg.mxu0
  %11518 = vmatpush.bf16.msra.mxu0 %v9389
  %11519 = vmatpush.bf16.msra.mxu0 %v9384
  %11520 = vmatpush.bf16.msra.mxu0 %v9379
  %11521 = vmatpush.bf16.msra.mxu0 %v9374
  %11522 = vmatpush.bf16.msra.mxu0 %v9369
  %11523 = vmatpush.bf16.msra.mxu0 %v9364
  %11524 = vmatpush.bf16.msra.mxu0 %v9359
  %11525 = vmatpush.bf16.msra.mxu0 %v9354
  %11526 = vmatmul.bf16.gmra.mxu0 %v5551
  %v11527 = vpop.f32.mrf.mxu0
  %v11528 = vadd.f32 %v11515, %v11527
  %v11529 = vpop.f32.mrf.mxu0
  %11530 = vdwg.mxu0
  %11531 = vmatpush.bf16.msra.mxu0 %v9429
  %11532 = vmatpush.bf16.msra.mxu0 %v9424
  %11533 = vmatpush.bf16.msra.mxu0 %v9419
  %11534 = vmatpush.bf16.msra.mxu0 %v9414
  %11535 = vmatpush.bf16.msra.mxu0 %v9409
  %11536 = vmatpush.bf16.msra.mxu0 %v9404
  %11537 = vmatpush.bf16.msra.mxu0 %v9399
  %11538 = vmatpush.bf16.msra.mxu0 %v9394
  %11539 = vmatmul.bf16.gmra.mxu0 %v5552
  %v11540 = vpop.f32.mrf.mxu0
  %v11541 = vadd.f32 %v11528, %v11540
  %v11542 = vpop.f32.mrf.mxu0
  %11543 = vdwg.mxu0
  %11544 = vmatpush.bf16.msra.mxu0 %v9469
  %11545 = vmatpush.bf16.msra.mxu0 %v9464
  %11546 = vmatpush.bf16.msra.mxu0 %v9459
  %11547 = vmatpush.bf16.msra.mxu0 %v9454
  %11548 = vmatpush.bf16.msra.mxu0 %v9449
  %11549 = vmatpush.bf16.msra.mxu0 %v9444
  %11550 = vmatpush.bf16.msra.mxu0 %v9439
  %11551 = vmatpush.bf16.msra.mxu0 %v9434
  %11552 = vmatmul.bf16.gmra.mxu0 %v5553
  %v11553 = vpop.f32.mrf.mxu0
  %v11554 = vadd.f32 %v11541, %v11553
  %v11555 = vpop.f32.mrf.mxu0
  %11556 = vdwg.mxu0
  %11557 = vmatpush.bf16.msra.mxu0 %v9509
  %11558 = vmatpush.bf16.msra.mxu0 %v9504
  %11559 = vmatpush.bf16.msra.mxu0 %v9499
  %11560 = vmatpush.bf16.msra.mxu0 %v9494
  %11561 = vmatpush.bf16.msra.mxu0 %v9489
  %11562 = vmatpush.bf16.msra.mxu0 %v9484
  %11563 = vmatpush.bf16.msra.mxu0 %v9479
  %11564 = vmatpush.bf16.msra.mxu0 %v9474
  %11565 = vmatmul.bf16.gmra.mxu0 %v5554
  %v11566 = vpop.f32.mrf.mxu0
  %v11567 = vadd.f32 %v11554, %v11566
  %v11568 = vpop.f32.mrf.mxu0
  %11569 = vdwg.mxu0
  %11570 = vmatpush.bf16.msra.mxu0 %v9549
  %11571 = vmatpush.bf16.msra.mxu0 %v9544
  %11572 = vmatpush.bf16.msra.mxu0 %v9539
  %11573 = vmatpush.bf16.msra.mxu0 %v9534
  %11574 = vmatpush.bf16.msra.mxu0 %v9529
  %11575 = vmatpush.bf16.msra.mxu0 %v9524
  %11576 = vmatpush.bf16.msra.mxu0 %v9519
  %11577 = vmatpush.bf16.msra.mxu0 %v9514
  %11578 = vmatmul.bf16.gmra.mxu0 %v5555
  %v11579 = vpop.f32.mrf.mxu0
  %v11580 = vadd.f32 %v11567, %v11579
  %v11581 = vpop.f32.mrf.mxu0
  %11582 = vdwg.mxu0
  %11583 = vmatpush.bf16.msra.mxu0 %v9589
  %11584 = vmatpush.bf16.msra.mxu0 %v9584
  %11585 = vmatpush.bf16.msra.mxu0 %v9579
  %11586 = vmatpush.bf16.msra.mxu0 %v9574
  %11587 = vmatpush.bf16.msra.mxu0 %v9569
  %11588 = vmatpush.bf16.msra.mxu0 %v9564
  %11589 = vmatpush.bf16.msra.mxu0 %v9559
  %11590 = vmatpush.bf16.msra.mxu0 %v9554
  %11591 = vmatmul.bf16.gmra.mxu0 %v5556
  %v11592 = vpop.f32.mrf.mxu0
  %v11593 = vadd.f32 %v11580, %v11592
  %v11594 = vpop.f32.mrf.mxu0
  %11595 = vdwg.mxu0
  %11596 = vmatpush.bf16.msra.mxu0 0
  %11597 = vmatpush.bf16.msra.mxu0 0
  %11598 = vmatpush.bf16.msra.mxu0 %v9619
  %11599 = vmatpush.bf16.msra.mxu0 %v9614
  %11600 = vmatpush.bf16.msra.mxu0 %v9609
  %11601 = vmatpush.bf16.msra.mxu0 %v9604
  %11602 = vmatpush.bf16.msra.mxu0 %v9599
  %11603 = vmatpush.bf16.msra.mxu0 %v9594
  %11604 = vmatmul.bf16.gmra.mxu0 %v10372
  %v11605 = vpop.f32.mrf.mxu0
  %v11606 = vadd.f32 %v11593, %v11605
  %v11607 = vpop.f32.mrf.mxu0
  %11608 = vdwg.mxu0
  %v11609 = vmax.f32 %v10618, 0.0
  %v11610 = vmax.f32 %v10865, 0.0
  %v11611 = vmax.f32 %v11112, 0.0
  %v11612 = vmax.f32 %v11359, 0.0
  %v11613 = vmax.f32 %v11606, 0.0
  %v11614 = vpack.c.bf16 %v11609, %v11609
  %v11615 = vpack.c.bf16 %v11610, %v11610
  %v11616 = vpack.c.bf16 %v11611, %v11611
  %v11617 = vpack.c.bf16 %v11612, %v11612
  %v11618 = vpack.c.bf16 %v11613, %v11613
  %v11619 = vld [vmem:[%s5] sm:$0xf]
  %v11620 = vld [vmem:[%s5 + $0x4] sm:$0xf]
  %v11621 = vld [vmem:[%s5 + $0x8] sm:$0xf]
  %v11622 = vld [vmem:[%s5 + $0xc] sm:$0xf]
  %v11623 = vld [vmem:[%s5 + $0x10] sm:$0xf]
  %v11624 = vld [vmem:[%s5 + $0x14] sm:$0xf]
  %v11625 = vld [vmem:[%s5 + $0x18] sm:$0xf]
  %v11626 = vld [vmem:[%s5 + $0x1c] sm:$0xf]
  %v11627 = vld [vmem:[%s5 + $0x20] sm:$0xf]
  %v11628 = vld [vmem:[%s5 + $0x24] sm:$0xf]
  %v11629 = vld [vmem:[%s5 + $0x28] sm:$0xf]
  %v11630 = vld [vmem:[%s5 + $0x2c] sm:$0xf]
  %v11631 = vld [vmem:[%s5 + $0x30] sm:$0xf]
  %v11632 = vld [vmem:[%s5 + $0x34] sm:$0xf]
  %v11633 = vld [vmem:[%s5 + $0x38] sm:$0xf]
  %v11634 = vld [vmem:[%s5 + $0x3c] sm:$0xf]
  %v11635 = vld [vmem:[%s5 + $0x40] sm:$0xf]
  %v11636 = vld [vmem:[%s5 + $0x44] sm:$0xf]
  %v11637 = vld [vmem:[%s5 + $0x48] sm:$0xf]
  %v11638 = vld [vmem:[%s5 + $0x4c] sm:$0xf]
  %v11639 = vld [vmem:[%s5 + $0x50] sm:$0xf]
  %v11640 = vld [vmem:[%s5 + $0x54] sm:$0xf]
  %v11641 = vld [vmem:[%s5 + $0x58] sm:$0xf]
  %v11642 = vld [vmem:[%s5 + $0x5c] sm:$0xf]
  %v11643 = vld [vmem:[%s5 + $0x60] sm:$0xf]
  %v11644 = vld [vmem:[%s5 + $0x64] sm:$0xf]
  %v11645 = vld [vmem:[%s5 + $0x68] sm:$0xf]
  %v11646 = vld [vmem:[%s5 + $0x6c] sm:$0xf]
  %v11647 = vld [vmem:[%s5 + $0x70] sm:$0xf]
  %v11648 = vld [vmem:[%s5 + $0x74] sm:$0xf]
  %v11649 = vld [vmem:[%s5 + $0x78] sm:$0xf]
  %v11650 = vld [vmem:[%s5 + $0x7c] sm:$0xf]
  %v11651 = vld [vmem:[%s5 + $0x80] sm:$0xf]
  %v11652 = vld [vmem:[%s5 + $0x84] sm:$0xf]
  %v11653 = vld [vmem:[%s5 + $0x88] sm:$0xf]
  %v11654 = vld [vmem:[%s5 + $0x8c] sm:$0xf]
  %v11655 = vld [vmem:[%s5 + $0x90] sm:$0xf]
  %v11656 = vld [vmem:[%s5 + $0x94] sm:$0xf]
  %v11657 = vld [vmem:[%s5 + $0x98] sm:$0xf]
  %v11658 = vld [vmem:[%s5 + $0x9c] sm:$0xf]
  %v11659 = vld [vmem:[%s5 + $0xa0] sm:$0xf]
  %v11660 = vld [vmem:[%s5 + $0xa4] sm:$0xf]
  %v11661 = vld [vmem:[%s5 + $0xa8] sm:$0xf]
  %v11662 = vld [vmem:[%s5 + $0xac] sm:$0xf]
  %v11663 = vld [vmem:[%s5 + $0xb0] sm:$0xf]
  %v11664 = vld [vmem:[%s5 + $0xb4] sm:$0xf]
  %v11665 = vld [vmem:[%s5 + $0xb8] sm:$0xf]
  %v11666 = vld [vmem:[%s5 + $0xbc] sm:$0xf]
  %v11667 = vld [vmem:[%s5 + $0xc0] sm:$0xf]
  %v11668 = vld [vmem:[%s5 + $0xc4] sm:$0xf]
  %v11669 = vld [vmem:[%s5 + $0xc8] sm:$0xf]
  %v11670 = vld [vmem:[%s5 + $0xcc] sm:$0xf]
  %v11671 = vld [vmem:[%s5 + $0xd0] sm:$0xf]
  %v11672 = vld [vmem:[%s5 + $0xd4] sm:$0xf]
  %v11673 = vld [vmem:[%s5 + $0xd8] sm:$0xf]
  %v11674 = vld [vmem:[%s5 + $0xdc] sm:$0xf]
  %v11675 = vld [vmem:[%s5 + $0xe0] sm:$0xf]
  %v11676 = vld [vmem:[%s5 + $0xe4] sm:$0xf]
  %v11677 = vld [vmem:[%s5 + $0xe8] sm:$0xf]
  %v11678 = vld [vmem:[%s5 + $0xec] sm:$0xf]
  %v11679 = vld [vmem:[%s5 + $0xf0] sm:$0xf]
  %v11680 = vld [vmem:[%s5 + $0xf4] sm:$0xf]
  %v11681 = vld [vmem:[%s5 + $0xf8] sm:$0xf]
  %v11682 = vld [vmem:[%s5 + $0xfc] sm:$0xf]
  %v11683 = vld [vmem:[%s5 + $0x100] sm:$0xf]
  %v11684 = vld [vmem:[%s5 + $0x104] sm:$0xf]
  %v11685 = vld [vmem:[%s5 + $0x108] sm:$0xf]
  %v11686 = vld [vmem:[%s5 + $0x10c] sm:$0xf]
  %v11687 = vld [vmem:[%s5 + $0x110] sm:$0xf]
  %v11688 = vld [vmem:[%s5 + $0x114] sm:$0xf]
  %v11689 = vld [vmem:[%s5 + $0x118] sm:$0xf]
  %v11690 = vld [vmem:[%s5 + $0x11c] sm:$0xf]
  %v11691 = vld [vmem:[%s6] sm:$0x1]
  %v11693 = vperm.slane %v11691, 0
  %v11767 = vunpack.c.l.b16 %v11619
  %v11768 = vunpack.c.l.b16 %v11620
  %v11769 = vunpack.c.l.b16 %v11621
  %v11770 = vunpack.c.l.b16 %v11622
  %v11771 = vunpack.c.l.b16 %v11623
  %v11772 = vunpack.c.l.b16 %v11624
  %v11773 = vunpack.c.l.b16 %v11625
  %v11774 = vunpack.c.l.b16 %v11626
  %v11775 = vunpack.c.l.b16 %v11627
  %v11776 = vunpack.c.l.b16 %v11628
  %v11777 = vunpack.c.l.b16 %v11629
  %v11778 = vunpack.c.l.b16 %v11630
  %v11779 = vunpack.c.l.b16 %v11631
  %v11780 = vunpack.c.l.b16 %v11632
  %v11781 = vunpack.c.l.b16 %v11633
  %v11782 = vunpack.c.l.b16 %v11634
  %v11783 = vunpack.c.l.b16 %v11635
  %v11784 = vunpack.c.l.b16 %v11636
  %v11785 = vunpack.c.l.b16 %v11637
  %v11786 = vunpack.c.l.b16 %v11638
  %v11787 = vunpack.c.l.b16 %v11639
  %v11788 = vunpack.c.l.b16 %v11640
  %v11789 = vunpack.c.l.b16 %v11641
  %v11790 = vunpack.c.l.b16 %v11642
  %v11791 = vunpack.c.l.b16 %v11643
  %v11792 = vunpack.c.l.b16 %v11644
  %v11793 = vunpack.c.l.b16 %v11645
  %v11794 = vunpack.c.l.b16 %v11646
  %v11795 = vunpack.c.l.b16 %v11647
  %v11796 = vunpack.c.l.b16 %v11648
  %v11797 = vunpack.c.l.b16 %v11649
  %v11798 = vunpack.c.l.b16 %v11650
  %v11799 = vunpack.c.l.b16 %v11651
  %v11800 = vunpack.c.l.b16 %v11652
  %v11801 = vunpack.c.l.b16 %v11653
  %v11802 = vunpack.c.l.b16 %v11654
  %v11803 = vunpack.c.l.b16 %v11655
  %v11804 = vunpack.c.l.b16 %v11656
  %v11805 = vunpack.c.l.b16 %v11657
  %v11806 = vunpack.c.l.b16 %v11658
  %v11807 = vunpack.c.l.b16 %v11659
  %v11808 = vunpack.c.l.b16 %v11660
  %v11809 = vunpack.c.l.b16 %v11661
  %v11810 = vunpack.c.l.b16 %v11662
  %v11811 = vunpack.c.l.b16 %v11663
  %v11812 = vunpack.c.l.b16 %v11664
  %v11813 = vunpack.c.l.b16 %v11665
  %v11814 = vunpack.c.l.b16 %v11666
  %v11815 = vunpack.c.l.b16 %v11667
  %v11816 = vunpack.c.l.b16 %v11668
  %v11817 = vunpack.c.l.b16 %v11669
  %v11818 = vunpack.c.l.b16 %v11670
  %v11819 = vunpack.c.l.b16 %v11671
  %v11820 = vunpack.c.l.b16 %v11672
  %v11821 = vunpack.c.l.b16 %v11673
  %v11822 = vunpack.c.l.b16 %v11674
  %v11823 = vunpack.c.l.b16 %v11675
  %v11824 = vunpack.c.l.b16 %v11676
  %v11825 = vunpack.c.l.b16 %v11677
  %v11826 = vunpack.c.l.b16 %v11678
  %v11827 = vunpack.c.l.b16 %v11679
  %v11828 = vunpack.c.l.b16 %v11680
  %v11829 = vunpack.c.l.b16 %v11681
  %v11830 = vunpack.c.l.b16 %v11682
  %v11831 = vunpack.c.l.b16 %v11683
  %v11832 = vunpack.c.l.b16 %v11684
  %v11833 = vunpack.c.l.b16 %v11685
  %v11834 = vunpack.c.l.b16 %v11686
  %v11835 = vunpack.c.l.b16 %v11687
  %v11836 = vunpack.c.l.b16 %v11688
  %v11837 = vunpack.c.l.b16 %v11689
  %v11838 = vunpack.c.l.b16 %v11690
  %v11839 = vpack.c.b16 %v11768, %v11767
  %v11840 = vpack.c.b16 %v11770, %v11769
  %v11841 = vpack.c.b16 %v11772, %v11771
  %v11842 = vpack.c.b16 %v11774, %v11773
  %v11843 = vpack.c.b16 %v11776, %v11775
  %v11844 = vpack.c.b16 %v11778, %v11777
  %v11845 = vpack.c.b16 %v11780, %v11779
  %v11846 = vpack.c.b16 %v11782, %v11781
  %v11847 = vpack.c.b16 %v11784, %v11783
  %v11848 = vpack.c.b16 %v11786, %v11785
  %v11849 = vpack.c.b16 %v11788, %v11787
  %v11850 = vpack.c.b16 %v11790, %v11789
  %v11851 = vpack.c.b16 %v11792, %v11791
  %v11852 = vpack.c.b16 %v11794, %v11793
  %v11853 = vpack.c.b16 %v11796, %v11795
  %v11854 = vpack.c.b16 %v11798, %v11797
  %v11855 = vpack.c.b16 %v11800, %v11799
  %v11856 = vpack.c.b16 %v11802, %v11801
  %v11857 = vpack.c.b16 %v11804, %v11803
  %v11858 = vpack.c.b16 %v11806, %v11805
  %v11859 = vpack.c.b16 %v11808, %v11807
  %v11860 = vpack.c.b16 %v11810, %v11809
  %v11861 = vpack.c.b16 %v11812, %v11811
  %v11862 = vpack.c.b16 %v11814, %v11813
  %v11863 = vpack.c.b16 %v11816, %v11815
  %v11864 = vpack.c.b16 %v11818, %v11817
  %v11865 = vpack.c.b16 %v11820, %v11819
  %v11866 = vpack.c.b16 %v11822, %v11821
  %v11867 = vpack.c.b16 %v11824, %v11823
  %v11868 = vpack.c.b16 %v11826, %v11825
  %v11869 = vpack.c.b16 %v11828, %v11827
  %v11870 = vpack.c.b16 %v11830, %v11829
  %v11871 = vpack.c.b16 %v11832, %v11831
  %v11872 = vpack.c.b16 %v11834, %v11833
  %v11873 = vpack.c.b16 %v11836, %v11835
  %v11874 = vpack.c.b16 %v11838, %v11837
  %v11912 = vsel %vm4281, %v11618, 0
  %11914 = vmatpush.bf16.msra.mxu0 %v11846
  %11915 = vmatpush.bf16.msra.mxu0 %v11845
  %11916 = vmatpush.bf16.msra.mxu0 %v11844
  %11917 = vmatpush.bf16.msra.mxu0 %v11843
  %11918 = vmatpush.bf16.msra.mxu0 %v11842
  %11919 = vmatpush.bf16.msra.mxu0 %v11841
  %11920 = vmatpush.bf16.msra.mxu0 %v11840
  %11921 = vmatpush.bf16.msra.mxu0 %v11839
  %11922 = vmatmul.bf16.gmra.mxu0 %v11614
  %v11923 = vpop.f32.mrf.mxu0
  %v11924 = vadd.f32 %v11693, %v11923
  %v11925 = vpop.f32.mrf.mxu0
  %11926 = vdwg.mxu0
  %11927 = vmatpush.bf16.msra.mxu0 %v11854
  %11928 = vmatpush.bf16.msra.mxu0 %v11853
  %11929 = vmatpush.bf16.msra.mxu0 %v11852
  %11930 = vmatpush.bf16.msra.mxu0 %v11851
  %11931 = vmatpush.bf16.msra.mxu0 %v11850
  %11932 = vmatpush.bf16.msra.mxu0 %v11849
  %11933 = vmatpush.bf16.msra.mxu0 %v11848
  %11934 = vmatpush.bf16.msra.mxu0 %v11847
  %11935 = vmatmul.bf16.gmra.mxu0 %v11615
  %v11936 = vpop.f32.mrf.mxu0
  %v11937 = vadd.f32 %v11924, %v11936
  %v11938 = vpop.f32.mrf.mxu0
  %11939 = vdwg.mxu0
  %11940 = vmatpush.bf16.msra.mxu0 %v11862
  %11941 = vmatpush.bf16.msra.mxu0 %v11861
  %11942 = vmatpush.bf16.msra.mxu0 %v11860
  %11943 = vmatpush.bf16.msra.mxu0 %v11859
  %11944 = vmatpush.bf16.msra.mxu0 %v11858
  %11945 = vmatpush.bf16.msra.mxu0 %v11857
  %11946 = vmatpush.bf16.msra.mxu0 %v11856
  %11947 = vmatpush.bf16.msra.mxu0 %v11855
  %11948 = vmatmul.bf16.gmra.mxu0 %v11616
  %v11949 = vpop.f32.mrf.mxu0
  %v11950 = vadd.f32 %v11937, %v11949
  %v11951 = vpop.f32.mrf.mxu0
  %11952 = vdwg.mxu0
  %11953 = vmatpush.bf16.msra.mxu0 %v11870
  %11954 = vmatpush.bf16.msra.mxu0 %v11869
  %11955 = vmatpush.bf16.msra.mxu0 %v11868
  %11956 = vmatpush.bf16.msra.mxu0 %v11867
  %11957 = vmatpush.bf16.msra.mxu0 %v11866
  %11958 = vmatpush.bf16.msra.mxu0 %v11865
  %11959 = vmatpush.bf16.msra.mxu0 %v11864
  %11960 = vmatpush.bf16.msra.mxu0 %v11863
  %11961 = vmatmul.bf16.gmra.mxu0 %v11617
  %v11962 = vpop.f32.mrf.mxu0
  %v11963 = vadd.f32 %v11950, %v11962
  %v11964 = vpop.f32.mrf.mxu0
  %11965 = vdwg.mxu0
  %11966 = vmatpush.bf16.msra.mxu0 0
  %11967 = vmatpush.bf16.msra.mxu0 0
  %11968 = vmatpush.bf16.msra.mxu0 0
  %11969 = vmatpush.bf16.msra.mxu0 0
  %11970 = vmatpush.bf16.msra.mxu0 %v11874
  %11971 = vmatpush.bf16.msra.mxu0 %v11873
  %11972 = vmatpush.bf16.msra.mxu0 %v11872
  %11973 = vmatpush.bf16.msra.mxu0 %v11871
  %11974 = vmatmul.bf16.gmra.mxu0 %v11912
  %v11975 = vpop.f32.mrf.mxu0
  %v11976 = vadd.f32 %v11963, %v11975
  %v11977 = vpop.f32.mrf.mxu0
  %11978 = vdwg.mxu0
  %v11979 = vmax.f32 %v11976, 0.0
  %v11980 = vpack.c.bf16 %v11979, %v11979
  %v11981 = vld [vmem:[%s7] sm:$0xf]
  %v11982 = vld [vmem:[%s7 + $0x4] sm:$0xf]
  %v11983 = vld [vmem:[%s7 + $0x8] sm:$0xf]
  %v11984 = vld [vmem:[%s7 + $0xc] sm:$0xf]
  %v11985 = vld [vmem:[%s7 + $0x10] sm:$0xf]
  %v11986 = vld [vmem:[%s7 + $0x14] sm:$0xf]
  %v11987 = vld [vmem:[%s7 + $0x18] sm:$0xf]
  %v11988 = vld [vmem:[%s7 + $0x1c] sm:$0xf]
  %v11989 = vld [vmem:[%s7 + $0x20] sm:$0xf]
  %v11990 = vld [vmem:[%s7 + $0x24] sm:$0xf]
  %v11991 = vld [vmem:[%s7 + $0x28] sm:$0xf]
  %v11992 = vld [vmem:[%s7 + $0x2c] sm:$0xf]
  %v11993 = vld [vmem:[%s7 + $0x30] sm:$0xf]
  %v11994 = vld [vmem:[%s7 + $0x34] sm:$0xf]
  %v11995 = vld [vmem:[%s7 + $0x38] sm:$0xf]
  %v11996 = vld [vmem:[%s8] sm:$0x1]
  %v11998 = vperm.slane %v11996, 0
  %v12015 = vunpack.c.l.b16 %v11981
  %v12016 = vunpack.c.l.b16 %v11982
  %v12017 = vunpack.c.l.b16 %v11983
  %v12018 = vunpack.c.l.b16 %v11984
  %v12019 = vunpack.c.l.b16 %v11985
  %v12020 = vunpack.c.l.b16 %v11986
  %v12021 = vunpack.c.l.b16 %v11987
  %v12022 = vunpack.c.l.b16 %v11988
  %v12023 = vunpack.c.l.b16 %v11989
  %v12024 = vunpack.c.l.b16 %v11990
  %v12025 = vunpack.c.l.b16 %v11991
  %v12026 = vunpack.c.l.b16 %v11992
  %v12027 = vunpack.c.l.b16 %v11993
  %v12028 = vunpack.c.l.b16 %v11994
  %v12029 = vunpack.c.l.b16 %v11995
  %v12030 = vpack.c.b16 %v12016, %v12015
  %v12031 = vpack.c.b16 %v12018, %v12017
  %v12032 = vpack.c.b16 %v12020, %v12019
  %v12033 = vpack.c.b16 %v12022, %v12021
  %v12034 = vpack.c.b16 %v12024, %v12023
  %v12035 = vpack.c.b16 %v12026, %v12025
  %v12036 = vpack.c.b16 %v12028, %v12027
  %v12037 = vpack.c.b16 %v12029, %v12029
  %vm12045 = vcmask 982016
  %v12047 = vsel %vm12045, %v11980, 0
  %vm12049 = vcmask 1043456
  %v12051 = vsel %vm12049, %v12037, 0
  %12053 = vmatpush.bf16.msra.mxu0 %v12051
  %12054 = vmatpush.bf16.msra.mxu0 %v12036
  %12055 = vmatpush.bf16.msra.mxu0 %v12035
  %12056 = vmatpush.bf16.msra.mxu0 %v12034
  %12057 = vmatpush.bf16.msra.mxu0 %v12033
  %12058 = vmatpush.bf16.msra.mxu0 %v12032
  %12059 = vmatpush.bf16.msra.mxu0 %v12031
  %12060 = vmatpush.bf16.msra.mxu0 %v12030
  %12061 = vmatmul.bf16.gmra.mxu0 %v12047
  %v12062 = vpop.f32.mrf.mxu0
  %v12063 = vadd.f32 %v11998, %v12062
  %v12064 = vpop.f32.mrf.mxu0
  %12065 = vdwg.mxu0
  %v12066 = vmax.f32 %v12063, 0.0
  %v12067 = vpack.c.bf16 %v12066, %v12066
  %v12068 = vld [vmem:[%s9] sm:$0xf]
  %v12069 = vld [vmem:[%s9 + $0x4] sm:$0xf]
  %v12070 = vld [vmem:[%s9 + $0x8] sm:$0xf]
  %v12071 = vld [vmem:[%s9 + $0xc] sm:$0xf]
  %v12072 = vld [vmem:[%s9 + $0x10] sm:$0xf]
  %v12073 = vld [vmem:[%s9 + $0x14] sm:$0xf]
  %v12074 = vld [vmem:[%s9 + $0x18] sm:$0xf]
  %v12075 = vld [vmem:[%s9 + $0x1c] sm:$0xf]
  %v12076 = vld [vmem:[%s9 + $0x20] sm:$0xf]
  %v12077 = vld [vmem:[%s9 + $0x24] sm:$0xf]
  %v12078 = vld [vmem:[%s9 + $0x28] sm:$0x3]
  %v12079 = vld [vmem:[#allocation2] sm:$0x1]
  %v12081 = vperm.slane %v12079, 0
  %v12094 = vunpack.c.l.b16 %v12068
  %v12095 = vunpack.c.l.b16 %v12069
  %v12096 = vunpack.c.l.b16 %v12070
  %v12097 = vunpack.c.l.b16 %v12071
  %v12098 = vunpack.c.l.b16 %v12072
  %v12099 = vunpack.c.l.b16 %v12073
  %v12100 = vunpack.c.l.b16 %v12074
  %v12101 = vunpack.c.l.b16 %v12075
  %v12102 = vunpack.c.l.b16 %v12076
  %v12103 = vunpack.c.l.b16 %v12077
  %v12104 = vunpack.c.l.b16 %v12078
  %v12105 = vpack.c.b16 %v12095, %v12094
  %v12106 = vpack.c.b16 %v12097, %v12096
  %v12107 = vpack.c.b16 %v12099, %v12098
  %v12108 = vpack.c.b16 %v12101, %v12100
  %v12109 = vpack.c.b16 %v12103, %v12102
  %v12110 = vpack.c.b16 %v12104, %v12104
  %vm12116 = vcmask 687104
  %v12118 = vsel %vm12116, %v12067, 0
  %vm12120 = vcmask 1041408
  %v12122 = vsel %vm12120, %v12110, 0
  %12124 = vmatpush.bf16.msra.mxu0 0
  %12125 = vmatpush.bf16.msra.mxu0 0
  %12126 = vmatpush.bf16.msra.mxu0 %v12122
  %12127 = vmatpush.bf16.msra.mxu0 %v12109
  %12128 = vmatpush.bf16.msra.mxu0 %v12108
  %12129 = vmatpush.bf16.msra.mxu0 %v12107
  %12130 = vmatpush.bf16.msra.mxu0 %v12106
  %12131 = vmatpush.bf16.msra.mxu0 %v12105
  %12132 = vmatmul.bf16.gmra.mxu0 %v12118
  %v12133 = vpop.f32.mrf.mxu0
  %v12134 = vadd.f32 %v12081, %v12133
  %v12135 = vpop.f32.mrf.mxu0
  %12136 = vdwg.mxu0
  %v12137 = vmul.f32 %v12134, 0.5
  %v12138 = vtanh.pop %v12137
  %v12139 = vadd.f32 %v12138, 1.0
  %v12140 = vmul.f32 %v12139, 0.5
  %vm12141 = vcmask 7168
  %12142 = vst.msk [vmem:[%s11] sm:$0xff] %vm12141, %v12140
  // Predicated region
  $region46: #{blink_forward.1} parent=0 // pred_check
    _
  $region47: #{blink_forward.1} parent=0 // pred_check_branch
    %12144 = sbr.rel (0) target = $region49
  $region48: #{blink_forward.1} parent=0 // pred_region
    _
  $region49: #{blink_forward.1} parent=0 // pred_fallthru
    _
  // Predicated region
  $region50: #{blink_forward.1} parent=0 // pred_check
    _
  $region51: #{blink_forward.1} parent=0 // pred_check_branch
    %12146 = sbr.rel (0) target = $region53
  $region52: #{blink_forward.1} parent=0 // pred_region
    _
  $region53: #{blink_forward.1} parent=0 // pred_fallthru
    _

</llo_original>
